<compile_context>
chip_gen: v5e
topology: v5e:2x2
jax: 0.10.0
libtpu: 0.0.40
codegen_flags: <defaults>
</compile_context>

<pallas_src>
import jax
import jax.numpy as jnp
from jax.experimental import pallas as pl
from jax.experimental.pallas import tpu as pltpu


# --------------------------- fused forward kernel --------------------------- #

def _lstm_video_kernel(x_ref, wx0_ref, bx0_ref, whh0_ref,
                       wih1_ref, whh1_ref, b1_ref, wfc_ref, bfc_ref,
                       o_ref, g0_ref):
    # x_ref:   (B, T, C*H*W) f32   raw video, trailing dims pre-merged
    # wx0_ref: (C*H*W, 4H)   bf16  folded GAP+projection+layer-0 input weights
    # bx0_ref: (1, 4H)       f32   folded bias (b_proj @ w_ih0 + b_ih0 + b_hh0)
    # whh0/wih1/whh1: (H, 4H) bf16 ; b1: (1, 4H) f32
    # wfc_ref: (H, Cpad) bf16 ; bfc_ref: (1, Cpad) f32
    # o_ref:   (B, Cpad) f32
    # g0_ref:  (B, T, 4H) f32 VMEM scratch (hoisted layer-0 input gates)
    B, T, _ = x_ref.shape
    Hd = whh0_ref.shape[0]

    # ---- Hoisted, folded encoder + layer-0 input projection (all t) ----
    # One (T, CHW) @ (CHW, 4H) MXU matmul per batch element, written to the
    # scratch with an aligned leading-axis store.
    bx0 = bx0_ref[...]
    wx0 = wx0_ref[...]
    for b in range(B):                                   # static, B is tiny
        xb = x_ref[b].astype(jnp.bfloat16)               # (T, CHW)
        g0_ref[b] = (jnp.dot(xb, wx0, preferred_element_type=jnp.float32)
                     + bx0)

    whh0 = whh0_ref[...]
    wih1 = wih1_ref[...]
    whh1 = whh1_ref[...]
    b1 = b1_ref[...]

    def gates_to_hc(gates, c_prev):
        # Hd is a multiple of 128 -> every gate slice is lane-aligned.
        i = jax.nn.sigmoid(gates[:, 0 * Hd:1 * Hd])
        f = jax.nn.sigmoid(gates[:, 1 * Hd:2 * Hd])
        g = jnp.tanh(gates[:, 2 * Hd:3 * Hd])
        o = jax.nn.sigmoid(gates[:, 3 * Hd:4 * Hd])
        c_new = f * c_prev + i * g
        h_new = o * jnp.tanh(c_new)
        return h_new, c_new

    z = jnp.zeros((B, Hd), jnp.float32)
    h0, c0, h1, c1 = z, z, z, z

    # Serial recurrence; T is small and static -> full unroll, static indices.
    for t in range(T):
        # layer 0: precomputed input gates + recurrent h-path matmul
        g_l0 = g0_ref[:, t, :] + jnp.dot(
            h0.astype(jnp.bfloat16), whh0, preferred_element_type=jnp.float32)
        h0, c0 = gates_to_hc(g_l0, c0)
        # layer 1: two dots (no concat on the critical path)
        g_l1 = (jnp.dot(h0.astype(jnp.bfloat16), wih1,
                        preferred_element_type=jnp.float32)
                + jnp.dot(h1.astype(jnp.bfloat16), whh1,
                          preferred_element_type=jnp.float32)
                + b1)
        h1, c1 = gates_to_hc(g_l1, c1)

    # logits = hn[-1] @ W_fc + b_fc ; padded to 128 lanes -> lane-dense store
    logits = jnp.dot(h1.astype(jnp.bfloat16), wfc_ref[...],
                     preferred_element_type=jnp.float32) + bfc_ref[...]
    o_ref[...] = logits


# ------------------------------ wrappers ------------------------------------ #

def prepare_params(raw, spatial_hw):
    """One-time (outside jit) parameter folding / padding / casting."""
    Hd = raw["w_hh0"].shape[0]
    nC = raw["w_fc"].shape[1]
    nC_pad = ((nC + 127) // 128) * 128

    # Fold GAP (mean over H*W) + linear projection + layer-0 input projection
    # into a single (C*HW, 4H) weight and a single (1, 4H) bias.
    w_pi = (raw["w_proj"] @ raw["w_ih0"]) / jnp.float32(spatial_hw)  # (C, 4H)
    w_x0 = jnp.repeat(w_pi, spatial_hw, axis=0)                      # (C*HW, 4H)
    b_x0 = raw["b_proj"].reshape(1, -1) @ raw["w_ih0"] + raw["b0"]   # (1, 4H)

    # Lane-pad the classifier so the kernel's final store is full-width.
    w_fc_p = jnp.zeros((Hd, nC_pad), jnp.float32).at[:, :nC].set(raw["w_fc"])
    b_fc_p = jnp.zeros((1, nC_pad), jnp.float32).at[:, :nC].set(
        raw["b_fc"].reshape(1, nC))

    return {
        "w_x0": w_x0.astype(jnp.bfloat16),
        "b_x0": b_x0.astype(jnp.float32),
        "w_hh0": raw["w_hh0"].astype(jnp.bfloat16),
        "w_ih1": raw["w_ih1"].astype(jnp.bfloat16),
        "w_hh1": raw["w_hh1"].astype(jnp.bfloat16),
        "b1": raw["b1"].astype(jnp.float32),
        "w_fc": w_fc_p.astype(jnp.bfloat16),
        "b_fc": b_fc_p,
    }


def lstm_video_classifier(video, kp, num_classes):
    """video: (B, T, C, H, W) f32 -> logits (B, num_classes) f32."""
    B, T, C, H, W = video.shape
    Hd = kp["w_hh0"].shape[0]
    nC_pad = kp["w_fc"].shape[1]

    x = video.reshape(B, T, C * H * W)          # free merge of trailing dims

    logits_p = pl.pallas_call(
        _lstm_video_kernel,
        out_shape=jax.ShapeDtypeStruct((B, nC_pad), jnp.float32),
        scratch_shapes=[pltpu.VMEM((B, T, 4 * Hd), jnp.float32)],
    )(x, kp["w_x0"], kp["b_x0"], kp["w_hh0"],
      kp["w_ih1"], kp["w_hh1"], kp["b1"], kp["w_fc"], kp["b_fc"])

    return logits_p[:, :num_classes]


# --------------------------------- main -------------------------------------- #

if __name__ == "__main__":
    B, T, C, H, W = 2, 8, 4, 16, 16
    # hidden_dim / projection_dim chosen as 128 so gate slices, h/c state and
    # the hoisted gate scratch are all lane-aligned (still "small").
    proj_dim, hidden_dim, num_classes = 128, 128, 10

    def uinit(k, shape, fan):
        bound = 1.0 / jnp.sqrt(jnp.float32(fan))
        return jax.random.uniform(k, shape, jnp.float32, -bound, bound)

    ks = jax.random.split(jax.random.PRNGKey(0), 13)
    raw_params = {
        # frame encoder stand-in (GAP + linear projection)
        "w_proj": uinit(ks[0], (C, proj_dim), C),
        "b_proj": uinit(ks[1], (proj_dim,), C),
        # LSTM layer 0 (biases combined: b_ih + b_hh); mats are (in, out)
        "w_ih0": uinit(ks[2], (proj_dim, 4 * hidden_dim), hidden_dim),
        "w_hh0": uinit(ks[3], (hidden_dim, 4 * hidden_dim), hidden_dim),
        "b0": uinit(ks[4], (1, 4 * hidden_dim), hidden_dim)
              + uinit(ks[5], (1, 4 * hidden_dim), hidden_dim),
        # LSTM layer 1
        "w_ih1": uinit(ks[6], (hidden_dim, 4 * hidden_dim), hidden_dim),
        "w_hh1": uinit(ks[7], (hidden_dim, 4 * hidden_dim), hidden_dim),
        "b1": uinit(ks[8], (1, 4 * hidden_dim), hidden_dim)
              + uinit(ks[9], (1, 4 * hidden_dim), hidden_dim),
        # final classifier
        "w_fc": uinit(ks[10], (hidden_dim, num_classes), hidden_dim),
        "b_fc": uinit(ks[11], (1, num_classes), hidden_dim),
    }

    # One-time parameter preparation (folding / padding / bf16) outside jit.
    kparams = prepare_params(raw_params, H * W)

    video = jax.random.normal(ks[12], (B, T, C, H, W), jnp.float32)

    fwd = jax.jit(lstm_video_classifier, static_argnums=2)
    logits = fwd(video, kparams, num_classes)
    jax.block_until_ready(logits)

    assert logits.shape == (B, num_classes), logits.shape
    assert logits.dtype == jnp.float32
    assert bool(jnp.all(jnp.isfinite(logits)))
    print("KERNEL_OK")
</pallas_src>

<mosaic_0001>
module attributes {stable_mosaic.version = 11 : i64} {
  func.func @_lstm_video_kernel(%arg0: memref<2x8x1024xf32, #tpu.memory_space<vmem>>, %arg1: memref<1024x512xbf16, #tpu.memory_space<vmem>>, %arg2: memref<1x512xf32, #tpu.memory_space<vmem>>, %arg3: memref<128x512xbf16, #tpu.memory_space<vmem>>, %arg4: memref<128x512xbf16, #tpu.memory_space<vmem>>, %arg5: memref<128x512xbf16, #tpu.memory_space<vmem>>, %arg6: memref<1x512xf32, #tpu.memory_space<vmem>>, %arg7: memref<128x128xbf16, #tpu.memory_space<vmem>>, %arg8: memref<1x128xf32, #tpu.memory_space<vmem>>, %arg9: memref<2x128xf32, #tpu.memory_space<vmem>>, %arg10: memref<2x8x512xf32, #tpu.memory_space<vmem>>) attributes {dimension_semantics = [], scalar_prefetch = 0 : i64, scratch_operands = 1 : i64, tpu.core_type = #tpu.core_type<tc>} {
    %c0 = arith.constant 0 : index
    %c0_0 = arith.constant 0 : index
    %0 = vector.load %arg2[%c0, %c0_0] : memref<1x512xf32, #tpu.memory_space<vmem>>, vector<1x512xf32>
    %c0_1 = arith.constant 0 : index
    %c0_2 = arith.constant 0 : index
    %1 = vector.load %arg1[%c0_1, %c0_2] : memref<1024x512xbf16, #tpu.memory_space<vmem>>, vector<1024x512xbf16>
    %c0_3 = arith.constant 0 : index
    %c0_4 = arith.constant 0 : index
    %c0_5 = arith.constant 0 : index
    %2 = vector.load %arg0[%c0_3, %c0_4, %c0_5] : memref<2x8x1024xf32, #tpu.memory_space<vmem>>, vector<1x8x1024xf32>
    %3 = vector.shape_cast %2 : vector<1x8x1024xf32> to vector<8x1024xf32>
    %4 = arith.truncf %3 : vector<8x1024xf32> to vector<8x1024xbf16>
    %cst = arith.constant dense<0.000000e+00> : vector<8x512xf32>
    %5 = tpu.matmul %4, %1, %cst {dimension_numbers = #tpu.dot_dimension_numbers<[1], [0], [0], [1], [0, 0, 1, 1], [], []>} : vector<8x1024xbf16>, vector<1024x512xbf16>, vector<8x512xf32> -> vector<8x512xf32>
    %6 = vector.broadcast %0 : vector<1x512xf32> to vector<8x512xf32>
    %7 = arith.addf %5, %6 : vector<8x512xf32>
    %c0_6 = arith.constant 0 : index
    %c0_7 = arith.constant 0 : index
    %c0_8 = arith.constant 0 : index
    %8 = vector.load %arg10[%c0_6, %c0_7, %c0_8] : memref<2x8x512xf32, #tpu.memory_space<vmem>>, vector<1x8x512xf32>
    %9 = vector.shape_cast %8 : vector<1x8x512xf32> to vector<8x512xf32>
    %10 = vector.shape_cast %7 : vector<8x512xf32> to vector<1x8x512xf32>
    tpu.vector_store %arg10[%c0_6, %c0_7, %c0_8], %10 {strides = array<i32>} : memref<2x8x512xf32, #tpu.memory_space<vmem>>, vector<1x8x512xf32>,
    %c1 = arith.constant 1 : index
    %c0_9 = arith.constant 0 : index
    %c0_10 = arith.constant 0 : index
    %11 = vector.load %arg0[%c1, %c0_9, %c0_10] : memref<2x8x1024xf32, #tpu.memory_space<vmem>>, vector<1x8x1024xf32>
    %12 = vector.shape_cast %11 : vector<1x8x1024xf32> to vector<8x1024xf32>
    %13 = arith.truncf %12 : vector<8x1024xf32> to vector<8x1024xbf16>
    %cst_11 = arith.constant dense<0.000000e+00> : vector<8x512xf32>
    %14 = tpu.matmul %13, %1, %cst_11 {dimension_numbers = #tpu.dot_dimension_numbers<[1], [0], [0], [1], [0, 0, 1, 1], [], []>} : vector<8x1024xbf16>, vector<1024x512xbf16>, vector<8x512xf32> -> vector<8x512xf32>
    %15 = vector.broadcast %0 : vector<1x512xf32> to vector<8x512xf32>
    %16 = arith.addf %14, %15 : vector<8x512xf32>
    %c1_12 = arith.constant 1 : index
    %c0_13 = arith.constant 0 : index
    %c0_14 = arith.constant 0 : index
    %17 = vector.load %arg10[%c1_12, %c0_13, %c0_14] : memref<2x8x512xf32, #tpu.memory_space<vmem>>, vector<1x8x512xf32>
    %18 = vector.shape_cast %17 : vector<1x8x512xf32> to vector<8x512xf32>
    %19 = vector.shape_cast %16 : vector<8x512xf32> to vector<1x8x512xf32>
    tpu.vector_store %arg10[%c1_12, %c0_13, %c0_14], %19 {strides = array<i32>} : memref<2x8x512xf32, #tpu.memory_space<vmem>>, vector<1x8x512xf32>,
    %c0_15 = arith.constant 0 : index
    %c0_16 = arith.constant 0 : index
    %20 = vector.load %arg3[%c0_15, %c0_16] : memref<128x512xbf16, #tpu.memory_space<vmem>>, vector<128x512xbf16>
    %c0_17 = arith.constant 0 : index
    %c0_18 = arith.constant 0 : index
    %21 = vector.load %arg4[%c0_17, %c0_18] : memref<128x512xbf16, #tpu.memory_space<vmem>>, vector<128x512xbf16>
    %c0_19 = arith.constant 0 : index
    %c0_20 = arith.constant 0 : index
    %22 = vector.load %arg5[%c0_19, %c0_20] : memref<128x512xbf16, #tpu.memory_space<vmem>>, vector<128x512xbf16>
    %c0_21 = arith.constant 0 : index
    %c0_22 = arith.constant 0 : index
    %23 = vector.load %arg6[%c0_21, %c0_22] : memref<1x512xf32, #tpu.memory_space<vmem>>, vector<1x512xf32>
    %cst_23 = arith.constant 0.000000e+00 : f32
    %24 = vector.broadcast %cst_23 : f32 to vector<2x128xf32>
    %c0_24 = arith.constant 0 : index
    %c0_25 = arith.constant 0 : index
    %c0_26 = arith.constant 0 : index
    %25 = vector.load %arg10[%c0_24, %c0_25, %c0_26] : memref<2x8x512xf32, #tpu.memory_space<vmem>>, vector<2x1x512xf32>
    %26 = vector.shape_cast %25 : vector<2x1x512xf32> to vector<2x512xf32>
    %27 = arith.truncf %24 : vector<2x128xf32> to vector<2x128xbf16>
    %cst_27 = arith.constant dense<0.000000e+00> : vector<2x512xf32>
    %28 = tpu.matmul %27, %20, %cst_27 {dimension_numbers = #tpu.dot_dimension_numbers<[1], [0], [0], [1], [0, 0, 1, 1], [], []>} : vector<2x128xbf16>, vector<128x512xbf16>, vector<2x512xf32> -> vector<2x512xf32>
    %29 = arith.addf %26, %28 : vector<2x512xf32>
    %30 = vector.extract_strided_slice %29 {offsets = [0, 0], sizes = [2, 128], strides = [1, 1]} : vector<2x512xf32> to vector<2x128xf32>
    %31 = arith.negf %30 : vector<2x128xf32>
    %32 = math.exp %31 : vector<2x128xf32>
    %cst_28 = arith.constant 1.000000e+00 : f32
    %33 = vector.broadcast %cst_28 : f32 to vector<2x128xf32>
    %34 = arith.addf %33, %32 : vector<2x128xf32>
    %35 = arith.divf %33, %34 : vector<2x128xf32>
    %36 = vector.extract_strided_slice %29 {offsets = [0, 128], sizes = [2, 128], strides = [1, 1]} : vector<2x512xf32> to vector<2x128xf32>
    %37 = arith.negf %36 : vector<2x128xf32>
    %38 = math.exp %37 : vector<2x128xf32>
    %cst_29 = arith.constant 1.000000e+00 : f32
    %39 = vector.broadcast %cst_29 : f32 to vector<2x128xf32>
    %40 = arith.addf %39, %38 : vector<2x128xf32>
    %41 = arith.divf %39, %40 : vector<2x128xf32>
    %42 = vector.extract_strided_slice %29 {offsets = [0, 256], sizes = [2, 128], strides = [1, 1]} : vector<2x512xf32> to vector<2x128xf32>
    %43 = math.tanh %42 : vector<2x128xf32>
    %44 = vector.extract_strided_slice %29 {offsets = [0, 384], sizes = [2, 128], strides = [1, 1]} : vector<2x512xf32> to vector<2x128xf32>
    %45 = arith.negf %44 : vector<2x128xf32>
    %46 = math.exp %45 : vector<2x128xf32>
    %cst_30 = arith.constant 1.000000e+00 : f32
    %47 = vector.broadcast %cst_30 : f32 to vector<2x128xf32>
    %48 = arith.addf %47, %46 : vector<2x128xf32>
    %49 = arith.divf %47, %48 : vector<2x128xf32>
    %50 = arith.mulf %41, %24 : vector<2x128xf32>
    %51 = arith.mulf %35, %43 : vector<2x128xf32>
    %52 = arith.addf %50, %51 : vector<2x128xf32>
    %53 = math.tanh %52 : vector<2x128xf32>
    %54 = arith.mulf %49, %53 : vector<2x128xf32>
    %55 = arith.truncf %54 : vector<2x128xf32> to vector<2x128xbf16>
    %cst_31 = arith.constant dense<0.000000e+00> : vector<2x512xf32>
    %56 = tpu.matmul %55, %21, %cst_31 {dimension_numbers = #tpu.dot_dimension_numbers<[1], [0], [0], [1], [0, 0, 1, 1], [], []>} : vector<2x128xbf16>, vector<128x512xbf16>, vector<2x512xf32> -> vector<2x512xf32>
    %57 = arith.truncf %24 : vector<2x128xf32> to vector<2x128xbf16>
    %cst_32 = arith.constant dense<0.000000e+00> : vector<2x512xf32>
    %58 = tpu.matmul %57, %22, %cst_32 {dimension_numbers = #tpu.dot_dimension_numbers<[1], [0], [0], [1], [0, 0, 1, 1], [], []>} : vector<2x128xbf16>, vector<128x512xbf16>, vector<2x512xf32> -> vector<2x512xf32>
    %59 = arith.addf %56, %58 : vector<2x512xf32>
    %60 = vector.broadcast %23 : vector<1x512xf32> to vector<2x512xf32>
    %61 = arith.addf %59, %60 : vector<2x512xf32>
    %62 = vector.extract_strided_slice %61 {offsets = [0, 0], sizes = [2, 128], strides = [1, 1]} : vector<2x512xf32> to vector<2x128xf32>
    %63 = arith.negf %62 : vector<2x128xf32>
    %64 = math.exp %63 : vector<2x128xf32>
    %cst_33 = arith.constant 1.000000e+00 : f32
    %65 = vector.broadcast %cst_33 : f32 to vector<2x128xf32>
    %66 = arith.addf %65, %64 : vector<2x128xf32>
    %67 = arith.divf %65, %66 : vector<2x128xf32>
    %68 = vector.extract_strided_slice %61 {offsets = [0, 128], sizes = [2, 128], strides = [1, 1]} : vector<2x512xf32> to vector<2x128xf32>
    %69 = arith.negf %68 : vector<2x128xf32>
    %70 = math.exp %69 : vector<2x128xf32>
    %cst_34 = arith.constant 1.000000e+00 : f32
    %71 = vector.broadcast %cst_34 : f32 to vector<2x128xf32>
    %72 = arith.addf %71, %70 : vector<2x128xf32>
    %73 = arith.divf %71, %72 : vector<2x128xf32>
    %74 = vector.extract_strided_slice %61 {offsets = [0, 256], sizes = [2, 128], strides = [1, 1]} : vector<2x512xf32> to vector<2x128xf32>
    %75 = math.tanh %74 : vector<2x128xf32>
    %76 = vector.extract_strided_slice %61 {offsets = [0, 384], sizes = [2, 128], strides = [1, 1]} : vector<2x512xf32> to vector<2x128xf32>
    %77 = arith.negf %76 : vector<2x128xf32>
    %78 = math.exp %77 : vector<2x128xf32>
    %cst_35 = arith.constant 1.000000e+00 : f32
    %79 = vector.broadcast %cst_35 : f32 to vector<2x128xf32>
    %80 = arith.addf %79, %78 : vector<2x128xf32>
    %81 = arith.divf %79, %80 : vector<2x128xf32>
    %82 = arith.mulf %73, %24 : vector<2x128xf32>
    %83 = arith.mulf %67, %75 : vector<2x128xf32>
    %84 = arith.addf %82, %83 : vector<2x128xf32>
    %85 = math.tanh %84 : vector<2x128xf32>
    %86 = arith.mulf %81, %85 : vector<2x128xf32>
    %c0_36 = arith.constant 0 : index
    %c1_37 = arith.constant 1 : index
    %c0_38 = arith.constant 0 : index
    %87 = vector.load %arg10[%c0_36, %c1_37, %c0_38] : memref<2x8x512xf32, #tpu.memory_space<vmem>>, vector<2x1x512xf32>
    %88 = vector.shape_cast %87 : vector<2x1x512xf32> to vector<2x512xf32>
    %89 = arith.truncf %54 : vector<2x128xf32> to vector<2x128xbf16>
    %cst_39 = arith.constant dense<0.000000e+00> : vector<2x512xf32>
    %90 = tpu.matmul %89, %20, %cst_39 {dimension_numbers = #tpu.dot_dimension_numbers<[1], [0], [0], [1], [0, 0, 1, 1], [], []>} : vector<2x128xbf16>, vector<128x512xbf16>, vector<2x512xf32> -> vector<2x512xf32>
    %91 = arith.addf %88, %90 : vector<2x512xf32>
    %92 = vector.extract_strided_slice %91 {offsets = [0, 0], sizes = [2, 128], strides = [1, 1]} : vector<2x512xf32> to vector<2x128xf32>
    %93 = arith.negf %92 : vector<2x128xf32>
    %94 = math.exp %93 : vector<2x128xf32>
    %cst_40 = arith.constant 1.000000e+00 : f32
    %95 = vector.broadcast %cst_40 : f32 to vector<2x128xf32>
    %96 = arith.addf %95, %94 : vector<2x128xf32>
    %97 = arith.divf %95, %96 : vector<2x128xf32>
    %98 = vector.extract_strided_slice %91 {offsets = [0, 128], sizes = [2, 128], strides = [1, 1]} : vector<2x512xf32> to vector<2x128xf32>
    %99 = arith.negf %98 : vector<2x128xf32>
    %100 = math.exp %99 : vector<2x128xf32>
    %cst_41 = arith.constant 1.000000e+00 : f32
    %101 = vector.broadcast %cst_41 : f32 to vector<2x128xf32>
    %102 = arith.addf %101, %100 : vector<2x128xf32>
    %103 = arith.divf %101, %102 : vector<2x128xf32>
    %104 = vector.extract_strided_slice %91 {offsets = [0, 256], sizes = [2, 128], strides = [1, 1]} : vector<2x512xf32> to vector<2x128xf32>
    %105 = math.tanh %104 : vector<2x128xf32>
    %106 = vector.extract_strided_slice %91 {offsets = [0, 384], sizes = [2, 128], strides = [1, 1]} : vector<2x512xf32> to vector<2x128xf32>
    %107 = arith.negf %106 : vector<2x128xf32>
    %108 = math.exp %107 : vector<2x128xf32>
    %cst_42 = arith.constant 1.000000e+00 : f32
    %109 = vector.broadcast %cst_42 : f32 to vector<2x128xf32>
    %110 = arith.addf %109, %108 : vector<2x128xf32>
    %111 = arith.divf %109, %110 : vector<2x128xf32>
    %112 = arith.mulf %103, %52 : vector<2x128xf32>
    %113 = arith.mulf %97, %105 : vector<2x128xf32>
    %114 = arith.addf %112, %113 : vector<2x128xf32>
    %115 = math.tanh %114 : vector<2x128xf32>
    %116 = arith.mulf %111, %115 : vector<2x128xf32>
    %117 = arith.truncf %116 : vector<2x128xf32> to vector<2x128xbf16>
    %cst_43 = arith.constant dense<0.000000e+00> : vector<2x512xf32>
    %118 = tpu.matmul %117, %21, %cst_43 {dimension_numbers = #tpu.dot_dimension_numbers<[1], [0], [0], [1], [0, 0, 1, 1], [], []>} : vector<2x128xbf16>, vector<128x512xbf16>, vector<2x512xf32> -> vector<2x512xf32>
    %119 = arith.truncf %86 : vector<2x128xf32> to vector<2x128xbf16>
    %cst_44 = arith.constant dense<0.000000e+00> : vector<2x512xf32>
    %120 = tpu.matmul %119, %22, %cst_44 {dimension_numbers = #tpu.dot_dimension_numbers<[1], [0], [0], [1], [0, 0, 1, 1], [], []>} : vector<2x128xbf16>, vector<128x512xbf16>, vector<2x512xf32> -> vector<2x512xf32>
    %121 = arith.addf %118, %120 : vector<2x512xf32>
    %122 = vector.broadcast %23 : vector<1x512xf32> to vector<2x512xf32>
    %123 = arith.addf %121, %122 : vector<2x512xf32>
    %124 = vector.extract_strided_slice %123 {offsets = [0, 0], sizes = [2, 128], strides = [1, 1]} : vector<2x512xf32> to vector<2x128xf32>
    %125 = arith.negf %124 : vector<2x128xf32>
    %126 = math.exp %125 : vector<2x128xf32>
    %cst_45 = arith.constant 1.000000e+00 : f32
    %127 = vector.broadcast %cst_45 : f32 to vector<2x128xf32>
    %128 = arith.addf %127, %126 : vector<2x128xf32>
    %129 = arith.divf %127, %128 : vector<2x128xf32>
    %130 = vector.extract_strided_slice %123 {offsets = [0, 128], sizes = [2, 128], strides = [1, 1]} : vector<2x512xf32> to vector<2x128xf32>
    %131 = arith.negf %130 : vector<2x128xf32>
    %132 = math.exp %131 : vector<2x128xf32>
    %cst_46 = arith.constant 1.000000e+00 : f32
    %133 = vector.broadcast %cst_46 : f32 to vector<2x128xf32>
    %134 = arith.addf %133, %132 : vector<2x128xf32>
    %135 = arith.divf %133, %134 : vector<2x128xf32>
    %136 = vector.extract_strided_slice %123 {offsets = [0, 256], sizes = [2, 128], strides = [1, 1]} : vector<2x512xf32> to vector<2x128xf32>
    %137 = math.tanh %136 : vector<2x128xf32>
    %138 = vector.extract_strided_slice %123 {offsets = [0, 384], sizes = [2, 128], strides = [1, 1]} : vector<2x512xf32> to vector<2x128xf32>
    %139 = arith.negf %138 : vector<2x128xf32>
    %140 = math.exp %139 : vector<2x128xf32>
    %cst_47 = arith.constant 1.000000e+00 : f32
    %141 = vector.broadcast %cst_47 : f32 to vector<2x128xf32>
    %142 = arith.addf %141, %140 : vector<2x128xf32>
    %143 = arith.divf %141, %142 : vector<2x128xf32>
    %144 = arith.mulf %135, %84 : vector<2x128xf32>
    %145 = arith.mulf %129, %137 : vector<2x128xf32>
    %146 = arith.addf %144, %145 : vector<2x128xf32>
    %147 = math.tanh %146 : vector<2x128xf32>
    %148 = arith.mulf %143, %147 : vector<2x128xf32>
    %c0_48 = arith.constant 0 : index
    %c2 = arith.constant 2 : index
    %c0_49 = arith.constant 0 : index
    %149 = vector.load %arg10[%c0_48, %c2, %c0_49] : memref<2x8x512xf32, #tpu.memory_space<vmem>>, vector<2x1x512xf32>
    %150 = vector.shape_cast %149 : vector<2x1x512xf32> to vector<2x512xf32>
    %151 = arith.truncf %116 : vector<2x128xf32> to vector<2x128xbf16>
    %cst_50 = arith.constant dense<0.000000e+00> : vector<2x512xf32>
    %152 = tpu.matmul %151, %20, %cst_50 {dimension_numbers = #tpu.dot_dimension_numbers<[1], [0], [0], [1], [0, 0, 1, 1], [], []>} : vector<2x128xbf16>, vector<128x512xbf16>, vector<2x512xf32> -> vector<2x512xf32>
    %153 = arith.addf %150, %152 : vector<2x512xf32>
    %154 = vector.extract_strided_slice %153 {offsets = [0, 0], sizes = [2, 128], strides = [1, 1]} : vector<2x512xf32> to vector<2x128xf32>
    %155 = arith.negf %154 : vector<2x128xf32>
    %156 = math.exp %155 : vector<2x128xf32>
    %cst_51 = arith.constant 1.000000e+00 : f32
    %157 = vector.broadcast %cst_51 : f32 to vector<2x128xf32>
    %158 = arith.addf %157, %156 : vector<2x128xf32>
    %159 = arith.divf %157, %158 : vector<2x128xf32>
    %160 = vector.extract_strided_slice %153 {offsets = [0, 128], sizes = [2, 128], strides = [1, 1]} : vector<2x512xf32> to vector<2x128xf32>
    %161 = arith.negf %160 : vector<2x128xf32>
    %162 = math.exp %161 : vector<2x128xf32>
    %cst_52 = arith.constant 1.000000e+00 : f32
    %163 = vector.broadcast %cst_52 : f32 to vector<2x128xf32>
    %164 = arith.addf %163, %162 : vector<2x128xf32>
    %165 = arith.divf %163, %164 : vector<2x128xf32>
    %166 = vector.extract_strided_slice %153 {offsets = [0, 256], sizes = [2, 128], strides = [1, 1]} : vector<2x512xf32> to vector<2x128xf32>
    %167 = math.tanh %166 : vector<2x128xf32>
    %168 = vector.extract_strided_slice %153 {offsets = [0, 384], sizes = [2, 128], strides = [1, 1]} : vector<2x512xf32> to vector<2x128xf32>
    %169 = arith.negf %168 : vector<2x128xf32>
    %170 = math.exp %169 : vector<2x128xf32>
    %cst_53 = arith.constant 1.000000e+00 : f32
    %171 = vector.broadcast %cst_53 : f32 to vector<2x128xf32>
    %172 = arith.addf %171, %170 : vector<2x128xf32>
    %173 = arith.divf %171, %172 : vector<2x128xf32>
    %174 = arith.mulf %165, %114 : vector<2x128xf32>
    %175 = arith.mulf %159, %167 : vector<2x128xf32>
    %176 = arith.addf %174, %175 : vector<2x128xf32>
    %177 = math.tanh %176 : vector<2x128xf32>
    %178 = arith.mulf %173, %177 : vector<2x128xf32>
    %179 = arith.truncf %178 : vector<2x128xf32> to vector<2x128xbf16>
    %cst_54 = arith.constant dense<0.000000e+00> : vector<2x512xf32>
    %180 = tpu.matmul %179, %21, %cst_54 {dimension_numbers = #tpu.dot_dimension_numbers<[1], [0], [0], [1], [0, 0, 1, 1], [], []>} : vector<2x128xbf16>, vector<128x512xbf16>, vector<2x512xf32> -> vector<2x512xf32>
    %181 = arith.truncf %148 : vector<2x128xf32> to vector<2x128xbf16>
    %cst_55 = arith.constant dense<0.000000e+00> : vector<2x512xf32>
    %182 = tpu.matmul %181, %22, %cst_55 {dimension_numbers = #tpu.dot_dimension_numbers<[1], [0], [0], [1], [0, 0, 1, 1], [], []>} : vector<2x128xbf16>, vector<128x512xbf16>, vector<2x512xf32> -> vector<2x512xf32>
    %183 = arith.addf %180, %182 : vector<2x512xf32>
    %184 = vector.broadcast %23 : vector<1x512xf32> to vector<2x512xf32>
    %185 = arith.addf %183, %184 : vector<2x512xf32>
    %186 = vector.extract_strided_slice %185 {offsets = [0, 0], sizes = [2, 128], strides = [1, 1]} : vector<2x512xf32> to vector<2x128xf32>
    %187 = arith.negf %186 : vector<2x128xf32>
    %188 = math.exp %187 : vector<2x128xf32>
    %cst_56 = arith.constant 1.000000e+00 : f32
    %189 = vector.broadcast %cst_56 : f32 to vector<2x128xf32>
    %190 = arith.addf %189, %188 : vector<2x128xf32>
    %191 = arith.divf %189, %190 : vector<2x128xf32>
    %192 = vector.extract_strided_slice %185 {offsets = [0, 128], sizes = [2, 128], strides = [1, 1]} : vector<2x512xf32> to vector<2x128xf32>
    %193 = arith.negf %192 : vector<2x128xf32>
    %194 = math.exp %193 : vector<2x128xf32>
    %cst_57 = arith.constant 1.000000e+00 : f32
    %195 = vector.broadcast %cst_57 : f32 to vector<2x128xf32>
    %196 = arith.addf %195, %194 : vector<2x128xf32>
    %197 = arith.divf %195, %196 : vector<2x128xf32>
    %198 = vector.extract_strided_slice %185 {offsets = [0, 256], sizes = [2, 128], strides = [1, 1]} : vector<2x512xf32> to vector<2x128xf32>
    %199 = math.tanh %198 : vector<2x128xf32>
    %200 = vector.extract_strided_slice %185 {offsets = [0, 384], sizes = [2, 128], strides = [1, 1]} : vector<2x512xf32> to vector<2x128xf32>
    %201 = arith.negf %200 : vector<2x128xf32>
    %202 = math.exp %201 : vector<2x128xf32>
    %cst_58 = arith.constant 1.000000e+00 : f32
    %203 = vector.broadcast %cst_58 : f32 to vector<2x128xf32>
    %204 = arith.addf %203, %202 : vector<2x128xf32>
    %205 = arith.divf %203, %204 : vector<2x128xf32>
    %206 = arith.mulf %197, %146 : vector<2x128xf32>
    %207 = arith.mulf %191, %199 : vector<2x128xf32>
    %208 = arith.addf %206, %207 : vector<2x128xf32>
    %209 = math.tanh %208 : vector<2x128xf32>
    %210 = arith.mulf %205, %209 : vector<2x128xf32>
    %c0_59 = arith.constant 0 : index
    %c3 = arith.constant 3 : index
    %c0_60 = arith.constant 0 : index
    %211 = vector.load %arg10[%c0_59, %c3, %c0_60] : memref<2x8x512xf32, #tpu.memory_space<vmem>>, vector<2x1x512xf32>
    %212 = vector.shape_cast %211 : vector<2x1x512xf32> to vector<2x512xf32>
    %213 = arith.truncf %178 : vector<2x128xf32> to vector<2x128xbf16>
    %cst_61 = arith.constant dense<0.000000e+00> : vector<2x512xf32>
    %214 = tpu.matmul %213, %20, %cst_61 {dimension_numbers = #tpu.dot_dimension_numbers<[1], [0], [0], [1], [0, 0, 1, 1], [], []>} : vector<2x128xbf16>, vector<128x512xbf16>, vector<2x512xf32> -> vector<2x512xf32>
    %215 = arith.addf %212, %214 : vector<2x512xf32>
    %216 = vector.extract_strided_slice %215 {offsets = [0, 0], sizes = [2, 128], strides = [1, 1]} : vector<2x512xf32> to vector<2x128xf32>
    %217 = arith.negf %216 : vector<2x128xf32>
    %218 = math.exp %217 : vector<2x128xf32>
    %cst_62 = arith.constant 1.000000e+00 : f32
    %219 = vector.broadcast %cst_62 : f32 to vector<2x128xf32>
    %220 = arith.addf %219, %218 : vector<2x128xf32>
    %221 = arith.divf %219, %220 : vector<2x128xf32>
    %222 = vector.extract_strided_slice %215 {offsets = [0, 128], sizes = [2, 128], strides = [1, 1]} : vector<2x512xf32> to vector<2x128xf32>
    %223 = arith.negf %222 : vector<2x128xf32>
    %224 = math.exp %223 : vector<2x128xf32>
    %cst_63 = arith.constant 1.000000e+00 : f32
    %225 = vector.broadcast %cst_63 : f32 to vector<2x128xf32>
    %226 = arith.addf %225, %224 : vector<2x128xf32>
    %227 = arith.divf %225, %226 : vector<2x128xf32>
    %228 = vector.extract_strided_slice %215 {offsets = [0, 256], sizes = [2, 128], strides = [1, 1]} : vector<2x512xf32> to vector<2x128xf32>
    %229 = math.tanh %228 : vector<2x128xf32>
    %230 = vector.extract_strided_slice %215 {offsets = [0, 384], sizes = [2, 128], strides = [1, 1]} : vector<2x512xf32> to vector<2x128xf32>
    %231 = arith.negf %230 : vector<2x128xf32>
    %232 = math.exp %231 : vector<2x128xf32>
    %cst_64 = arith.constant 1.000000e+00 : f32
    %233 = vector.broadcast %cst_64 : f32 to vector<2x128xf32>
    %234 = arith.addf %233, %232 : vector<2x128xf32>
    %235 = arith.divf %233, %234 : vector<2x128xf32>
    %236 = arith.mulf %227, %176 : vector<2x128xf32>
    %237 = arith.mulf %221, %229 : vector<2x128xf32>
    %238 = arith.addf %236, %237 : vector<2x128xf32>
    %239 = math.tanh %238 : vector<2x128xf32>
    %240 = arith.mulf %235, %239 : vector<2x128xf32>
    %241 = arith.truncf %240 : vector<2x128xf32> to vector<2x128xbf16>
    %cst_65 = arith.constant dense<0.000000e+00> : vector<2x512xf32>
    %242 = tpu.matmul %241, %21, %cst_65 {dimension_numbers = #tpu.dot_dimension_numbers<[1], [0], [0], [1], [0, 0, 1, 1], [], []>} : vector<2x128xbf16>, vector<128x512xbf16>, vector<2x512xf32> -> vector<2x512xf32>
    %243 = arith.truncf %210 : vector<2x128xf32> to vector<2x128xbf16>
    %cst_66 = arith.constant dense<0.000000e+00> : vector<2x512xf32>
    %244 = tpu.matmul %243, %22, %cst_66 {dimension_numbers = #tpu.dot_dimension_numbers<[1], [0], [0], [1], [0, 0, 1, 1], [], []>} : vector<2x128xbf16>, vector<128x512xbf16>, vector<2x512xf32> -> vector<2x512xf32>
    %245 = arith.addf %242, %244 : vector<2x512xf32>
    %246 = vector.broadcast %23 : vector<1x512xf32> to vector<2x512xf32>
    %247 = arith.addf %245, %246 : vector<2x512xf32>
    %248 = vector.extract_strided_slice %247 {offsets = [0, 0], sizes = [2, 128], strides = [1, 1]} : vector<2x512xf32> to vector<2x128xf32>
    %249 = arith.negf %248 : vector<2x128xf32>
    %250 = math.exp %249 : vector<2x128xf32>
    %cst_67 = arith.constant 1.000000e+00 : f32
    %251 = vector.broadcast %cst_67 : f32 to vector<2x128xf32>
    %252 = arith.addf %251, %250 : vector<2x128xf32>
    %253 = arith.divf %251, %252 : vector<2x128xf32>
    %254 = vector.extract_strided_slice %247 {offsets = [0, 128], sizes = [2, 128], strides = [1, 1]} : vector<2x512xf32> to vector<2x128xf32>
    %255 = arith.negf %254 : vector<2x128xf32>
    %256 = math.exp %255 : vector<2x128xf32>
    %cst_68 = arith.constant 1.000000e+00 : f32
    %257 = vector.broadcast %cst_68 : f32 to vector<2x128xf32>
    %258 = arith.addf %257, %256 : vector<2x128xf32>
    %259 = arith.divf %257, %258 : vector<2x128xf32>
    %260 = vector.extract_strided_slice %247 {offsets = [0, 256], sizes = [2, 128], strides = [1, 1]} : vector<2x512xf32> to vector<2x128xf32>
    %261 = math.tanh %260 : vector<2x128xf32>
    %262 = vector.extract_strided_slice %247 {offsets = [0, 384], sizes = [2, 128], strides = [1, 1]} : vector<2x512xf32> to vector<2x128xf32>
    %263 = arith.negf %262 : vector<2x128xf32>
    %264 = math.exp %263 : vector<2x128xf32>
    %cst_69 = arith.constant 1.000000e+00 : f32
    %265 = vector.broadcast %cst_69 : f32 to vector<2x128xf32>
    %266 = arith.addf %265, %264 : vector<2x128xf32>
    %267 = arith.divf %265, %266 : vector<2x128xf32>
    %268 = arith.mulf %259, %208 : vector<2x128xf32>
    %269 = arith.mulf %253, %261 : vector<2x128xf32>
    %270 = arith.addf %268, %269 : vector<2x128xf32>
    %271 = math.tanh %270 : vector<2x128xf32>
    %272 = arith.mulf %267, %271 : vector<2x128xf32>
    %c0_70 = arith.constant 0 : index
    %c4 = arith.constant 4 : index
    %c0_71 = arith.constant 0 : index
    %273 = vector.load %arg10[%c0_70, %c4, %c0_71] : memref<2x8x512xf32, #tpu.memory_space<vmem>>, vector<2x1x512xf32>
    %274 = vector.shape_cast %273 : vector<2x1x512xf32> to vector<2x512xf32>
    %275 = arith.truncf %240 : vector<2x128xf32> to vector<2x128xbf16>
    %cst_72 = arith.constant dense<0.000000e+00> : vector<2x512xf32>
    %276 = tpu.matmul %275, %20, %cst_72 {dimension_numbers = #tpu.dot_dimension_numbers<[1], [0], [0], [1], [0, 0, 1, 1], [], []>} : vector<2x128xbf16>, vector<128x512xbf16>, vector<2x512xf32> -> vector<2x512xf32>
    %277 = arith.addf %274, %276 : vector<2x512xf32>
    %278 = vector.extract_strided_slice %277 {offsets = [0, 0], sizes = [2, 128], strides = [1, 1]} : vector<2x512xf32> to vector<2x128xf32>
    %279 = arith.negf %278 : vector<2x128xf32>
    %280 = math.exp %279 : vector<2x128xf32>
    %cst_73 = arith.constant 1.000000e+00 : f32
    %281 = vector.broadcast %cst_73 : f32 to vector<2x128xf32>
    %282 = arith.addf %281, %280 : vector<2x128xf32>
    %283 = arith.divf %281, %282 : vector<2x128xf32>
    %284 = vector.extract_strided_slice %277 {offsets = [0, 128], sizes = [2, 128], strides = [1, 1]} : vector<2x512xf32> to vector<2x128xf32>
    %285 = arith.negf %284 : vector<2x128xf32>
    %286 = math.exp %285 : vector<2x128xf32>
    %cst_74 = arith.constant 1.000000e+00 : f32
    %287 = vector.broadcast %cst_74 : f32 to vector<2x128xf32>
    %288 = arith.addf %287, %286 : vector<2x128xf32>
    %289 = arith.divf %287, %288 : vector<2x128xf32>
    %290 = vector.extract_strided_slice %277 {offsets = [0, 256], sizes = [2, 128], strides = [1, 1]} : vector<2x512xf32> to vector<2x128xf32>
    %291 = math.tanh %290 : vector<2x128xf32>
    %292 = vector.extract_strided_slice %277 {offsets = [0, 384], sizes = [2, 128], strides = [1, 1]} : vector<2x512xf32> to vector<2x128xf32>
    %293 = arith.negf %292 : vector<2x128xf32>
    %294 = math.exp %293 : vector<2x128xf32>
    %cst_75 = arith.constant 1.000000e+00 : f32
    %295 = vector.broadcast %cst_75 : f32 to vector<2x128xf32>
    %296 = arith.addf %295, %294 : vector<2x128xf32>
    %297 = arith.divf %295, %296 : vector<2x128xf32>
    %298 = arith.mulf %289, %238 : vector<2x128xf32>
    %299 = arith.mulf %283, %291 : vector<2x128xf32>
    %300 = arith.addf %298, %299 : vector<2x128xf32>
    %301 = math.tanh %300 : vector<2x128xf32>
    %302 = arith.mulf %297, %301 : vector<2x128xf32>
    %303 = arith.truncf %302 : vector<2x128xf32> to vector<2x128xbf16>
    %cst_76 = arith.constant dense<0.000000e+00> : vector<2x512xf32>
    %304 = tpu.matmul %303, %21, %cst_76 {dimension_numbers = #tpu.dot_dimension_numbers<[1], [0], [0], [1], [0, 0, 1, 1], [], []>} : vector<2x128xbf16>, vector<128x512xbf16>, vector<2x512xf32> -> vector<2x512xf32>
    %305 = arith.truncf %272 : vector<2x128xf32> to vector<2x128xbf16>
    %cst_77 = arith.constant dense<0.000000e+00> : vector<2x512xf32>
    %306 = tpu.matmul %305, %22, %cst_77 {dimension_numbers = #tpu.dot_dimension_numbers<[1], [0], [0], [1], [0, 0, 1, 1], [], []>} : vector<2x128xbf16>, vector<128x512xbf16>, vector<2x512xf32> -> vector<2x512xf32>
    %307 = arith.addf %304, %306 : vector<2x512xf32>
    %308 = vector.broadcast %23 : vector<1x512xf32> to vector<2x512xf32>
    %309 = arith.addf %307, %308 : vector<2x512xf32>
    %310 = vector.extract_strided_slice %309 {offsets = [0, 0], sizes = [2, 128], strides = [1, 1]} : vector<2x512xf32> to vector<2x128xf32>
    %311 = arith.negf %310 : vector<2x128xf32>
    %312 = math.exp %311 : vector<2x128xf32>
    %cst_78 = arith.constant 1.000000e+00 : f32
    %313 = vector.broadcast %cst_78 : f32 to vector<2x128xf32>
    %314 = arith.addf %313, %312 : vector<2x128xf32>
    %315 = arith.divf %313, %314 : vector<2x128xf32>
    %316 = vector.extract_strided_slice %309 {offsets = [0, 128], sizes = [2, 128], strides = [1, 1]} : vector<2x512xf32> to vector<2x128xf32>
    %317 = arith.negf %316 : vector<2x128xf32>
    %318 = math.exp %317 : vector<2x128xf32>
    %cst_79 = arith.constant 1.000000e+00 : f32
    %319 = vector.broadcast %cst_79 : f32 to vector<2x128xf32>
    %320 = arith.addf %319, %318 : vector<2x128xf32>
    %321 = arith.divf %319, %320 : vector<2x128xf32>
    %322 = vector.extract_strided_slice %309 {offsets = [0, 256], sizes = [2, 128], strides = [1, 1]} : vector<2x512xf32> to vector<2x128xf32>
    %323 = math.tanh %322 : vector<2x128xf32>
    %324 = vector.extract_strided_slice %309 {offsets = [0, 384], sizes = [2, 128], strides = [1, 1]} : vector<2x512xf32> to vector<2x128xf32>
    %325 = arith.negf %324 : vector<2x128xf32>
    %326 = math.exp %325 : vector<2x128xf32>
    %cst_80 = arith.constant 1.000000e+00 : f32
    %327 = vector.broadcast %cst_80 : f32 to vector<2x128xf32>
    %328 = arith.addf %327, %326 : vector<2x128xf32>
    %329 = arith.divf %327, %328 : vector<2x128xf32>
    %330 = arith.mulf %321, %270 : vector<2x128xf32>
    %331 = arith.mulf %315, %323 : vector<2x128xf32>
    %332 = arith.addf %330, %331 : vector<2x128xf32>
    %333 = math.tanh %332 : vector<2x128xf32>
    %334 = arith.mulf %329, %333 : vector<2x128xf32>
    %c0_81 = arith.constant 0 : index
    %c5 = arith.constant 5 : index
    %c0_82 = arith.constant 0 : index
    %335 = vector.load %arg10[%c0_81, %c5, %c0_82] : memref<2x8x512xf32, #tpu.memory_space<vmem>>, vector<2x1x512xf32>
    %336 = vector.shape_cast %335 : vector<2x1x512xf32> to vector<2x512xf32>
    %337 = arith.truncf %302 : vector<2x128xf32> to vector<2x128xbf16>
    %cst_83 = arith.constant dense<0.000000e+00> : vector<2x512xf32>
    %338 = tpu.matmul %337, %20, %cst_83 {dimension_numbers = #tpu.dot_dimension_numbers<[1], [0], [0], [1], [0, 0, 1, 1], [], []>} : vector<2x128xbf16>, vector<128x512xbf16>, vector<2x512xf32> -> vector<2x512xf32>
    %339 = arith.addf %336, %338 : vector<2x512xf32>
    %340 = vector.extract_strided_slice %339 {offsets = [0, 0], sizes = [2, 128], strides = [1, 1]} : vector<2x512xf32> to vector<2x128xf32>
    %341 = arith.negf %340 : vector<2x128xf32>
    %342 = math.exp %341 : vector<2x128xf32>
    %cst_84 = arith.constant 1.000000e+00 : f32
    %343 = vector.broadcast %cst_84 : f32 to vector<2x128xf32>
    %344 = arith.addf %343, %342 : vector<2x128xf32>
    %345 = arith.divf %343, %344 : vector<2x128xf32>
    %346 = vector.extract_strided_slice %339 {offsets = [0, 128], sizes = [2, 128], strides = [1, 1]} : vector<2x512xf32> to vector<2x128xf32>
    %347 = arith.negf %346 : vector<2x128xf32>
    %348 = math.exp %347 : vector<2x128xf32>
    %cst_85 = arith.constant 1.000000e+00 : f32
    %349 = vector.broadcast %cst_85 : f32 to vector<2x128xf32>
    %350 = arith.addf %349, %348 : vector<2x128xf32>
    %351 = arith.divf %349, %350 : vector<2x128xf32>
    %352 = vector.extract_strided_slice %339 {offsets = [0, 256], sizes = [2, 128], strides = [1, 1]} : vector<2x512xf32> to vector<2x128xf32>
    %353 = math.tanh %352 : vector<2x128xf32>
    %354 = vector.extract_strided_slice %339 {offsets = [0, 384], sizes = [2, 128], strides = [1, 1]} : vector<2x512xf32> to vector<2x128xf32>
    %355 = arith.negf %354 : vector<2x128xf32>
    %356 = math.exp %355 : vector<2x128xf32>
    %cst_86 = arith.constant 1.000000e+00 : f32
    %357 = vector.broadcast %cst_86 : f32 to vector<2x128xf32>
    %358 = arith.addf %357, %356 : vector<2x128xf32>
    %359 = arith.divf %357, %358 : vector<2x128xf32>
    %360 = arith.mulf %351, %300 : vector<2x128xf32>
    %361 = arith.mulf %345, %353 : vector<2x128xf32>
    %362 = arith.addf %360, %361 : vector<2x128xf32>
    %363 = math.tanh %362 : vector<2x128xf32>
    %364 = arith.mulf %359, %363 : vector<2x128xf32>
    %365 = arith.truncf %364 : vector<2x128xf32> to vector<2x128xbf16>
    %cst_87 = arith.constant dense<0.000000e+00> : vector<2x512xf32>
    %366 = tpu.matmul %365, %21, %cst_87 {dimension_numbers = #tpu.dot_dimension_numbers<[1], [0], [0], [1], [0, 0, 1, 1], [], []>} : vector<2x128xbf16>, vector<128x512xbf16>, vector<2x512xf32> -> vector<2x512xf32>
    %367 = arith.truncf %334 : vector<2x128xf32> to vector<2x128xbf16>
    %cst_88 = arith.constant dense<0.000000e+00> : vector<2x512xf32>
    %368 = tpu.matmul %367, %22, %cst_88 {dimension_numbers = #tpu.dot_dimension_numbers<[1], [0], [0], [1], [0, 0, 1, 1], [], []>} : vector<2x128xbf16>, vector<128x512xbf16>, vector<2x512xf32> -> vector<2x512xf32>
    %369 = arith.addf %366, %368 : vector<2x512xf32>
    %370 = vector.broadcast %23 : vector<1x512xf32> to vector<2x512xf32>
    %371 = arith.addf %369, %370 : vector<2x512xf32>
    %372 = vector.extract_strided_slice %371 {offsets = [0, 0], sizes = [2, 128], strides = [1, 1]} : vector<2x512xf32> to vector<2x128xf32>
    %373 = arith.negf %372 : vector<2x128xf32>
    %374 = math.exp %373 : vector<2x128xf32>
    %cst_89 = arith.constant 1.000000e+00 : f32
    %375 = vector.broadcast %cst_89 : f32 to vector<2x128xf32>
    %376 = arith.addf %375, %374 : vector<2x128xf32>
    %377 = arith.divf %375, %376 : vector<2x128xf32>
    %378 = vector.extract_strided_slice %371 {offsets = [0, 128], sizes = [2, 128], strides = [1, 1]} : vector<2x512xf32> to vector<2x128xf32>
    %379 = arith.negf %378 : vector<2x128xf32>
    %380 = math.exp %379 : vector<2x128xf32>
    %cst_90 = arith.constant 1.000000e+00 : f32
    %381 = vector.broadcast %cst_90 : f32 to vector<2x128xf32>
    %382 = arith.addf %381, %380 : vector<2x128xf32>
    %383 = arith.divf %381, %382 : vector<2x128xf32>
    %384 = vector.extract_strided_slice %371 {offsets = [0, 256], sizes = [2, 128], strides = [1, 1]} : vector<2x512xf32> to vector<2x128xf32>
    %385 = math.tanh %384 : vector<2x128xf32>
    %386 = vector.extract_strided_slice %371 {offsets = [0, 384], sizes = [2, 128], strides = [1, 1]} : vector<2x512xf32> to vector<2x128xf32>
    %387 = arith.negf %386 : vector<2x128xf32>
    %388 = math.exp %387 : vector<2x128xf32>
    %cst_91 = arith.constant 1.000000e+00 : f32
    %389 = vector.broadcast %cst_91 : f32 to vector<2x128xf32>
    %390 = arith.addf %389, %388 : vector<2x128xf32>
    %391 = arith.divf %389, %390 : vector<2x128xf32>
    %392 = arith.mulf %383, %332 : vector<2x128xf32>
    %393 = arith.mulf %377, %385 : vector<2x128xf32>
    %394 = arith.addf %392, %393 : vector<2x128xf32>
    %395 = math.tanh %394 : vector<2x128xf32>
    %396 = arith.mulf %391, %395 : vector<2x128xf32>
    %c0_92 = arith.constant 0 : index
    %c6 = arith.constant 6 : index
    %c0_93 = arith.constant 0 : index
    %397 = vector.load %arg10[%c0_92, %c6, %c0_93] : memref<2x8x512xf32, #tpu.memory_space<vmem>>, vector<2x1x512xf32>
    %398 = vector.shape_cast %397 : vector<2x1x512xf32> to vector<2x512xf32>
    %399 = arith.truncf %364 : vector<2x128xf32> to vector<2x128xbf16>
    %cst_94 = arith.constant dense<0.000000e+00> : vector<2x512xf32>
    %400 = tpu.matmul %399, %20, %cst_94 {dimension_numbers = #tpu.dot_dimension_numbers<[1], [0], [0], [1], [0, 0, 1, 1], [], []>} : vector<2x128xbf16>, vector<128x512xbf16>, vector<2x512xf32> -> vector<2x512xf32>
    %401 = arith.addf %398, %400 : vector<2x512xf32>
    %402 = vector.extract_strided_slice %401 {offsets = [0, 0], sizes = [2, 128], strides = [1, 1]} : vector<2x512xf32> to vector<2x128xf32>
    %403 = arith.negf %402 : vector<2x128xf32>
    %404 = math.exp %403 : vector<2x128xf32>
    %cst_95 = arith.constant 1.000000e+00 : f32
    %405 = vector.broadcast %cst_95 : f32 to vector<2x128xf32>
    %406 = arith.addf %405, %404 : vector<2x128xf32>
    %407 = arith.divf %405, %406 : vector<2x128xf32>
    %408 = vector.extract_strided_slice %401 {offsets = [0, 128], sizes = [2, 128], strides = [1, 1]} : vector<2x512xf32> to vector<2x128xf32>
    %409 = arith.negf %408 : vector<2x128xf32>
    %410 = math.exp %409 : vector<2x128xf32>
    %cst_96 = arith.constant 1.000000e+00 : f32
    %411 = vector.broadcast %cst_96 : f32 to vector<2x128xf32>
    %412 = arith.addf %411, %410 : vector<2x128xf32>
    %413 = arith.divf %411, %412 : vector<2x128xf32>
    %414 = vector.extract_strided_slice %401 {offsets = [0, 256], sizes = [2, 128], strides = [1, 1]} : vector<2x512xf32> to vector<2x128xf32>
    %415 = math.tanh %414 : vector<2x128xf32>
    %416 = vector.extract_strided_slice %401 {offsets = [0, 384], sizes = [2, 128], strides = [1, 1]} : vector<2x512xf32> to vector<2x128xf32>
    %417 = arith.negf %416 : vector<2x128xf32>
    %418 = math.exp %417 : vector<2x128xf32>
    %cst_97 = arith.constant 1.000000e+00 : f32
    %419 = vector.broadcast %cst_97 : f32 to vector<2x128xf32>
    %420 = arith.addf %419, %418 : vector<2x128xf32>
    %421 = arith.divf %419, %420 : vector<2x128xf32>
    %422 = arith.mulf %413, %362 : vector<2x128xf32>
    %423 = arith.mulf %407, %415 : vector<2x128xf32>
    %424 = arith.addf %422, %423 : vector<2x128xf32>
    %425 = math.tanh %424 : vector<2x128xf32>
    %426 = arith.mulf %421, %425 : vector<2x128xf32>
    %427 = arith.truncf %426 : vector<2x128xf32> to vector<2x128xbf16>
    %cst_98 = arith.constant dense<0.000000e+00> : vector<2x512xf32>
    %428 = tpu.matmul %427, %21, %cst_98 {dimension_numbers = #tpu.dot_dimension_numbers<[1], [0], [0], [1], [0, 0, 1, 1], [], []>} : vector<2x128xbf16>, vector<128x512xbf16>, vector<2x512xf32> -> vector<2x512xf32>
    %429 = arith.truncf %396 : vector<2x128xf32> to vector<2x128xbf16>
    %cst_99 = arith.constant dense<0.000000e+00> : vector<2x512xf32>
    %430 = tpu.matmul %429, %22, %cst_99 {dimension_numbers = #tpu.dot_dimension_numbers<[1], [0], [0], [1], [0, 0, 1, 1], [], []>} : vector<2x128xbf16>, vector<128x512xbf16>, vector<2x512xf32> -> vector<2x512xf32>
    %431 = arith.addf %428, %430 : vector<2x512xf32>
    %432 = vector.broadcast %23 : vector<1x512xf32> to vector<2x512xf32>
    %433 = arith.addf %431, %432 : vector<2x512xf32>
    %434 = vector.extract_strided_slice %433 {offsets = [0, 0], sizes = [2, 128], strides = [1, 1]} : vector<2x512xf32> to vector<2x128xf32>
    %435 = arith.negf %434 : vector<2x128xf32>
    %436 = math.exp %435 : vector<2x128xf32>
    %cst_100 = arith.constant 1.000000e+00 : f32
    %437 = vector.broadcast %cst_100 : f32 to vector<2x128xf32>
    %438 = arith.addf %437, %436 : vector<2x128xf32>
    %439 = arith.divf %437, %438 : vector<2x128xf32>
    %440 = vector.extract_strided_slice %433 {offsets = [0, 128], sizes = [2, 128], strides = [1, 1]} : vector<2x512xf32> to vector<2x128xf32>
    %441 = arith.negf %440 : vector<2x128xf32>
    %442 = math.exp %441 : vector<2x128xf32>
    %cst_101 = arith.constant 1.000000e+00 : f32
    %443 = vector.broadcast %cst_101 : f32 to vector<2x128xf32>
    %444 = arith.addf %443, %442 : vector<2x128xf32>
    %445 = arith.divf %443, %444 : vector<2x128xf32>
    %446 = vector.extract_strided_slice %433 {offsets = [0, 256], sizes = [2, 128], strides = [1, 1]} : vector<2x512xf32> to vector<2x128xf32>
    %447 = math.tanh %446 : vector<2x128xf32>
    %448 = vector.extract_strided_slice %433 {offsets = [0, 384], sizes = [2, 128], strides = [1, 1]} : vector<2x512xf32> to vector<2x128xf32>
    %449 = arith.negf %448 : vector<2x128xf32>
    %450 = math.exp %449 : vector<2x128xf32>
    %cst_102 = arith.constant 1.000000e+00 : f32
    %451 = vector.broadcast %cst_102 : f32 to vector<2x128xf32>
    %452 = arith.addf %451, %450 : vector<2x128xf32>
    %453 = arith.divf %451, %452 : vector<2x128xf32>
    %454 = arith.mulf %445, %394 : vector<2x128xf32>
    %455 = arith.mulf %439, %447 : vector<2x128xf32>
    %456 = arith.addf %454, %455 : vector<2x128xf32>
    %457 = math.tanh %456 : vector<2x128xf32>
    %458 = arith.mulf %453, %457 : vector<2x128xf32>
    %c0_103 = arith.constant 0 : index
    %c7 = arith.constant 7 : index
    %c0_104 = arith.constant 0 : index
    %459 = vector.load %arg10[%c0_103, %c7, %c0_104] : memref<2x8x512xf32, #tpu.memory_space<vmem>>, vector<2x1x512xf32>
    %460 = vector.shape_cast %459 : vector<2x1x512xf32> to vector<2x512xf32>
    %461 = arith.truncf %426 : vector<2x128xf32> to vector<2x128xbf16>
    %cst_105 = arith.constant dense<0.000000e+00> : vector<2x512xf32>
    %462 = tpu.matmul %461, %20, %cst_105 {dimension_numbers = #tpu.dot_dimension_numbers<[1], [0], [0], [1], [0, 0, 1, 1], [], []>} : vector<2x128xbf16>, vector<128x512xbf16>, vector<2x512xf32> -> vector<2x512xf32>
    %463 = arith.addf %460, %462 : vector<2x512xf32>
    %464 = vector.extract_strided_slice %463 {offsets = [0, 0], sizes = [2, 128], strides = [1, 1]} : vector<2x512xf32> to vector<2x128xf32>
    %465 = arith.negf %464 : vector<2x128xf32>
    %466 = math.exp %465 : vector<2x128xf32>
    %cst_106 = arith.constant 1.000000e+00 : f32
    %467 = vector.broadcast %cst_106 : f32 to vector<2x128xf32>
    %468 = arith.addf %467, %466 : vector<2x128xf32>
    %469 = arith.divf %467, %468 : vector<2x128xf32>
    %470 = vector.extract_strided_slice %463 {offsets = [0, 128], sizes = [2, 128], strides = [1, 1]} : vector<2x512xf32> to vector<2x128xf32>
    %471 = arith.negf %470 : vector<2x128xf32>
    %472 = math.exp %471 : vector<2x128xf32>
    %cst_107 = arith.constant 1.000000e+00 : f32
    %473 = vector.broadcast %cst_107 : f32 to vector<2x128xf32>
    %474 = arith.addf %473, %472 : vector<2x128xf32>
    %475 = arith.divf %473, %474 : vector<2x128xf32>
    %476 = vector.extract_strided_slice %463 {offsets = [0, 256], sizes = [2, 128], strides = [1, 1]} : vector<2x512xf32> to vector<2x128xf32>
    %477 = math.tanh %476 : vector<2x128xf32>
    %478 = vector.extract_strided_slice %463 {offsets = [0, 384], sizes = [2, 128], strides = [1, 1]} : vector<2x512xf32> to vector<2x128xf32>
    %479 = arith.negf %478 : vector<2x128xf32>
    %480 = math.exp %479 : vector<2x128xf32>
    %cst_108 = arith.constant 1.000000e+00 : f32
    %481 = vector.broadcast %cst_108 : f32 to vector<2x128xf32>
    %482 = arith.addf %481, %480 : vector<2x128xf32>
    %483 = arith.divf %481, %482 : vector<2x128xf32>
    %484 = arith.mulf %475, %424 : vector<2x128xf32>
    %485 = arith.mulf %469, %477 : vector<2x128xf32>
    %486 = arith.addf %484, %485 : vector<2x128xf32>
    %487 = math.tanh %486 : vector<2x128xf32>
    %488 = arith.mulf %483, %487 : vector<2x128xf32>
    %489 = arith.truncf %488 : vector<2x128xf32> to vector<2x128xbf16>
    %cst_109 = arith.constant dense<0.000000e+00> : vector<2x512xf32>
    %490 = tpu.matmul %489, %21, %cst_109 {dimension_numbers = #tpu.dot_dimension_numbers<[1], [0], [0], [1], [0, 0, 1, 1], [], []>} : vector<2x128xbf16>, vector<128x512xbf16>, vector<2x512xf32> -> vector<2x512xf32>
    %491 = arith.truncf %458 : vector<2x128xf32> to vector<2x128xbf16>
    %cst_110 = arith.constant dense<0.000000e+00> : vector<2x512xf32>
    %492 = tpu.matmul %491, %22, %cst_110 {dimension_numbers = #tpu.dot_dimension_numbers<[1], [0], [0], [1], [0, 0, 1, 1], [], []>} : vector<2x128xbf16>, vector<128x512xbf16>, vector<2x512xf32> -> vector<2x512xf32>
    %493 = arith.addf %490, %492 : vector<2x512xf32>
    %494 = vector.broadcast %23 : vector<1x512xf32> to vector<2x512xf32>
    %495 = arith.addf %493, %494 : vector<2x512xf32>
    %496 = vector.extract_strided_slice %495 {offsets = [0, 0], sizes = [2, 128], strides = [1, 1]} : vector<2x512xf32> to vector<2x128xf32>
    %497 = arith.negf %496 : vector<2x128xf32>
    %498 = math.exp %497 : vector<2x128xf32>
    %cst_111 = arith.constant 1.000000e+00 : f32
    %499 = vector.broadcast %cst_111 : f32 to vector<2x128xf32>
    %500 = arith.addf %499, %498 : vector<2x128xf32>
    %501 = arith.divf %499, %500 : vector<2x128xf32>
    %502 = vector.extract_strided_slice %495 {offsets = [0, 128], sizes = [2, 128], strides = [1, 1]} : vector<2x512xf32> to vector<2x128xf32>
    %503 = arith.negf %502 : vector<2x128xf32>
    %504 = math.exp %503 : vector<2x128xf32>
    %cst_112 = arith.constant 1.000000e+00 : f32
    %505 = vector.broadcast %cst_112 : f32 to vector<2x128xf32>
    %506 = arith.addf %505, %504 : vector<2x128xf32>
    %507 = arith.divf %505, %506 : vector<2x128xf32>
    %508 = vector.extract_strided_slice %495 {offsets = [0, 256], sizes = [2, 128], strides = [1, 1]} : vector<2x512xf32> to vector<2x128xf32>
    %509 = math.tanh %508 : vector<2x128xf32>
    %510 = vector.extract_strided_slice %495 {offsets = [0, 384], sizes = [2, 128], strides = [1, 1]} : vector<2x512xf32> to vector<2x128xf32>
    %511 = arith.negf %510 : vector<2x128xf32>
    %512 = math.exp %511 : vector<2x128xf32>
    %cst_113 = arith.constant 1.000000e+00 : f32
    %513 = vector.broadcast %cst_113 : f32 to vector<2x128xf32>
    %514 = arith.addf %513, %512 : vector<2x128xf32>
    %515 = arith.divf %513, %514 : vector<2x128xf32>
    %516 = arith.mulf %507, %456 : vector<2x128xf32>
    %517 = arith.mulf %501, %509 : vector<2x128xf32>
    %518 = arith.addf %516, %517 : vector<2x128xf32>
    %519 = math.tanh %518 : vector<2x128xf32>
    %520 = arith.mulf %515, %519 : vector<2x128xf32>
    %521 = arith.truncf %520 : vector<2x128xf32> to vector<2x128xbf16>
    %c0_114 = arith.constant 0 : index
    %c0_115 = arith.constant 0 : index
    %522 = vector.load %arg7[%c0_114, %c0_115] : memref<128x128xbf16, #tpu.memory_space<vmem>>, vector<128x128xbf16>
    %cst_116 = arith.constant dense<0.000000e+00> : vector<2x128xf32>
    %523 = tpu.matmul %521, %522, %cst_116 {dimension_numbers = #tpu.dot_dimension_numbers<[1], [0], [0], [1], [0, 0, 1, 1], [], []>} : vector<2x128xbf16>, vector<128x128xbf16>, vector<2x128xf32> -> vector<2x128xf32>
    %c0_117 = arith.constant 0 : index
    %c0_118 = arith.constant 0 : index
    %524 = vector.load %arg8[%c0_117, %c0_118] : memref<1x128xf32, #tpu.memory_space<vmem>>, vector<1x128xf32>
    %525 = vector.broadcast %524 : vector<1x128xf32> to vector<2x128xf32>
    %526 = arith.addf %523, %525 : vector<2x128xf32>
    %c0_119 = arith.constant 0 : index
    %c0_120 = arith.constant 0 : index
    %527 = vector.load %arg9[%c0_119, %c0_120] : memref<2x128xf32, #tpu.memory_space<vmem>>, vector<2x128xf32>
    tpu.vector_store %arg9[%c0_119, %c0_120], %526 {strides = array<i32>} : memref<2x128xf32, #tpu.memory_space<vmem>>, vector<2x128xf32>,
    return
  }
}

</mosaic_0001>

<llo_original>
// kernel: lstm_video_classifier.1
$region0: #{lstm_video_classifier.1}
  #allocation0 [shape = 'u32[]', space=smem, size = 0x4, offset = 0x4, fixed_abs, tag = 'smem constant byte address 0x4 - core index']
  #allocation1 [shape = 'u32[72,128]{1,0:T(1,128)}', space=vmem, size = 0x9000, scoped, tag = 'internal scratch']
  #allocation2 [shape = 'f32[2,8,512]{2,1,0:T(8,128)}', space=vmem, size = 0x8000, scoped, tag = 'scratch operand']
  %s0 = inlined_call_operand.vmem [shape: f32[2,8,1024], index: 0, kind: input, shape index: {}]
  %s1 = inlined_call_operand.hbm [shape: bf16[1024,512], index: 1, kind: input, shape index: {}]
  %s2 = inlined_call_operand.vmem [shape: f32[1,512], index: 2, kind: input, shape index: {}]
  %s3 = inlined_call_operand.vmem [shape: bf16[128,512], index: 3, kind: input, shape index: {}]
  %s4 = inlined_call_operand.vmem [shape: bf16[128,512], index: 4, kind: input, shape index: {}]
  %s5 = inlined_call_operand.vmem [shape: bf16[128,512], index: 5, kind: input, shape index: {}]
  %s6 = inlined_call_operand.vmem [shape: f32[1,512], index: 6, kind: input, shape index: {}]
  %s7 = inlined_call_operand.vmem [shape: bf16[128,128], index: 7, kind: input, shape index: {}]
  %s8 = inlined_call_operand.vmem [shape: f32[1,128], index: 8, kind: input, shape index: {}]
  %s9 = inlined_call_operand.hbm [shape: f32[2,128], index: 9, kind: output, shape index: {}]
  %s10 = sld [smem:[#allocation0]]
  $region50: #{lstm_video_classifier.1} parent=0
    _
  %s12 = ssub.s32 1, %s10
  %s13 = scalar_select 0, %s12, %s10
  $region1: #{lstm_video_classifier.1} parent=0
    #allocation3 [shape = 'u8[1048576]{0}', space=vmem, size = 0x100000, scoped, tag = 'input window, operand 1, single buffered']
    #allocation4 [shape = 's32[1]{0}', space=sflag, size = 0x4, scoped, tag = 'scoped memory for lstm_video_classifier.1']
    #allocation5 [shape = 's32[1]{0}', space=sflag, size = 0x4, scoped, tag = 'scoped memory for lstm_video_classifier.1']
    #allocation6 [shape = 'u8[1024]{0}', space=vmem, size = 0x400, scoped, tag = 'output window, operand 0, single buffered']
    %14 = vsyncpa [#allocation4], 0
    %15 = vsyncpa [#allocation5], 0
    // Predicated region
    $region2: #{lstm_video_classifier.1} parent=1 // pred_check
      _
    $region3: #{lstm_video_classifier.1} parent=1 // pred_check_branch
      %17 = sbr.rel (0) target = $region5
    $region4: #{lstm_video_classifier.1} parent=1 // pred_region
      _
    $region5: #{lstm_video_classifier.1} parent=1 // pred_fallthru
      _
    // Predicated region
    $region6: #{lstm_video_classifier.1} parent=1 // pred_check
      _
    $region7: #{lstm_video_classifier.1} parent=1 // pred_check_branch
      %19 = sbr.rel (0) target = $region9
    $region8: #{lstm_video_classifier.1} parent=1 // pred_region
      %21 = vsyncadd [#allocation4], 0
      %s22 = sshll.u32 %s1, 4
      %s23 = int_to_ptr.hbm [resolvable:$true] %s22
      %s24 = sshll.u32 [#allocation3], 4
      %s25 = int_to_ptr.vmem [resolvable:$true] %s24
      %30 = dma.hbm_to_vmem [thread:$0]  %s23, 32768, %s25, [#allocation4], 256, 256, 16
    $region9: #{lstm_video_classifier.1} parent=1 // pred_fallthru
      _
    // Predicated region
    $region10: #{lstm_video_classifier.1} parent=1 // pred_check
      _
    $region11: #{lstm_video_classifier.1} parent=1 // pred_check_branch
      %32 = sbr.rel (0) target = $region13
    $region12: #{lstm_video_classifier.1} parent=1 // pred_region
      _
    $region13: #{lstm_video_classifier.1} parent=1 // pred_fallthru
      _
    // Predicated region
    $region14: #{lstm_video_classifier.1} parent=1 // pred_check
      _
    $region15: #{lstm_video_classifier.1} parent=1 // pred_check_branch
      %34 = sbr.rel (0) target = $region17
    $region16: #{lstm_video_classifier.1} parent=1 // pred_region
      _
    $region17: #{lstm_video_classifier.1} parent=1 // pred_fallthru
      _
    // Predicated region
    $region18: #{lstm_video_classifier.1} parent=1 // pred_check
      _
    $region19: #{lstm_video_classifier.1} parent=1 // pred_check_branch
      %36 = sbr.rel (0) target = $region21
    $region20: #{lstm_video_classifier.1} parent=1 // pred_region
      _
    $region21: #{lstm_video_classifier.1} parent=1 // pred_fallthru
      _
    // Predicated region
    $region22: #{lstm_video_classifier.1} parent=1 // pred_check
      _
    $region23: #{lstm_video_classifier.1} parent=1 // pred_check_branch
      %38 = sbr.rel (0) target = $region25
    $region24: #{lstm_video_classifier.1} parent=1 // pred_region
      _
    $region25: #{lstm_video_classifier.1} parent=1 // pred_fallthru
      _
    // Predicated region
    $region26: #{lstm_video_classifier.1} parent=1 // pred_check
      _
    $region27: #{lstm_video_classifier.1} parent=1 // pred_check_branch
      %40 = sbr.rel (0) target = $region29
    $region28: #{lstm_video_classifier.1} parent=1 // pred_region
      _
    $region29: #{lstm_video_classifier.1} parent=1 // pred_fallthru
      _
    // Predicated region
    $region30: #{lstm_video_classifier.1} parent=1 // pred_check
      _
    $region31: #{lstm_video_classifier.1} parent=1 // pred_check_branch
      %42 = sbr.rel (0) target = $region33
    $region32: #{lstm_video_classifier.1} parent=1 // pred_region
      _
    $region33: #{lstm_video_classifier.1} parent=1 // pred_fallthru
      _
    // Predicated region
    $region34: #{lstm_video_classifier.1} parent=1 // pred_check
      _
    $region35: #{lstm_video_classifier.1} parent=1 // pred_check_branch
      %44 = sbr.rel (0) target = $region37
    $region36: #{lstm_video_classifier.1} parent=1 // pred_region
      _
    $region37: #{lstm_video_classifier.1} parent=1 // pred_fallthru
      _
    // Predicated region
    $region38: #{lstm_video_classifier.1} parent=1 // pred_check
      _
    $region39: #{lstm_video_classifier.1} parent=1 // pred_check_branch
      %46 = sbr.rel (0) target = $region41
    $region40: #{lstm_video_classifier.1} parent=1 // pred_region
      %48 = dma.done [#allocation4], 32768
    $region41: #{lstm_video_classifier.1} parent=1 // pred_fallthru
      _
    %v50 = vld [vmem:[%s2] sm:$0xf]
    %v51 = vld [vmem:[#allocation3] sm:$0xff]
    %v52 = vld [vmem:[#allocation3 + $0x8] sm:$0xff]
    %v53 = vld [vmem:[#allocation3 + $0x10] sm:$0xff]
    %v54 = vld [vmem:[#allocation3 + $0x18] sm:$0xff]
    %v55 = vld [vmem:[#allocation3 + $0x20] sm:$0xff]
    %v56 = vld [vmem:[#allocation3 + $0x28] sm:$0xff]
    %v57 = vld [vmem:[#allocation3 + $0x30] sm:$0xff]
    %v58 = vld [vmem:[#allocation3 + $0x38] sm:$0xff]
    %v59 = vld [vmem:[#allocation3 + $0x40] sm:$0xff]
    %v60 = vld [vmem:[#allocation3 + $0x48] sm:$0xff]
    %v61 = vld [vmem:[#allocation3 + $0x50] sm:$0xff]
    %v62 = vld [vmem:[#allocation3 + $0x58] sm:$0xff]
    %v63 = vld [vmem:[#allocation3 + $0x60] sm:$0xff]
    %v64 = vld [vmem:[#allocation3 + $0x68] sm:$0xff]
    %v65 = vld [vmem:[#allocation3 + $0x70] sm:$0xff]
    %v66 = vld [vmem:[#allocation3 + $0x78] sm:$0xff]
    %v67 = vld [vmem:[#allocation3 + $0x80] sm:$0xff]
    %v68 = vld [vmem:[#allocation3 + $0x88] sm:$0xff]
    %v69 = vld [vmem:[#allocation3 + $0x90] sm:$0xff]
    %v70 = vld [vmem:[#allocation3 + $0x98] sm:$0xff]
    %v71 = vld [vmem:[#allocation3 + $0xa0] sm:$0xff]
    %v72 = vld [vmem:[#allocation3 + $0xa8] sm:$0xff]
    %v73 = vld [vmem:[#allocation3 + $0xb0] sm:$0xff]
    %v74 = vld [vmem:[#allocation3 + $0xb8] sm:$0xff]
    %v75 = vld [vmem:[#allocation3 + $0xc0] sm:$0xff]
    %v76 = vld [vmem:[#allocation3 + $0xc8] sm:$0xff]
    %v77 = vld [vmem:[#allocation3 + $0xd0] sm:$0xff]
    %v78 = vld [vmem:[#allocation3 + $0xd8] sm:$0xff]
    %v79 = vld [vmem:[#allocation3 + $0xe0] sm:$0xff]
    %v80 = vld [vmem:[#allocation3 + $0xe8] sm:$0xff]
    %v81 = vld [vmem:[#allocation3 + $0xf0] sm:$0xff]
    %v82 = vld [vmem:[#allocation3 + $0xf8] sm:$0xff]
    %v83 = vld [vmem:[#allocation3 + $0x100] sm:$0xff]
    %v84 = vld [vmem:[#allocation3 + $0x108] sm:$0xff]
    %v85 = vld [vmem:[#allocation3 + $0x110] sm:$0xff]
    %v86 = vld [vmem:[#allocation3 + $0x118] sm:$0xff]
    %v87 = vld [vmem:[#allocation3 + $0x120] sm:$0xff]
    %v88 = vld [vmem:[#allocation3 + $0x128] sm:$0xff]
    %v89 = vld [vmem:[#allocation3 + $0x130] sm:$0xff]
    %v90 = vld [vmem:[#allocation3 + $0x138] sm:$0xff]
    %v91 = vld [vmem:[#allocation3 + $0x140] sm:$0xff]
    %v92 = vld [vmem:[#allocation3 + $0x148] sm:$0xff]
    %v93 = vld [vmem:[#allocation3 + $0x150] sm:$0xff]
    %v94 = vld [vmem:[#allocation3 + $0x158] sm:$0xff]
    %v95 = vld [vmem:[#allocation3 + $0x160] sm:$0xff]
    %v96 = vld [vmem:[#allocation3 + $0x168] sm:$0xff]
    %v97 = vld [vmem:[#allocation3 + $0x170] sm:$0xff]
    %v98 = vld [vmem:[#allocation3 + $0x178] sm:$0xff]
    %v99 = vld [vmem:[#allocation3 + $0x180] sm:$0xff]
    %v100 = vld [vmem:[#allocation3 + $0x188] sm:$0xff]
    %v101 = vld [vmem:[#allocation3 + $0x190] sm:$0xff]
    %v102 = vld [vmem:[#allocation3 + $0x198] sm:$0xff]
    %v103 = vld [vmem:[#allocation3 + $0x1a0] sm:$0xff]
    %v104 = vld [vmem:[#allocation3 + $0x1a8] sm:$0xff]
    %v105 = vld [vmem:[#allocation3 + $0x1b0] sm:$0xff]
    %v106 = vld [vmem:[#allocation3 + $0x1b8] sm:$0xff]
    %v107 = vld [vmem:[#allocation3 + $0x1c0] sm:$0xff]
    %v108 = vld [vmem:[#allocation3 + $0x1c8] sm:$0xff]
    %v109 = vld [vmem:[#allocation3 + $0x1d0] sm:$0xff]
    %v110 = vld [vmem:[#allocation3 + $0x1d8] sm:$0xff]
    %v111 = vld [vmem:[#allocation3 + $0x1e0] sm:$0xff]
    %v112 = vld [vmem:[#allocation3 + $0x1e8] sm:$0xff]
    %v113 = vld [vmem:[#allocation3 + $0x1f0] sm:$0xff]
    %v114 = vld [vmem:[#allocation3 + $0x1f8] sm:$0xff]
    %v115 = vld [vmem:[#allocation3 + $0x200] sm:$0xff]
    %v116 = vld [vmem:[#allocation3 + $0x208] sm:$0xff]
    %v117 = vld [vmem:[#allocation3 + $0x210] sm:$0xff]
    %v118 = vld [vmem:[#allocation3 + $0x218] sm:$0xff]
    %v119 = vld [vmem:[#allocation3 + $0x220] sm:$0xff]
    %v120 = vld [vmem:[#allocation3 + $0x228] sm:$0xff]
    %v121 = vld [vmem:[#allocation3 + $0x230] sm:$0xff]
    %v122 = vld [vmem:[#allocation3 + $0x238] sm:$0xff]
    %v123 = vld [vmem:[#allocation3 + $0x240] sm:$0xff]
    %v124 = vld [vmem:[#allocation3 + $0x248] sm:$0xff]
    %v125 = vld [vmem:[#allocation3 + $0x250] sm:$0xff]
    %v126 = vld [vmem:[#allocation3 + $0x258] sm:$0xff]
    %v127 = vld [vmem:[#allocation3 + $0x260] sm:$0xff]
    %v128 = vld [vmem:[#allocation3 + $0x268] sm:$0xff]
    %v129 = vld [vmem:[#allocation3 + $0x270] sm:$0xff]
    %v130 = vld [vmem:[#allocation3 + $0x278] sm:$0xff]
    %v131 = vld [vmem:[#allocation3 + $0x280] sm:$0xff]
    %v132 = vld [vmem:[#allocation3 + $0x288] sm:$0xff]
    %v133 = vld [vmem:[#allocation3 + $0x290] sm:$0xff]
    %v134 = vld [vmem:[#allocation3 + $0x298] sm:$0xff]
    %v135 = vld [vmem:[#allocation3 + $0x2a0] sm:$0xff]
    %v136 = vld [vmem:[#allocation3 + $0x2a8] sm:$0xff]
    %v137 = vld [vmem:[#allocation3 + $0x2b0] sm:$0xff]
    %v138 = vld [vmem:[#allocation3 + $0x2b8] sm:$0xff]
    %v139 = vld [vmem:[#allocation3 + $0x2c0] sm:$0xff]
    %v140 = vld [vmem:[#allocation3 + $0x2c8] sm:$0xff]
    %v141 = vld [vmem:[#allocation3 + $0x2d0] sm:$0xff]
    %v142 = vld [vmem:[#allocation3 + $0x2d8] sm:$0xff]
    %v143 = vld [vmem:[#allocation3 + $0x2e0] sm:$0xff]
    %v144 = vld [vmem:[#allocation3 + $0x2e8] sm:$0xff]
    %v145 = vld [vmem:[#allocation3 + $0x2f0] sm:$0xff]
    %v146 = vld [vmem:[#allocation3 + $0x2f8] sm:$0xff]
    %v147 = vld [vmem:[#allocation3 + $0x300] sm:$0xff]
    %v148 = vld [vmem:[#allocation3 + $0x308] sm:$0xff]
    %v149 = vld [vmem:[#allocation3 + $0x310] sm:$0xff]
    %v150 = vld [vmem:[#allocation3 + $0x318] sm:$0xff]
    %v151 = vld [vmem:[#allocation3 + $0x320] sm:$0xff]
    %v152 = vld [vmem:[#allocation3 + $0x328] sm:$0xff]
    %v153 = vld [vmem:[#allocation3 + $0x330] sm:$0xff]
    %v154 = vld [vmem:[#allocation3 + $0x338] sm:$0xff]
    %v155 = vld [vmem:[#allocation3 + $0x340] sm:$0xff]
    %v156 = vld [vmem:[#allocation3 + $0x348] sm:$0xff]
    %v157 = vld [vmem:[#allocation3 + $0x350] sm:$0xff]
    %v158 = vld [vmem:[#allocation3 + $0x358] sm:$0xff]
    %v159 = vld [vmem:[#allocation3 + $0x360] sm:$0xff]
    %v160 = vld [vmem:[#allocation3 + $0x368] sm:$0xff]
    %v161 = vld [vmem:[#allocation3 + $0x370] sm:$0xff]
    %v162 = vld [vmem:[#allocation3 + $0x378] sm:$0xff]
    %v163 = vld [vmem:[#allocation3 + $0x380] sm:$0xff]
    %v164 = vld [vmem:[#allocation3 + $0x388] sm:$0xff]
    %v165 = vld [vmem:[#allocation3 + $0x390] sm:$0xff]
    %v166 = vld [vmem:[#allocation3 + $0x398] sm:$0xff]
    %v167 = vld [vmem:[#allocation3 + $0x3a0] sm:$0xff]
    %v168 = vld [vmem:[#allocation3 + $0x3a8] sm:$0xff]
    %v169 = vld [vmem:[#allocation3 + $0x3b0] sm:$0xff]
    %v170 = vld [vmem:[#allocation3 + $0x3b8] sm:$0xff]
    %v171 = vld [vmem:[#allocation3 + $0x3c0] sm:$0xff]
    %v172 = vld [vmem:[#allocation3 + $0x3c8] sm:$0xff]
    %v173 = vld [vmem:[#allocation3 + $0x3d0] sm:$0xff]
    %v174 = vld [vmem:[#allocation3 + $0x3d8] sm:$0xff]
    %v175 = vld [vmem:[#allocation3 + $0x3e0] sm:$0xff]
    %v176 = vld [vmem:[#allocation3 + $0x3e8] sm:$0xff]
    %v177 = vld [vmem:[#allocation3 + $0x3f0] sm:$0xff]
    %v178 = vld [vmem:[#allocation3 + $0x3f8] sm:$0xff]
    %v179 = vld [vmem:[#allocation3 + $0x400] sm:$0xff]
    %v180 = vld [vmem:[#allocation3 + $0x408] sm:$0xff]
    %v181 = vld [vmem:[#allocation3 + $0x410] sm:$0xff]
    %v182 = vld [vmem:[#allocation3 + $0x418] sm:$0xff]
    %v183 = vld [vmem:[#allocation3 + $0x420] sm:$0xff]
    %v184 = vld [vmem:[#allocation3 + $0x428] sm:$0xff]
    %v185 = vld [vmem:[#allocation3 + $0x430] sm:$0xff]
    %v186 = vld [vmem:[#allocation3 + $0x438] sm:$0xff]
    %v187 = vld [vmem:[#allocation3 + $0x440] sm:$0xff]
    %v188 = vld [vmem:[#allocation3 + $0x448] sm:$0xff]
    %v189 = vld [vmem:[#allocation3 + $0x450] sm:$0xff]
    %v190 = vld [vmem:[#allocation3 + $0x458] sm:$0xff]
    %v191 = vld [vmem:[#allocation3 + $0x460] sm:$0xff]
    %v192 = vld [vmem:[#allocation3 + $0x468] sm:$0xff]
    %v193 = vld [vmem:[#allocation3 + $0x470] sm:$0xff]
    %v194 = vld [vmem:[#allocation3 + $0x478] sm:$0xff]
    %v195 = vld [vmem:[#allocation3 + $0x480] sm:$0xff]
    %v196 = vld [vmem:[#allocation3 + $0x488] sm:$0xff]
    %v197 = vld [vmem:[#allocation3 + $0x490] sm:$0xff]
    %v198 = vld [vmem:[#allocation3 + $0x498] sm:$0xff]
    %v199 = vld [vmem:[#allocation3 + $0x4a0] sm:$0xff]
    %v200 = vld [vmem:[#allocation3 + $0x4a8] sm:$0xff]
    %v201 = vld [vmem:[#allocation3 + $0x4b0] sm:$0xff]
    %v202 = vld [vmem:[#allocation3 + $0x4b8] sm:$0xff]
    %v203 = vld [vmem:[#allocation3 + $0x4c0] sm:$0xff]
    %v204 = vld [vmem:[#allocation3 + $0x4c8] sm:$0xff]
    %v205 = vld [vmem:[#allocation3 + $0x4d0] sm:$0xff]
    %v206 = vld [vmem:[#allocation3 + $0x4d8] sm:$0xff]
    %v207 = vld [vmem:[#allocation3 + $0x4e0] sm:$0xff]
    %v208 = vld [vmem:[#allocation3 + $0x4e8] sm:$0xff]
    %v209 = vld [vmem:[#allocation3 + $0x4f0] sm:$0xff]
    %v210 = vld [vmem:[#allocation3 + $0x4f8] sm:$0xff]
    %v211 = vld [vmem:[#allocation3 + $0x500] sm:$0xff]
    %v212 = vld [vmem:[#allocation3 + $0x508] sm:$0xff]
    %v213 = vld [vmem:[#allocation3 + $0x510] sm:$0xff]
    %v214 = vld [vmem:[#allocation3 + $0x518] sm:$0xff]
    %v215 = vld [vmem:[#allocation3 + $0x520] sm:$0xff]
    %v216 = vld [vmem:[#allocation3 + $0x528] sm:$0xff]
    %v217 = vld [vmem:[#allocation3 + $0x530] sm:$0xff]
    %v218 = vld [vmem:[#allocation3 + $0x538] sm:$0xff]
    %v219 = vld [vmem:[#allocation3 + $0x540] sm:$0xff]
    %v220 = vld [vmem:[#allocation3 + $0x548] sm:$0xff]
    %v221 = vld [vmem:[#allocation3 + $0x550] sm:$0xff]
    %v222 = vld [vmem:[#allocation3 + $0x558] sm:$0xff]
    %v223 = vld [vmem:[#allocation3 + $0x560] sm:$0xff]
    %v224 = vld [vmem:[#allocation3 + $0x568] sm:$0xff]
    %v225 = vld [vmem:[#allocation3 + $0x570] sm:$0xff]
    %v226 = vld [vmem:[#allocation3 + $0x578] sm:$0xff]
    %v227 = vld [vmem:[#allocation3 + $0x580] sm:$0xff]
    %v228 = vld [vmem:[#allocation3 + $0x588] sm:$0xff]
    %v229 = vld [vmem:[#allocation3 + $0x590] sm:$0xff]
    %v230 = vld [vmem:[#allocation3 + $0x598] sm:$0xff]
    %v231 = vld [vmem:[#allocation3 + $0x5a0] sm:$0xff]
    %v232 = vld [vmem:[#allocation3 + $0x5a8] sm:$0xff]
    %v233 = vld [vmem:[#allocation3 + $0x5b0] sm:$0xff]
    %v234 = vld [vmem:[#allocation3 + $0x5b8] sm:$0xff]
    %v235 = vld [vmem:[#allocation3 + $0x5c0] sm:$0xff]
    %v236 = vld [vmem:[#allocation3 + $0x5c8] sm:$0xff]
    %v237 = vld [vmem:[#allocation3 + $0x5d0] sm:$0xff]
    %v238 = vld [vmem:[#allocation3 + $0x5d8] sm:$0xff]
    %v239 = vld [vmem:[#allocation3 + $0x5e0] sm:$0xff]
    %v240 = vld [vmem:[#allocation3 + $0x5e8] sm:$0xff]
    %v241 = vld [vmem:[#allocation3 + $0x5f0] sm:$0xff]
    %v242 = vld [vmem:[#allocation3 + $0x5f8] sm:$0xff]
    %v243 = vld [vmem:[#allocation3 + $0x600] sm:$0xff]
    %v244 = vld [vmem:[#allocation3 + $0x608] sm:$0xff]
    %v245 = vld [vmem:[#allocation3 + $0x610] sm:$0xff]
    %v246 = vld [vmem:[#allocation3 + $0x618] sm:$0xff]
    %v247 = vld [vmem:[#allocation3 + $0x620] sm:$0xff]
    %v248 = vld [vmem:[#allocation3 + $0x628] sm:$0xff]
    %v249 = vld [vmem:[#allocation3 + $0x630] sm:$0xff]
    %v250 = vld [vmem:[#allocation3 + $0x638] sm:$0xff]
    %v251 = vld [vmem:[#allocation3 + $0x640] sm:$0xff]
    %v252 = vld [vmem:[#allocation3 + $0x648] sm:$0xff]
    %v253 = vld [vmem:[#allocation3 + $0x650] sm:$0xff]
    %v254 = vld [vmem:[#allocation3 + $0x658] sm:$0xff]
    %v255 = vld [vmem:[#allocation3 + $0x660] sm:$0xff]
    %v256 = vld [vmem:[#allocation3 + $0x668] sm:$0xff]
    %v257 = vld [vmem:[#allocation3 + $0x670] sm:$0xff]
    %v258 = vld [vmem:[#allocation3 + $0x678] sm:$0xff]
    %v259 = vld [vmem:[#allocation3 + $0x680] sm:$0xff]
    %v260 = vld [vmem:[#allocation3 + $0x688] sm:$0xff]
    %v261 = vld [vmem:[#allocation3 + $0x690] sm:$0xff]
    %v262 = vld [vmem:[#allocation3 + $0x698] sm:$0xff]
    %v263 = vld [vmem:[#allocation3 + $0x6a0] sm:$0xff]
    %v264 = vld [vmem:[#allocation3 + $0x6a8] sm:$0xff]
    %v265 = vld [vmem:[#allocation3 + $0x6b0] sm:$0xff]
    %v266 = vld [vmem:[#allocation3 + $0x6b8] sm:$0xff]
    %v267 = vld [vmem:[#allocation3 + $0x6c0] sm:$0xff]
    %v268 = vld [vmem:[#allocation3 + $0x6c8] sm:$0xff]
    %v269 = vld [vmem:[#allocation3 + $0x6d0] sm:$0xff]
    %v270 = vld [vmem:[#allocation3 + $0x6d8] sm:$0xff]
    %v271 = vld [vmem:[#allocation3 + $0x6e0] sm:$0xff]
    %v272 = vld [vmem:[#allocation3 + $0x6e8] sm:$0xff]
    %v273 = vld [vmem:[#allocation3 + $0x6f0] sm:$0xff]
    %v274 = vld [vmem:[#allocation3 + $0x6f8] sm:$0xff]
    %v275 = vld [vmem:[#allocation3 + $0x700] sm:$0xff]
    %v276 = vld [vmem:[#allocation3 + $0x708] sm:$0xff]
    %v277 = vld [vmem:[#allocation3 + $0x710] sm:$0xff]
    %v278 = vld [vmem:[#allocation3 + $0x718] sm:$0xff]
    %v279 = vld [vmem:[#allocation3 + $0x720] sm:$0xff]
    %v280 = vld [vmem:[#allocation3 + $0x728] sm:$0xff]
    %v281 = vld [vmem:[#allocation3 + $0x730] sm:$0xff]
    %v282 = vld [vmem:[#allocation3 + $0x738] sm:$0xff]
    %v283 = vld [vmem:[#allocation3 + $0x740] sm:$0xff]
    %v284 = vld [vmem:[#allocation3 + $0x748] sm:$0xff]
    %v285 = vld [vmem:[#allocation3 + $0x750] sm:$0xff]
    %v286 = vld [vmem:[#allocation3 + $0x758] sm:$0xff]
    %v287 = vld [vmem:[#allocation3 + $0x760] sm:$0xff]
    %v288 = vld [vmem:[#allocation3 + $0x768] sm:$0xff]
    %v289 = vld [vmem:[#allocation3 + $0x770] sm:$0xff]
    %v290 = vld [vmem:[#allocation3 + $0x778] sm:$0xff]
    %v291 = vld [vmem:[#allocation3 + $0x780] sm:$0xff]
    %v292 = vld [vmem:[#allocation3 + $0x788] sm:$0xff]
    %v293 = vld [vmem:[#allocation3 + $0x790] sm:$0xff]
    %v294 = vld [vmem:[#allocation3 + $0x798] sm:$0xff]
    %v295 = vld [vmem:[#allocation3 + $0x7a0] sm:$0xff]
    %v296 = vld [vmem:[#allocation3 + $0x7a8] sm:$0xff]
    %v297 = vld [vmem:[#allocation3 + $0x7b0] sm:$0xff]
    %v298 = vld [vmem:[#allocation3 + $0x7b8] sm:$0xff]
    %v299 = vld [vmem:[#allocation3 + $0x7c0] sm:$0xff]
    %v300 = vld [vmem:[#allocation3 + $0x7c8] sm:$0xff]
    %v301 = vld [vmem:[#allocation3 + $0x7d0] sm:$0xff]
    %v302 = vld [vmem:[#allocation3 + $0x7d8] sm:$0xff]
    %v303 = vld [vmem:[#allocation3 + $0x7e0] sm:$0xff]
    %v304 = vld [vmem:[#allocation3 + $0x7e8] sm:$0xff]
    %v305 = vld [vmem:[#allocation3 + $0x7f0] sm:$0xff]
    %v306 = vld [vmem:[#allocation3 + $0x7f8] sm:$0xff]
    %v307 = vld [vmem:[%s0] sm:$0xff]
    %v308 = vld [vmem:[%s0 + $0x8] sm:$0xff]
    %v309 = vld [vmem:[%s0 + $0x10] sm:$0xff]
    %v310 = vld [vmem:[%s0 + $0x18] sm:$0xff]
    %v311 = vld [vmem:[%s0 + $0x20] sm:$0xff]
    %v312 = vld [vmem:[%s0 + $0x28] sm:$0xff]
    %v313 = vld [vmem:[%s0 + $0x30] sm:$0xff]
    %v314 = vld [vmem:[%s0 + $0x38] sm:$0xff]
    %v315 = vpack.c.bf16 %v307, %v307
    %v316 = vpack.c.bf16 %v308, %v308
    %v317 = vpack.c.bf16 %v309, %v309
    %v318 = vpack.c.bf16 %v310, %v310
    %v319 = vpack.c.bf16 %v311, %v311
    %v320 = vpack.c.bf16 %v312, %v312
    %v321 = vpack.c.bf16 %v313, %v313
    %v322 = vpack.c.bf16 %v314, %v314
    %v324 = vperm.slane %v50, 0
    %v325 = vperm.slane %v50, 1
    %v326 = vperm.slane %v50, 2
    %v327 = vperm.slane %v50, 3
    %v588 = vunpack.c.l.b16 %v51
    %v589 = vunpack.c.h.b16 %v51
    %v590 = vunpack.c.l.b16 %v52
    %v591 = vunpack.c.h.b16 %v52
    %v592 = vunpack.c.l.b16 %v53
    %v593 = vunpack.c.h.b16 %v53
    %v594 = vunpack.c.l.b16 %v54
    %v595 = vunpack.c.h.b16 %v54
    %v596 = vunpack.c.l.b16 %v55
    %v597 = vunpack.c.h.b16 %v55
    %v598 = vunpack.c.l.b16 %v56
    %v599 = vunpack.c.h.b16 %v56
    %v600 = vunpack.c.l.b16 %v57
    %v601 = vunpack.c.h.b16 %v57
    %v602 = vunpack.c.l.b16 %v58
    %v603 = vunpack.c.h.b16 %v58
    %v604 = vunpack.c.l.b16 %v59
    %v605 = vunpack.c.h.b16 %v59
    %v606 = vunpack.c.l.b16 %v60
    %v607 = vunpack.c.h.b16 %v60
    %v608 = vunpack.c.l.b16 %v61
    %v609 = vunpack.c.h.b16 %v61
    %v610 = vunpack.c.l.b16 %v62
    %v611 = vunpack.c.h.b16 %v62
    %v612 = vunpack.c.l.b16 %v63
    %v613 = vunpack.c.h.b16 %v63
    %v614 = vunpack.c.l.b16 %v64
    %v615 = vunpack.c.h.b16 %v64
    %v616 = vunpack.c.l.b16 %v65
    %v617 = vunpack.c.h.b16 %v65
    %v618 = vunpack.c.l.b16 %v66
    %v619 = vunpack.c.h.b16 %v66
    %v620 = vunpack.c.l.b16 %v67
    %v621 = vunpack.c.h.b16 %v67
    %v622 = vunpack.c.l.b16 %v68
    %v623 = vunpack.c.h.b16 %v68
    %v624 = vunpack.c.l.b16 %v69
    %v625 = vunpack.c.h.b16 %v69
    %v626 = vunpack.c.l.b16 %v70
    %v627 = vunpack.c.h.b16 %v70
    %v628 = vunpack.c.l.b16 %v71
    %v629 = vunpack.c.h.b16 %v71
    %v630 = vunpack.c.l.b16 %v72
    %v631 = vunpack.c.h.b16 %v72
    %v632 = vunpack.c.l.b16 %v73
    %v633 = vunpack.c.h.b16 %v73
    %v634 = vunpack.c.l.b16 %v74
    %v635 = vunpack.c.h.b16 %v74
    %v636 = vunpack.c.l.b16 %v75
    %v637 = vunpack.c.h.b16 %v75
    %v638 = vunpack.c.l.b16 %v76
    %v639 = vunpack.c.h.b16 %v76
    %v640 = vunpack.c.l.b16 %v77
    %v641 = vunpack.c.h.b16 %v77
    %v642 = vunpack.c.l.b16 %v78
    %v643 = vunpack.c.h.b16 %v78
    %v644 = vunpack.c.l.b16 %v79
    %v645 = vunpack.c.h.b16 %v79
    %v646 = vunpack.c.l.b16 %v80
    %v647 = vunpack.c.h.b16 %v80
    %v648 = vunpack.c.l.b16 %v81
    %v649 = vunpack.c.h.b16 %v81
    %v650 = vunpack.c.l.b16 %v82
    %v651 = vunpack.c.h.b16 %v82
    %v652 = vunpack.c.l.b16 %v83
    %v653 = vunpack.c.h.b16 %v83
    %v654 = vunpack.c.l.b16 %v84
    %v655 = vunpack.c.h.b16 %v84
    %v656 = vunpack.c.l.b16 %v85
    %v657 = vunpack.c.h.b16 %v85
    %v658 = vunpack.c.l.b16 %v86
    %v659 = vunpack.c.h.b16 %v86
    %v660 = vunpack.c.l.b16 %v87
    %v661 = vunpack.c.h.b16 %v87
    %v662 = vunpack.c.l.b16 %v88
    %v663 = vunpack.c.h.b16 %v88
    %v664 = vunpack.c.l.b16 %v89
    %v665 = vunpack.c.h.b16 %v89
    %v666 = vunpack.c.l.b16 %v90
    %v667 = vunpack.c.h.b16 %v90
    %v668 = vunpack.c.l.b16 %v91
    %v669 = vunpack.c.h.b16 %v91
    %v670 = vunpack.c.l.b16 %v92
    %v671 = vunpack.c.h.b16 %v92
    %v672 = vunpack.c.l.b16 %v93
    %v673 = vunpack.c.h.b16 %v93
    %v674 = vunpack.c.l.b16 %v94
    %v675 = vunpack.c.h.b16 %v94
    %v676 = vunpack.c.l.b16 %v95
    %v677 = vunpack.c.h.b16 %v95
    %v678 = vunpack.c.l.b16 %v96
    %v679 = vunpack.c.h.b16 %v96
    %v680 = vunpack.c.l.b16 %v97
    %v681 = vunpack.c.h.b16 %v97
    %v682 = vunpack.c.l.b16 %v98
    %v683 = vunpack.c.h.b16 %v98
    %v684 = vunpack.c.l.b16 %v99
    %v685 = vunpack.c.h.b16 %v99
    %v686 = vunpack.c.l.b16 %v100
    %v687 = vunpack.c.h.b16 %v100
    %v688 = vunpack.c.l.b16 %v101
    %v689 = vunpack.c.h.b16 %v101
    %v690 = vunpack.c.l.b16 %v102
    %v691 = vunpack.c.h.b16 %v102
    %v692 = vunpack.c.l.b16 %v103
    %v693 = vunpack.c.h.b16 %v103
    %v694 = vunpack.c.l.b16 %v104
    %v695 = vunpack.c.h.b16 %v104
    %v696 = vunpack.c.l.b16 %v105
    %v697 = vunpack.c.h.b16 %v105
    %v698 = vunpack.c.l.b16 %v106
    %v699 = vunpack.c.h.b16 %v106
    %v700 = vunpack.c.l.b16 %v107
    %v701 = vunpack.c.h.b16 %v107
    %v702 = vunpack.c.l.b16 %v108
    %v703 = vunpack.c.h.b16 %v108
    %v704 = vunpack.c.l.b16 %v109
    %v705 = vunpack.c.h.b16 %v109
    %v706 = vunpack.c.l.b16 %v110
    %v707 = vunpack.c.h.b16 %v110
    %v708 = vunpack.c.l.b16 %v111
    %v709 = vunpack.c.h.b16 %v111
    %v710 = vunpack.c.l.b16 %v112
    %v711 = vunpack.c.h.b16 %v112
    %v712 = vunpack.c.l.b16 %v113
    %v713 = vunpack.c.h.b16 %v113
    %v714 = vunpack.c.l.b16 %v114
    %v715 = vunpack.c.h.b16 %v114
    %v716 = vunpack.c.l.b16 %v115
    %v717 = vunpack.c.h.b16 %v115
    %v718 = vunpack.c.l.b16 %v116
    %v719 = vunpack.c.h.b16 %v116
    %v720 = vunpack.c.l.b16 %v117
    %v721 = vunpack.c.h.b16 %v117
    %v722 = vunpack.c.l.b16 %v118
    %v723 = vunpack.c.h.b16 %v118
    %v724 = vunpack.c.l.b16 %v119
    %v725 = vunpack.c.h.b16 %v119
    %v726 = vunpack.c.l.b16 %v120
    %v727 = vunpack.c.h.b16 %v120
    %v728 = vunpack.c.l.b16 %v121
    %v729 = vunpack.c.h.b16 %v121
    %v730 = vunpack.c.l.b16 %v122
    %v731 = vunpack.c.h.b16 %v122
    %v732 = vunpack.c.l.b16 %v123
    %v733 = vunpack.c.h.b16 %v123
    %v734 = vunpack.c.l.b16 %v124
    %v735 = vunpack.c.h.b16 %v124
    %v736 = vunpack.c.l.b16 %v125
    %v737 = vunpack.c.h.b16 %v125
    %v738 = vunpack.c.l.b16 %v126
    %v739 = vunpack.c.h.b16 %v126
    %v740 = vunpack.c.l.b16 %v127
    %v741 = vunpack.c.h.b16 %v127
    %v742 = vunpack.c.l.b16 %v128
    %v743 = vunpack.c.h.b16 %v128
    %v744 = vunpack.c.l.b16 %v129
    %v745 = vunpack.c.h.b16 %v129
    %v746 = vunpack.c.l.b16 %v130
    %v747 = vunpack.c.h.b16 %v130
    %v748 = vunpack.c.l.b16 %v131
    %v749 = vunpack.c.h.b16 %v131
    %v750 = vunpack.c.l.b16 %v132
    %v751 = vunpack.c.h.b16 %v132
    %v752 = vunpack.c.l.b16 %v133
    %v753 = vunpack.c.h.b16 %v133
    %v754 = vunpack.c.l.b16 %v134
    %v755 = vunpack.c.h.b16 %v134
    %v756 = vunpack.c.l.b16 %v135
    %v757 = vunpack.c.h.b16 %v135
    %v758 = vunpack.c.l.b16 %v136
    %v759 = vunpack.c.h.b16 %v136
    %v760 = vunpack.c.l.b16 %v137
    %v761 = vunpack.c.h.b16 %v137
    %v762 = vunpack.c.l.b16 %v138
    %v763 = vunpack.c.h.b16 %v138
    %v764 = vunpack.c.l.b16 %v139
    %v765 = vunpack.c.h.b16 %v139
    %v766 = vunpack.c.l.b16 %v140
    %v767 = vunpack.c.h.b16 %v140
    %v768 = vunpack.c.l.b16 %v141
    %v769 = vunpack.c.h.b16 %v141
    %v770 = vunpack.c.l.b16 %v142
    %v771 = vunpack.c.h.b16 %v142
    %v772 = vunpack.c.l.b16 %v143
    %v773 = vunpack.c.h.b16 %v143
    %v774 = vunpack.c.l.b16 %v144
    %v775 = vunpack.c.h.b16 %v144
    %v776 = vunpack.c.l.b16 %v145
    %v777 = vunpack.c.h.b16 %v145
    %v778 = vunpack.c.l.b16 %v146
    %v779 = vunpack.c.h.b16 %v146
    %v780 = vunpack.c.l.b16 %v147
    %v781 = vunpack.c.h.b16 %v147
    %v782 = vunpack.c.l.b16 %v148
    %v783 = vunpack.c.h.b16 %v148
    %v784 = vunpack.c.l.b16 %v149
    %v785 = vunpack.c.h.b16 %v149
    %v786 = vunpack.c.l.b16 %v150
    %v787 = vunpack.c.h.b16 %v150
    %v788 = vunpack.c.l.b16 %v151
    %v789 = vunpack.c.h.b16 %v151
    %v790 = vunpack.c.l.b16 %v152
    %v791 = vunpack.c.h.b16 %v152
    %v792 = vunpack.c.l.b16 %v153
    %v793 = vunpack.c.h.b16 %v153
    %v794 = vunpack.c.l.b16 %v154
    %v795 = vunpack.c.h.b16 %v154
    %v796 = vunpack.c.l.b16 %v155
    %v797 = vunpack.c.h.b16 %v155
    %v798 = vunpack.c.l.b16 %v156
    %v799 = vunpack.c.h.b16 %v156
    %v800 = vunpack.c.l.b16 %v157
    %v801 = vunpack.c.h.b16 %v157
    %v802 = vunpack.c.l.b16 %v158
    %v803 = vunpack.c.h.b16 %v158
    %v804 = vunpack.c.l.b16 %v159
    %v805 = vunpack.c.h.b16 %v159
    %v806 = vunpack.c.l.b16 %v160
    %v807 = vunpack.c.h.b16 %v160
    %v808 = vunpack.c.l.b16 %v161
    %v809 = vunpack.c.h.b16 %v161
    %v810 = vunpack.c.l.b16 %v162
    %v811 = vunpack.c.h.b16 %v162
    %v812 = vunpack.c.l.b16 %v163
    %v813 = vunpack.c.h.b16 %v163
    %v814 = vunpack.c.l.b16 %v164
    %v815 = vunpack.c.h.b16 %v164
    %v816 = vunpack.c.l.b16 %v165
    %v817 = vunpack.c.h.b16 %v165
    %v818 = vunpack.c.l.b16 %v166
    %v819 = vunpack.c.h.b16 %v166
    %v820 = vunpack.c.l.b16 %v167
    %v821 = vunpack.c.h.b16 %v167
    %v822 = vunpack.c.l.b16 %v168
    %v823 = vunpack.c.h.b16 %v168
    %v824 = vunpack.c.l.b16 %v169
    %v825 = vunpack.c.h.b16 %v169
    %v826 = vunpack.c.l.b16 %v170
    %v827 = vunpack.c.h.b16 %v170
    %v828 = vunpack.c.l.b16 %v171
    %v829 = vunpack.c.h.b16 %v171
    %v830 = vunpack.c.l.b16 %v172
    %v831 = vunpack.c.h.b16 %v172
    %v832 = vunpack.c.l.b16 %v173
    %v833 = vunpack.c.h.b16 %v173
    %v834 = vunpack.c.l.b16 %v174
    %v835 = vunpack.c.h.b16 %v174
    %v836 = vunpack.c.l.b16 %v175
    %v837 = vunpack.c.h.b16 %v175
    %v838 = vunpack.c.l.b16 %v176
    %v839 = vunpack.c.h.b16 %v176
    %v840 = vunpack.c.l.b16 %v177
    %v841 = vunpack.c.h.b16 %v177
    %v842 = vunpack.c.l.b16 %v178
    %v843 = vunpack.c.h.b16 %v178
    %v844 = vunpack.c.l.b16 %v179
    %v845 = vunpack.c.h.b16 %v179
    %v846 = vunpack.c.l.b16 %v180
    %v847 = vunpack.c.h.b16 %v180
    %v848 = vunpack.c.l.b16 %v181
    %v849 = vunpack.c.h.b16 %v181
    %v850 = vunpack.c.l.b16 %v182
    %v851 = vunpack.c.h.b16 %v182
    %v852 = vunpack.c.l.b16 %v183
    %v853 = vunpack.c.h.b16 %v183
    %v854 = vunpack.c.l.b16 %v184
    %v855 = vunpack.c.h.b16 %v184
    %v856 = vunpack.c.l.b16 %v185
    %v857 = vunpack.c.h.b16 %v185
    %v858 = vunpack.c.l.b16 %v186
    %v859 = vunpack.c.h.b16 %v186
    %v860 = vunpack.c.l.b16 %v187
    %v861 = vunpack.c.h.b16 %v187
    %v862 = vunpack.c.l.b16 %v188
    %v863 = vunpack.c.h.b16 %v188
    %v864 = vunpack.c.l.b16 %v189
    %v865 = vunpack.c.h.b16 %v189
    %v866 = vunpack.c.l.b16 %v190
    %v867 = vunpack.c.h.b16 %v190
    %v868 = vunpack.c.l.b16 %v191
    %v869 = vunpack.c.h.b16 %v191
    %v870 = vunpack.c.l.b16 %v192
    %v871 = vunpack.c.h.b16 %v192
    %v872 = vunpack.c.l.b16 %v193
    %v873 = vunpack.c.h.b16 %v193
    %v874 = vunpack.c.l.b16 %v194
    %v875 = vunpack.c.h.b16 %v194
    %v876 = vunpack.c.l.b16 %v195
    %v877 = vunpack.c.h.b16 %v195
    %v878 = vunpack.c.l.b16 %v196
    %v879 = vunpack.c.h.b16 %v196
    %v880 = vunpack.c.l.b16 %v197
    %v881 = vunpack.c.h.b16 %v197
    %v882 = vunpack.c.l.b16 %v198
    %v883 = vunpack.c.h.b16 %v198
    %v884 = vunpack.c.l.b16 %v199
    %v885 = vunpack.c.h.b16 %v199
    %v886 = vunpack.c.l.b16 %v200
    %v887 = vunpack.c.h.b16 %v200
    %v888 = vunpack.c.l.b16 %v201
    %v889 = vunpack.c.h.b16 %v201
    %v890 = vunpack.c.l.b16 %v202
    %v891 = vunpack.c.h.b16 %v202
    %v892 = vunpack.c.l.b16 %v203
    %v893 = vunpack.c.h.b16 %v203
    %v894 = vunpack.c.l.b16 %v204
    %v895 = vunpack.c.h.b16 %v204
    %v896 = vunpack.c.l.b16 %v205
    %v897 = vunpack.c.h.b16 %v205
    %v898 = vunpack.c.l.b16 %v206
    %v899 = vunpack.c.h.b16 %v206
    %v900 = vunpack.c.l.b16 %v207
    %v901 = vunpack.c.h.b16 %v207
    %v902 = vunpack.c.l.b16 %v208
    %v903 = vunpack.c.h.b16 %v208
    %v904 = vunpack.c.l.b16 %v209
    %v905 = vunpack.c.h.b16 %v209
    %v906 = vunpack.c.l.b16 %v210
    %v907 = vunpack.c.h.b16 %v210
    %v908 = vunpack.c.l.b16 %v211
    %v909 = vunpack.c.h.b16 %v211
    %v910 = vunpack.c.l.b16 %v212
    %v911 = vunpack.c.h.b16 %v212
    %v912 = vunpack.c.l.b16 %v213
    %v913 = vunpack.c.h.b16 %v213
    %v914 = vunpack.c.l.b16 %v214
    %v915 = vunpack.c.h.b16 %v214
    %v916 = vunpack.c.l.b16 %v215
    %v917 = vunpack.c.h.b16 %v215
    %v918 = vunpack.c.l.b16 %v216
    %v919 = vunpack.c.h.b16 %v216
    %v920 = vunpack.c.l.b16 %v217
    %v921 = vunpack.c.h.b16 %v217
    %v922 = vunpack.c.l.b16 %v218
    %v923 = vunpack.c.h.b16 %v218
    %v924 = vunpack.c.l.b16 %v219
    %v925 = vunpack.c.h.b16 %v219
    %v926 = vunpack.c.l.b16 %v220
    %v927 = vunpack.c.h.b16 %v220
    %v928 = vunpack.c.l.b16 %v221
    %v929 = vunpack.c.h.b16 %v221
    %v930 = vunpack.c.l.b16 %v222
    %v931 = vunpack.c.h.b16 %v222
    %v932 = vunpack.c.l.b16 %v223
    %v933 = vunpack.c.h.b16 %v223
    %v934 = vunpack.c.l.b16 %v224
    %v935 = vunpack.c.h.b16 %v224
    %v936 = vunpack.c.l.b16 %v225
    %v937 = vunpack.c.h.b16 %v225
    %v938 = vunpack.c.l.b16 %v226
    %v939 = vunpack.c.h.b16 %v226
    %v940 = vunpack.c.l.b16 %v227
    %v941 = vunpack.c.h.b16 %v227
    %v942 = vunpack.c.l.b16 %v228
    %v943 = vunpack.c.h.b16 %v228
    %v944 = vunpack.c.l.b16 %v229
    %v945 = vunpack.c.h.b16 %v229
    %v946 = vunpack.c.l.b16 %v230
    %v947 = vunpack.c.h.b16 %v230
    %v948 = vunpack.c.l.b16 %v231
    %v949 = vunpack.c.h.b16 %v231
    %v950 = vunpack.c.l.b16 %v232
    %v951 = vunpack.c.h.b16 %v232
    %v952 = vunpack.c.l.b16 %v233
    %v953 = vunpack.c.h.b16 %v233
    %v954 = vunpack.c.l.b16 %v234
    %v955 = vunpack.c.h.b16 %v234
    %v956 = vunpack.c.l.b16 %v235
    %v957 = vunpack.c.h.b16 %v235
    %v958 = vunpack.c.l.b16 %v236
    %v959 = vunpack.c.h.b16 %v236
    %v960 = vunpack.c.l.b16 %v237
    %v961 = vunpack.c.h.b16 %v237
    %v962 = vunpack.c.l.b16 %v238
    %v963 = vunpack.c.h.b16 %v238
    %v964 = vunpack.c.l.b16 %v239
    %v965 = vunpack.c.h.b16 %v239
    %v966 = vunpack.c.l.b16 %v240
    %v967 = vunpack.c.h.b16 %v240
    %v968 = vunpack.c.l.b16 %v241
    %v969 = vunpack.c.h.b16 %v241
    %v970 = vunpack.c.l.b16 %v242
    %v971 = vunpack.c.h.b16 %v242
    %v972 = vunpack.c.l.b16 %v243
    %v973 = vunpack.c.h.b16 %v243
    %v974 = vunpack.c.l.b16 %v244
    %v975 = vunpack.c.h.b16 %v244
    %v976 = vunpack.c.l.b16 %v245
    %v977 = vunpack.c.h.b16 %v245
    %v978 = vunpack.c.l.b16 %v246
    %v979 = vunpack.c.h.b16 %v246
    %v980 = vunpack.c.l.b16 %v247
    %v981 = vunpack.c.h.b16 %v247
    %v982 = vunpack.c.l.b16 %v248
    %v983 = vunpack.c.h.b16 %v248
    %v984 = vunpack.c.l.b16 %v249
    %v985 = vunpack.c.h.b16 %v249
    %v986 = vunpack.c.l.b16 %v250
    %v987 = vunpack.c.h.b16 %v250
    %v988 = vunpack.c.l.b16 %v251
    %v989 = vunpack.c.h.b16 %v251
    %v990 = vunpack.c.l.b16 %v252
    %v991 = vunpack.c.h.b16 %v252
    %v992 = vunpack.c.l.b16 %v253
    %v993 = vunpack.c.h.b16 %v253
    %v994 = vunpack.c.l.b16 %v254
    %v995 = vunpack.c.h.b16 %v254
    %v996 = vunpack.c.l.b16 %v255
    %v997 = vunpack.c.h.b16 %v255
    %v998 = vunpack.c.l.b16 %v256
    %v999 = vunpack.c.h.b16 %v256
    %v1000 = vunpack.c.l.b16 %v257
    %v1001 = vunpack.c.h.b16 %v257
    %v1002 = vunpack.c.l.b16 %v258
    %v1003 = vunpack.c.h.b16 %v258
    %v1004 = vunpack.c.l.b16 %v259
    %v1005 = vunpack.c.h.b16 %v259
    %v1006 = vunpack.c.l.b16 %v260
    %v1007 = vunpack.c.h.b16 %v260
    %v1008 = vunpack.c.l.b16 %v261
    %v1009 = vunpack.c.h.b16 %v261
    %v1010 = vunpack.c.l.b16 %v262
    %v1011 = vunpack.c.h.b16 %v262
    %v1012 = vunpack.c.l.b16 %v263
    %v1013 = vunpack.c.h.b16 %v263
    %v1014 = vunpack.c.l.b16 %v264
    %v1015 = vunpack.c.h.b16 %v264
    %v1016 = vunpack.c.l.b16 %v265
    %v1017 = vunpack.c.h.b16 %v265
    %v1018 = vunpack.c.l.b16 %v266
    %v1019 = vunpack.c.h.b16 %v266
    %v1020 = vunpack.c.l.b16 %v267
    %v1021 = vunpack.c.h.b16 %v267
    %v1022 = vunpack.c.l.b16 %v268
    %v1023 = vunpack.c.h.b16 %v268
    %v1024 = vunpack.c.l.b16 %v269
    %v1025 = vunpack.c.h.b16 %v269
    %v1026 = vunpack.c.l.b16 %v270
    %v1027 = vunpack.c.h.b16 %v270
    %v1028 = vunpack.c.l.b16 %v271
    %v1029 = vunpack.c.h.b16 %v271
    %v1030 = vunpack.c.l.b16 %v272
    %v1031 = vunpack.c.h.b16 %v272
    %v1032 = vunpack.c.l.b16 %v273
    %v1033 = vunpack.c.h.b16 %v273
    %v1034 = vunpack.c.l.b16 %v274
    %v1035 = vunpack.c.h.b16 %v274
    %v1036 = vunpack.c.l.b16 %v275
    %v1037 = vunpack.c.h.b16 %v275
    %v1038 = vunpack.c.l.b16 %v276
    %v1039 = vunpack.c.h.b16 %v276
    %v1040 = vunpack.c.l.b16 %v277
    %v1041 = vunpack.c.h.b16 %v277
    %v1042 = vunpack.c.l.b16 %v278
    %v1043 = vunpack.c.h.b16 %v278
    %v1044 = vunpack.c.l.b16 %v279
    %v1045 = vunpack.c.h.b16 %v279
    %v1046 = vunpack.c.l.b16 %v280
    %v1047 = vunpack.c.h.b16 %v280
    %v1048 = vunpack.c.l.b16 %v281
    %v1049 = vunpack.c.h.b16 %v281
    %v1050 = vunpack.c.l.b16 %v282
    %v1051 = vunpack.c.h.b16 %v282
    %v1052 = vunpack.c.l.b16 %v283
    %v1053 = vunpack.c.h.b16 %v283
    %v1054 = vunpack.c.l.b16 %v284
    %v1055 = vunpack.c.h.b16 %v284
    %v1056 = vunpack.c.l.b16 %v285
    %v1057 = vunpack.c.h.b16 %v285
    %v1058 = vunpack.c.l.b16 %v286
    %v1059 = vunpack.c.h.b16 %v286
    %v1060 = vunpack.c.l.b16 %v287
    %v1061 = vunpack.c.h.b16 %v287
    %v1062 = vunpack.c.l.b16 %v288
    %v1063 = vunpack.c.h.b16 %v288
    %v1064 = vunpack.c.l.b16 %v289
    %v1065 = vunpack.c.h.b16 %v289
    %v1066 = vunpack.c.l.b16 %v290
    %v1067 = vunpack.c.h.b16 %v290
    %v1068 = vunpack.c.l.b16 %v291
    %v1069 = vunpack.c.h.b16 %v291
    %v1070 = vunpack.c.l.b16 %v292
    %v1071 = vunpack.c.h.b16 %v292
    %v1072 = vunpack.c.l.b16 %v293
    %v1073 = vunpack.c.h.b16 %v293
    %v1074 = vunpack.c.l.b16 %v294
    %v1075 = vunpack.c.h.b16 %v294
    %v1076 = vunpack.c.l.b16 %v295
    %v1077 = vunpack.c.h.b16 %v295
    %v1078 = vunpack.c.l.b16 %v296
    %v1079 = vunpack.c.h.b16 %v296
    %v1080 = vunpack.c.l.b16 %v297
    %v1081 = vunpack.c.h.b16 %v297
    %v1082 = vunpack.c.l.b16 %v298
    %v1083 = vunpack.c.h.b16 %v298
    %v1084 = vunpack.c.l.b16 %v299
    %v1085 = vunpack.c.h.b16 %v299
    %v1086 = vunpack.c.l.b16 %v300
    %v1087 = vunpack.c.h.b16 %v300
    %v1088 = vunpack.c.l.b16 %v301
    %v1089 = vunpack.c.h.b16 %v301
    %v1090 = vunpack.c.l.b16 %v302
    %v1091 = vunpack.c.h.b16 %v302
    %v1092 = vunpack.c.l.b16 %v303
    %v1093 = vunpack.c.h.b16 %v303
    %v1094 = vunpack.c.l.b16 %v304
    %v1095 = vunpack.c.h.b16 %v304
    %v1096 = vunpack.c.l.b16 %v305
    %v1097 = vunpack.c.h.b16 %v305
    %v1098 = vunpack.c.l.b16 %v306
    %v1099 = vunpack.c.h.b16 %v306
    %v1100 = vpack.c.b16 %v592, %v588
    %v1101 = vpack.c.b16 %v593, %v589
    %v1102 = vpack.c.b16 %v594, %v590
    %v1103 = vpack.c.b16 %v595, %v591
    %v1104 = vpack.c.b16 %v600, %v596
    %v1105 = vpack.c.b16 %v601, %v597
    %v1106 = vpack.c.b16 %v602, %v598
    %v1107 = vpack.c.b16 %v603, %v599
    %v1108 = vpack.c.b16 %v608, %v604
    %v1109 = vpack.c.b16 %v609, %v605
    %v1110 = vpack.c.b16 %v610, %v606
    %v1111 = vpack.c.b16 %v611, %v607
    %v1112 = vpack.c.b16 %v616, %v612
    %v1113 = vpack.c.b16 %v617, %v613
    %v1114 = vpack.c.b16 %v618, %v614
    %v1115 = vpack.c.b16 %v619, %v615
    %v1116 = vpack.c.b16 %v624, %v620
    %v1117 = vpack.c.b16 %v625, %v621
    %v1118 = vpack.c.b16 %v626, %v622
    %v1119 = vpack.c.b16 %v627, %v623
    %v1120 = vpack.c.b16 %v632, %v628
    %v1121 = vpack.c.b16 %v633, %v629
    %v1122 = vpack.c.b16 %v634, %v630
    %v1123 = vpack.c.b16 %v635, %v631
    %v1124 = vpack.c.b16 %v640, %v636
    %v1125 = vpack.c.b16 %v641, %v637
    %v1126 = vpack.c.b16 %v642, %v638
    %v1127 = vpack.c.b16 %v643, %v639
    %v1128 = vpack.c.b16 %v648, %v644
    %v1129 = vpack.c.b16 %v649, %v645
    %v1130 = vpack.c.b16 %v650, %v646
    %v1131 = vpack.c.b16 %v651, %v647
    %v1132 = vpack.c.b16 %v656, %v652
    %v1133 = vpack.c.b16 %v657, %v653
    %v1134 = vpack.c.b16 %v658, %v654
    %v1135 = vpack.c.b16 %v659, %v655
    %v1136 = vpack.c.b16 %v664, %v660
    %v1137 = vpack.c.b16 %v665, %v661
    %v1138 = vpack.c.b16 %v666, %v662
    %v1139 = vpack.c.b16 %v667, %v663
    %v1140 = vpack.c.b16 %v672, %v668
    %v1141 = vpack.c.b16 %v673, %v669
    %v1142 = vpack.c.b16 %v674, %v670
    %v1143 = vpack.c.b16 %v675, %v671
    %v1144 = vpack.c.b16 %v680, %v676
    %v1145 = vpack.c.b16 %v681, %v677
    %v1146 = vpack.c.b16 %v682, %v678
    %v1147 = vpack.c.b16 %v683, %v679
    %v1148 = vpack.c.b16 %v688, %v684
    %v1149 = vpack.c.b16 %v689, %v685
    %v1150 = vpack.c.b16 %v690, %v686
    %v1151 = vpack.c.b16 %v691, %v687
    %v1152 = vpack.c.b16 %v696, %v692
    %v1153 = vpack.c.b16 %v697, %v693
    %v1154 = vpack.c.b16 %v698, %v694
    %v1155 = vpack.c.b16 %v699, %v695
    %v1156 = vpack.c.b16 %v704, %v700
    %v1157 = vpack.c.b16 %v705, %v701
    %v1158 = vpack.c.b16 %v706, %v702
    %v1159 = vpack.c.b16 %v707, %v703
    %v1160 = vpack.c.b16 %v712, %v708
    %v1161 = vpack.c.b16 %v713, %v709
    %v1162 = vpack.c.b16 %v714, %v710
    %v1163 = vpack.c.b16 %v715, %v711
    %v1164 = vpack.c.b16 %v720, %v716
    %v1165 = vpack.c.b16 %v721, %v717
    %v1166 = vpack.c.b16 %v722, %v718
    %v1167 = vpack.c.b16 %v723, %v719
    %v1168 = vpack.c.b16 %v728, %v724
    %v1169 = vpack.c.b16 %v729, %v725
    %v1170 = vpack.c.b16 %v730, %v726
    %v1171 = vpack.c.b16 %v731, %v727
    %v1172 = vpack.c.b16 %v736, %v732
    %v1173 = vpack.c.b16 %v737, %v733
    %v1174 = vpack.c.b16 %v738, %v734
    %v1175 = vpack.c.b16 %v739, %v735
    %v1176 = vpack.c.b16 %v744, %v740
    %v1177 = vpack.c.b16 %v745, %v741
    %v1178 = vpack.c.b16 %v746, %v742
    %v1179 = vpack.c.b16 %v747, %v743
    %v1180 = vpack.c.b16 %v752, %v748
    %v1181 = vpack.c.b16 %v753, %v749
    %v1182 = vpack.c.b16 %v754, %v750
    %v1183 = vpack.c.b16 %v755, %v751
    %v1184 = vpack.c.b16 %v760, %v756
    %v1185 = vpack.c.b16 %v761, %v757
    %v1186 = vpack.c.b16 %v762, %v758
    %v1187 = vpack.c.b16 %v763, %v759
    %v1188 = vpack.c.b16 %v768, %v764
    %v1189 = vpack.c.b16 %v769, %v765
    %v1190 = vpack.c.b16 %v770, %v766
    %v1191 = vpack.c.b16 %v771, %v767
    %v1192 = vpack.c.b16 %v776, %v772
    %v1193 = vpack.c.b16 %v777, %v773
    %v1194 = vpack.c.b16 %v778, %v774
    %v1195 = vpack.c.b16 %v779, %v775
    %v1196 = vpack.c.b16 %v784, %v780
    %v1197 = vpack.c.b16 %v785, %v781
    %v1198 = vpack.c.b16 %v786, %v782
    %v1199 = vpack.c.b16 %v787, %v783
    %v1200 = vpack.c.b16 %v792, %v788
    %v1201 = vpack.c.b16 %v793, %v789
    %v1202 = vpack.c.b16 %v794, %v790
    %v1203 = vpack.c.b16 %v795, %v791
    %v1204 = vpack.c.b16 %v800, %v796
    %v1205 = vpack.c.b16 %v801, %v797
    %v1206 = vpack.c.b16 %v802, %v798
    %v1207 = vpack.c.b16 %v803, %v799
    %v1208 = vpack.c.b16 %v808, %v804
    %v1209 = vpack.c.b16 %v809, %v805
    %v1210 = vpack.c.b16 %v810, %v806
    %v1211 = vpack.c.b16 %v811, %v807
    %v1212 = vpack.c.b16 %v816, %v812
    %v1213 = vpack.c.b16 %v817, %v813
    %v1214 = vpack.c.b16 %v818, %v814
    %v1215 = vpack.c.b16 %v819, %v815
    %v1216 = vpack.c.b16 %v824, %v820
    %v1217 = vpack.c.b16 %v825, %v821
    %v1218 = vpack.c.b16 %v826, %v822
    %v1219 = vpack.c.b16 %v827, %v823
    %v1220 = vpack.c.b16 %v832, %v828
    %v1221 = vpack.c.b16 %v833, %v829
    %v1222 = vpack.c.b16 %v834, %v830
    %v1223 = vpack.c.b16 %v835, %v831
    %v1224 = vpack.c.b16 %v840, %v836
    %v1225 = vpack.c.b16 %v841, %v837
    %v1226 = vpack.c.b16 %v842, %v838
    %v1227 = vpack.c.b16 %v843, %v839
    %v1228 = vpack.c.b16 %v848, %v844
    %v1229 = vpack.c.b16 %v849, %v845
    %v1230 = vpack.c.b16 %v850, %v846
    %v1231 = vpack.c.b16 %v851, %v847
    %v1232 = vpack.c.b16 %v856, %v852
    %v1233 = vpack.c.b16 %v857, %v853
    %v1234 = vpack.c.b16 %v858, %v854
    %v1235 = vpack.c.b16 %v859, %v855
    %v1236 = vpack.c.b16 %v864, %v860
    %v1237 = vpack.c.b16 %v865, %v861
    %v1238 = vpack.c.b16 %v866, %v862
    %v1239 = vpack.c.b16 %v867, %v863
    %v1240 = vpack.c.b16 %v872, %v868
    %v1241 = vpack.c.b16 %v873, %v869
    %v1242 = vpack.c.b16 %v874, %v870
    %v1243 = vpack.c.b16 %v875, %v871
    %v1244 = vpack.c.b16 %v880, %v876
    %v1245 = vpack.c.b16 %v881, %v877
    %v1246 = vpack.c.b16 %v882, %v878
    %v1247 = vpack.c.b16 %v883, %v879
    %v1248 = vpack.c.b16 %v888, %v884
    %v1249 = vpack.c.b16 %v889, %v885
    %v1250 = vpack.c.b16 %v890, %v886
    %v1251 = vpack.c.b16 %v891, %v887
    %v1252 = vpack.c.b16 %v896, %v892
    %v1253 = vpack.c.b16 %v897, %v893
    %v1254 = vpack.c.b16 %v898, %v894
    %v1255 = vpack.c.b16 %v899, %v895
    %v1256 = vpack.c.b16 %v904, %v900
    %v1257 = vpack.c.b16 %v905, %v901
    %v1258 = vpack.c.b16 %v906, %v902
    %v1259 = vpack.c.b16 %v907, %v903
    %v1260 = vpack.c.b16 %v912, %v908
    %v1261 = vpack.c.b16 %v913, %v909
    %v1262 = vpack.c.b16 %v914, %v910
    %v1263 = vpack.c.b16 %v915, %v911
    %v1264 = vpack.c.b16 %v920, %v916
    %v1265 = vpack.c.b16 %v921, %v917
    %v1266 = vpack.c.b16 %v922, %v918
    %v1267 = vpack.c.b16 %v923, %v919
    %v1268 = vpack.c.b16 %v928, %v924
    %v1269 = vpack.c.b16 %v929, %v925
    %v1270 = vpack.c.b16 %v930, %v926
    %v1271 = vpack.c.b16 %v931, %v927
    %v1272 = vpack.c.b16 %v936, %v932
    %v1273 = vpack.c.b16 %v937, %v933
    %v1274 = vpack.c.b16 %v938, %v934
    %v1275 = vpack.c.b16 %v939, %v935
    %v1276 = vpack.c.b16 %v944, %v940
    %v1277 = vpack.c.b16 %v945, %v941
    %v1278 = vpack.c.b16 %v946, %v942
    %v1279 = vpack.c.b16 %v947, %v943
    %v1280 = vpack.c.b16 %v952, %v948
    %v1281 = vpack.c.b16 %v953, %v949
    %v1282 = vpack.c.b16 %v954, %v950
    %v1283 = vpack.c.b16 %v955, %v951
    %v1284 = vpack.c.b16 %v960, %v956
    %v1285 = vpack.c.b16 %v961, %v957
    %v1286 = vpack.c.b16 %v962, %v958
    %v1287 = vpack.c.b16 %v963, %v959
    %v1288 = vpack.c.b16 %v968, %v964
    %v1289 = vpack.c.b16 %v969, %v965
    %v1290 = vpack.c.b16 %v970, %v966
    %v1291 = vpack.c.b16 %v971, %v967
    %v1292 = vpack.c.b16 %v976, %v972
    %v1293 = vpack.c.b16 %v977, %v973
    %v1294 = vpack.c.b16 %v978, %v974
    %v1295 = vpack.c.b16 %v979, %v975
    %v1296 = vpack.c.b16 %v984, %v980
    %v1297 = vpack.c.b16 %v985, %v981
    %v1298 = vpack.c.b16 %v986, %v982
    %v1299 = vpack.c.b16 %v987, %v983
    %v1300 = vpack.c.b16 %v992, %v988
    %v1301 = vpack.c.b16 %v993, %v989
    %v1302 = vpack.c.b16 %v994, %v990
    %v1303 = vpack.c.b16 %v995, %v991
    %v1304 = vpack.c.b16 %v1000, %v996
    %v1305 = vpack.c.b16 %v1001, %v997
    %v1306 = vpack.c.b16 %v1002, %v998
    %v1307 = vpack.c.b16 %v1003, %v999
    %v1308 = vpack.c.b16 %v1008, %v1004
    %v1309 = vpack.c.b16 %v1009, %v1005
    %v1310 = vpack.c.b16 %v1010, %v1006
    %v1311 = vpack.c.b16 %v1011, %v1007
    %v1312 = vpack.c.b16 %v1016, %v1012
    %v1313 = vpack.c.b16 %v1017, %v1013
    %v1314 = vpack.c.b16 %v1018, %v1014
    %v1315 = vpack.c.b16 %v1019, %v1015
    %v1316 = vpack.c.b16 %v1024, %v1020
    %v1317 = vpack.c.b16 %v1025, %v1021
    %v1318 = vpack.c.b16 %v1026, %v1022
    %v1319 = vpack.c.b16 %v1027, %v1023
    %v1320 = vpack.c.b16 %v1032, %v1028
    %v1321 = vpack.c.b16 %v1033, %v1029
    %v1322 = vpack.c.b16 %v1034, %v1030
    %v1323 = vpack.c.b16 %v1035, %v1031
    %v1324 = vpack.c.b16 %v1040, %v1036
    %v1325 = vpack.c.b16 %v1041, %v1037
    %v1326 = vpack.c.b16 %v1042, %v1038
    %v1327 = vpack.c.b16 %v1043, %v1039
    %v1328 = vpack.c.b16 %v1048, %v1044
    %v1329 = vpack.c.b16 %v1049, %v1045
    %v1330 = vpack.c.b16 %v1050, %v1046
    %v1331 = vpack.c.b16 %v1051, %v1047
    %v1332 = vpack.c.b16 %v1056, %v1052
    %v1333 = vpack.c.b16 %v1057, %v1053
    %v1334 = vpack.c.b16 %v1058, %v1054
    %v1335 = vpack.c.b16 %v1059, %v1055
    %v1336 = vpack.c.b16 %v1064, %v1060
    %v1337 = vpack.c.b16 %v1065, %v1061
    %v1338 = vpack.c.b16 %v1066, %v1062
    %v1339 = vpack.c.b16 %v1067, %v1063
    %v1340 = vpack.c.b16 %v1072, %v1068
    %v1341 = vpack.c.b16 %v1073, %v1069
    %v1342 = vpack.c.b16 %v1074, %v1070
    %v1343 = vpack.c.b16 %v1075, %v1071
    %v1344 = vpack.c.b16 %v1080, %v1076
    %v1345 = vpack.c.b16 %v1081, %v1077
    %v1346 = vpack.c.b16 %v1082, %v1078
    %v1347 = vpack.c.b16 %v1083, %v1079
    %v1348 = vpack.c.b16 %v1088, %v1084
    %v1349 = vpack.c.b16 %v1089, %v1085
    %v1350 = vpack.c.b16 %v1090, %v1086
    %v1351 = vpack.c.b16 %v1091, %v1087
    %v1352 = vpack.c.b16 %v1096, %v1092
    %v1353 = vpack.c.b16 %v1097, %v1093
    %v1354 = vpack.c.b16 %v1098, %v1094
    %v1355 = vpack.c.b16 %v1099, %v1095
    %1612 = vmatpush.bf16.msra.mxu0 %v1128
    %1613 = vmatpush.bf16.msra.mxu0 %v1124
    %1614 = vmatpush.bf16.msra.mxu0 %v1120
    %1615 = vmatpush.bf16.msra.mxu0 %v1116
    %1616 = vmatpush.bf16.msra.mxu0 %v1112
    %1617 = vmatpush.bf16.msra.mxu0 %v1108
    %1618 = vmatpush.bf16.msra.mxu0 %v1104
    %1619 = vmatpush.bf16.msra.mxu0 %v1100
    %1620 = vmatmul.bf16.gmra.mxu0 %v315
    %v1621 = vpop.f32.mrf.mxu0
    %v1622 = vadd.f32 %v324, %v1621
    %v1623 = vpop.f32.mrf.mxu0
    %1624 = vdwg.mxu0
    %1625 = vmatpush.bf16.msra.mxu0 %v1160
    %1626 = vmatpush.bf16.msra.mxu0 %v1156
    %1627 = vmatpush.bf16.msra.mxu0 %v1152
    %1628 = vmatpush.bf16.msra.mxu0 %v1148
    %1629 = vmatpush.bf16.msra.mxu0 %v1144
    %1630 = vmatpush.bf16.msra.mxu0 %v1140
    %1631 = vmatpush.bf16.msra.mxu0 %v1136
    %1632 = vmatpush.bf16.msra.mxu0 %v1132
    %1633 = vmatmul.bf16.gmra.mxu0 %v316
    %v1634 = vpop.f32.mrf.mxu0
    %v1635 = vadd.f32 %v1622, %v1634
    %v1636 = vpop.f32.mrf.mxu0
    %1637 = vdwg.mxu0
    %1638 = vmatpush.bf16.msra.mxu0 %v1192
    %1639 = vmatpush.bf16.msra.mxu0 %v1188
    %1640 = vmatpush.bf16.msra.mxu0 %v1184
    %1641 = vmatpush.bf16.msra.mxu0 %v1180
    %1642 = vmatpush.bf16.msra.mxu0 %v1176
    %1643 = vmatpush.bf16.msra.mxu0 %v1172
    %1644 = vmatpush.bf16.msra.mxu0 %v1168
    %1645 = vmatpush.bf16.msra.mxu0 %v1164
    %1646 = vmatmul.bf16.gmra.mxu0 %v317
    %v1647 = vpop.f32.mrf.mxu0
    %v1648 = vadd.f32 %v1635, %v1647
    %v1649 = vpop.f32.mrf.mxu0
    %1650 = vdwg.mxu0
    %1651 = vmatpush.bf16.msra.mxu0 %v1224
    %1652 = vmatpush.bf16.msra.mxu0 %v1220
    %1653 = vmatpush.bf16.msra.mxu0 %v1216
    %1654 = vmatpush.bf16.msra.mxu0 %v1212
    %1655 = vmatpush.bf16.msra.mxu0 %v1208
    %1656 = vmatpush.bf16.msra.mxu0 %v1204
    %1657 = vmatpush.bf16.msra.mxu0 %v1200
    %1658 = vmatpush.bf16.msra.mxu0 %v1196
    %1659 = vmatmul.bf16.gmra.mxu0 %v318
    %v1660 = vpop.f32.mrf.mxu0
    %v1661 = vadd.f32 %v1648, %v1660
    %v1662 = vpop.f32.mrf.mxu0
    %1663 = vdwg.mxu0
    %1664 = vmatpush.bf16.msra.mxu0 %v1256
    %1665 = vmatpush.bf16.msra.mxu0 %v1252
    %1666 = vmatpush.bf16.msra.mxu0 %v1248
    %1667 = vmatpush.bf16.msra.mxu0 %v1244
    %1668 = vmatpush.bf16.msra.mxu0 %v1240
    %1669 = vmatpush.bf16.msra.mxu0 %v1236
    %1670 = vmatpush.bf16.msra.mxu0 %v1232
    %1671 = vmatpush.bf16.msra.mxu0 %v1228
    %1672 = vmatmul.bf16.gmra.mxu0 %v319
    %v1673 = vpop.f32.mrf.mxu0
    %v1674 = vadd.f32 %v1661, %v1673
    %v1675 = vpop.f32.mrf.mxu0
    %1676 = vdwg.mxu0
    %1677 = vmatpush.bf16.msra.mxu0 %v1288
    %1678 = vmatpush.bf16.msra.mxu0 %v1284
    %1679 = vmatpush.bf16.msra.mxu0 %v1280
    %1680 = vmatpush.bf16.msra.mxu0 %v1276
    %1681 = vmatpush.bf16.msra.mxu0 %v1272
    %1682 = vmatpush.bf16.msra.mxu0 %v1268
    %1683 = vmatpush.bf16.msra.mxu0 %v1264
    %1684 = vmatpush.bf16.msra.mxu0 %v1260
    %1685 = vmatmul.bf16.gmra.mxu0 %v320
    %v1686 = vpop.f32.mrf.mxu0
    %v1687 = vadd.f32 %v1674, %v1686
    %v1688 = vpop.f32.mrf.mxu0
    %1689 = vdwg.mxu0
    %1690 = vmatpush.bf16.msra.mxu0 %v1320
    %1691 = vmatpush.bf16.msra.mxu0 %v1316
    %1692 = vmatpush.bf16.msra.mxu0 %v1312
    %1693 = vmatpush.bf16.msra.mxu0 %v1308
    %1694 = vmatpush.bf16.msra.mxu0 %v1304
    %1695 = vmatpush.bf16.msra.mxu0 %v1300
    %1696 = vmatpush.bf16.msra.mxu0 %v1296
    %1697 = vmatpush.bf16.msra.mxu0 %v1292
    %1698 = vmatmul.bf16.gmra.mxu0 %v321
    %v1699 = vpop.f32.mrf.mxu0
    %v1700 = vadd.f32 %v1687, %v1699
    %v1701 = vpop.f32.mrf.mxu0
    %1702 = vdwg.mxu0
    %1703 = vmatpush.bf16.msra.mxu0 %v1352
    %1704 = vmatpush.bf16.msra.mxu0 %v1348
    %1705 = vmatpush.bf16.msra.mxu0 %v1344
    %1706 = vmatpush.bf16.msra.mxu0 %v1340
    %1707 = vmatpush.bf16.msra.mxu0 %v1336
    %1708 = vmatpush.bf16.msra.mxu0 %v1332
    %1709 = vmatpush.bf16.msra.mxu0 %v1328
    %1710 = vmatpush.bf16.msra.mxu0 %v1324
    %1711 = vmatmul.bf16.gmra.mxu0 %v322
    %v1712 = vpop.f32.mrf.mxu0
    %v1713 = vadd.f32 %v1700, %v1712
    %v1714 = vpop.f32.mrf.mxu0
    %1715 = vdwg.mxu0
    %1716 = vmatpush.bf16.msra.mxu0 %v1129
    %1717 = vmatpush.bf16.msra.mxu0 %v1125
    %1718 = vmatpush.bf16.msra.mxu0 %v1121
    %1719 = vmatpush.bf16.msra.mxu0 %v1117
    %1720 = vmatpush.bf16.msra.mxu0 %v1113
    %1721 = vmatpush.bf16.msra.mxu0 %v1109
    %1722 = vmatpush.bf16.msra.mxu0 %v1105
    %1723 = vmatpush.bf16.msra.mxu0 %v1101
    %1724 = vmatmul.bf16.gmra.mxu0 %v315
    %v1725 = vpop.f32.mrf.mxu0
    %v1726 = vadd.f32 %v325, %v1725
    %v1727 = vpop.f32.mrf.mxu0
    %1728 = vdwg.mxu0
    %1729 = vmatpush.bf16.msra.mxu0 %v1161
    %1730 = vmatpush.bf16.msra.mxu0 %v1157
    %1731 = vmatpush.bf16.msra.mxu0 %v1153
    %1732 = vmatpush.bf16.msra.mxu0 %v1149
    %1733 = vmatpush.bf16.msra.mxu0 %v1145
    %1734 = vmatpush.bf16.msra.mxu0 %v1141
    %1735 = vmatpush.bf16.msra.mxu0 %v1137
    %1736 = vmatpush.bf16.msra.mxu0 %v1133
    %1737 = vmatmul.bf16.gmra.mxu0 %v316
    %v1738 = vpop.f32.mrf.mxu0
    %v1739 = vadd.f32 %v1726, %v1738
    %v1740 = vpop.f32.mrf.mxu0
    %1741 = vdwg.mxu0
    %1742 = vmatpush.bf16.msra.mxu0 %v1193
    %1743 = vmatpush.bf16.msra.mxu0 %v1189
    %1744 = vmatpush.bf16.msra.mxu0 %v1185
    %1745 = vmatpush.bf16.msra.mxu0 %v1181
    %1746 = vmatpush.bf16.msra.mxu0 %v1177
    %1747 = vmatpush.bf16.msra.mxu0 %v1173
    %1748 = vmatpush.bf16.msra.mxu0 %v1169
    %1749 = vmatpush.bf16.msra.mxu0 %v1165
    %1750 = vmatmul.bf16.gmra.mxu0 %v317
    %v1751 = vpop.f32.mrf.mxu0
    %v1752 = vadd.f32 %v1739, %v1751
    %v1753 = vpop.f32.mrf.mxu0
    %1754 = vdwg.mxu0
    %1755 = vmatpush.bf16.msra.mxu0 %v1225
    %1756 = vmatpush.bf16.msra.mxu0 %v1221
    %1757 = vmatpush.bf16.msra.mxu0 %v1217
    %1758 = vmatpush.bf16.msra.mxu0 %v1213
    %1759 = vmatpush.bf16.msra.mxu0 %v1209
    %1760 = vmatpush.bf16.msra.mxu0 %v1205
    %1761 = vmatpush.bf16.msra.mxu0 %v1201
    %1762 = vmatpush.bf16.msra.mxu0 %v1197
    %1763 = vmatmul.bf16.gmra.mxu0 %v318
    %v1764 = vpop.f32.mrf.mxu0
    %v1765 = vadd.f32 %v1752, %v1764
    %v1766 = vpop.f32.mrf.mxu0
    %1767 = vdwg.mxu0
    %1768 = vmatpush.bf16.msra.mxu0 %v1257
    %1769 = vmatpush.bf16.msra.mxu0 %v1253
    %1770 = vmatpush.bf16.msra.mxu0 %v1249
    %1771 = vmatpush.bf16.msra.mxu0 %v1245
    %1772 = vmatpush.bf16.msra.mxu0 %v1241
    %1773 = vmatpush.bf16.msra.mxu0 %v1237
    %1774 = vmatpush.bf16.msra.mxu0 %v1233
    %1775 = vmatpush.bf16.msra.mxu0 %v1229
    %1776 = vmatmul.bf16.gmra.mxu0 %v319
    %v1777 = vpop.f32.mrf.mxu0
    %v1778 = vadd.f32 %v1765, %v1777
    %v1779 = vpop.f32.mrf.mxu0
    %1780 = vdwg.mxu0
    %1781 = vmatpush.bf16.msra.mxu0 %v1289
    %1782 = vmatpush.bf16.msra.mxu0 %v1285
    %1783 = vmatpush.bf16.msra.mxu0 %v1281
    %1784 = vmatpush.bf16.msra.mxu0 %v1277
    %1785 = vmatpush.bf16.msra.mxu0 %v1273
    %1786 = vmatpush.bf16.msra.mxu0 %v1269
    %1787 = vmatpush.bf16.msra.mxu0 %v1265
    %1788 = vmatpush.bf16.msra.mxu0 %v1261
    %1789 = vmatmul.bf16.gmra.mxu0 %v320
    %v1790 = vpop.f32.mrf.mxu0
    %v1791 = vadd.f32 %v1778, %v1790
    %v1792 = vpop.f32.mrf.mxu0
    %1793 = vdwg.mxu0
    %1794 = vmatpush.bf16.msra.mxu0 %v1321
    %1795 = vmatpush.bf16.msra.mxu0 %v1317
    %1796 = vmatpush.bf16.msra.mxu0 %v1313
    %1797 = vmatpush.bf16.msra.mxu0 %v1309
    %1798 = vmatpush.bf16.msra.mxu0 %v1305
    %1799 = vmatpush.bf16.msra.mxu0 %v1301
    %1800 = vmatpush.bf16.msra.mxu0 %v1297
    %1801 = vmatpush.bf16.msra.mxu0 %v1293
    %1802 = vmatmul.bf16.gmra.mxu0 %v321
    %v1803 = vpop.f32.mrf.mxu0
    %v1804 = vadd.f32 %v1791, %v1803
    %v1805 = vpop.f32.mrf.mxu0
    %1806 = vdwg.mxu0
    %1807 = vmatpush.bf16.msra.mxu0 %v1353
    %1808 = vmatpush.bf16.msra.mxu0 %v1349
    %1809 = vmatpush.bf16.msra.mxu0 %v1345
    %1810 = vmatpush.bf16.msra.mxu0 %v1341
    %1811 = vmatpush.bf16.msra.mxu0 %v1337
    %1812 = vmatpush.bf16.msra.mxu0 %v1333
    %1813 = vmatpush.bf16.msra.mxu0 %v1329
    %1814 = vmatpush.bf16.msra.mxu0 %v1325
    %1815 = vmatmul.bf16.gmra.mxu0 %v322
    %v1816 = vpop.f32.mrf.mxu0
    %v1817 = vadd.f32 %v1804, %v1816
    %v1818 = vpop.f32.mrf.mxu0
    %1819 = vdwg.mxu0
    %1820 = vmatpush.bf16.msra.mxu0 %v1130
    %1821 = vmatpush.bf16.msra.mxu0 %v1126
    %1822 = vmatpush.bf16.msra.mxu0 %v1122
    %1823 = vmatpush.bf16.msra.mxu0 %v1118
    %1824 = vmatpush.bf16.msra.mxu0 %v1114
    %1825 = vmatpush.bf16.msra.mxu0 %v1110
    %1826 = vmatpush.bf16.msra.mxu0 %v1106
    %1827 = vmatpush.bf16.msra.mxu0 %v1102
    %1828 = vmatmul.bf16.gmra.mxu0 %v315
    %v1829 = vpop.f32.mrf.mxu0
    %v1830 = vadd.f32 %v326, %v1829
    %v1831 = vpop.f32.mrf.mxu0
    %1832 = vdwg.mxu0
    %1833 = vmatpush.bf16.msra.mxu0 %v1162
    %1834 = vmatpush.bf16.msra.mxu0 %v1158
    %1835 = vmatpush.bf16.msra.mxu0 %v1154
    %1836 = vmatpush.bf16.msra.mxu0 %v1150
    %1837 = vmatpush.bf16.msra.mxu0 %v1146
    %1838 = vmatpush.bf16.msra.mxu0 %v1142
    %1839 = vmatpush.bf16.msra.mxu0 %v1138
    %1840 = vmatpush.bf16.msra.mxu0 %v1134
    %1841 = vmatmul.bf16.gmra.mxu0 %v316
    %v1842 = vpop.f32.mrf.mxu0
    %v1843 = vadd.f32 %v1830, %v1842
    %v1844 = vpop.f32.mrf.mxu0
    %1845 = vdwg.mxu0
    %1846 = vmatpush.bf16.msra.mxu0 %v1194
    %1847 = vmatpush.bf16.msra.mxu0 %v1190
    %1848 = vmatpush.bf16.msra.mxu0 %v1186
    %1849 = vmatpush.bf16.msra.mxu0 %v1182
    %1850 = vmatpush.bf16.msra.mxu0 %v1178
    %1851 = vmatpush.bf16.msra.mxu0 %v1174
    %1852 = vmatpush.bf16.msra.mxu0 %v1170
    %1853 = vmatpush.bf16.msra.mxu0 %v1166
    %1854 = vmatmul.bf16.gmra.mxu0 %v317
    %v1855 = vpop.f32.mrf.mxu0
    %v1856 = vadd.f32 %v1843, %v1855
    %v1857 = vpop.f32.mrf.mxu0
    %1858 = vdwg.mxu0
    %1859 = vmatpush.bf16.msra.mxu0 %v1226
    %1860 = vmatpush.bf16.msra.mxu0 %v1222
    %1861 = vmatpush.bf16.msra.mxu0 %v1218
    %1862 = vmatpush.bf16.msra.mxu0 %v1214
    %1863 = vmatpush.bf16.msra.mxu0 %v1210
    %1864 = vmatpush.bf16.msra.mxu0 %v1206
    %1865 = vmatpush.bf16.msra.mxu0 %v1202
    %1866 = vmatpush.bf16.msra.mxu0 %v1198
    %1867 = vmatmul.bf16.gmra.mxu0 %v318
    %v1868 = vpop.f32.mrf.mxu0
    %v1869 = vadd.f32 %v1856, %v1868
    %v1870 = vpop.f32.mrf.mxu0
    %1871 = vdwg.mxu0
    %1872 = vmatpush.bf16.msra.mxu0 %v1258
    %1873 = vmatpush.bf16.msra.mxu0 %v1254
    %1874 = vmatpush.bf16.msra.mxu0 %v1250
    %1875 = vmatpush.bf16.msra.mxu0 %v1246
    %1876 = vmatpush.bf16.msra.mxu0 %v1242
    %1877 = vmatpush.bf16.msra.mxu0 %v1238
    %1878 = vmatpush.bf16.msra.mxu0 %v1234
    %1879 = vmatpush.bf16.msra.mxu0 %v1230
    %1880 = vmatmul.bf16.gmra.mxu0 %v319
    %v1881 = vpop.f32.mrf.mxu0
    %v1882 = vadd.f32 %v1869, %v1881
    %v1883 = vpop.f32.mrf.mxu0
    %1884 = vdwg.mxu0
    %1885 = vmatpush.bf16.msra.mxu0 %v1290
    %1886 = vmatpush.bf16.msra.mxu0 %v1286
    %1887 = vmatpush.bf16.msra.mxu0 %v1282
    %1888 = vmatpush.bf16.msra.mxu0 %v1278
    %1889 = vmatpush.bf16.msra.mxu0 %v1274
    %1890 = vmatpush.bf16.msra.mxu0 %v1270
    %1891 = vmatpush.bf16.msra.mxu0 %v1266
    %1892 = vmatpush.bf16.msra.mxu0 %v1262
    %1893 = vmatmul.bf16.gmra.mxu0 %v320
    %v1894 = vpop.f32.mrf.mxu0
    %v1895 = vadd.f32 %v1882, %v1894
    %v1896 = vpop.f32.mrf.mxu0
    %1897 = vdwg.mxu0
    %1898 = vmatpush.bf16.msra.mxu0 %v1322
    %1899 = vmatpush.bf16.msra.mxu0 %v1318
    %1900 = vmatpush.bf16.msra.mxu0 %v1314
    %1901 = vmatpush.bf16.msra.mxu0 %v1310
    %1902 = vmatpush.bf16.msra.mxu0 %v1306
    %1903 = vmatpush.bf16.msra.mxu0 %v1302
    %1904 = vmatpush.bf16.msra.mxu0 %v1298
    %1905 = vmatpush.bf16.msra.mxu0 %v1294
    %1906 = vmatmul.bf16.gmra.mxu0 %v321
    %v1907 = vpop.f32.mrf.mxu0
    %v1908 = vadd.f32 %v1895, %v1907
    %v1909 = vpop.f32.mrf.mxu0
    %1910 = vdwg.mxu0
    %1911 = vmatpush.bf16.msra.mxu0 %v1354
    %1912 = vmatpush.bf16.msra.mxu0 %v1350
    %1913 = vmatpush.bf16.msra.mxu0 %v1346
    %1914 = vmatpush.bf16.msra.mxu0 %v1342
    %1915 = vmatpush.bf16.msra.mxu0 %v1338
    %1916 = vmatpush.bf16.msra.mxu0 %v1334
    %1917 = vmatpush.bf16.msra.mxu0 %v1330
    %1918 = vmatpush.bf16.msra.mxu0 %v1326
    %1919 = vmatmul.bf16.gmra.mxu0 %v322
    %v1920 = vpop.f32.mrf.mxu0
    %v1921 = vadd.f32 %v1908, %v1920
    %v1922 = vpop.f32.mrf.mxu0
    %1923 = vdwg.mxu0
    %1924 = vmatpush.bf16.msra.mxu0 %v1131
    %1925 = vmatpush.bf16.msra.mxu0 %v1127
    %1926 = vmatpush.bf16.msra.mxu0 %v1123
    %1927 = vmatpush.bf16.msra.mxu0 %v1119
    %1928 = vmatpush.bf16.msra.mxu0 %v1115
    %1929 = vmatpush.bf16.msra.mxu0 %v1111
    %1930 = vmatpush.bf16.msra.mxu0 %v1107
    %1931 = vmatpush.bf16.msra.mxu0 %v1103
    %1932 = vmatmul.bf16.gmra.mxu0 %v315
    %v1933 = vpop.f32.mrf.mxu0
    %v1934 = vadd.f32 %v327, %v1933
    %v1935 = vpop.f32.mrf.mxu0
    %1936 = vdwg.mxu0
    %1937 = vmatpush.bf16.msra.mxu0 %v1163
    %1938 = vmatpush.bf16.msra.mxu0 %v1159
    %1939 = vmatpush.bf16.msra.mxu0 %v1155
    %1940 = vmatpush.bf16.msra.mxu0 %v1151
    %1941 = vmatpush.bf16.msra.mxu0 %v1147
    %1942 = vmatpush.bf16.msra.mxu0 %v1143
    %1943 = vmatpush.bf16.msra.mxu0 %v1139
    %1944 = vmatpush.bf16.msra.mxu0 %v1135
    %1945 = vmatmul.bf16.gmra.mxu0 %v316
    %v1946 = vpop.f32.mrf.mxu0
    %v1947 = vadd.f32 %v1934, %v1946
    %v1948 = vpop.f32.mrf.mxu0
    %1949 = vdwg.mxu0
    %1950 = vmatpush.bf16.msra.mxu0 %v1195
    %1951 = vmatpush.bf16.msra.mxu0 %v1191
    %1952 = vmatpush.bf16.msra.mxu0 %v1187
    %1953 = vmatpush.bf16.msra.mxu0 %v1183
    %1954 = vmatpush.bf16.msra.mxu0 %v1179
    %1955 = vmatpush.bf16.msra.mxu0 %v1175
    %1956 = vmatpush.bf16.msra.mxu0 %v1171
    %1957 = vmatpush.bf16.msra.mxu0 %v1167
    %1958 = vmatmul.bf16.gmra.mxu0 %v317
    %v1959 = vpop.f32.mrf.mxu0
    %v1960 = vadd.f32 %v1947, %v1959
    %v1961 = vpop.f32.mrf.mxu0
    %1962 = vdwg.mxu0
    %1963 = vmatpush.bf16.msra.mxu0 %v1227
    %1964 = vmatpush.bf16.msra.mxu0 %v1223
    %1965 = vmatpush.bf16.msra.mxu0 %v1219
    %1966 = vmatpush.bf16.msra.mxu0 %v1215
    %1967 = vmatpush.bf16.msra.mxu0 %v1211
    %1968 = vmatpush.bf16.msra.mxu0 %v1207
    %1969 = vmatpush.bf16.msra.mxu0 %v1203
    %1970 = vmatpush.bf16.msra.mxu0 %v1199
    %1971 = vmatmul.bf16.gmra.mxu0 %v318
    %v1972 = vpop.f32.mrf.mxu0
    %v1973 = vadd.f32 %v1960, %v1972
    %v1974 = vpop.f32.mrf.mxu0
    %1975 = vdwg.mxu0
    %1976 = vmatpush.bf16.msra.mxu0 %v1259
    %1977 = vmatpush.bf16.msra.mxu0 %v1255
    %1978 = vmatpush.bf16.msra.mxu0 %v1251
    %1979 = vmatpush.bf16.msra.mxu0 %v1247
    %1980 = vmatpush.bf16.msra.mxu0 %v1243
    %1981 = vmatpush.bf16.msra.mxu0 %v1239
    %1982 = vmatpush.bf16.msra.mxu0 %v1235
    %1983 = vmatpush.bf16.msra.mxu0 %v1231
    %1984 = vmatmul.bf16.gmra.mxu0 %v319
    %v1985 = vpop.f32.mrf.mxu0
    %v1986 = vadd.f32 %v1973, %v1985
    %v1987 = vpop.f32.mrf.mxu0
    %1988 = vdwg.mxu0
    %1989 = vmatpush.bf16.msra.mxu0 %v1291
    %1990 = vmatpush.bf16.msra.mxu0 %v1287
    %1991 = vmatpush.bf16.msra.mxu0 %v1283
    %1992 = vmatpush.bf16.msra.mxu0 %v1279
    %1993 = vmatpush.bf16.msra.mxu0 %v1275
    %1994 = vmatpush.bf16.msra.mxu0 %v1271
    %1995 = vmatpush.bf16.msra.mxu0 %v1267
    %1996 = vmatpush.bf16.msra.mxu0 %v1263
    %1997 = vmatmul.bf16.gmra.mxu0 %v320
    %v1998 = vpop.f32.mrf.mxu0
    %v1999 = vadd.f32 %v1986, %v1998
    %v2000 = vpop.f32.mrf.mxu0
    %2001 = vdwg.mxu0
    %2002 = vmatpush.bf16.msra.mxu0 %v1323
    %2003 = vmatpush.bf16.msra.mxu0 %v1319
    %2004 = vmatpush.bf16.msra.mxu0 %v1315
    %2005 = vmatpush.bf16.msra.mxu0 %v1311
    %2006 = vmatpush.bf16.msra.mxu0 %v1307
    %2007 = vmatpush.bf16.msra.mxu0 %v1303
    %2008 = vmatpush.bf16.msra.mxu0 %v1299
    %2009 = vmatpush.bf16.msra.mxu0 %v1295
    %2010 = vmatmul.bf16.gmra.mxu0 %v321
    %v2011 = vpop.f32.mrf.mxu0
    %v2012 = vadd.f32 %v1999, %v2011
    %v2013 = vpop.f32.mrf.mxu0
    %2014 = vdwg.mxu0
    %2015 = vmatpush.bf16.msra.mxu0 %v1355
    %2016 = vmatpush.bf16.msra.mxu0 %v1351
    %2017 = vmatpush.bf16.msra.mxu0 %v1347
    %2018 = vmatpush.bf16.msra.mxu0 %v1343
    %2019 = vmatpush.bf16.msra.mxu0 %v1339
    %2020 = vmatpush.bf16.msra.mxu0 %v1335
    %2021 = vmatpush.bf16.msra.mxu0 %v1331
    %2022 = vmatpush.bf16.msra.mxu0 %v1327
    %2023 = vmatmul.bf16.gmra.mxu0 %v322
    %v2024 = vpop.f32.mrf.mxu0
    %v2025 = vadd.f32 %v2012, %v2024
    %v2026 = vpop.f32.mrf.mxu0
    %2027 = vdwg.mxu0
    %2028 = vst [vmem:[#allocation2] sm:$0xff] %v1713
    %2029 = vst [vmem:[#allocation2 + $0x8] sm:$0xff] %v1817
    %2030 = vst [vmem:[#allocation2 + $0x10] sm:$0xff] %v1921
    %2031 = vst [vmem:[#allocation2 + $0x18] sm:$0xff] %v2025
    %s2032 = scalar_lea.vmem %s0, 64
    %v2033 = vld [vmem:[%s2032] sm:$0xff]
    %v2034 = vld [vmem:[%s2032 + $0x8] sm:$0xff]
    %v2035 = vld [vmem:[%s2032 + $0x10] sm:$0xff]
    %v2036 = vld [vmem:[%s2032 + $0x18] sm:$0xff]
    %v2037 = vld [vmem:[%s2032 + $0x20] sm:$0xff]
    %v2038 = vld [vmem:[%s2032 + $0x28] sm:$0xff]
    %v2039 = vld [vmem:[%s2032 + $0x30] sm:$0xff]
    %v2040 = vld [vmem:[%s2032 + $0x38] sm:$0xff]
    %v2041 = vpack.c.bf16 %v2033, %v2033
    %v2042 = vpack.c.bf16 %v2034, %v2034
    %v2043 = vpack.c.bf16 %v2035, %v2035
    %v2044 = vpack.c.bf16 %v2036, %v2036
    %v2045 = vpack.c.bf16 %v2037, %v2037
    %v2046 = vpack.c.bf16 %v2038, %v2038
    %v2047 = vpack.c.bf16 %v2039, %v2039
    %v2048 = vpack.c.bf16 %v2040, %v2040
    %2049 = vmatpush.bf16.msra.mxu0 %v1128
    %2050 = vmatpush.bf16.msra.mxu0 %v1124
    %2051 = vmatpush.bf16.msra.mxu0 %v1120
    %2052 = vmatpush.bf16.msra.mxu0 %v1116
    %2053 = vmatpush.bf16.msra.mxu0 %v1112
    %2054 = vmatpush.bf16.msra.mxu0 %v1108
    %2055 = vmatpush.bf16.msra.mxu0 %v1104
    %2056 = vmatpush.bf16.msra.mxu0 %v1100
    %2057 = vmatmul.bf16.gmra.mxu0 %v2041
    %v2058 = vpop.f32.mrf.mxu0
    %v2059 = vadd.f32 %v324, %v2058
    %v2060 = vpop.f32.mrf.mxu0
    %2061 = vdwg.mxu0
    %2062 = vmatpush.bf16.msra.mxu0 %v1160
    %2063 = vmatpush.bf16.msra.mxu0 %v1156
    %2064 = vmatpush.bf16.msra.mxu0 %v1152
    %2065 = vmatpush.bf16.msra.mxu0 %v1148
    %2066 = vmatpush.bf16.msra.mxu0 %v1144
    %2067 = vmatpush.bf16.msra.mxu0 %v1140
    %2068 = vmatpush.bf16.msra.mxu0 %v1136
    %2069 = vmatpush.bf16.msra.mxu0 %v1132
    %2070 = vmatmul.bf16.gmra.mxu0 %v2042
    %v2071 = vpop.f32.mrf.mxu0
    %v2072 = vadd.f32 %v2059, %v2071
    %v2073 = vpop.f32.mrf.mxu0
    %2074 = vdwg.mxu0
    %2075 = vmatpush.bf16.msra.mxu0 %v1192
    %2076 = vmatpush.bf16.msra.mxu0 %v1188
    %2077 = vmatpush.bf16.msra.mxu0 %v1184
    %2078 = vmatpush.bf16.msra.mxu0 %v1180
    %2079 = vmatpush.bf16.msra.mxu0 %v1176
    %2080 = vmatpush.bf16.msra.mxu0 %v1172
    %2081 = vmatpush.bf16.msra.mxu0 %v1168
    %2082 = vmatpush.bf16.msra.mxu0 %v1164
    %2083 = vmatmul.bf16.gmra.mxu0 %v2043
    %v2084 = vpop.f32.mrf.mxu0
    %v2085 = vadd.f32 %v2072, %v2084
    %v2086 = vpop.f32.mrf.mxu0
    %2087 = vdwg.mxu0
    %2088 = vmatpush.bf16.msra.mxu0 %v1224
    %2089 = vmatpush.bf16.msra.mxu0 %v1220
    %2090 = vmatpush.bf16.msra.mxu0 %v1216
    %2091 = vmatpush.bf16.msra.mxu0 %v1212
    %2092 = vmatpush.bf16.msra.mxu0 %v1208
    %2093 = vmatpush.bf16.msra.mxu0 %v1204
    %2094 = vmatpush.bf16.msra.mxu0 %v1200
    %2095 = vmatpush.bf16.msra.mxu0 %v1196
    %2096 = vmatmul.bf16.gmra.mxu0 %v2044
    %v2097 = vpop.f32.mrf.mxu0
    %v2098 = vadd.f32 %v2085, %v2097
    %v2099 = vpop.f32.mrf.mxu0
    %2100 = vdwg.mxu0
    %2101 = vmatpush.bf16.msra.mxu0 %v1256
    %2102 = vmatpush.bf16.msra.mxu0 %v1252
    %2103 = vmatpush.bf16.msra.mxu0 %v1248
    %2104 = vmatpush.bf16.msra.mxu0 %v1244
    %2105 = vmatpush.bf16.msra.mxu0 %v1240
    %2106 = vmatpush.bf16.msra.mxu0 %v1236
    %2107 = vmatpush.bf16.msra.mxu0 %v1232
    %2108 = vmatpush.bf16.msra.mxu0 %v1228
    %2109 = vmatmul.bf16.gmra.mxu0 %v2045
    %v2110 = vpop.f32.mrf.mxu0
    %v2111 = vadd.f32 %v2098, %v2110
    %v2112 = vpop.f32.mrf.mxu0
    %2113 = vdwg.mxu0
    %2114 = vmatpush.bf16.msra.mxu0 %v1288
    %2115 = vmatpush.bf16.msra.mxu0 %v1284
    %2116 = vmatpush.bf16.msra.mxu0 %v1280
    %2117 = vmatpush.bf16.msra.mxu0 %v1276
    %2118 = vmatpush.bf16.msra.mxu0 %v1272
    %2119 = vmatpush.bf16.msra.mxu0 %v1268
    %2120 = vmatpush.bf16.msra.mxu0 %v1264
    %2121 = vmatpush.bf16.msra.mxu0 %v1260
    %2122 = vmatmul.bf16.gmra.mxu0 %v2046
    %v2123 = vpop.f32.mrf.mxu0
    %v2124 = vadd.f32 %v2111, %v2123
    %v2125 = vpop.f32.mrf.mxu0
    %2126 = vdwg.mxu0
    %2127 = vmatpush.bf16.msra.mxu0 %v1320
    %2128 = vmatpush.bf16.msra.mxu0 %v1316
    %2129 = vmatpush.bf16.msra.mxu0 %v1312
    %2130 = vmatpush.bf16.msra.mxu0 %v1308
    %2131 = vmatpush.bf16.msra.mxu0 %v1304
    %2132 = vmatpush.bf16.msra.mxu0 %v1300
    %2133 = vmatpush.bf16.msra.mxu0 %v1296
    %2134 = vmatpush.bf16.msra.mxu0 %v1292
    %2135 = vmatmul.bf16.gmra.mxu0 %v2047
    %v2136 = vpop.f32.mrf.mxu0
    %v2137 = vadd.f32 %v2124, %v2136
    %v2138 = vpop.f32.mrf.mxu0
    %2139 = vdwg.mxu0
    %2140 = vmatpush.bf16.msra.mxu0 %v1352
    %2141 = vmatpush.bf16.msra.mxu0 %v1348
    %2142 = vmatpush.bf16.msra.mxu0 %v1344
    %2143 = vmatpush.bf16.msra.mxu0 %v1340
    %2144 = vmatpush.bf16.msra.mxu0 %v1336
    %2145 = vmatpush.bf16.msra.mxu0 %v1332
    %2146 = vmatpush.bf16.msra.mxu0 %v1328
    %2147 = vmatpush.bf16.msra.mxu0 %v1324
    %2148 = vmatmul.bf16.gmra.mxu0 %v2048
    %v2149 = vpop.f32.mrf.mxu0
    %v2150 = vadd.f32 %v2137, %v2149
    %v2151 = vpop.f32.mrf.mxu0
    %2152 = vdwg.mxu0
    %2153 = vmatpush.bf16.msra.mxu0 %v1129
    %2154 = vmatpush.bf16.msra.mxu0 %v1125
    %2155 = vmatpush.bf16.msra.mxu0 %v1121
    %2156 = vmatpush.bf16.msra.mxu0 %v1117
    %2157 = vmatpush.bf16.msra.mxu0 %v1113
    %2158 = vmatpush.bf16.msra.mxu0 %v1109
    %2159 = vmatpush.bf16.msra.mxu0 %v1105
    %2160 = vmatpush.bf16.msra.mxu0 %v1101
    %2161 = vmatmul.bf16.gmra.mxu0 %v2041
    %v2162 = vpop.f32.mrf.mxu0
    %v2163 = vadd.f32 %v325, %v2162
    %v2164 = vpop.f32.mrf.mxu0
    %2165 = vdwg.mxu0
    %2166 = vmatpush.bf16.msra.mxu0 %v1161
    %2167 = vmatpush.bf16.msra.mxu0 %v1157
    %2168 = vmatpush.bf16.msra.mxu0 %v1153
    %2169 = vmatpush.bf16.msra.mxu0 %v1149
    %2170 = vmatpush.bf16.msra.mxu0 %v1145
    %2171 = vmatpush.bf16.msra.mxu0 %v1141
    %2172 = vmatpush.bf16.msra.mxu0 %v1137
    %2173 = vmatpush.bf16.msra.mxu0 %v1133
    %2174 = vmatmul.bf16.gmra.mxu0 %v2042
    %v2175 = vpop.f32.mrf.mxu0
    %v2176 = vadd.f32 %v2163, %v2175
    %v2177 = vpop.f32.mrf.mxu0
    %2178 = vdwg.mxu0
    %2179 = vmatpush.bf16.msra.mxu0 %v1193
    %2180 = vmatpush.bf16.msra.mxu0 %v1189
    %2181 = vmatpush.bf16.msra.mxu0 %v1185
    %2182 = vmatpush.bf16.msra.mxu0 %v1181
    %2183 = vmatpush.bf16.msra.mxu0 %v1177
    %2184 = vmatpush.bf16.msra.mxu0 %v1173
    %2185 = vmatpush.bf16.msra.mxu0 %v1169
    %2186 = vmatpush.bf16.msra.mxu0 %v1165
    %2187 = vmatmul.bf16.gmra.mxu0 %v2043
    %v2188 = vpop.f32.mrf.mxu0
    %v2189 = vadd.f32 %v2176, %v2188
    %v2190 = vpop.f32.mrf.mxu0
    %2191 = vdwg.mxu0
    %2192 = vmatpush.bf16.msra.mxu0 %v1225
    %2193 = vmatpush.bf16.msra.mxu0 %v1221
    %2194 = vmatpush.bf16.msra.mxu0 %v1217
    %2195 = vmatpush.bf16.msra.mxu0 %v1213
    %2196 = vmatpush.bf16.msra.mxu0 %v1209
    %2197 = vmatpush.bf16.msra.mxu0 %v1205
    %2198 = vmatpush.bf16.msra.mxu0 %v1201
    %2199 = vmatpush.bf16.msra.mxu0 %v1197
    %2200 = vmatmul.bf16.gmra.mxu0 %v2044
    %v2201 = vpop.f32.mrf.mxu0
    %v2202 = vadd.f32 %v2189, %v2201
    %v2203 = vpop.f32.mrf.mxu0
    %2204 = vdwg.mxu0
    %2205 = vmatpush.bf16.msra.mxu0 %v1257
    %2206 = vmatpush.bf16.msra.mxu0 %v1253
    %2207 = vmatpush.bf16.msra.mxu0 %v1249
    %2208 = vmatpush.bf16.msra.mxu0 %v1245
    %2209 = vmatpush.bf16.msra.mxu0 %v1241
    %2210 = vmatpush.bf16.msra.mxu0 %v1237
    %2211 = vmatpush.bf16.msra.mxu0 %v1233
    %2212 = vmatpush.bf16.msra.mxu0 %v1229
    %2213 = vmatmul.bf16.gmra.mxu0 %v2045
    %v2214 = vpop.f32.mrf.mxu0
    %v2215 = vadd.f32 %v2202, %v2214
    %v2216 = vpop.f32.mrf.mxu0
    %2217 = vdwg.mxu0
    %2218 = vmatpush.bf16.msra.mxu0 %v1289
    %2219 = vmatpush.bf16.msra.mxu0 %v1285
    %2220 = vmatpush.bf16.msra.mxu0 %v1281
    %2221 = vmatpush.bf16.msra.mxu0 %v1277
    %2222 = vmatpush.bf16.msra.mxu0 %v1273
    %2223 = vmatpush.bf16.msra.mxu0 %v1269
    %2224 = vmatpush.bf16.msra.mxu0 %v1265
    %2225 = vmatpush.bf16.msra.mxu0 %v1261
    %2226 = vmatmul.bf16.gmra.mxu0 %v2046
    %v2227 = vpop.f32.mrf.mxu0
    %v2228 = vadd.f32 %v2215, %v2227
    %v2229 = vpop.f32.mrf.mxu0
    %2230 = vdwg.mxu0
    %2231 = vmatpush.bf16.msra.mxu0 %v1321
    %2232 = vmatpush.bf16.msra.mxu0 %v1317
    %2233 = vmatpush.bf16.msra.mxu0 %v1313
    %2234 = vmatpush.bf16.msra.mxu0 %v1309
    %2235 = vmatpush.bf16.msra.mxu0 %v1305
    %2236 = vmatpush.bf16.msra.mxu0 %v1301
    %2237 = vmatpush.bf16.msra.mxu0 %v1297
    %2238 = vmatpush.bf16.msra.mxu0 %v1293
    %2239 = vmatmul.bf16.gmra.mxu0 %v2047
    %v2240 = vpop.f32.mrf.mxu0
    %v2241 = vadd.f32 %v2228, %v2240
    %v2242 = vpop.f32.mrf.mxu0
    %2243 = vdwg.mxu0
    %2244 = vmatpush.bf16.msra.mxu0 %v1353
    %2245 = vmatpush.bf16.msra.mxu0 %v1349
    %2246 = vmatpush.bf16.msra.mxu0 %v1345
    %2247 = vmatpush.bf16.msra.mxu0 %v1341
    %2248 = vmatpush.bf16.msra.mxu0 %v1337
    %2249 = vmatpush.bf16.msra.mxu0 %v1333
    %2250 = vmatpush.bf16.msra.mxu0 %v1329
    %2251 = vmatpush.bf16.msra.mxu0 %v1325
    %2252 = vmatmul.bf16.gmra.mxu0 %v2048
    %v2253 = vpop.f32.mrf.mxu0
    %v2254 = vadd.f32 %v2241, %v2253
    %v2255 = vpop.f32.mrf.mxu0
    %2256 = vdwg.mxu0
    %2257 = vmatpush.bf16.msra.mxu0 %v1130
    %2258 = vmatpush.bf16.msra.mxu0 %v1126
    %2259 = vmatpush.bf16.msra.mxu0 %v1122
    %2260 = vmatpush.bf16.msra.mxu0 %v1118
    %2261 = vmatpush.bf16.msra.mxu0 %v1114
    %2262 = vmatpush.bf16.msra.mxu0 %v1110
    %2263 = vmatpush.bf16.msra.mxu0 %v1106
    %2264 = vmatpush.bf16.msra.mxu0 %v1102
    %2265 = vmatmul.bf16.gmra.mxu0 %v2041
    %v2266 = vpop.f32.mrf.mxu0
    %v2267 = vadd.f32 %v326, %v2266
    %v2268 = vpop.f32.mrf.mxu0
    %2269 = vdwg.mxu0
    %2270 = vmatpush.bf16.msra.mxu0 %v1162
    %2271 = vmatpush.bf16.msra.mxu0 %v1158
    %2272 = vmatpush.bf16.msra.mxu0 %v1154
    %2273 = vmatpush.bf16.msra.mxu0 %v1150
    %2274 = vmatpush.bf16.msra.mxu0 %v1146
    %2275 = vmatpush.bf16.msra.mxu0 %v1142
    %2276 = vmatpush.bf16.msra.mxu0 %v1138
    %2277 = vmatpush.bf16.msra.mxu0 %v1134
    %2278 = vmatmul.bf16.gmra.mxu0 %v2042
    %v2279 = vpop.f32.mrf.mxu0
    %v2280 = vadd.f32 %v2267, %v2279
    %v2281 = vpop.f32.mrf.mxu0
    %2282 = vdwg.mxu0
    %2283 = vmatpush.bf16.msra.mxu0 %v1194
    %2284 = vmatpush.bf16.msra.mxu0 %v1190
    %2285 = vmatpush.bf16.msra.mxu0 %v1186
    %2286 = vmatpush.bf16.msra.mxu0 %v1182
    %2287 = vmatpush.bf16.msra.mxu0 %v1178
    %2288 = vmatpush.bf16.msra.mxu0 %v1174
    %2289 = vmatpush.bf16.msra.mxu0 %v1170
    %2290 = vmatpush.bf16.msra.mxu0 %v1166
    %2291 = vmatmul.bf16.gmra.mxu0 %v2043
    %v2292 = vpop.f32.mrf.mxu0
    %v2293 = vadd.f32 %v2280, %v2292
    %v2294 = vpop.f32.mrf.mxu0
    %2295 = vdwg.mxu0
    %2296 = vmatpush.bf16.msra.mxu0 %v1226
    %2297 = vmatpush.bf16.msra.mxu0 %v1222
    %2298 = vmatpush.bf16.msra.mxu0 %v1218
    %2299 = vmatpush.bf16.msra.mxu0 %v1214
    %2300 = vmatpush.bf16.msra.mxu0 %v1210
    %2301 = vmatpush.bf16.msra.mxu0 %v1206
    %2302 = vmatpush.bf16.msra.mxu0 %v1202
    %2303 = vmatpush.bf16.msra.mxu0 %v1198
    %2304 = vmatmul.bf16.gmra.mxu0 %v2044
    %v2305 = vpop.f32.mrf.mxu0
    %v2306 = vadd.f32 %v2293, %v2305
    %v2307 = vpop.f32.mrf.mxu0
    %2308 = vdwg.mxu0
    %2309 = vmatpush.bf16.msra.mxu0 %v1258
    %2310 = vmatpush.bf16.msra.mxu0 %v1254
    %2311 = vmatpush.bf16.msra.mxu0 %v1250
    %2312 = vmatpush.bf16.msra.mxu0 %v1246
    %2313 = vmatpush.bf16.msra.mxu0 %v1242
    %2314 = vmatpush.bf16.msra.mxu0 %v1238
    %2315 = vmatpush.bf16.msra.mxu0 %v1234
    %2316 = vmatpush.bf16.msra.mxu0 %v1230
    %2317 = vmatmul.bf16.gmra.mxu0 %v2045
    %v2318 = vpop.f32.mrf.mxu0
    %v2319 = vadd.f32 %v2306, %v2318
    %v2320 = vpop.f32.mrf.mxu0
    %2321 = vdwg.mxu0
    %2322 = vmatpush.bf16.msra.mxu0 %v1290
    %2323 = vmatpush.bf16.msra.mxu0 %v1286
    %2324 = vmatpush.bf16.msra.mxu0 %v1282
    %2325 = vmatpush.bf16.msra.mxu0 %v1278
    %2326 = vmatpush.bf16.msra.mxu0 %v1274
    %2327 = vmatpush.bf16.msra.mxu0 %v1270
    %2328 = vmatpush.bf16.msra.mxu0 %v1266
    %2329 = vmatpush.bf16.msra.mxu0 %v1262
    %2330 = vmatmul.bf16.gmra.mxu0 %v2046
    %v2331 = vpop.f32.mrf.mxu0
    %v2332 = vadd.f32 %v2319, %v2331
    %v2333 = vpop.f32.mrf.mxu0
    %2334 = vdwg.mxu0
    %2335 = vmatpush.bf16.msra.mxu0 %v1322
    %2336 = vmatpush.bf16.msra.mxu0 %v1318
    %2337 = vmatpush.bf16.msra.mxu0 %v1314
    %2338 = vmatpush.bf16.msra.mxu0 %v1310
    %2339 = vmatpush.bf16.msra.mxu0 %v1306
    %2340 = vmatpush.bf16.msra.mxu0 %v1302
    %2341 = vmatpush.bf16.msra.mxu0 %v1298
    %2342 = vmatpush.bf16.msra.mxu0 %v1294
    %2343 = vmatmul.bf16.gmra.mxu0 %v2047
    %v2344 = vpop.f32.mrf.mxu0
    %v2345 = vadd.f32 %v2332, %v2344
    %v2346 = vpop.f32.mrf.mxu0
    %2347 = vdwg.mxu0
    %2348 = vmatpush.bf16.msra.mxu0 %v1354
    %2349 = vmatpush.bf16.msra.mxu0 %v1350
    %2350 = vmatpush.bf16.msra.mxu0 %v1346
    %2351 = vmatpush.bf16.msra.mxu0 %v1342
    %2352 = vmatpush.bf16.msra.mxu0 %v1338
    %2353 = vmatpush.bf16.msra.mxu0 %v1334
    %2354 = vmatpush.bf16.msra.mxu0 %v1330
    %2355 = vmatpush.bf16.msra.mxu0 %v1326
    %2356 = vmatmul.bf16.gmra.mxu0 %v2048
    %v2357 = vpop.f32.mrf.mxu0
    %v2358 = vadd.f32 %v2345, %v2357
    %v2359 = vpop.f32.mrf.mxu0
    %2360 = vdwg.mxu0
    %2361 = vmatpush.bf16.msra.mxu0 %v1131
    %2362 = vmatpush.bf16.msra.mxu0 %v1127
    %2363 = vmatpush.bf16.msra.mxu0 %v1123
    %2364 = vmatpush.bf16.msra.mxu0 %v1119
    %2365 = vmatpush.bf16.msra.mxu0 %v1115
    %2366 = vmatpush.bf16.msra.mxu0 %v1111
    %2367 = vmatpush.bf16.msra.mxu0 %v1107
    %2368 = vmatpush.bf16.msra.mxu0 %v1103
    %2369 = vmatmul.bf16.gmra.mxu0 %v2041
    %v2370 = vpop.f32.mrf.mxu0
    %v2371 = vadd.f32 %v327, %v2370
    %v2372 = vpop.f32.mrf.mxu0
    %2373 = vdwg.mxu0
    %2374 = vmatpush.bf16.msra.mxu0 %v1163
    %2375 = vmatpush.bf16.msra.mxu0 %v1159
    %2376 = vmatpush.bf16.msra.mxu0 %v1155
    %2377 = vmatpush.bf16.msra.mxu0 %v1151
    %2378 = vmatpush.bf16.msra.mxu0 %v1147
    %2379 = vmatpush.bf16.msra.mxu0 %v1143
    %2380 = vmatpush.bf16.msra.mxu0 %v1139
    %2381 = vmatpush.bf16.msra.mxu0 %v1135
    %2382 = vmatmul.bf16.gmra.mxu0 %v2042
    %v2383 = vpop.f32.mrf.mxu0
    %v2384 = vadd.f32 %v2371, %v2383
    %v2385 = vpop.f32.mrf.mxu0
    %2386 = vdwg.mxu0
    %2387 = vmatpush.bf16.msra.mxu0 %v1195
    %2388 = vmatpush.bf16.msra.mxu0 %v1191
    %2389 = vmatpush.bf16.msra.mxu0 %v1187
    %2390 = vmatpush.bf16.msra.mxu0 %v1183
    %2391 = vmatpush.bf16.msra.mxu0 %v1179
    %2392 = vmatpush.bf16.msra.mxu0 %v1175
    %2393 = vmatpush.bf16.msra.mxu0 %v1171
    %2394 = vmatpush.bf16.msra.mxu0 %v1167
    %2395 = vmatmul.bf16.gmra.mxu0 %v2043
    %v2396 = vpop.f32.mrf.mxu0
    %v2397 = vadd.f32 %v2384, %v2396
    %v2398 = vpop.f32.mrf.mxu0
    %2399 = vdwg.mxu0
    %2400 = vmatpush.bf16.msra.mxu0 %v1227
    %2401 = vmatpush.bf16.msra.mxu0 %v1223
    %2402 = vmatpush.bf16.msra.mxu0 %v1219
    %2403 = vmatpush.bf16.msra.mxu0 %v1215
    %2404 = vmatpush.bf16.msra.mxu0 %v1211
    %2405 = vmatpush.bf16.msra.mxu0 %v1207
    %2406 = vmatpush.bf16.msra.mxu0 %v1203
    %2407 = vmatpush.bf16.msra.mxu0 %v1199
    %2408 = vmatmul.bf16.gmra.mxu0 %v2044
    %v2409 = vpop.f32.mrf.mxu0
    %v2410 = vadd.f32 %v2397, %v2409
    %v2411 = vpop.f32.mrf.mxu0
    %2412 = vdwg.mxu0
    %2413 = vmatpush.bf16.msra.mxu0 %v1259
    %2414 = vmatpush.bf16.msra.mxu0 %v1255
    %2415 = vmatpush.bf16.msra.mxu0 %v1251
    %2416 = vmatpush.bf16.msra.mxu0 %v1247
    %2417 = vmatpush.bf16.msra.mxu0 %v1243
    %2418 = vmatpush.bf16.msra.mxu0 %v1239
    %2419 = vmatpush.bf16.msra.mxu0 %v1235
    %2420 = vmatpush.bf16.msra.mxu0 %v1231
    %2421 = vmatmul.bf16.gmra.mxu0 %v2045
    %v2422 = vpop.f32.mrf.mxu0
    %v2423 = vadd.f32 %v2410, %v2422
    %v2424 = vpop.f32.mrf.mxu0
    %2425 = vdwg.mxu0
    %2426 = vmatpush.bf16.msra.mxu0 %v1291
    %2427 = vmatpush.bf16.msra.mxu0 %v1287
    %2428 = vmatpush.bf16.msra.mxu0 %v1283
    %2429 = vmatpush.bf16.msra.mxu0 %v1279
    %2430 = vmatpush.bf16.msra.mxu0 %v1275
    %2431 = vmatpush.bf16.msra.mxu0 %v1271
    %2432 = vmatpush.bf16.msra.mxu0 %v1267
    %2433 = vmatpush.bf16.msra.mxu0 %v1263
    %2434 = vmatmul.bf16.gmra.mxu0 %v2046
    %v2435 = vpop.f32.mrf.mxu0
    %v2436 = vadd.f32 %v2423, %v2435
    %v2437 = vpop.f32.mrf.mxu0
    %2438 = vdwg.mxu0
    %2439 = vmatpush.bf16.msra.mxu0 %v1323
    %2440 = vmatpush.bf16.msra.mxu0 %v1319
    %2441 = vmatpush.bf16.msra.mxu0 %v1315
    %2442 = vmatpush.bf16.msra.mxu0 %v1311
    %2443 = vmatpush.bf16.msra.mxu0 %v1307
    %2444 = vmatpush.bf16.msra.mxu0 %v1303
    %2445 = vmatpush.bf16.msra.mxu0 %v1299
    %2446 = vmatpush.bf16.msra.mxu0 %v1295
    %2447 = vmatmul.bf16.gmra.mxu0 %v2047
    %v2448 = vpop.f32.mrf.mxu0
    %v2449 = vadd.f32 %v2436, %v2448
    %v2450 = vpop.f32.mrf.mxu0
    %2451 = vdwg.mxu0
    %2452 = vmatpush.bf16.msra.mxu0 %v1355
    %2453 = vmatpush.bf16.msra.mxu0 %v1351
    %2454 = vmatpush.bf16.msra.mxu0 %v1347
    %2455 = vmatpush.bf16.msra.mxu0 %v1343
    %2456 = vmatpush.bf16.msra.mxu0 %v1339
    %2457 = vmatpush.bf16.msra.mxu0 %v1335
    %2458 = vmatpush.bf16.msra.mxu0 %v1331
    %2459 = vmatpush.bf16.msra.mxu0 %v1327
    %2460 = vmatmul.bf16.gmra.mxu0 %v2048
    %v2461 = vpop.f32.mrf.mxu0
    %v2462 = vadd.f32 %v2449, %v2461
    %v2463 = vpop.f32.mrf.mxu0
    %2464 = vdwg.mxu0
    %s2465 = scalar_lea.vmem [#allocation2], 32
    %2466 = vst [vmem:[%s2465] sm:$0xff] %v2150
    %2467 = vst [vmem:[%s2465 + $0x8] sm:$0xff] %v2254
    %2468 = vst [vmem:[%s2465 + $0x10] sm:$0xff] %v2358
    %2469 = vst [vmem:[%s2465 + $0x18] sm:$0xff] %v2462
    %v2470 = vld [vmem:[%s3] sm:$0xff]
    %v2471 = vld [vmem:[%s3 + $0x8] sm:$0xff]
    %v2472 = vld [vmem:[%s3 + $0x10] sm:$0xff]
    %v2473 = vld [vmem:[%s3 + $0x18] sm:$0xff]
    %v2474 = vld [vmem:[%s3 + $0x20] sm:$0xff]
    %v2475 = vld [vmem:[%s3 + $0x28] sm:$0xff]
    %v2476 = vld [vmem:[%s3 + $0x30] sm:$0xff]
    %v2477 = vld [vmem:[%s3 + $0x38] sm:$0xff]
    %v2478 = vld [vmem:[%s3 + $0x40] sm:$0xff]
    %v2479 = vld [vmem:[%s3 + $0x48] sm:$0xff]
    %v2480 = vld [vmem:[%s3 + $0x50] sm:$0xff]
    %v2481 = vld [vmem:[%s3 + $0x58] sm:$0xff]
    %v2482 = vld [vmem:[%s3 + $0x60] sm:$0xff]
    %v2483 = vld [vmem:[%s3 + $0x68] sm:$0xff]
    %v2484 = vld [vmem:[%s3 + $0x70] sm:$0xff]
    %v2485 = vld [vmem:[%s3 + $0x78] sm:$0xff]
    %v2486 = vld [vmem:[%s3 + $0x80] sm:$0xff]
    %v2487 = vld [vmem:[%s3 + $0x88] sm:$0xff]
    %v2488 = vld [vmem:[%s3 + $0x90] sm:$0xff]
    %v2489 = vld [vmem:[%s3 + $0x98] sm:$0xff]
    %v2490 = vld [vmem:[%s3 + $0xa0] sm:$0xff]
    %v2491 = vld [vmem:[%s3 + $0xa8] sm:$0xff]
    %v2492 = vld [vmem:[%s3 + $0xb0] sm:$0xff]
    %v2493 = vld [vmem:[%s3 + $0xb8] sm:$0xff]
    %v2494 = vld [vmem:[%s3 + $0xc0] sm:$0xff]
    %v2495 = vld [vmem:[%s3 + $0xc8] sm:$0xff]
    %v2496 = vld [vmem:[%s3 + $0xd0] sm:$0xff]
    %v2497 = vld [vmem:[%s3 + $0xd8] sm:$0xff]
    %v2498 = vld [vmem:[%s3 + $0xe0] sm:$0xff]
    %v2499 = vld [vmem:[%s3 + $0xe8] sm:$0xff]
    %v2500 = vld [vmem:[%s3 + $0xf0] sm:$0xff]
    %v2501 = vld [vmem:[%s3 + $0xf8] sm:$0xff]
    %v2502 = vld [vmem:[%s4] sm:$0xff]
    %v2503 = vld [vmem:[%s4 + $0x8] sm:$0xff]
    %v2504 = vld [vmem:[%s4 + $0x10] sm:$0xff]
    %v2505 = vld [vmem:[%s4 + $0x18] sm:$0xff]
    %v2506 = vld [vmem:[%s4 + $0x20] sm:$0xff]
    %v2507 = vld [vmem:[%s4 + $0x28] sm:$0xff]
    %v2508 = vld [vmem:[%s4 + $0x30] sm:$0xff]
    %v2509 = vld [vmem:[%s4 + $0x38] sm:$0xff]
    %v2510 = vld [vmem:[%s4 + $0x40] sm:$0xff]
    %v2511 = vld [vmem:[%s4 + $0x48] sm:$0xff]
    %v2512 = vld [vmem:[%s4 + $0x50] sm:$0xff]
    %v2513 = vld [vmem:[%s4 + $0x58] sm:$0xff]
    %v2514 = vld [vmem:[%s4 + $0x60] sm:$0xff]
    %v2515 = vld [vmem:[%s4 + $0x68] sm:$0xff]
    %v2516 = vld [vmem:[%s4 + $0x70] sm:$0xff]
    %v2517 = vld [vmem:[%s4 + $0x78] sm:$0xff]
    %v2518 = vld [vmem:[%s4 + $0x80] sm:$0xff]
    %v2519 = vld [vmem:[%s4 + $0x88] sm:$0xff]
    %v2520 = vld [vmem:[%s4 + $0x90] sm:$0xff]
    %v2521 = vld [vmem:[%s4 + $0x98] sm:$0xff]
    %v2522 = vld [vmem:[%s4 + $0xa0] sm:$0xff]
    %v2523 = vld [vmem:[%s4 + $0xa8] sm:$0xff]
    %v2524 = vld [vmem:[%s4 + $0xb0] sm:$0xff]
    %v2525 = vld [vmem:[%s4 + $0xb8] sm:$0xff]
    %v2526 = vld [vmem:[%s4 + $0xc0] sm:$0xff]
    %v2527 = vld [vmem:[%s4 + $0xc8] sm:$0xff]
    %v2528 = vld [vmem:[%s4 + $0xd0] sm:$0xff]
    %v2529 = vld [vmem:[%s4 + $0xd8] sm:$0xff]
    %v2530 = vld [vmem:[%s4 + $0xe0] sm:$0xff]
    %v2531 = vld [vmem:[%s4 + $0xe8] sm:$0xff]
    %v2532 = vld [vmem:[%s4 + $0xf0] sm:$0xff]
    %v2533 = vld [vmem:[%s4 + $0xf8] sm:$0xff]
    %v2534 = vld [vmem:[%s5] sm:$0xff]
    %v2535 = vld [vmem:[%s5 + $0x8] sm:$0xff]
    %v2536 = vld [vmem:[%s5 + $0x10] sm:$0xff]
    %v2537 = vld [vmem:[%s5 + $0x18] sm:$0xff]
    %v2538 = vld [vmem:[%s5 + $0x20] sm:$0xff]
    %v2539 = vld [vmem:[%s5 + $0x28] sm:$0xff]
    %v2540 = vld [vmem:[%s5 + $0x30] sm:$0xff]
    %v2541 = vld [vmem:[%s5 + $0x38] sm:$0xff]
    %v2542 = vld [vmem:[%s5 + $0x40] sm:$0xff]
    %v2543 = vld [vmem:[%s5 + $0x48] sm:$0xff]
    %v2544 = vld [vmem:[%s5 + $0x50] sm:$0xff]
    %v2545 = vld [vmem:[%s5 + $0x58] sm:$0xff]
    %v2546 = vld [vmem:[%s5 + $0x60] sm:$0xff]
    %v2547 = vld [vmem:[%s5 + $0x68] sm:$0xff]
    %v2548 = vld [vmem:[%s5 + $0x70] sm:$0xff]
    %v2549 = vld [vmem:[%s5 + $0x78] sm:$0xff]
    %v2550 = vld [vmem:[%s5 + $0x80] sm:$0xff]
    %v2551 = vld [vmem:[%s5 + $0x88] sm:$0xff]
    %v2552 = vld [vmem:[%s5 + $0x90] sm:$0xff]
    %v2553 = vld [vmem:[%s5 + $0x98] sm:$0xff]
    %v2554 = vld [vmem:[%s5 + $0xa0] sm:$0xff]
    %v2555 = vld [vmem:[%s5 + $0xa8] sm:$0xff]
    %v2556 = vld [vmem:[%s5 + $0xb0] sm:$0xff]
    %v2557 = vld [vmem:[%s5 + $0xb8] sm:$0xff]
    %v2558 = vld [vmem:[%s5 + $0xc0] sm:$0xff]
    %v2559 = vld [vmem:[%s5 + $0xc8] sm:$0xff]
    %v2560 = vld [vmem:[%s5 + $0xd0] sm:$0xff]
    %v2561 = vld [vmem:[%s5 + $0xd8] sm:$0xff]
    %v2562 = vld [vmem:[%s5 + $0xe0] sm:$0xff]
    %v2563 = vld [vmem:[%s5 + $0xe8] sm:$0xff]
    %v2564 = vld [vmem:[%s5 + $0xf0] sm:$0xff]
    %v2565 = vld [vmem:[%s5 + $0xf8] sm:$0xff]
    %v2566 = vld [vmem:[%s6] sm:$0xf]
    %v2567 = vld [vmem:[#allocation2] ss:$8 sm:$0xf]
    %s2568 = scalar_lea.vmem [#allocation2], 32
    %v2569 = vld [vmem:[%s2568] ss:$8 sm:$0xf]
    %v2602 = vunpack.c.l.b16 %v2470
    %v2603 = vunpack.c.h.b16 %v2470
    %v2604 = vunpack.c.l.b16 %v2471
    %v2605 = vunpack.c.h.b16 %v2471
    %v2606 = vunpack.c.l.b16 %v2472
    %v2607 = vunpack.c.h.b16 %v2472
    %v2608 = vunpack.c.l.b16 %v2473
    %v2609 = vunpack.c.h.b16 %v2473
    %v2610 = vunpack.c.l.b16 %v2474
    %v2611 = vunpack.c.h.b16 %v2474
    %v2612 = vunpack.c.l.b16 %v2475
    %v2613 = vunpack.c.h.b16 %v2475
    %v2614 = vunpack.c.l.b16 %v2476
    %v2615 = vunpack.c.h.b16 %v2476
    %v2616 = vunpack.c.l.b16 %v2477
    %v2617 = vunpack.c.h.b16 %v2477
    %v2618 = vunpack.c.l.b16 %v2478
    %v2619 = vunpack.c.h.b16 %v2478
    %v2620 = vunpack.c.l.b16 %v2479
    %v2621 = vunpack.c.h.b16 %v2479
    %v2622 = vunpack.c.l.b16 %v2480
    %v2623 = vunpack.c.h.b16 %v2480
    %v2624 = vunpack.c.l.b16 %v2481
    %v2625 = vunpack.c.h.b16 %v2481
    %v2626 = vunpack.c.l.b16 %v2482
    %v2627 = vunpack.c.h.b16 %v2482
    %v2628 = vunpack.c.l.b16 %v2483
    %v2629 = vunpack.c.h.b16 %v2483
    %v2630 = vunpack.c.l.b16 %v2484
    %v2631 = vunpack.c.h.b16 %v2484
    %v2632 = vunpack.c.l.b16 %v2485
    %v2633 = vunpack.c.h.b16 %v2485
    %v2634 = vunpack.c.l.b16 %v2486
    %v2635 = vunpack.c.h.b16 %v2486
    %v2636 = vunpack.c.l.b16 %v2487
    %v2637 = vunpack.c.h.b16 %v2487
    %v2638 = vunpack.c.l.b16 %v2488
    %v2639 = vunpack.c.h.b16 %v2488
    %v2640 = vunpack.c.l.b16 %v2489
    %v2641 = vunpack.c.h.b16 %v2489
    %v2642 = vunpack.c.l.b16 %v2490
    %v2643 = vunpack.c.h.b16 %v2490
    %v2644 = vunpack.c.l.b16 %v2491
    %v2645 = vunpack.c.h.b16 %v2491
    %v2646 = vunpack.c.l.b16 %v2492
    %v2647 = vunpack.c.h.b16 %v2492
    %v2648 = vunpack.c.l.b16 %v2493
    %v2649 = vunpack.c.h.b16 %v2493
    %v2650 = vunpack.c.l.b16 %v2494
    %v2651 = vunpack.c.h.b16 %v2494
    %v2652 = vunpack.c.l.b16 %v2495
    %v2653 = vunpack.c.h.b16 %v2495
    %v2654 = vunpack.c.l.b16 %v2496
    %v2655 = vunpack.c.h.b16 %v2496
    %v2656 = vunpack.c.l.b16 %v2497
    %v2657 = vunpack.c.h.b16 %v2497
    %v2658 = vunpack.c.l.b16 %v2498
    %v2659 = vunpack.c.h.b16 %v2498
    %v2660 = vunpack.c.l.b16 %v2499
    %v2661 = vunpack.c.h.b16 %v2499
    %v2662 = vunpack.c.l.b16 %v2500
    %v2663 = vunpack.c.h.b16 %v2500
    %v2664 = vunpack.c.l.b16 %v2501
    %v2665 = vunpack.c.h.b16 %v2501
    %v2666 = vpack.c.b16 %v2606, %v2602
    %v2667 = vpack.c.b16 %v2607, %v2603
    %v2668 = vpack.c.b16 %v2608, %v2604
    %v2669 = vpack.c.b16 %v2609, %v2605
    %v2670 = vpack.c.b16 %v2614, %v2610
    %v2671 = vpack.c.b16 %v2615, %v2611
    %v2672 = vpack.c.b16 %v2616, %v2612
    %v2673 = vpack.c.b16 %v2617, %v2613
    %v2674 = vpack.c.b16 %v2622, %v2618
    %v2675 = vpack.c.b16 %v2623, %v2619
    %v2676 = vpack.c.b16 %v2624, %v2620
    %v2677 = vpack.c.b16 %v2625, %v2621
    %v2678 = vpack.c.b16 %v2630, %v2626
    %v2679 = vpack.c.b16 %v2631, %v2627
    %v2680 = vpack.c.b16 %v2632, %v2628
    %v2681 = vpack.c.b16 %v2633, %v2629
    %v2682 = vpack.c.b16 %v2638, %v2634
    %v2683 = vpack.c.b16 %v2639, %v2635
    %v2684 = vpack.c.b16 %v2640, %v2636
    %v2685 = vpack.c.b16 %v2641, %v2637
    %v2686 = vpack.c.b16 %v2646, %v2642
    %v2687 = vpack.c.b16 %v2647, %v2643
    %v2688 = vpack.c.b16 %v2648, %v2644
    %v2689 = vpack.c.b16 %v2649, %v2645
    %v2690 = vpack.c.b16 %v2654, %v2650
    %v2691 = vpack.c.b16 %v2655, %v2651
    %v2692 = vpack.c.b16 %v2656, %v2652
    %v2693 = vpack.c.b16 %v2657, %v2653
    %v2694 = vpack.c.b16 %v2662, %v2658
    %v2695 = vpack.c.b16 %v2663, %v2659
    %v2696 = vpack.c.b16 %v2664, %v2660
    %v2697 = vpack.c.b16 %v2665, %v2661
    %2730 = vmatpush.bf16.msra.mxu0 %v2694
    %2731 = vmatpush.bf16.msra.mxu0 %v2690
    %2732 = vmatpush.bf16.msra.mxu0 %v2686
    %2733 = vmatpush.bf16.msra.mxu0 %v2682
    %2734 = vmatpush.bf16.msra.mxu0 %v2678
    %2735 = vmatpush.bf16.msra.mxu0 %v2674
    %2736 = vmatpush.bf16.msra.mxu0 %v2670
    %2737 = vmatpush.bf16.msra.mxu0 %v2666
    %2738 = vmatmul.bf16.gmra.mxu0 0
    %v2739 = vpop.f32.mrf.mxu0
    %v2740 = vadd.f32 0.0, %v2739
    %v2741 = vpop.f32.mrf.mxu0
    %2742 = vdwg.mxu0
    %2743 = vmatpush.bf16.msra.mxu0 %v2695
    %2744 = vmatpush.bf16.msra.mxu0 %v2691
    %2745 = vmatpush.bf16.msra.mxu0 %v2687
    %2746 = vmatpush.bf16.msra.mxu0 %v2683
    %2747 = vmatpush.bf16.msra.mxu0 %v2679
    %2748 = vmatpush.bf16.msra.mxu0 %v2675
    %2749 = vmatpush.bf16.msra.mxu0 %v2671
    %2750 = vmatpush.bf16.msra.mxu0 %v2667
    %2751 = vmatmul.bf16.gmra.mxu0 0
    %v2752 = vpop.f32.mrf.mxu0
    %v2753 = vadd.f32 0.0, %v2752
    %v2754 = vpop.f32.mrf.mxu0
    %2755 = vdwg.mxu0
    %2756 = vmatpush.bf16.msra.mxu0 %v2696
    %2757 = vmatpush.bf16.msra.mxu0 %v2692
    %2758 = vmatpush.bf16.msra.mxu0 %v2688
    %2759 = vmatpush.bf16.msra.mxu0 %v2684
    %2760 = vmatpush.bf16.msra.mxu0 %v2680
    %2761 = vmatpush.bf16.msra.mxu0 %v2676
    %2762 = vmatpush.bf16.msra.mxu0 %v2672
    %2763 = vmatpush.bf16.msra.mxu0 %v2668
    %2764 = vmatmul.bf16.gmra.mxu0 0
    %v2765 = vpop.f32.mrf.mxu0
    %v2766 = vadd.f32 0.0, %v2765
    %v2767 = vpop.f32.mrf.mxu0
    %2768 = vdwg.mxu0
    %2769 = vmatpush.bf16.msra.mxu0 %v2697
    %2770 = vmatpush.bf16.msra.mxu0 %v2693
    %2771 = vmatpush.bf16.msra.mxu0 %v2689
    %2772 = vmatpush.bf16.msra.mxu0 %v2685
    %2773 = vmatpush.bf16.msra.mxu0 %v2681
    %2774 = vmatpush.bf16.msra.mxu0 %v2677
    %2775 = vmatpush.bf16.msra.mxu0 %v2673
    %2776 = vmatpush.bf16.msra.mxu0 %v2669
    %2777 = vmatmul.bf16.gmra.mxu0 0
    %v2778 = vpop.f32.mrf.mxu0
    %v2779 = vadd.f32 0.0, %v2778
    %v2780 = vpop.f32.mrf.mxu0
    %2781 = vdwg.mxu0
    %v2786 = vrot.slane %v2753, 7
    %v2787 = vrot.slane %v2766, 6
    %v2788 = vrot.slane %v2779, 5
    %vm2789 = vcmask 1040384
    %v2790 = vsel %vm2789, %v2740, %v2786
    %vm2791 = vcmask 1042434
    %v2792 = vsel %vm2791, %v2787, %v2788
    %vm2793 = vcmask 1041408
    %v2794 = vsel %vm2793, %v2790, %v2792
    %vm2795 = vcmask 1041409
    %v2796 = vsel %vm2795, %v2740, %v2786
    %vm2797 = vcmask 1043459
    %v2798 = vsel %vm2797, %v2787, %v2788
    %vm2799 = vcmask 1042433
    %v2800 = vsel %vm2799, %v2796, %v2798
    %v2801 = vrot.slane %v2800, 1
    %v2804 = vadd.f32 %v2567, %v2794
    %v2805 = vadd.f32 %v2569, %v2801
    %v2806 = vxor.u32 %v2804, 2147483648
    %v2807 = vxor.u32 %v2805, 2147483648
    %v2808 = vmul.f32 %v2806, 1.442695
    %v2809 = vpow.pop %v2808
    %v2810 = vmul.f32 %v2807, 1.442695
    %v2811 = vpow.pop %v2810
    %v2812 = vadd.f32 %v2809, 1.0
    %v2813 = vadd.f32 %v2811, 1.0
    %v2814 = vrcp.pop %v2812
    %v2815 = vmul.f32 %v2812, %v2814
    %v2816 = vsub.f32 1.0, %v2815
    %v2817 = vmul.f32 %v2814, %v2816
    %v2818 = vadd.f32 %v2814, %v2817
    %vm2819 = vweird.f32 %v2812
    %vm2820 = vweird.f32 %v2814
    %vm2821 = vmor %vm2819, %vm2820
    %v2822 = vsel %vm2821, %v2814, %v2818
    %v2823 = vand.u32 2147483647, %v2812
    %vm2824 = vcmp.eq.f32.partialorder %v2823, 8.507059e+37
    %v2825 = vand.u32 %v2812, 2147483648
    %v2826 = vor.u32 1.1754944e-38, %v2825
    %v2827 = vsel %vm2824, %v2826, %v2822
    %v2828 = vmul.f32 1.0, %v2827
    %v2829 = vrcp.pop %v2813
    %v2830 = vmul.f32 %v2813, %v2829
    %v2831 = vsub.f32 1.0, %v2830
    %v2832 = vmul.f32 %v2829, %v2831
    %v2833 = vadd.f32 %v2829, %v2832
    %vm2834 = vweird.f32 %v2813
    %vm2835 = vweird.f32 %v2829
    %vm2836 = vmor %vm2834, %vm2835
    %v2837 = vsel %vm2836, %v2829, %v2833
    %v2838 = vand.u32 2147483647, %v2813
    %vm2839 = vcmp.eq.f32.partialorder %v2838, 8.507059e+37
    %v2840 = vand.u32 %v2813, 2147483648
    %v2841 = vor.u32 1.1754944e-38, %v2840
    %v2842 = vsel %vm2839, %v2841, %v2837
    %v2843 = vmul.f32 1.0, %v2842
    %v2846 = vrot.slane %v2804, 1
    %v2847 = vrot.slane %v2805, 1
    %v2850 = vxor.u32 %v2846, 2147483648
    %v2851 = vxor.u32 %v2847, 2147483648
    %v2852 = vmul.f32 %v2850, 1.442695
    %v2853 = vpow.pop %v2852
    %v2854 = vmul.f32 %v2851, 1.442695
    %v2855 = vpow.pop %v2854
    %v2856 = vadd.f32 %v2853, 1.0
    %v2857 = vadd.f32 %v2855, 1.0
    %v2858 = vrcp.pop %v2856
    %v2859 = vmul.f32 %v2856, %v2858
    %v2860 = vsub.f32 1.0, %v2859
    %v2861 = vmul.f32 %v2858, %v2860
    %v2862 = vadd.f32 %v2858, %v2861
    %vm2863 = vweird.f32 %v2856
    %vm2864 = vweird.f32 %v2858
    %vm2865 = vmor %vm2863, %vm2864
    %v2866 = vsel %vm2865, %v2858, %v2862
    %v2867 = vand.u32 2147483647, %v2856
    %vm2868 = vcmp.eq.f32.partialorder %v2867, 8.507059e+37
    %v2869 = vand.u32 %v2856, 2147483648
    %v2870 = vor.u32 1.1754944e-38, %v2869
    %v2871 = vsel %vm2868, %v2870, %v2866
    %v2872 = vmul.f32 1.0, %v2871
    %v2873 = vrcp.pop %v2857
    %v2874 = vmul.f32 %v2857, %v2873
    %v2875 = vsub.f32 1.0, %v2874
    %v2876 = vmul.f32 %v2873, %v2875
    %v2877 = vadd.f32 %v2873, %v2876
    %vm2878 = vweird.f32 %v2857
    %vm2879 = vweird.f32 %v2873
    %vm2880 = vmor %vm2878, %vm2879
    %v2881 = vsel %vm2880, %v2873, %v2877
    %v2882 = vand.u32 2147483647, %v2857
    %vm2883 = vcmp.eq.f32.partialorder %v2882, 8.507059e+37
    %v2884 = vand.u32 %v2857, 2147483648
    %v2885 = vor.u32 1.1754944e-38, %v2884
    %v2886 = vsel %vm2883, %v2885, %v2881
    %v2887 = vmul.f32 1.0, %v2886
    %v2888 = vrot.slane %v2804, 2
    %v2889 = vrot.slane %v2805, 2
    %v2892 = vtanh.pop %v2888
    %v2893 = vtanh.pop %v2889
    %v2894 = vrot.slane %v2804, 3
    %v2895 = vrot.slane %v2805, 3
    %v2898 = vxor.u32 %v2894, 2147483648
    %v2899 = vxor.u32 %v2895, 2147483648
    %v2900 = vmul.f32 %v2898, 1.442695
    %v2901 = vpow.pop %v2900
    %v2902 = vmul.f32 %v2899, 1.442695
    %v2903 = vpow.pop %v2902
    %v2904 = vadd.f32 %v2901, 1.0
    %v2905 = vadd.f32 %v2903, 1.0
    %v2906 = vrcp.pop %v2904
    %v2907 = vmul.f32 %v2904, %v2906
    %v2908 = vsub.f32 1.0, %v2907
    %v2909 = vmul.f32 %v2906, %v2908
    %v2910 = vadd.f32 %v2906, %v2909
    %vm2911 = vweird.f32 %v2904
    %vm2912 = vweird.f32 %v2906
    %vm2913 = vmor %vm2911, %vm2912
    %v2914 = vsel %vm2913, %v2906, %v2910
    %v2915 = vand.u32 2147483647, %v2904
    %vm2916 = vcmp.eq.f32.partialorder %v2915, 8.507059e+37
    %v2917 = vand.u32 %v2904, 2147483648
    %v2918 = vor.u32 1.1754944e-38, %v2917
    %v2919 = vsel %vm2916, %v2918, %v2914
    %v2920 = vmul.f32 1.0, %v2919
    %v2921 = vrcp.pop %v2905
    %v2922 = vmul.f32 %v2905, %v2921
    %v2923 = vsub.f32 1.0, %v2922
    %v2924 = vmul.f32 %v2921, %v2923
    %v2925 = vadd.f32 %v2921, %v2924
    %vm2926 = vweird.f32 %v2905
    %vm2927 = vweird.f32 %v2921
    %vm2928 = vmor %vm2926, %vm2927
    %v2929 = vsel %vm2928, %v2921, %v2925
    %v2930 = vand.u32 2147483647, %v2905
    %vm2931 = vcmp.eq.f32.partialorder %v2930, 8.507059e+37
    %v2932 = vand.u32 %v2905, 2147483648
    %v2933 = vor.u32 1.1754944e-38, %v2932
    %v2934 = vsel %vm2931, %v2933, %v2929
    %v2935 = vmul.f32 1.0, %v2934
    %v2936 = vmul.f32 %v2872, 0.0
    %v2937 = vmul.f32 %v2887, 0.0
    %v2938 = vmul.f32 %v2828, %v2892
    %v2939 = vmul.f32 %v2843, %v2893
    %v2940 = vadd.f32 %v2936, %v2938
    %v2941 = vadd.f32 %v2937, %v2939
    %v2942 = vtanh.pop %v2940
    %v2943 = vtanh.pop %v2941
    %v2944 = vmul.f32 %v2920, %v2942
    %v2945 = vmul.f32 %v2935, %v2943
    %v2946 = vpack.c.bf16 %v2944, %v2944
    %v2947 = vpack.c.bf16 %v2945, %v2945
    %v2980 = vunpack.c.l.b16 %v2534
    %v2981 = vunpack.c.h.b16 %v2534
    %v2982 = vunpack.c.l.b16 %v2535
    %v2983 = vunpack.c.h.b16 %v2535
    %v2984 = vunpack.c.l.b16 %v2536
    %v2985 = vunpack.c.h.b16 %v2536
    %v2986 = vunpack.c.l.b16 %v2537
    %v2987 = vunpack.c.h.b16 %v2537
    %v2988 = vunpack.c.l.b16 %v2538
    %v2989 = vunpack.c.h.b16 %v2538
    %v2990 = vunpack.c.l.b16 %v2539
    %v2991 = vunpack.c.h.b16 %v2539
    %v2992 = vunpack.c.l.b16 %v2540
    %v2993 = vunpack.c.h.b16 %v2540
    %v2994 = vunpack.c.l.b16 %v2541
    %v2995 = vunpack.c.h.b16 %v2541
    %v2996 = vunpack.c.l.b16 %v2542
    %v2997 = vunpack.c.h.b16 %v2542
    %v2998 = vunpack.c.l.b16 %v2543
    %v2999 = vunpack.c.h.b16 %v2543
    %v3000 = vunpack.c.l.b16 %v2544
    %v3001 = vunpack.c.h.b16 %v2544
    %v3002 = vunpack.c.l.b16 %v2545
    %v3003 = vunpack.c.h.b16 %v2545
    %v3004 = vunpack.c.l.b16 %v2546
    %v3005 = vunpack.c.h.b16 %v2546
    %v3006 = vunpack.c.l.b16 %v2547
    %v3007 = vunpack.c.h.b16 %v2547
    %v3008 = vunpack.c.l.b16 %v2548
    %v3009 = vunpack.c.h.b16 %v2548
    %v3010 = vunpack.c.l.b16 %v2549
    %v3011 = vunpack.c.h.b16 %v2549
    %v3012 = vunpack.c.l.b16 %v2550
    %v3013 = vunpack.c.h.b16 %v2550
    %v3014 = vunpack.c.l.b16 %v2551
    %v3015 = vunpack.c.h.b16 %v2551
    %v3016 = vunpack.c.l.b16 %v2552
    %v3017 = vunpack.c.h.b16 %v2552
    %v3018 = vunpack.c.l.b16 %v2553
    %v3019 = vunpack.c.h.b16 %v2553
    %v3020 = vunpack.c.l.b16 %v2554
    %v3021 = vunpack.c.h.b16 %v2554
    %v3022 = vunpack.c.l.b16 %v2555
    %v3023 = vunpack.c.h.b16 %v2555
    %v3024 = vunpack.c.l.b16 %v2556
    %v3025 = vunpack.c.h.b16 %v2556
    %v3026 = vunpack.c.l.b16 %v2557
    %v3027 = vunpack.c.h.b16 %v2557
    %v3028 = vunpack.c.l.b16 %v2558
    %v3029 = vunpack.c.h.b16 %v2558
    %v3030 = vunpack.c.l.b16 %v2559
    %v3031 = vunpack.c.h.b16 %v2559
    %v3032 = vunpack.c.l.b16 %v2560
    %v3033 = vunpack.c.h.b16 %v2560
    %v3034 = vunpack.c.l.b16 %v2561
    %v3035 = vunpack.c.h.b16 %v2561
    %v3036 = vunpack.c.l.b16 %v2562
    %v3037 = vunpack.c.h.b16 %v2562
    %v3038 = vunpack.c.l.b16 %v2563
    %v3039 = vunpack.c.h.b16 %v2563
    %v3040 = vunpack.c.l.b16 %v2564
    %v3041 = vunpack.c.h.b16 %v2564
    %v3042 = vunpack.c.l.b16 %v2565
    %v3043 = vunpack.c.h.b16 %v2565
    %v3044 = vpack.c.b16 %v2984, %v2980
    %v3045 = vpack.c.b16 %v2985, %v2981
    %v3046 = vpack.c.b16 %v2986, %v2982
    %v3047 = vpack.c.b16 %v2987, %v2983
    %v3048 = vpack.c.b16 %v2992, %v2988
    %v3049 = vpack.c.b16 %v2993, %v2989
    %v3050 = vpack.c.b16 %v2994, %v2990
    %v3051 = vpack.c.b16 %v2995, %v2991
    %v3052 = vpack.c.b16 %v3000, %v2996
    %v3053 = vpack.c.b16 %v3001, %v2997
    %v3054 = vpack.c.b16 %v3002, %v2998
    %v3055 = vpack.c.b16 %v3003, %v2999
    %v3056 = vpack.c.b16 %v3008, %v3004
    %v3057 = vpack.c.b16 %v3009, %v3005
    %v3058 = vpack.c.b16 %v3010, %v3006
    %v3059 = vpack.c.b16 %v3011, %v3007
    %v3060 = vpack.c.b16 %v3016, %v3012
    %v3061 = vpack.c.b16 %v3017, %v3013
    %v3062 = vpack.c.b16 %v3018, %v3014
    %v3063 = vpack.c.b16 %v3019, %v3015
    %v3064 = vpack.c.b16 %v3024, %v3020
    %v3065 = vpack.c.b16 %v3025, %v3021
    %v3066 = vpack.c.b16 %v3026, %v3022
    %v3067 = vpack.c.b16 %v3027, %v3023
    %v3068 = vpack.c.b16 %v3032, %v3028
    %v3069 = vpack.c.b16 %v3033, %v3029
    %v3070 = vpack.c.b16 %v3034, %v3030
    %v3071 = vpack.c.b16 %v3035, %v3031
    %v3072 = vpack.c.b16 %v3040, %v3036
    %v3073 = vpack.c.b16 %v3041, %v3037
    %v3074 = vpack.c.b16 %v3042, %v3038
    %v3075 = vpack.c.b16 %v3043, %v3039
    %3108 = vmatpush.bf16.msra.mxu0 %v3072
    %3109 = vmatpush.bf16.msra.mxu0 %v3068
    %3110 = vmatpush.bf16.msra.mxu0 %v3064
    %3111 = vmatpush.bf16.msra.mxu0 %v3060
    %3112 = vmatpush.bf16.msra.mxu0 %v3056
    %3113 = vmatpush.bf16.msra.mxu0 %v3052
    %3114 = vmatpush.bf16.msra.mxu0 %v3048
    %3115 = vmatpush.bf16.msra.mxu0 %v3044
    %3116 = vmatmul.bf16.gmra.mxu0 0
    %v3117 = vpop.f32.mrf.mxu0
    %v3118 = vadd.f32 0.0, %v3117
    %v3119 = vpop.f32.mrf.mxu0
    %3120 = vdwg.mxu0
    %3121 = vmatpush.bf16.msra.mxu0 %v3073
    %3122 = vmatpush.bf16.msra.mxu0 %v3069
    %3123 = vmatpush.bf16.msra.mxu0 %v3065
    %3124 = vmatpush.bf16.msra.mxu0 %v3061
    %3125 = vmatpush.bf16.msra.mxu0 %v3057
    %3126 = vmatpush.bf16.msra.mxu0 %v3053
    %3127 = vmatpush.bf16.msra.mxu0 %v3049
    %3128 = vmatpush.bf16.msra.mxu0 %v3045
    %3129 = vmatmul.bf16.gmra.mxu0 0
    %v3130 = vpop.f32.mrf.mxu0
    %v3131 = vadd.f32 0.0, %v3130
    %v3132 = vpop.f32.mrf.mxu0
    %3133 = vdwg.mxu0
    %3134 = vmatpush.bf16.msra.mxu0 %v3074
    %3135 = vmatpush.bf16.msra.mxu0 %v3070
    %3136 = vmatpush.bf16.msra.mxu0 %v3066
    %3137 = vmatpush.bf16.msra.mxu0 %v3062
    %3138 = vmatpush.bf16.msra.mxu0 %v3058
    %3139 = vmatpush.bf16.msra.mxu0 %v3054
    %3140 = vmatpush.bf16.msra.mxu0 %v3050
    %3141 = vmatpush.bf16.msra.mxu0 %v3046
    %3142 = vmatmul.bf16.gmra.mxu0 0
    %v3143 = vpop.f32.mrf.mxu0
    %v3144 = vadd.f32 0.0, %v3143
    %v3145 = vpop.f32.mrf.mxu0
    %3146 = vdwg.mxu0
    %3147 = vmatpush.bf16.msra.mxu0 %v3075
    %3148 = vmatpush.bf16.msra.mxu0 %v3071
    %3149 = vmatpush.bf16.msra.mxu0 %v3067
    %3150 = vmatpush.bf16.msra.mxu0 %v3063
    %3151 = vmatpush.bf16.msra.mxu0 %v3059
    %3152 = vmatpush.bf16.msra.mxu0 %v3055
    %3153 = vmatpush.bf16.msra.mxu0 %v3051
    %3154 = vmatpush.bf16.msra.mxu0 %v3047
    %3155 = vmatmul.bf16.gmra.mxu0 0
    %v3156 = vpop.f32.mrf.mxu0
    %v3157 = vadd.f32 0.0, %v3156
    %v3158 = vpop.f32.mrf.mxu0
    %3159 = vdwg.mxu0
    %v3162 = vunpack.c.l.b16 %v2946
    %v3163 = vunpack.c.l.b16 %v2947
    %v3164 = vrot.slane %v3163, 7
    %v3165 = vsel %vm2795, %v3164, %v3162
    %v3166 = vpack.c.b16 %v3165, %v3165
    %v3200 = vunpack.c.l.b16 %v2502
    %v3201 = vunpack.c.h.b16 %v2502
    %v3202 = vunpack.c.l.b16 %v2503
    %v3203 = vunpack.c.h.b16 %v2503
    %v3204 = vunpack.c.l.b16 %v2504
    %v3205 = vunpack.c.h.b16 %v2504
    %v3206 = vunpack.c.l.b16 %v2505
    %v3207 = vunpack.c.h.b16 %v2505
    %v3208 = vunpack.c.l.b16 %v2506
    %v3209 = vunpack.c.h.b16 %v2506
    %v3210 = vunpack.c.l.b16 %v2507
    %v3211 = vunpack.c.h.b16 %v2507
    %v3212 = vunpack.c.l.b16 %v2508
    %v3213 = vunpack.c.h.b16 %v2508
    %v3214 = vunpack.c.l.b16 %v2509
    %v3215 = vunpack.c.h.b16 %v2509
    %v3216 = vunpack.c.l.b16 %v2510
    %v3217 = vunpack.c.h.b16 %v2510
    %v3218 = vunpack.c.l.b16 %v2511
    %v3219 = vunpack.c.h.b16 %v2511
    %v3220 = vunpack.c.l.b16 %v2512
    %v3221 = vunpack.c.h.b16 %v2512
    %v3222 = vunpack.c.l.b16 %v2513
    %v3223 = vunpack.c.h.b16 %v2513
    %v3224 = vunpack.c.l.b16 %v2514
    %v3225 = vunpack.c.h.b16 %v2514
    %v3226 = vunpack.c.l.b16 %v2515
    %v3227 = vunpack.c.h.b16 %v2515
    %v3228 = vunpack.c.l.b16 %v2516
    %v3229 = vunpack.c.h.b16 %v2516
    %v3230 = vunpack.c.l.b16 %v2517
    %v3231 = vunpack.c.h.b16 %v2517
    %v3232 = vunpack.c.l.b16 %v2518
    %v3233 = vunpack.c.h.b16 %v2518
    %v3234 = vunpack.c.l.b16 %v2519
    %v3235 = vunpack.c.h.b16 %v2519
    %v3236 = vunpack.c.l.b16 %v2520
    %v3237 = vunpack.c.h.b16 %v2520
    %v3238 = vunpack.c.l.b16 %v2521
    %v3239 = vunpack.c.h.b16 %v2521
    %v3240 = vunpack.c.l.b16 %v2522
    %v3241 = vunpack.c.h.b16 %v2522
    %v3242 = vunpack.c.l.b16 %v2523
    %v3243 = vunpack.c.h.b16 %v2523
    %v3244 = vunpack.c.l.b16 %v2524
    %v3245 = vunpack.c.h.b16 %v2524
    %v3246 = vunpack.c.l.b16 %v2525
    %v3247 = vunpack.c.h.b16 %v2525
    %v3248 = vunpack.c.l.b16 %v2526
    %v3249 = vunpack.c.h.b16 %v2526
    %v3250 = vunpack.c.l.b16 %v2527
    %v3251 = vunpack.c.h.b16 %v2527
    %v3252 = vunpack.c.l.b16 %v2528
    %v3253 = vunpack.c.h.b16 %v2528
    %v3254 = vunpack.c.l.b16 %v2529
    %v3255 = vunpack.c.h.b16 %v2529
    %v3256 = vunpack.c.l.b16 %v2530
    %v3257 = vunpack.c.h.b16 %v2530
    %v3258 = vunpack.c.l.b16 %v2531
    %v3259 = vunpack.c.h.b16 %v2531
    %v3260 = vunpack.c.l.b16 %v2532
    %v3261 = vunpack.c.h.b16 %v2532
    %v3262 = vunpack.c.l.b16 %v2533
    %v3263 = vunpack.c.h.b16 %v2533
    %v3264 = vpack.c.b16 %v3204, %v3200
    %v3265 = vpack.c.b16 %v3205, %v3201
    %v3266 = vpack.c.b16 %v3206, %v3202
    %v3267 = vpack.c.b16 %v3207, %v3203
    %v3268 = vpack.c.b16 %v3212, %v3208
    %v3269 = vpack.c.b16 %v3213, %v3209
    %v3270 = vpack.c.b16 %v3214, %v3210
    %v3271 = vpack.c.b16 %v3215, %v3211
    %v3272 = vpack.c.b16 %v3220, %v3216
    %v3273 = vpack.c.b16 %v3221, %v3217
    %v3274 = vpack.c.b16 %v3222, %v3218
    %v3275 = vpack.c.b16 %v3223, %v3219
    %v3276 = vpack.c.b16 %v3228, %v3224
    %v3277 = vpack.c.b16 %v3229, %v3225
    %v3278 = vpack.c.b16 %v3230, %v3226
    %v3279 = vpack.c.b16 %v3231, %v3227
    %v3280 = vpack.c.b16 %v3236, %v3232
    %v3281 = vpack.c.b16 %v3237, %v3233
    %v3282 = vpack.c.b16 %v3238, %v3234
    %v3283 = vpack.c.b16 %v3239, %v3235
    %v3284 = vpack.c.b16 %v3244, %v3240
    %v3285 = vpack.c.b16 %v3245, %v3241
    %v3286 = vpack.c.b16 %v3246, %v3242
    %v3287 = vpack.c.b16 %v3247, %v3243
    %v3288 = vpack.c.b16 %v3252, %v3248
    %v3289 = vpack.c.b16 %v3253, %v3249
    %v3290 = vpack.c.b16 %v3254, %v3250
    %v3291 = vpack.c.b16 %v3255, %v3251
    %v3292 = vpack.c.b16 %v3260, %v3256
    %v3293 = vpack.c.b16 %v3261, %v3257
    %v3294 = vpack.c.b16 %v3262, %v3258
    %v3295 = vpack.c.b16 %v3263, %v3259
    %3328 = vmatpush.bf16.msra.mxu0 %v3292
    %3329 = vmatpush.bf16.msra.mxu0 %v3288
    %3330 = vmatpush.bf16.msra.mxu0 %v3284
    %3331 = vmatpush.bf16.msra.mxu0 %v3280
    %3332 = vmatpush.bf16.msra.mxu0 %v3276
    %3333 = vmatpush.bf16.msra.mxu0 %v3272
    %3334 = vmatpush.bf16.msra.mxu0 %v3268
    %3335 = vmatpush.bf16.msra.mxu0 %v3264
    %3336 = vmatmul.bf16.gmra.mxu0 %v3166
    %v3337 = vpop.f32.mrf.mxu0
    %v3338 = vadd.f32 %v3118, %v3337
    %v3339 = vpop.f32.mrf.mxu0
    %3340 = vdwg.mxu0
    %3341 = vmatpush.bf16.msra.mxu0 %v3293
    %3342 = vmatpush.bf16.msra.mxu0 %v3289
    %3343 = vmatpush.bf16.msra.mxu0 %v3285
    %3344 = vmatpush.bf16.msra.mxu0 %v3281
    %3345 = vmatpush.bf16.msra.mxu0 %v3277
    %3346 = vmatpush.bf16.msra.mxu0 %v3273
    %3347 = vmatpush.bf16.msra.mxu0 %v3269
    %3348 = vmatpush.bf16.msra.mxu0 %v3265
    %3349 = vmatmul.bf16.gmra.mxu0 %v3166
    %v3350 = vpop.f32.mrf.mxu0
    %v3351 = vadd.f32 %v3131, %v3350
    %v3352 = vpop.f32.mrf.mxu0
    %3353 = vdwg.mxu0
    %3354 = vmatpush.bf16.msra.mxu0 %v3294
    %3355 = vmatpush.bf16.msra.mxu0 %v3290
    %3356 = vmatpush.bf16.msra.mxu0 %v3286
    %3357 = vmatpush.bf16.msra.mxu0 %v3282
    %3358 = vmatpush.bf16.msra.mxu0 %v3278
    %3359 = vmatpush.bf16.msra.mxu0 %v3274
    %3360 = vmatpush.bf16.msra.mxu0 %v3270
    %3361 = vmatpush.bf16.msra.mxu0 %v3266
    %3362 = vmatmul.bf16.gmra.mxu0 %v3166
    %v3363 = vpop.f32.mrf.mxu0
    %v3364 = vadd.f32 %v3144, %v3363
    %v3365 = vpop.f32.mrf.mxu0
    %3366 = vdwg.mxu0
    %3367 = vmatpush.bf16.msra.mxu0 %v3295
    %3368 = vmatpush.bf16.msra.mxu0 %v3291
    %3369 = vmatpush.bf16.msra.mxu0 %v3287
    %3370 = vmatpush.bf16.msra.mxu0 %v3283
    %3371 = vmatpush.bf16.msra.mxu0 %v3279
    %3372 = vmatpush.bf16.msra.mxu0 %v3275
    %3373 = vmatpush.bf16.msra.mxu0 %v3271
    %3374 = vmatpush.bf16.msra.mxu0 %v3267
    %3375 = vmatmul.bf16.gmra.mxu0 %v3166
    %v3376 = vpop.f32.mrf.mxu0
    %v3377 = vadd.f32 %v3157, %v3376
    %v3378 = vpop.f32.mrf.mxu0
    %3379 = vdwg.mxu0
    %v3381 = vperm.slane %v2566, 0
    %v3382 = vperm.slane %v2566, 1
    %v3383 = vperm.slane %v2566, 2
    %v3384 = vperm.slane %v2566, 3
    %v3389 = vadd.f32 %v3338, %v3381
    %v3390 = vadd.f32 %v3351, %v3382
    %v3391 = vadd.f32 %v3364, %v3383
    %v3392 = vadd.f32 %v3377, %v3384
    %v3393 = vxor.u32 %v3389, 2147483648
    %v3394 = vmul.f32 %v3393, 1.442695
    %v3395 = vpow.pop %v3394
    %v3396 = vadd.f32 %v3395, 1.0
    %v3397 = vrcp.pop %v3396
    %v3398 = vmul.f32 %v3396, %v3397
    %v3399 = vsub.f32 1.0, %v3398
    %v3400 = vmul.f32 %v3397, %v3399
    %v3401 = vadd.f32 %v3397, %v3400
    %vm3402 = vweird.f32 %v3396
    %vm3403 = vweird.f32 %v3397
    %vm3404 = vmor %vm3402, %vm3403
    %v3405 = vsel %vm3404, %v3397, %v3401
    %v3406 = vand.u32 2147483647, %v3396
    %vm3407 = vcmp.eq.f32.partialorder %v3406, 8.507059e+37
    %v3408 = vand.u32 %v3396, 2147483648
    %v3409 = vor.u32 1.1754944e-38, %v3408
    %v3410 = vsel %vm3407, %v3409, %v3405
    %v3411 = vmul.f32 1.0, %v3410
    %v3412 = vxor.u32 %v3390, 2147483648
    %v3413 = vmul.f32 %v3412, 1.442695
    %v3414 = vpow.pop %v3413
    %v3415 = vadd.f32 %v3414, 1.0
    %v3416 = vrcp.pop %v3415
    %v3417 = vmul.f32 %v3415, %v3416
    %v3418 = vsub.f32 1.0, %v3417
    %v3419 = vmul.f32 %v3416, %v3418
    %v3420 = vadd.f32 %v3416, %v3419
    %vm3421 = vweird.f32 %v3415
    %vm3422 = vweird.f32 %v3416
    %vm3423 = vmor %vm3421, %vm3422
    %v3424 = vsel %vm3423, %v3416, %v3420
    %v3425 = vand.u32 2147483647, %v3415
    %vm3426 = vcmp.eq.f32.partialorder %v3425, 8.507059e+37
    %v3427 = vand.u32 %v3415, 2147483648
    %v3428 = vor.u32 1.1754944e-38, %v3427
    %v3429 = vsel %vm3426, %v3428, %v3424
    %v3430 = vmul.f32 1.0, %v3429
    %v3431 = vtanh.pop %v3391
    %v3432 = vxor.u32 %v3392, 2147483648
    %v3433 = vmul.f32 %v3432, 1.442695
    %v3434 = vpow.pop %v3433
    %v3435 = vadd.f32 %v3434, 1.0
    %v3436 = vrcp.pop %v3435
    %v3437 = vmul.f32 %v3435, %v3436
    %v3438 = vsub.f32 1.0, %v3437
    %v3439 = vmul.f32 %v3436, %v3438
    %v3440 = vadd.f32 %v3436, %v3439
    %vm3441 = vweird.f32 %v3435
    %vm3442 = vweird.f32 %v3436
    %vm3443 = vmor %vm3441, %vm3442
    %v3444 = vsel %vm3443, %v3436, %v3440
    %v3445 = vand.u32 2147483647, %v3435
    %vm3446 = vcmp.eq.f32.partialorder %v3445, 8.507059e+37
    %v3447 = vand.u32 %v3435, 2147483648
    %v3448 = vor.u32 1.1754944e-38, %v3447
    %v3449 = vsel %vm3446, %v3448, %v3444
    %v3450 = vmul.f32 1.0, %v3449
    %v3451 = vmul.f32 %v3430, 0.0
    %v3452 = vmul.f32 %v3411, %v3431
    %v3453 = vadd.f32 %v3451, %v3452
    %v3454 = vtanh.pop %v3453
    %v3455 = vmul.f32 %v3450, %v3454
    %s3456 = scalar_lea.vmem [#allocation2], 1
    %v3457 = vld [vmem:[%s3456] ss:$8 sm:$0xf]
    %s3458 = scalar_lea.vmem [#allocation2], 33
    %v3459 = vld [vmem:[%s3458] ss:$8 sm:$0xf]
    %3460 = vmatpush.bf16.msra.mxu0 %v2694
    %3461 = vmatpush.bf16.msra.mxu0 %v2690
    %3462 = vmatpush.bf16.msra.mxu0 %v2686
    %3463 = vmatpush.bf16.msra.mxu0 %v2682
    %3464 = vmatpush.bf16.msra.mxu0 %v2678
    %3465 = vmatpush.bf16.msra.mxu0 %v2674
    %3466 = vmatpush.bf16.msra.mxu0 %v2670
    %3467 = vmatpush.bf16.msra.mxu0 %v2666
    %3468 = vmatmul.bf16.gmra.mxu0 %v3166
    %v3469 = vpop.f32.mrf.mxu0
    %v3470 = vadd.f32 0.0, %v3469
    %v3471 = vpop.f32.mrf.mxu0
    %3472 = vdwg.mxu0
    %3473 = vmatpush.bf16.msra.mxu0 %v2695
    %3474 = vmatpush.bf16.msra.mxu0 %v2691
    %3475 = vmatpush.bf16.msra.mxu0 %v2687
    %3476 = vmatpush.bf16.msra.mxu0 %v2683
    %3477 = vmatpush.bf16.msra.mxu0 %v2679
    %3478 = vmatpush.bf16.msra.mxu0 %v2675
    %3479 = vmatpush.bf16.msra.mxu0 %v2671
    %3480 = vmatpush.bf16.msra.mxu0 %v2667
    %3481 = vmatmul.bf16.gmra.mxu0 %v3166
    %v3482 = vpop.f32.mrf.mxu0
    %v3483 = vadd.f32 0.0, %v3482
    %v3484 = vpop.f32.mrf.mxu0
    %3485 = vdwg.mxu0
    %3486 = vmatpush.bf16.msra.mxu0 %v2696
    %3487 = vmatpush.bf16.msra.mxu0 %v2692
    %3488 = vmatpush.bf16.msra.mxu0 %v2688
    %3489 = vmatpush.bf16.msra.mxu0 %v2684
    %3490 = vmatpush.bf16.msra.mxu0 %v2680
    %3491 = vmatpush.bf16.msra.mxu0 %v2676
    %3492 = vmatpush.bf16.msra.mxu0 %v2672
    %3493 = vmatpush.bf16.msra.mxu0 %v2668
    %3494 = vmatmul.bf16.gmra.mxu0 %v3166
    %v3495 = vpop.f32.mrf.mxu0
    %v3496 = vadd.f32 0.0, %v3495
    %v3497 = vpop.f32.mrf.mxu0
    %3498 = vdwg.mxu0
    %3499 = vmatpush.bf16.msra.mxu0 %v2697
    %3500 = vmatpush.bf16.msra.mxu0 %v2693
    %3501 = vmatpush.bf16.msra.mxu0 %v2689
    %3502 = vmatpush.bf16.msra.mxu0 %v2685
    %3503 = vmatpush.bf16.msra.mxu0 %v2681
    %3504 = vmatpush.bf16.msra.mxu0 %v2677
    %3505 = vmatpush.bf16.msra.mxu0 %v2673
    %3506 = vmatpush.bf16.msra.mxu0 %v2669
    %3507 = vmatmul.bf16.gmra.mxu0 %v3166
    %v3508 = vpop.f32.mrf.mxu0
    %v3509 = vadd.f32 0.0, %v3508
    %v3510 = vpop.f32.mrf.mxu0
    %3511 = vdwg.mxu0
    %v3516 = vrot.slane %v3483, 7
    %v3517 = vrot.slane %v3496, 6
    %v3518 = vrot.slane %v3509, 5
    %v3519 = vsel %vm2789, %v3470, %v3516
    %v3520 = vsel %vm2791, %v3517, %v3518
    %v3521 = vsel %vm2793, %v3519, %v3520
    %v3522 = vsel %vm2795, %v3470, %v3516
    %v3523 = vsel %vm2797, %v3517, %v3518
    %v3524 = vsel %vm2799, %v3522, %v3523
    %v3525 = vrot.slane %v3524, 1
    %v3528 = vadd.f32 %v3457, %v3521
    %v3529 = vadd.f32 %v3459, %v3525
    %v3530 = vxor.u32 %v3528, 2147483648
    %v3531 = vxor.u32 %v3529, 2147483648
    %v3532 = vmul.f32 %v3530, 1.442695
    %v3533 = vpow.pop %v3532
    %v3534 = vmul.f32 %v3531, 1.442695
    %v3535 = vpow.pop %v3534
    %v3536 = vadd.f32 %v3533, 1.0
    %v3537 = vadd.f32 %v3535, 1.0
    %v3538 = vrcp.pop %v3536
    %v3539 = vmul.f32 %v3536, %v3538
    %v3540 = vsub.f32 1.0, %v3539
    %v3541 = vmul.f32 %v3538, %v3540
    %v3542 = vadd.f32 %v3538, %v3541
    %vm3543 = vweird.f32 %v3536
    %vm3544 = vweird.f32 %v3538
    %vm3545 = vmor %vm3543, %vm3544
    %v3546 = vsel %vm3545, %v3538, %v3542
    %v3547 = vand.u32 2147483647, %v3536
    %vm3548 = vcmp.eq.f32.partialorder %v3547, 8.507059e+37
    %v3549 = vand.u32 %v3536, 2147483648
    %v3550 = vor.u32 1.1754944e-38, %v3549
    %v3551 = vsel %vm3548, %v3550, %v3546
    %v3552 = vmul.f32 1.0, %v3551
    %v3553 = vrcp.pop %v3537
    %v3554 = vmul.f32 %v3537, %v3553
    %v3555 = vsub.f32 1.0, %v3554
    %v3556 = vmul.f32 %v3553, %v3555
    %v3557 = vadd.f32 %v3553, %v3556
    %vm3558 = vweird.f32 %v3537
    %vm3559 = vweird.f32 %v3553
    %vm3560 = vmor %vm3558, %vm3559
    %v3561 = vsel %vm3560, %v3553, %v3557
    %v3562 = vand.u32 2147483647, %v3537
    %vm3563 = vcmp.eq.f32.partialorder %v3562, 8.507059e+37
    %v3564 = vand.u32 %v3537, 2147483648
    %v3565 = vor.u32 1.1754944e-38, %v3564
    %v3566 = vsel %vm3563, %v3565, %v3561
    %v3567 = vmul.f32 1.0, %v3566
    %v3570 = vrot.slane %v3528, 1
    %v3571 = vrot.slane %v3529, 1
    %v3574 = vxor.u32 %v3570, 2147483648
    %v3575 = vxor.u32 %v3571, 2147483648
    %v3576 = vmul.f32 %v3574, 1.442695
    %v3577 = vpow.pop %v3576
    %v3578 = vmul.f32 %v3575, 1.442695
    %v3579 = vpow.pop %v3578
    %v3580 = vadd.f32 %v3577, 1.0
    %v3581 = vadd.f32 %v3579, 1.0
    %v3582 = vrcp.pop %v3580
    %v3583 = vmul.f32 %v3580, %v3582
    %v3584 = vsub.f32 1.0, %v3583
    %v3585 = vmul.f32 %v3582, %v3584
    %v3586 = vadd.f32 %v3582, %v3585
    %vm3587 = vweird.f32 %v3580
    %vm3588 = vweird.f32 %v3582
    %vm3589 = vmor %vm3587, %vm3588
    %v3590 = vsel %vm3589, %v3582, %v3586
    %v3591 = vand.u32 2147483647, %v3580
    %vm3592 = vcmp.eq.f32.partialorder %v3591, 8.507059e+37
    %v3593 = vand.u32 %v3580, 2147483648
    %v3594 = vor.u32 1.1754944e-38, %v3593
    %v3595 = vsel %vm3592, %v3594, %v3590
    %v3596 = vmul.f32 1.0, %v3595
    %v3597 = vrcp.pop %v3581
    %v3598 = vmul.f32 %v3581, %v3597
    %v3599 = vsub.f32 1.0, %v3598
    %v3600 = vmul.f32 %v3597, %v3599
    %v3601 = vadd.f32 %v3597, %v3600
    %vm3602 = vweird.f32 %v3581
    %vm3603 = vweird.f32 %v3597
    %vm3604 = vmor %vm3602, %vm3603
    %v3605 = vsel %vm3604, %v3597, %v3601
    %v3606 = vand.u32 2147483647, %v3581
    %vm3607 = vcmp.eq.f32.partialorder %v3606, 8.507059e+37
    %v3608 = vand.u32 %v3581, 2147483648
    %v3609 = vor.u32 1.1754944e-38, %v3608
    %v3610 = vsel %vm3607, %v3609, %v3605
    %v3611 = vmul.f32 1.0, %v3610
    %v3612 = vrot.slane %v3528, 2
    %v3613 = vrot.slane %v3529, 2
    %v3616 = vtanh.pop %v3612
    %v3617 = vtanh.pop %v3613
    %v3618 = vrot.slane %v3528, 3
    %v3619 = vrot.slane %v3529, 3
    %v3622 = vxor.u32 %v3618, 2147483648
    %v3623 = vxor.u32 %v3619, 2147483648
    %v3624 = vmul.f32 %v3622, 1.442695
    %v3625 = vpow.pop %v3624
    %v3626 = vmul.f32 %v3623, 1.442695
    %v3627 = vpow.pop %v3626
    %v3628 = vadd.f32 %v3625, 1.0
    %v3629 = vadd.f32 %v3627, 1.0
    %v3630 = vrcp.pop %v3628
    %v3631 = vmul.f32 %v3628, %v3630
    %v3632 = vsub.f32 1.0, %v3631
    %v3633 = vmul.f32 %v3630, %v3632
    %v3634 = vadd.f32 %v3630, %v3633
    %vm3635 = vweird.f32 %v3628
    %vm3636 = vweird.f32 %v3630
    %vm3637 = vmor %vm3635, %vm3636
    %v3638 = vsel %vm3637, %v3630, %v3634
    %v3639 = vand.u32 2147483647, %v3628
    %vm3640 = vcmp.eq.f32.partialorder %v3639, 8.507059e+37
    %v3641 = vand.u32 %v3628, 2147483648
    %v3642 = vor.u32 1.1754944e-38, %v3641
    %v3643 = vsel %vm3640, %v3642, %v3638
    %v3644 = vmul.f32 1.0, %v3643
    %v3645 = vrcp.pop %v3629
    %v3646 = vmul.f32 %v3629, %v3645
    %v3647 = vsub.f32 1.0, %v3646
    %v3648 = vmul.f32 %v3645, %v3647
    %v3649 = vadd.f32 %v3645, %v3648
    %vm3650 = vweird.f32 %v3629
    %vm3651 = vweird.f32 %v3645
    %vm3652 = vmor %vm3650, %vm3651
    %v3653 = vsel %vm3652, %v3645, %v3649
    %v3654 = vand.u32 2147483647, %v3629
    %vm3655 = vcmp.eq.f32.partialorder %v3654, 8.507059e+37
    %v3656 = vand.u32 %v3629, 2147483648
    %v3657 = vor.u32 1.1754944e-38, %v3656
    %v3658 = vsel %vm3655, %v3657, %v3653
    %v3659 = vmul.f32 1.0, %v3658
    %v3660 = vmul.f32 %v3596, %v2940
    %v3661 = vmul.f32 %v3611, %v2941
    %v3662 = vmul.f32 %v3552, %v3616
    %v3663 = vmul.f32 %v3567, %v3617
    %v3664 = vadd.f32 %v3660, %v3662
    %v3665 = vadd.f32 %v3661, %v3663
    %v3666 = vtanh.pop %v3664
    %v3667 = vtanh.pop %v3665
    %v3668 = vmul.f32 %v3644, %v3666
    %v3669 = vmul.f32 %v3659, %v3667
    %v3670 = vpack.c.bf16 %v3668, %v3668
    %v3671 = vpack.c.bf16 %v3669, %v3669
    %v3672 = vpack.c.bf16 %v3455, %v3455
    %3673 = vmatpush.bf16.msra.mxu0 %v3072
    %3674 = vmatpush.bf16.msra.mxu0 %v3068
    %3675 = vmatpush.bf16.msra.mxu0 %v3064
    %3676 = vmatpush.bf16.msra.mxu0 %v3060
    %3677 = vmatpush.bf16.msra.mxu0 %v3056
    %3678 = vmatpush.bf16.msra.mxu0 %v3052
    %3679 = vmatpush.bf16.msra.mxu0 %v3048
    %3680 = vmatpush.bf16.msra.mxu0 %v3044
    %3681 = vmatmul.bf16.gmra.mxu0 %v3672
    %v3682 = vpop.f32.mrf.mxu0
    %v3683 = vadd.f32 0.0, %v3682
    %v3684 = vpop.f32.mrf.mxu0
    %3685 = vdwg.mxu0
    %3686 = vmatpush.bf16.msra.mxu0 %v3073
    %3687 = vmatpush.bf16.msra.mxu0 %v3069
    %3688 = vmatpush.bf16.msra.mxu0 %v3065
    %3689 = vmatpush.bf16.msra.mxu0 %v3061
    %3690 = vmatpush.bf16.msra.mxu0 %v3057
    %3691 = vmatpush.bf16.msra.mxu0 %v3053
    %3692 = vmatpush.bf16.msra.mxu0 %v3049
    %3693 = vmatpush.bf16.msra.mxu0 %v3045
    %3694 = vmatmul.bf16.gmra.mxu0 %v3672
    %v3695 = vpop.f32.mrf.mxu0
    %v3696 = vadd.f32 0.0, %v3695
    %v3697 = vpop.f32.mrf.mxu0
    %3698 = vdwg.mxu0
    %3699 = vmatpush.bf16.msra.mxu0 %v3074
    %3700 = vmatpush.bf16.msra.mxu0 %v3070
    %3701 = vmatpush.bf16.msra.mxu0 %v3066
    %3702 = vmatpush.bf16.msra.mxu0 %v3062
    %3703 = vmatpush.bf16.msra.mxu0 %v3058
    %3704 = vmatpush.bf16.msra.mxu0 %v3054
    %3705 = vmatpush.bf16.msra.mxu0 %v3050
    %3706 = vmatpush.bf16.msra.mxu0 %v3046
    %3707 = vmatmul.bf16.gmra.mxu0 %v3672
    %v3708 = vpop.f32.mrf.mxu0
    %v3709 = vadd.f32 0.0, %v3708
    %v3710 = vpop.f32.mrf.mxu0
    %3711 = vdwg.mxu0
    %3712 = vmatpush.bf16.msra.mxu0 %v3075
    %3713 = vmatpush.bf16.msra.mxu0 %v3071
    %3714 = vmatpush.bf16.msra.mxu0 %v3067
    %3715 = vmatpush.bf16.msra.mxu0 %v3063
    %3716 = vmatpush.bf16.msra.mxu0 %v3059
    %3717 = vmatpush.bf16.msra.mxu0 %v3055
    %3718 = vmatpush.bf16.msra.mxu0 %v3051
    %3719 = vmatpush.bf16.msra.mxu0 %v3047
    %3720 = vmatmul.bf16.gmra.mxu0 %v3672
    %v3721 = vpop.f32.mrf.mxu0
    %v3722 = vadd.f32 0.0, %v3721
    %v3723 = vpop.f32.mrf.mxu0
    %3724 = vdwg.mxu0
    %v3727 = vunpack.c.l.b16 %v3670
    %v3728 = vunpack.c.l.b16 %v3671
    %v3729 = vrot.slane %v3728, 7
    %v3730 = vsel %vm2795, %v3729, %v3727
    %v3731 = vpack.c.b16 %v3730, %v3730
    %3733 = vmatpush.bf16.msra.mxu0 %v3292
    %3734 = vmatpush.bf16.msra.mxu0 %v3288
    %3735 = vmatpush.bf16.msra.mxu0 %v3284
    %3736 = vmatpush.bf16.msra.mxu0 %v3280
    %3737 = vmatpush.bf16.msra.mxu0 %v3276
    %3738 = vmatpush.bf16.msra.mxu0 %v3272
    %3739 = vmatpush.bf16.msra.mxu0 %v3268
    %3740 = vmatpush.bf16.msra.mxu0 %v3264
    %3741 = vmatmul.bf16.gmra.mxu0 %v3731
    %v3742 = vpop.f32.mrf.mxu0
    %v3743 = vadd.f32 %v3683, %v3742
    %v3744 = vpop.f32.mrf.mxu0
    %3745 = vdwg.mxu0
    %3746 = vmatpush.bf16.msra.mxu0 %v3293
    %3747 = vmatpush.bf16.msra.mxu0 %v3289
    %3748 = vmatpush.bf16.msra.mxu0 %v3285
    %3749 = vmatpush.bf16.msra.mxu0 %v3281
    %3750 = vmatpush.bf16.msra.mxu0 %v3277
    %3751 = vmatpush.bf16.msra.mxu0 %v3273
    %3752 = vmatpush.bf16.msra.mxu0 %v3269
    %3753 = vmatpush.bf16.msra.mxu0 %v3265
    %3754 = vmatmul.bf16.gmra.mxu0 %v3731
    %v3755 = vpop.f32.mrf.mxu0
    %v3756 = vadd.f32 %v3696, %v3755
    %v3757 = vpop.f32.mrf.mxu0
    %3758 = vdwg.mxu0
    %3759 = vmatpush.bf16.msra.mxu0 %v3294
    %3760 = vmatpush.bf16.msra.mxu0 %v3290
    %3761 = vmatpush.bf16.msra.mxu0 %v3286
    %3762 = vmatpush.bf16.msra.mxu0 %v3282
    %3763 = vmatpush.bf16.msra.mxu0 %v3278
    %3764 = vmatpush.bf16.msra.mxu0 %v3274
    %3765 = vmatpush.bf16.msra.mxu0 %v3270
    %3766 = vmatpush.bf16.msra.mxu0 %v3266
    %3767 = vmatmul.bf16.gmra.mxu0 %v3731
    %v3768 = vpop.f32.mrf.mxu0
    %v3769 = vadd.f32 %v3709, %v3768
    %v3770 = vpop.f32.mrf.mxu0
    %3771 = vdwg.mxu0
    %3772 = vmatpush.bf16.msra.mxu0 %v3295
    %3773 = vmatpush.bf16.msra.mxu0 %v3291
    %3774 = vmatpush.bf16.msra.mxu0 %v3287
    %3775 = vmatpush.bf16.msra.mxu0 %v3283
    %3776 = vmatpush.bf16.msra.mxu0 %v3279
    %3777 = vmatpush.bf16.msra.mxu0 %v3275
    %3778 = vmatpush.bf16.msra.mxu0 %v3271
    %3779 = vmatpush.bf16.msra.mxu0 %v3267
    %3780 = vmatmul.bf16.gmra.mxu0 %v3731
    %v3781 = vpop.f32.mrf.mxu0
    %v3782 = vadd.f32 %v3722, %v3781
    %v3783 = vpop.f32.mrf.mxu0
    %3784 = vdwg.mxu0
    %v3785 = vadd.f32 %v3743, %v3381
    %v3786 = vadd.f32 %v3756, %v3382
    %v3787 = vadd.f32 %v3769, %v3383
    %v3788 = vadd.f32 %v3782, %v3384
    %v3789 = vxor.u32 %v3785, 2147483648
    %v3790 = vmul.f32 %v3789, 1.442695
    %v3791 = vpow.pop %v3790
    %v3792 = vadd.f32 %v3791, 1.0
    %v3793 = vrcp.pop %v3792
    %v3794 = vmul.f32 %v3792, %v3793
    %v3795 = vsub.f32 1.0, %v3794
    %v3796 = vmul.f32 %v3793, %v3795
    %v3797 = vadd.f32 %v3793, %v3796
    %vm3798 = vweird.f32 %v3792
    %vm3799 = vweird.f32 %v3793
    %vm3800 = vmor %vm3798, %vm3799
    %v3801 = vsel %vm3800, %v3793, %v3797
    %v3802 = vand.u32 2147483647, %v3792
    %vm3803 = vcmp.eq.f32.partialorder %v3802, 8.507059e+37
    %v3804 = vand.u32 %v3792, 2147483648
    %v3805 = vor.u32 1.1754944e-38, %v3804
    %v3806 = vsel %vm3803, %v3805, %v3801
    %v3807 = vmul.f32 1.0, %v3806
    %v3808 = vxor.u32 %v3786, 2147483648
    %v3809 = vmul.f32 %v3808, 1.442695
    %v3810 = vpow.pop %v3809
    %v3811 = vadd.f32 %v3810, 1.0
    %v3812 = vrcp.pop %v3811
    %v3813 = vmul.f32 %v3811, %v3812
    %v3814 = vsub.f32 1.0, %v3813
    %v3815 = vmul.f32 %v3812, %v3814
    %v3816 = vadd.f32 %v3812, %v3815
    %vm3817 = vweird.f32 %v3811
    %vm3818 = vweird.f32 %v3812
    %vm3819 = vmor %vm3817, %vm3818
    %v3820 = vsel %vm3819, %v3812, %v3816
    %v3821 = vand.u32 2147483647, %v3811
    %vm3822 = vcmp.eq.f32.partialorder %v3821, 8.507059e+37
    %v3823 = vand.u32 %v3811, 2147483648
    %v3824 = vor.u32 1.1754944e-38, %v3823
    %v3825 = vsel %vm3822, %v3824, %v3820
    %v3826 = vmul.f32 1.0, %v3825
    %v3827 = vtanh.pop %v3787
    %v3828 = vxor.u32 %v3788, 2147483648
    %v3829 = vmul.f32 %v3828, 1.442695
    %v3830 = vpow.pop %v3829
    %v3831 = vadd.f32 %v3830, 1.0
    %v3832 = vrcp.pop %v3831
    %v3833 = vmul.f32 %v3831, %v3832
    %v3834 = vsub.f32 1.0, %v3833
    %v3835 = vmul.f32 %v3832, %v3834
    %v3836 = vadd.f32 %v3832, %v3835
    %vm3837 = vweird.f32 %v3831
    %vm3838 = vweird.f32 %v3832
    %vm3839 = vmor %vm3837, %vm3838
    %v3840 = vsel %vm3839, %v3832, %v3836
    %v3841 = vand.u32 2147483647, %v3831
    %vm3842 = vcmp.eq.f32.partialorder %v3841, 8.507059e+37
    %v3843 = vand.u32 %v3831, 2147483648
    %v3844 = vor.u32 1.1754944e-38, %v3843
    %v3845 = vsel %vm3842, %v3844, %v3840
    %v3846 = vmul.f32 1.0, %v3845
    %v3847 = vmul.f32 %v3826, %v3453
    %v3848 = vmul.f32 %v3807, %v3827
    %v3849 = vadd.f32 %v3847, %v3848
    %v3850 = vtanh.pop %v3849
    %v3851 = vmul.f32 %v3846, %v3850
    %s3852 = scalar_lea.vmem [#allocation2], 2
    %v3853 = vld [vmem:[%s3852] ss:$8 sm:$0xf]
    %s3854 = scalar_lea.vmem [#allocation2], 34
    %v3855 = vld [vmem:[%s3854] ss:$8 sm:$0xf]
    %3856 = vmatpush.bf16.msra.mxu0 %v2694
    %3857 = vmatpush.bf16.msra.mxu0 %v2690
    %3858 = vmatpush.bf16.msra.mxu0 %v2686
    %3859 = vmatpush.bf16.msra.mxu0 %v2682
    %3860 = vmatpush.bf16.msra.mxu0 %v2678
    %3861 = vmatpush.bf16.msra.mxu0 %v2674
    %3862 = vmatpush.bf16.msra.mxu0 %v2670
    %3863 = vmatpush.bf16.msra.mxu0 %v2666
    %3864 = vmatmul.bf16.gmra.mxu0 %v3731
    %v3865 = vpop.f32.mrf.mxu0
    %v3866 = vadd.f32 0.0, %v3865
    %v3867 = vpop.f32.mrf.mxu0
    %3868 = vdwg.mxu0
    %3869 = vmatpush.bf16.msra.mxu0 %v2695
    %3870 = vmatpush.bf16.msra.mxu0 %v2691
    %3871 = vmatpush.bf16.msra.mxu0 %v2687
    %3872 = vmatpush.bf16.msra.mxu0 %v2683
    %3873 = vmatpush.bf16.msra.mxu0 %v2679
    %3874 = vmatpush.bf16.msra.mxu0 %v2675
    %3875 = vmatpush.bf16.msra.mxu0 %v2671
    %3876 = vmatpush.bf16.msra.mxu0 %v2667
    %3877 = vmatmul.bf16.gmra.mxu0 %v3731
    %v3878 = vpop.f32.mrf.mxu0
    %v3879 = vadd.f32 0.0, %v3878
    %v3880 = vpop.f32.mrf.mxu0
    %3881 = vdwg.mxu0
    %3882 = vmatpush.bf16.msra.mxu0 %v2696
    %3883 = vmatpush.bf16.msra.mxu0 %v2692
    %3884 = vmatpush.bf16.msra.mxu0 %v2688
    %3885 = vmatpush.bf16.msra.mxu0 %v2684
    %3886 = vmatpush.bf16.msra.mxu0 %v2680
    %3887 = vmatpush.bf16.msra.mxu0 %v2676
    %3888 = vmatpush.bf16.msra.mxu0 %v2672
    %3889 = vmatpush.bf16.msra.mxu0 %v2668
    %3890 = vmatmul.bf16.gmra.mxu0 %v3731
    %v3891 = vpop.f32.mrf.mxu0
    %v3892 = vadd.f32 0.0, %v3891
    %v3893 = vpop.f32.mrf.mxu0
    %3894 = vdwg.mxu0
    %3895 = vmatpush.bf16.msra.mxu0 %v2697
    %3896 = vmatpush.bf16.msra.mxu0 %v2693
    %3897 = vmatpush.bf16.msra.mxu0 %v2689
    %3898 = vmatpush.bf16.msra.mxu0 %v2685
    %3899 = vmatpush.bf16.msra.mxu0 %v2681
    %3900 = vmatpush.bf16.msra.mxu0 %v2677
    %3901 = vmatpush.bf16.msra.mxu0 %v2673
    %3902 = vmatpush.bf16.msra.mxu0 %v2669
    %3903 = vmatmul.bf16.gmra.mxu0 %v3731
    %v3904 = vpop.f32.mrf.mxu0
    %v3905 = vadd.f32 0.0, %v3904
    %v3906 = vpop.f32.mrf.mxu0
    %3907 = vdwg.mxu0
    %v3912 = vrot.slane %v3879, 7
    %v3913 = vrot.slane %v3892, 6
    %v3914 = vrot.slane %v3905, 5
    %v3915 = vsel %vm2789, %v3866, %v3912
    %v3916 = vsel %vm2791, %v3913, %v3914
    %v3917 = vsel %vm2793, %v3915, %v3916
    %v3918 = vsel %vm2795, %v3866, %v3912
    %v3919 = vsel %vm2797, %v3913, %v3914
    %v3920 = vsel %vm2799, %v3918, %v3919
    %v3921 = vrot.slane %v3920, 1
    %v3924 = vadd.f32 %v3853, %v3917
    %v3925 = vadd.f32 %v3855, %v3921
    %v3926 = vxor.u32 %v3924, 2147483648
    %v3927 = vxor.u32 %v3925, 2147483648
    %v3928 = vmul.f32 %v3926, 1.442695
    %v3929 = vpow.pop %v3928
    %v3930 = vmul.f32 %v3927, 1.442695
    %v3931 = vpow.pop %v3930
    %v3932 = vadd.f32 %v3929, 1.0
    %v3933 = vadd.f32 %v3931, 1.0
    %v3934 = vrcp.pop %v3932
    %v3935 = vmul.f32 %v3932, %v3934
    %v3936 = vsub.f32 1.0, %v3935
    %v3937 = vmul.f32 %v3934, %v3936
    %v3938 = vadd.f32 %v3934, %v3937
    %vm3939 = vweird.f32 %v3932
    %vm3940 = vweird.f32 %v3934
    %vm3941 = vmor %vm3939, %vm3940
    %v3942 = vsel %vm3941, %v3934, %v3938
    %v3943 = vand.u32 2147483647, %v3932
    %vm3944 = vcmp.eq.f32.partialorder %v3943, 8.507059e+37
    %v3945 = vand.u32 %v3932, 2147483648
    %v3946 = vor.u32 1.1754944e-38, %v3945
    %v3947 = vsel %vm3944, %v3946, %v3942
    %v3948 = vmul.f32 1.0, %v3947
    %v3949 = vrcp.pop %v3933
    %v3950 = vmul.f32 %v3933, %v3949
    %v3951 = vsub.f32 1.0, %v3950
    %v3952 = vmul.f32 %v3949, %v3951
    %v3953 = vadd.f32 %v3949, %v3952
    %vm3954 = vweird.f32 %v3933
    %vm3955 = vweird.f32 %v3949
    %vm3956 = vmor %vm3954, %vm3955
    %v3957 = vsel %vm3956, %v3949, %v3953
    %v3958 = vand.u32 2147483647, %v3933
    %vm3959 = vcmp.eq.f32.partialorder %v3958, 8.507059e+37
    %v3960 = vand.u32 %v3933, 2147483648
    %v3961 = vor.u32 1.1754944e-38, %v3960
    %v3962 = vsel %vm3959, %v3961, %v3957
    %v3963 = vmul.f32 1.0, %v3962
    %v3966 = vrot.slane %v3924, 1
    %v3967 = vrot.slane %v3925, 1
    %v3970 = vxor.u32 %v3966, 2147483648
    %v3971 = vxor.u32 %v3967, 2147483648
    %v3972 = vmul.f32 %v3970, 1.442695
    %v3973 = vpow.pop %v3972
    %v3974 = vmul.f32 %v3971, 1.442695
    %v3975 = vpow.pop %v3974
    %v3976 = vadd.f32 %v3973, 1.0
    %v3977 = vadd.f32 %v3975, 1.0
    %v3978 = vrcp.pop %v3976
    %v3979 = vmul.f32 %v3976, %v3978
    %v3980 = vsub.f32 1.0, %v3979
    %v3981 = vmul.f32 %v3978, %v3980
    %v3982 = vadd.f32 %v3978, %v3981
    %vm3983 = vweird.f32 %v3976
    %vm3984 = vweird.f32 %v3978
    %vm3985 = vmor %vm3983, %vm3984
    %v3986 = vsel %vm3985, %v3978, %v3982
    %v3987 = vand.u32 2147483647, %v3976
    %vm3988 = vcmp.eq.f32.partialorder %v3987, 8.507059e+37
    %v3989 = vand.u32 %v3976, 2147483648
    %v3990 = vor.u32 1.1754944e-38, %v3989
    %v3991 = vsel %vm3988, %v3990, %v3986
    %v3992 = vmul.f32 1.0, %v3991
    %v3993 = vrcp.pop %v3977
    %v3994 = vmul.f32 %v3977, %v3993
    %v3995 = vsub.f32 1.0, %v3994
    %v3996 = vmul.f32 %v3993, %v3995
    %v3997 = vadd.f32 %v3993, %v3996
    %vm3998 = vweird.f32 %v3977
    %vm3999 = vweird.f32 %v3993
    %vm4000 = vmor %vm3998, %vm3999
    %v4001 = vsel %vm4000, %v3993, %v3997
    %v4002 = vand.u32 2147483647, %v3977
    %vm4003 = vcmp.eq.f32.partialorder %v4002, 8.507059e+37
    %v4004 = vand.u32 %v3977, 2147483648
    %v4005 = vor.u32 1.1754944e-38, %v4004
    %v4006 = vsel %vm4003, %v4005, %v4001
    %v4007 = vmul.f32 1.0, %v4006
    %v4008 = vrot.slane %v3924, 2
    %v4009 = vrot.slane %v3925, 2
    %v4012 = vtanh.pop %v4008
    %v4013 = vtanh.pop %v4009
    %v4014 = vrot.slane %v3924, 3
    %v4015 = vrot.slane %v3925, 3
    %v4018 = vxor.u32 %v4014, 2147483648
    %v4019 = vxor.u32 %v4015, 2147483648
    %v4020 = vmul.f32 %v4018, 1.442695
    %v4021 = vpow.pop %v4020
    %v4022 = vmul.f32 %v4019, 1.442695
    %v4023 = vpow.pop %v4022
    %v4024 = vadd.f32 %v4021, 1.0
    %v4025 = vadd.f32 %v4023, 1.0
    %v4026 = vrcp.pop %v4024
    %v4027 = vmul.f32 %v4024, %v4026
    %v4028 = vsub.f32 1.0, %v4027
    %v4029 = vmul.f32 %v4026, %v4028
    %v4030 = vadd.f32 %v4026, %v4029
    %vm4031 = vweird.f32 %v4024
    %vm4032 = vweird.f32 %v4026
    %vm4033 = vmor %vm4031, %vm4032
    %v4034 = vsel %vm4033, %v4026, %v4030
    %v4035 = vand.u32 2147483647, %v4024
    %vm4036 = vcmp.eq.f32.partialorder %v4035, 8.507059e+37
    %v4037 = vand.u32 %v4024, 2147483648
    %v4038 = vor.u32 1.1754944e-38, %v4037
    %v4039 = vsel %vm4036, %v4038, %v4034
    %v4040 = vmul.f32 1.0, %v4039
    %v4041 = vrcp.pop %v4025
    %v4042 = vmul.f32 %v4025, %v4041
    %v4043 = vsub.f32 1.0, %v4042
    %v4044 = vmul.f32 %v4041, %v4043
    %v4045 = vadd.f32 %v4041, %v4044
    %vm4046 = vweird.f32 %v4025
    %vm4047 = vweird.f32 %v4041
    %vm4048 = vmor %vm4046, %vm4047
    %v4049 = vsel %vm4048, %v4041, %v4045
    %v4050 = vand.u32 2147483647, %v4025
    %vm4051 = vcmp.eq.f32.partialorder %v4050, 8.507059e+37
    %v4052 = vand.u32 %v4025, 2147483648
    %v4053 = vor.u32 1.1754944e-38, %v4052
    %v4054 = vsel %vm4051, %v4053, %v4049
    %v4055 = vmul.f32 1.0, %v4054
    %v4056 = vmul.f32 %v3992, %v3664
    %v4057 = vmul.f32 %v4007, %v3665
    %v4058 = vmul.f32 %v3948, %v4012
    %v4059 = vmul.f32 %v3963, %v4013
    %v4060 = vadd.f32 %v4056, %v4058
    %v4061 = vadd.f32 %v4057, %v4059
    %v4062 = vtanh.pop %v4060
    %v4063 = vtanh.pop %v4061
    %v4064 = vmul.f32 %v4040, %v4062
    %v4065 = vmul.f32 %v4055, %v4063
    %v4066 = vpack.c.bf16 %v4064, %v4064
    %v4067 = vpack.c.bf16 %v4065, %v4065
    %v4068 = vpack.c.bf16 %v3851, %v3851
    %4069 = vmatpush.bf16.msra.mxu0 %v3072
    %4070 = vmatpush.bf16.msra.mxu0 %v3068
    %4071 = vmatpush.bf16.msra.mxu0 %v3064
    %4072 = vmatpush.bf16.msra.mxu0 %v3060
    %4073 = vmatpush.bf16.msra.mxu0 %v3056
    %4074 = vmatpush.bf16.msra.mxu0 %v3052
    %4075 = vmatpush.bf16.msra.mxu0 %v3048
    %4076 = vmatpush.bf16.msra.mxu0 %v3044
    %4077 = vmatmul.bf16.gmra.mxu0 %v4068
    %v4078 = vpop.f32.mrf.mxu0
    %v4079 = vadd.f32 0.0, %v4078
    %v4080 = vpop.f32.mrf.mxu0
    %4081 = vdwg.mxu0
    %4082 = vmatpush.bf16.msra.mxu0 %v3073
    %4083 = vmatpush.bf16.msra.mxu0 %v3069
    %4084 = vmatpush.bf16.msra.mxu0 %v3065
    %4085 = vmatpush.bf16.msra.mxu0 %v3061
    %4086 = vmatpush.bf16.msra.mxu0 %v3057
    %4087 = vmatpush.bf16.msra.mxu0 %v3053
    %4088 = vmatpush.bf16.msra.mxu0 %v3049
    %4089 = vmatpush.bf16.msra.mxu0 %v3045
    %4090 = vmatmul.bf16.gmra.mxu0 %v4068
    %v4091 = vpop.f32.mrf.mxu0
    %v4092 = vadd.f32 0.0, %v4091
    %v4093 = vpop.f32.mrf.mxu0
    %4094 = vdwg.mxu0
    %4095 = vmatpush.bf16.msra.mxu0 %v3074
    %4096 = vmatpush.bf16.msra.mxu0 %v3070
    %4097 = vmatpush.bf16.msra.mxu0 %v3066
    %4098 = vmatpush.bf16.msra.mxu0 %v3062
    %4099 = vmatpush.bf16.msra.mxu0 %v3058
    %4100 = vmatpush.bf16.msra.mxu0 %v3054
    %4101 = vmatpush.bf16.msra.mxu0 %v3050
    %4102 = vmatpush.bf16.msra.mxu0 %v3046
    %4103 = vmatmul.bf16.gmra.mxu0 %v4068
    %v4104 = vpop.f32.mrf.mxu0
    %v4105 = vadd.f32 0.0, %v4104
    %v4106 = vpop.f32.mrf.mxu0
    %4107 = vdwg.mxu0
    %4108 = vmatpush.bf16.msra.mxu0 %v3075
    %4109 = vmatpush.bf16.msra.mxu0 %v3071
    %4110 = vmatpush.bf16.msra.mxu0 %v3067
    %4111 = vmatpush.bf16.msra.mxu0 %v3063
    %4112 = vmatpush.bf16.msra.mxu0 %v3059
    %4113 = vmatpush.bf16.msra.mxu0 %v3055
    %4114 = vmatpush.bf16.msra.mxu0 %v3051
    %4115 = vmatpush.bf16.msra.mxu0 %v3047
    %4116 = vmatmul.bf16.gmra.mxu0 %v4068
    %v4117 = vpop.f32.mrf.mxu0
    %v4118 = vadd.f32 0.0, %v4117
    %v4119 = vpop.f32.mrf.mxu0
    %4120 = vdwg.mxu0
    %v4123 = vunpack.c.l.b16 %v4066
    %v4124 = vunpack.c.l.b16 %v4067
    %v4125 = vrot.slane %v4124, 7
    %v4126 = vsel %vm2795, %v4125, %v4123
    %v4127 = vpack.c.b16 %v4126, %v4126
    %4129 = vmatpush.bf16.msra.mxu0 %v3292
    %4130 = vmatpush.bf16.msra.mxu0 %v3288
    %4131 = vmatpush.bf16.msra.mxu0 %v3284
    %4132 = vmatpush.bf16.msra.mxu0 %v3280
    %4133 = vmatpush.bf16.msra.mxu0 %v3276
    %4134 = vmatpush.bf16.msra.mxu0 %v3272
    %4135 = vmatpush.bf16.msra.mxu0 %v3268
    %4136 = vmatpush.bf16.msra.mxu0 %v3264
    %4137 = vmatmul.bf16.gmra.mxu0 %v4127
    %v4138 = vpop.f32.mrf.mxu0
    %v4139 = vadd.f32 %v4079, %v4138
    %v4140 = vpop.f32.mrf.mxu0
    %4141 = vdwg.mxu0
    %4142 = vmatpush.bf16.msra.mxu0 %v3293
    %4143 = vmatpush.bf16.msra.mxu0 %v3289
    %4144 = vmatpush.bf16.msra.mxu0 %v3285
    %4145 = vmatpush.bf16.msra.mxu0 %v3281
    %4146 = vmatpush.bf16.msra.mxu0 %v3277
    %4147 = vmatpush.bf16.msra.mxu0 %v3273
    %4148 = vmatpush.bf16.msra.mxu0 %v3269
    %4149 = vmatpush.bf16.msra.mxu0 %v3265
    %4150 = vmatmul.bf16.gmra.mxu0 %v4127
    %v4151 = vpop.f32.mrf.mxu0
    %v4152 = vadd.f32 %v4092, %v4151
    %v4153 = vpop.f32.mrf.mxu0
    %4154 = vdwg.mxu0
    %4155 = vmatpush.bf16.msra.mxu0 %v3294
    %4156 = vmatpush.bf16.msra.mxu0 %v3290
    %4157 = vmatpush.bf16.msra.mxu0 %v3286
    %4158 = vmatpush.bf16.msra.mxu0 %v3282
    %4159 = vmatpush.bf16.msra.mxu0 %v3278
    %4160 = vmatpush.bf16.msra.mxu0 %v3274
    %4161 = vmatpush.bf16.msra.mxu0 %v3270
    %4162 = vmatpush.bf16.msra.mxu0 %v3266
    %4163 = vmatmul.bf16.gmra.mxu0 %v4127
    %v4164 = vpop.f32.mrf.mxu0
    %v4165 = vadd.f32 %v4105, %v4164
    %v4166 = vpop.f32.mrf.mxu0
    %4167 = vdwg.mxu0
    %4168 = vmatpush.bf16.msra.mxu0 %v3295
    %4169 = vmatpush.bf16.msra.mxu0 %v3291
    %4170 = vmatpush.bf16.msra.mxu0 %v3287
    %4171 = vmatpush.bf16.msra.mxu0 %v3283
    %4172 = vmatpush.bf16.msra.mxu0 %v3279
    %4173 = vmatpush.bf16.msra.mxu0 %v3275
    %4174 = vmatpush.bf16.msra.mxu0 %v3271
    %4175 = vmatpush.bf16.msra.mxu0 %v3267
    %4176 = vmatmul.bf16.gmra.mxu0 %v4127
    %v4177 = vpop.f32.mrf.mxu0
    %v4178 = vadd.f32 %v4118, %v4177
    %v4179 = vpop.f32.mrf.mxu0
    %4180 = vdwg.mxu0
    %v4181 = vadd.f32 %v4139, %v3381
    %v4182 = vadd.f32 %v4152, %v3382
    %v4183 = vadd.f32 %v4165, %v3383
    %v4184 = vadd.f32 %v4178, %v3384
    %v4185 = vxor.u32 %v4181, 2147483648
    %v4186 = vmul.f32 %v4185, 1.442695
    %v4187 = vpow.pop %v4186
    %v4188 = vadd.f32 %v4187, 1.0
    %v4189 = vrcp.pop %v4188
    %v4190 = vmul.f32 %v4188, %v4189
    %v4191 = vsub.f32 1.0, %v4190
    %v4192 = vmul.f32 %v4189, %v4191
    %v4193 = vadd.f32 %v4189, %v4192
    %vm4194 = vweird.f32 %v4188
    %vm4195 = vweird.f32 %v4189
    %vm4196 = vmor %vm4194, %vm4195
    %v4197 = vsel %vm4196, %v4189, %v4193
    %v4198 = vand.u32 2147483647, %v4188
    %vm4199 = vcmp.eq.f32.partialorder %v4198, 8.507059e+37
    %v4200 = vand.u32 %v4188, 2147483648
    %v4201 = vor.u32 1.1754944e-38, %v4200
    %v4202 = vsel %vm4199, %v4201, %v4197
    %v4203 = vmul.f32 1.0, %v4202
    %v4204 = vxor.u32 %v4182, 2147483648
    %v4205 = vmul.f32 %v4204, 1.442695
    %v4206 = vpow.pop %v4205
    %v4207 = vadd.f32 %v4206, 1.0
    %v4208 = vrcp.pop %v4207
    %v4209 = vmul.f32 %v4207, %v4208
    %v4210 = vsub.f32 1.0, %v4209
    %v4211 = vmul.f32 %v4208, %v4210
    %v4212 = vadd.f32 %v4208, %v4211
    %vm4213 = vweird.f32 %v4207
    %vm4214 = vweird.f32 %v4208
    %vm4215 = vmor %vm4213, %vm4214
    %v4216 = vsel %vm4215, %v4208, %v4212
    %v4217 = vand.u32 2147483647, %v4207
    %vm4218 = vcmp.eq.f32.partialorder %v4217, 8.507059e+37
    %v4219 = vand.u32 %v4207, 2147483648
    %v4220 = vor.u32 1.1754944e-38, %v4219
    %v4221 = vsel %vm4218, %v4220, %v4216
    %v4222 = vmul.f32 1.0, %v4221
    %v4223 = vtanh.pop %v4183
    %v4224 = vxor.u32 %v4184, 2147483648
    %v4225 = vmul.f32 %v4224, 1.442695
    %v4226 = vpow.pop %v4225
    %v4227 = vadd.f32 %v4226, 1.0
    %v4228 = vrcp.pop %v4227
    %v4229 = vmul.f32 %v4227, %v4228
    %v4230 = vsub.f32 1.0, %v4229
    %v4231 = vmul.f32 %v4228, %v4230
    %v4232 = vadd.f32 %v4228, %v4231
    %vm4233 = vweird.f32 %v4227
    %vm4234 = vweird.f32 %v4228
    %vm4235 = vmor %vm4233, %vm4234
    %v4236 = vsel %vm4235, %v4228, %v4232
    %v4237 = vand.u32 2147483647, %v4227
    %vm4238 = vcmp.eq.f32.partialorder %v4237, 8.507059e+37
    %v4239 = vand.u32 %v4227, 2147483648
    %v4240 = vor.u32 1.1754944e-38, %v4239
    %v4241 = vsel %vm4238, %v4240, %v4236
    %v4242 = vmul.f32 1.0, %v4241
    %v4243 = vmul.f32 %v4222, %v3849
    %v4244 = vmul.f32 %v4203, %v4223
    %v4245 = vadd.f32 %v4243, %v4244
    %v4246 = vtanh.pop %v4245
    %v4247 = vmul.f32 %v4242, %v4246
    %s4248 = scalar_lea.vmem [#allocation2], 3
    %v4249 = vld [vmem:[%s4248] ss:$8 sm:$0xf]
    %s4250 = scalar_lea.vmem [#allocation2], 35
    %v4251 = vld [vmem:[%s4250] ss:$8 sm:$0xf]
    %4252 = vmatpush.bf16.msra.mxu0 %v2694
    %4253 = vmatpush.bf16.msra.mxu0 %v2690
    %4254 = vmatpush.bf16.msra.mxu0 %v2686
    %4255 = vmatpush.bf16.msra.mxu0 %v2682
    %4256 = vmatpush.bf16.msra.mxu0 %v2678
    %4257 = vmatpush.bf16.msra.mxu0 %v2674
    %4258 = vmatpush.bf16.msra.mxu0 %v2670
    %4259 = vmatpush.bf16.msra.mxu0 %v2666
    %4260 = vmatmul.bf16.gmra.mxu0 %v4127
    %v4261 = vpop.f32.mrf.mxu0
    %v4262 = vadd.f32 0.0, %v4261
    %v4263 = vpop.f32.mrf.mxu0
    %4264 = vdwg.mxu0
    %4265 = vmatpush.bf16.msra.mxu0 %v2695
    %4266 = vmatpush.bf16.msra.mxu0 %v2691
    %4267 = vmatpush.bf16.msra.mxu0 %v2687
    %4268 = vmatpush.bf16.msra.mxu0 %v2683
    %4269 = vmatpush.bf16.msra.mxu0 %v2679
    %4270 = vmatpush.bf16.msra.mxu0 %v2675
    %4271 = vmatpush.bf16.msra.mxu0 %v2671
    %4272 = vmatpush.bf16.msra.mxu0 %v2667
    %4273 = vmatmul.bf16.gmra.mxu0 %v4127
    %v4274 = vpop.f32.mrf.mxu0
    %v4275 = vadd.f32 0.0, %v4274
    %v4276 = vpop.f32.mrf.mxu0
    %4277 = vdwg.mxu0
    %4278 = vmatpush.bf16.msra.mxu0 %v2696
    %4279 = vmatpush.bf16.msra.mxu0 %v2692
    %4280 = vmatpush.bf16.msra.mxu0 %v2688
    %4281 = vmatpush.bf16.msra.mxu0 %v2684
    %4282 = vmatpush.bf16.msra.mxu0 %v2680
    %4283 = vmatpush.bf16.msra.mxu0 %v2676
    %4284 = vmatpush.bf16.msra.mxu0 %v2672
    %4285 = vmatpush.bf16.msra.mxu0 %v2668
    %4286 = vmatmul.bf16.gmra.mxu0 %v4127
    %v4287 = vpop.f32.mrf.mxu0
    %v4288 = vadd.f32 0.0, %v4287
    %v4289 = vpop.f32.mrf.mxu0
    %4290 = vdwg.mxu0
    %4291 = vmatpush.bf16.msra.mxu0 %v2697
    %4292 = vmatpush.bf16.msra.mxu0 %v2693
    %4293 = vmatpush.bf16.msra.mxu0 %v2689
    %4294 = vmatpush.bf16.msra.mxu0 %v2685
    %4295 = vmatpush.bf16.msra.mxu0 %v2681
    %4296 = vmatpush.bf16.msra.mxu0 %v2677
    %4297 = vmatpush.bf16.msra.mxu0 %v2673
    %4298 = vmatpush.bf16.msra.mxu0 %v2669
    %4299 = vmatmul.bf16.gmra.mxu0 %v4127
    %v4300 = vpop.f32.mrf.mxu0
    %v4301 = vadd.f32 0.0, %v4300
    %v4302 = vpop.f32.mrf.mxu0
    %4303 = vdwg.mxu0
    %v4308 = vrot.slane %v4275, 7
    %v4309 = vrot.slane %v4288, 6
    %v4310 = vrot.slane %v4301, 5
    %v4311 = vsel %vm2789, %v4262, %v4308
    %v4312 = vsel %vm2791, %v4309, %v4310
    %v4313 = vsel %vm2793, %v4311, %v4312
    %v4314 = vsel %vm2795, %v4262, %v4308
    %v4315 = vsel %vm2797, %v4309, %v4310
    %v4316 = vsel %vm2799, %v4314, %v4315
    %v4317 = vrot.slane %v4316, 1
    %v4320 = vadd.f32 %v4249, %v4313
    %v4321 = vadd.f32 %v4251, %v4317
    %v4322 = vxor.u32 %v4320, 2147483648
    %v4323 = vxor.u32 %v4321, 2147483648
    %v4324 = vmul.f32 %v4322, 1.442695
    %v4325 = vpow.pop %v4324
    %v4326 = vmul.f32 %v4323, 1.442695
    %v4327 = vpow.pop %v4326
    %v4328 = vadd.f32 %v4325, 1.0
    %v4329 = vadd.f32 %v4327, 1.0
    %v4330 = vrcp.pop %v4328
    %v4331 = vmul.f32 %v4328, %v4330
    %v4332 = vsub.f32 1.0, %v4331
    %v4333 = vmul.f32 %v4330, %v4332
    %v4334 = vadd.f32 %v4330, %v4333
    %vm4335 = vweird.f32 %v4328
    %vm4336 = vweird.f32 %v4330
    %vm4337 = vmor %vm4335, %vm4336
    %v4338 = vsel %vm4337, %v4330, %v4334
    %v4339 = vand.u32 2147483647, %v4328
    %vm4340 = vcmp.eq.f32.partialorder %v4339, 8.507059e+37
    %v4341 = vand.u32 %v4328, 2147483648
    %v4342 = vor.u32 1.1754944e-38, %v4341
    %v4343 = vsel %vm4340, %v4342, %v4338
    %v4344 = vmul.f32 1.0, %v4343
    %v4345 = vrcp.pop %v4329
    %v4346 = vmul.f32 %v4329, %v4345
    %v4347 = vsub.f32 1.0, %v4346
    %v4348 = vmul.f32 %v4345, %v4347
    %v4349 = vadd.f32 %v4345, %v4348
    %vm4350 = vweird.f32 %v4329
    %vm4351 = vweird.f32 %v4345
    %vm4352 = vmor %vm4350, %vm4351
    %v4353 = vsel %vm4352, %v4345, %v4349
    %v4354 = vand.u32 2147483647, %v4329
    %vm4355 = vcmp.eq.f32.partialorder %v4354, 8.507059e+37
    %v4356 = vand.u32 %v4329, 2147483648
    %v4357 = vor.u32 1.1754944e-38, %v4356
    %v4358 = vsel %vm4355, %v4357, %v4353
    %v4359 = vmul.f32 1.0, %v4358
    %v4362 = vrot.slane %v4320, 1
    %v4363 = vrot.slane %v4321, 1
    %v4366 = vxor.u32 %v4362, 2147483648
    %v4367 = vxor.u32 %v4363, 2147483648
    %v4368 = vmul.f32 %v4366, 1.442695
    %v4369 = vpow.pop %v4368
    %v4370 = vmul.f32 %v4367, 1.442695
    %v4371 = vpow.pop %v4370
    %v4372 = vadd.f32 %v4369, 1.0
    %v4373 = vadd.f32 %v4371, 1.0
    %v4374 = vrcp.pop %v4372
    %v4375 = vmul.f32 %v4372, %v4374
    %v4376 = vsub.f32 1.0, %v4375
    %v4377 = vmul.f32 %v4374, %v4376
    %v4378 = vadd.f32 %v4374, %v4377
    %vm4379 = vweird.f32 %v4372
    %vm4380 = vweird.f32 %v4374
    %vm4381 = vmor %vm4379, %vm4380
    %v4382 = vsel %vm4381, %v4374, %v4378
    %v4383 = vand.u32 2147483647, %v4372
    %vm4384 = vcmp.eq.f32.partialorder %v4383, 8.507059e+37
    %v4385 = vand.u32 %v4372, 2147483648
    %v4386 = vor.u32 1.1754944e-38, %v4385
    %v4387 = vsel %vm4384, %v4386, %v4382
    %v4388 = vmul.f32 1.0, %v4387
    %v4389 = vrcp.pop %v4373
    %v4390 = vmul.f32 %v4373, %v4389
    %v4391 = vsub.f32 1.0, %v4390
    %v4392 = vmul.f32 %v4389, %v4391
    %v4393 = vadd.f32 %v4389, %v4392
    %vm4394 = vweird.f32 %v4373
    %vm4395 = vweird.f32 %v4389
    %vm4396 = vmor %vm4394, %vm4395
    %v4397 = vsel %vm4396, %v4389, %v4393
    %v4398 = vand.u32 2147483647, %v4373
    %vm4399 = vcmp.eq.f32.partialorder %v4398, 8.507059e+37
    %v4400 = vand.u32 %v4373, 2147483648
    %v4401 = vor.u32 1.1754944e-38, %v4400
    %v4402 = vsel %vm4399, %v4401, %v4397
    %v4403 = vmul.f32 1.0, %v4402
    %v4404 = vrot.slane %v4320, 2
    %v4405 = vrot.slane %v4321, 2
    %v4408 = vtanh.pop %v4404
    %v4409 = vtanh.pop %v4405
    %v4410 = vrot.slane %v4320, 3
    %v4411 = vrot.slane %v4321, 3
    %v4414 = vxor.u32 %v4410, 2147483648
    %v4415 = vxor.u32 %v4411, 2147483648
    %v4416 = vmul.f32 %v4414, 1.442695
    %v4417 = vpow.pop %v4416
    %v4418 = vmul.f32 %v4415, 1.442695
    %v4419 = vpow.pop %v4418
    %v4420 = vadd.f32 %v4417, 1.0
    %v4421 = vadd.f32 %v4419, 1.0
    %v4422 = vrcp.pop %v4420
    %v4423 = vmul.f32 %v4420, %v4422
    %v4424 = vsub.f32 1.0, %v4423
    %v4425 = vmul.f32 %v4422, %v4424
    %v4426 = vadd.f32 %v4422, %v4425
    %vm4427 = vweird.f32 %v4420
    %vm4428 = vweird.f32 %v4422
    %vm4429 = vmor %vm4427, %vm4428
    %v4430 = vsel %vm4429, %v4422, %v4426
    %v4431 = vand.u32 2147483647, %v4420
    %vm4432 = vcmp.eq.f32.partialorder %v4431, 8.507059e+37
    %v4433 = vand.u32 %v4420, 2147483648
    %v4434 = vor.u32 1.1754944e-38, %v4433
    %v4435 = vsel %vm4432, %v4434, %v4430
    %v4436 = vmul.f32 1.0, %v4435
    %v4437 = vrcp.pop %v4421
    %v4438 = vmul.f32 %v4421, %v4437
    %v4439 = vsub.f32 1.0, %v4438
    %v4440 = vmul.f32 %v4437, %v4439
    %v4441 = vadd.f32 %v4437, %v4440
    %vm4442 = vweird.f32 %v4421
    %vm4443 = vweird.f32 %v4437
    %vm4444 = vmor %vm4442, %vm4443
    %v4445 = vsel %vm4444, %v4437, %v4441
    %v4446 = vand.u32 2147483647, %v4421
    %vm4447 = vcmp.eq.f32.partialorder %v4446, 8.507059e+37
    %v4448 = vand.u32 %v4421, 2147483648
    %v4449 = vor.u32 1.1754944e-38, %v4448
    %v4450 = vsel %vm4447, %v4449, %v4445
    %v4451 = vmul.f32 1.0, %v4450
    %v4452 = vmul.f32 %v4388, %v4060
    %v4453 = vmul.f32 %v4403, %v4061
    %v4454 = vmul.f32 %v4344, %v4408
    %v4455 = vmul.f32 %v4359, %v4409
    %v4456 = vadd.f32 %v4452, %v4454
    %v4457 = vadd.f32 %v4453, %v4455
    %v4458 = vtanh.pop %v4456
    %v4459 = vtanh.pop %v4457
    %v4460 = vmul.f32 %v4436, %v4458
    %v4461 = vmul.f32 %v4451, %v4459
    %v4462 = vpack.c.bf16 %v4460, %v4460
    %v4463 = vpack.c.bf16 %v4461, %v4461
    %v4464 = vpack.c.bf16 %v4247, %v4247
    %4465 = vmatpush.bf16.msra.mxu0 %v3072
    %4466 = vmatpush.bf16.msra.mxu0 %v3068
    %4467 = vmatpush.bf16.msra.mxu0 %v3064
    %4468 = vmatpush.bf16.msra.mxu0 %v3060
    %4469 = vmatpush.bf16.msra.mxu0 %v3056
    %4470 = vmatpush.bf16.msra.mxu0 %v3052
    %4471 = vmatpush.bf16.msra.mxu0 %v3048
    %4472 = vmatpush.bf16.msra.mxu0 %v3044
    %4473 = vmatmul.bf16.gmra.mxu0 %v4464
    %v4474 = vpop.f32.mrf.mxu0
    %v4475 = vadd.f32 0.0, %v4474
    %v4476 = vpop.f32.mrf.mxu0
    %4477 = vdwg.mxu0
    %4478 = vmatpush.bf16.msra.mxu0 %v3073
    %4479 = vmatpush.bf16.msra.mxu0 %v3069
    %4480 = vmatpush.bf16.msra.mxu0 %v3065
    %4481 = vmatpush.bf16.msra.mxu0 %v3061
    %4482 = vmatpush.bf16.msra.mxu0 %v3057
    %4483 = vmatpush.bf16.msra.mxu0 %v3053
    %4484 = vmatpush.bf16.msra.mxu0 %v3049
    %4485 = vmatpush.bf16.msra.mxu0 %v3045
    %4486 = vmatmul.bf16.gmra.mxu0 %v4464
    %v4487 = vpop.f32.mrf.mxu0
    %v4488 = vadd.f32 0.0, %v4487
    %v4489 = vpop.f32.mrf.mxu0
    %4490 = vdwg.mxu0
    %4491 = vmatpush.bf16.msra.mxu0 %v3074
    %4492 = vmatpush.bf16.msra.mxu0 %v3070
    %4493 = vmatpush.bf16.msra.mxu0 %v3066
    %4494 = vmatpush.bf16.msra.mxu0 %v3062
    %4495 = vmatpush.bf16.msra.mxu0 %v3058
    %4496 = vmatpush.bf16.msra.mxu0 %v3054
    %4497 = vmatpush.bf16.msra.mxu0 %v3050
    %4498 = vmatpush.bf16.msra.mxu0 %v3046
    %4499 = vmatmul.bf16.gmra.mxu0 %v4464
    %v4500 = vpop.f32.mrf.mxu0
    %v4501 = vadd.f32 0.0, %v4500
    %v4502 = vpop.f32.mrf.mxu0
    %4503 = vdwg.mxu0
    %4504 = vmatpush.bf16.msra.mxu0 %v3075
    %4505 = vmatpush.bf16.msra.mxu0 %v3071
    %4506 = vmatpush.bf16.msra.mxu0 %v3067
    %4507 = vmatpush.bf16.msra.mxu0 %v3063
    %4508 = vmatpush.bf16.msra.mxu0 %v3059
    %4509 = vmatpush.bf16.msra.mxu0 %v3055
    %4510 = vmatpush.bf16.msra.mxu0 %v3051
    %4511 = vmatpush.bf16.msra.mxu0 %v3047
    %4512 = vmatmul.bf16.gmra.mxu0 %v4464
    %v4513 = vpop.f32.mrf.mxu0
    %v4514 = vadd.f32 0.0, %v4513
    %v4515 = vpop.f32.mrf.mxu0
    %4516 = vdwg.mxu0
    %v4519 = vunpack.c.l.b16 %v4462
    %v4520 = vunpack.c.l.b16 %v4463
    %v4521 = vrot.slane %v4520, 7
    %v4522 = vsel %vm2795, %v4521, %v4519
    %v4523 = vpack.c.b16 %v4522, %v4522
    %4525 = vmatpush.bf16.msra.mxu0 %v3292
    %4526 = vmatpush.bf16.msra.mxu0 %v3288
    %4527 = vmatpush.bf16.msra.mxu0 %v3284
    %4528 = vmatpush.bf16.msra.mxu0 %v3280
    %4529 = vmatpush.bf16.msra.mxu0 %v3276
    %4530 = vmatpush.bf16.msra.mxu0 %v3272
    %4531 = vmatpush.bf16.msra.mxu0 %v3268
    %4532 = vmatpush.bf16.msra.mxu0 %v3264
    %4533 = vmatmul.bf16.gmra.mxu0 %v4523
    %v4534 = vpop.f32.mrf.mxu0
    %v4535 = vadd.f32 %v4475, %v4534
    %v4536 = vpop.f32.mrf.mxu0
    %4537 = vdwg.mxu0
    %4538 = vmatpush.bf16.msra.mxu0 %v3293
    %4539 = vmatpush.bf16.msra.mxu0 %v3289
    %4540 = vmatpush.bf16.msra.mxu0 %v3285
    %4541 = vmatpush.bf16.msra.mxu0 %v3281
    %4542 = vmatpush.bf16.msra.mxu0 %v3277
    %4543 = vmatpush.bf16.msra.mxu0 %v3273
    %4544 = vmatpush.bf16.msra.mxu0 %v3269
    %4545 = vmatpush.bf16.msra.mxu0 %v3265
    %4546 = vmatmul.bf16.gmra.mxu0 %v4523
    %v4547 = vpop.f32.mrf.mxu0
    %v4548 = vadd.f32 %v4488, %v4547
    %v4549 = vpop.f32.mrf.mxu0
    %4550 = vdwg.mxu0
    %4551 = vmatpush.bf16.msra.mxu0 %v3294
    %4552 = vmatpush.bf16.msra.mxu0 %v3290
    %4553 = vmatpush.bf16.msra.mxu0 %v3286
    %4554 = vmatpush.bf16.msra.mxu0 %v3282
    %4555 = vmatpush.bf16.msra.mxu0 %v3278
    %4556 = vmatpush.bf16.msra.mxu0 %v3274
    %4557 = vmatpush.bf16.msra.mxu0 %v3270
    %4558 = vmatpush.bf16.msra.mxu0 %v3266
    %4559 = vmatmul.bf16.gmra.mxu0 %v4523
    %v4560 = vpop.f32.mrf.mxu0
    %v4561 = vadd.f32 %v4501, %v4560
    %v4562 = vpop.f32.mrf.mxu0
    %4563 = vdwg.mxu0
    %4564 = vmatpush.bf16.msra.mxu0 %v3295
    %4565 = vmatpush.bf16.msra.mxu0 %v3291
    %4566 = vmatpush.bf16.msra.mxu0 %v3287
    %4567 = vmatpush.bf16.msra.mxu0 %v3283
    %4568 = vmatpush.bf16.msra.mxu0 %v3279
    %4569 = vmatpush.bf16.msra.mxu0 %v3275
    %4570 = vmatpush.bf16.msra.mxu0 %v3271
    %4571 = vmatpush.bf16.msra.mxu0 %v3267
    %4572 = vmatmul.bf16.gmra.mxu0 %v4523
    %v4573 = vpop.f32.mrf.mxu0
    %v4574 = vadd.f32 %v4514, %v4573
    %v4575 = vpop.f32.mrf.mxu0
    %4576 = vdwg.mxu0
    %v4577 = vadd.f32 %v4535, %v3381
    %v4578 = vadd.f32 %v4548, %v3382
    %v4579 = vadd.f32 %v4561, %v3383
    %v4580 = vadd.f32 %v4574, %v3384
    %v4581 = vxor.u32 %v4577, 2147483648
    %v4582 = vmul.f32 %v4581, 1.442695
    %v4583 = vpow.pop %v4582
    %v4584 = vadd.f32 %v4583, 1.0
    %v4585 = vrcp.pop %v4584
    %v4586 = vmul.f32 %v4584, %v4585
    %v4587 = vsub.f32 1.0, %v4586
    %v4588 = vmul.f32 %v4585, %v4587
    %v4589 = vadd.f32 %v4585, %v4588
    %vm4590 = vweird.f32 %v4584
    %vm4591 = vweird.f32 %v4585
    %vm4592 = vmor %vm4590, %vm4591
    %v4593 = vsel %vm4592, %v4585, %v4589
    %v4594 = vand.u32 2147483647, %v4584
    %vm4595 = vcmp.eq.f32.partialorder %v4594, 8.507059e+37
    %v4596 = vand.u32 %v4584, 2147483648
    %v4597 = vor.u32 1.1754944e-38, %v4596
    %v4598 = vsel %vm4595, %v4597, %v4593
    %v4599 = vmul.f32 1.0, %v4598
    %v4600 = vxor.u32 %v4578, 2147483648
    %v4601 = vmul.f32 %v4600, 1.442695
    %v4602 = vpow.pop %v4601
    %v4603 = vadd.f32 %v4602, 1.0
    %v4604 = vrcp.pop %v4603
    %v4605 = vmul.f32 %v4603, %v4604
    %v4606 = vsub.f32 1.0, %v4605
    %v4607 = vmul.f32 %v4604, %v4606
    %v4608 = vadd.f32 %v4604, %v4607
    %vm4609 = vweird.f32 %v4603
    %vm4610 = vweird.f32 %v4604
    %vm4611 = vmor %vm4609, %vm4610
    %v4612 = vsel %vm4611, %v4604, %v4608
    %v4613 = vand.u32 2147483647, %v4603
    %vm4614 = vcmp.eq.f32.partialorder %v4613, 8.507059e+37
    %v4615 = vand.u32 %v4603, 2147483648
    %v4616 = vor.u32 1.1754944e-38, %v4615
    %v4617 = vsel %vm4614, %v4616, %v4612
    %v4618 = vmul.f32 1.0, %v4617
    %v4619 = vtanh.pop %v4579
    %v4620 = vxor.u32 %v4580, 2147483648
    %v4621 = vmul.f32 %v4620, 1.442695
    %v4622 = vpow.pop %v4621
    %v4623 = vadd.f32 %v4622, 1.0
    %v4624 = vrcp.pop %v4623
    %v4625 = vmul.f32 %v4623, %v4624
    %v4626 = vsub.f32 1.0, %v4625
    %v4627 = vmul.f32 %v4624, %v4626
    %v4628 = vadd.f32 %v4624, %v4627
    %vm4629 = vweird.f32 %v4623
    %vm4630 = vweird.f32 %v4624
    %vm4631 = vmor %vm4629, %vm4630
    %v4632 = vsel %vm4631, %v4624, %v4628
    %v4633 = vand.u32 2147483647, %v4623
    %vm4634 = vcmp.eq.f32.partialorder %v4633, 8.507059e+37
    %v4635 = vand.u32 %v4623, 2147483648
    %v4636 = vor.u32 1.1754944e-38, %v4635
    %v4637 = vsel %vm4634, %v4636, %v4632
    %v4638 = vmul.f32 1.0, %v4637
    %v4639 = vmul.f32 %v4618, %v4245
    %v4640 = vmul.f32 %v4599, %v4619
    %v4641 = vadd.f32 %v4639, %v4640
    %v4642 = vtanh.pop %v4641
    %v4643 = vmul.f32 %v4638, %v4642
    %s4644 = scalar_lea.vmem [#allocation2], 4
    %v4645 = vld [vmem:[%s4644] ss:$8 sm:$0xf]
    %s4646 = scalar_lea.vmem [#allocation2], 36
    %v4647 = vld [vmem:[%s4646] ss:$8 sm:$0xf]
    %4648 = vmatpush.bf16.msra.mxu0 %v2694
    %4649 = vmatpush.bf16.msra.mxu0 %v2690
    %4650 = vmatpush.bf16.msra.mxu0 %v2686
    %4651 = vmatpush.bf16.msra.mxu0 %v2682
    %4652 = vmatpush.bf16.msra.mxu0 %v2678
    %4653 = vmatpush.bf16.msra.mxu0 %v2674
    %4654 = vmatpush.bf16.msra.mxu0 %v2670
    %4655 = vmatpush.bf16.msra.mxu0 %v2666
    %4656 = vmatmul.bf16.gmra.mxu0 %v4523
    %v4657 = vpop.f32.mrf.mxu0
    %v4658 = vadd.f32 0.0, %v4657
    %v4659 = vpop.f32.mrf.mxu0
    %4660 = vdwg.mxu0
    %4661 = vmatpush.bf16.msra.mxu0 %v2695
    %4662 = vmatpush.bf16.msra.mxu0 %v2691
    %4663 = vmatpush.bf16.msra.mxu0 %v2687
    %4664 = vmatpush.bf16.msra.mxu0 %v2683
    %4665 = vmatpush.bf16.msra.mxu0 %v2679
    %4666 = vmatpush.bf16.msra.mxu0 %v2675
    %4667 = vmatpush.bf16.msra.mxu0 %v2671
    %4668 = vmatpush.bf16.msra.mxu0 %v2667
    %4669 = vmatmul.bf16.gmra.mxu0 %v4523
    %v4670 = vpop.f32.mrf.mxu0
    %v4671 = vadd.f32 0.0, %v4670
    %v4672 = vpop.f32.mrf.mxu0
    %4673 = vdwg.mxu0
    %4674 = vmatpush.bf16.msra.mxu0 %v2696
    %4675 = vmatpush.bf16.msra.mxu0 %v2692
    %4676 = vmatpush.bf16.msra.mxu0 %v2688
    %4677 = vmatpush.bf16.msra.mxu0 %v2684
    %4678 = vmatpush.bf16.msra.mxu0 %v2680
    %4679 = vmatpush.bf16.msra.mxu0 %v2676
    %4680 = vmatpush.bf16.msra.mxu0 %v2672
    %4681 = vmatpush.bf16.msra.mxu0 %v2668
    %4682 = vmatmul.bf16.gmra.mxu0 %v4523
    %v4683 = vpop.f32.mrf.mxu0
    %v4684 = vadd.f32 0.0, %v4683
    %v4685 = vpop.f32.mrf.mxu0
    %4686 = vdwg.mxu0
    %4687 = vmatpush.bf16.msra.mxu0 %v2697
    %4688 = vmatpush.bf16.msra.mxu0 %v2693
    %4689 = vmatpush.bf16.msra.mxu0 %v2689
    %4690 = vmatpush.bf16.msra.mxu0 %v2685
    %4691 = vmatpush.bf16.msra.mxu0 %v2681
    %4692 = vmatpush.bf16.msra.mxu0 %v2677
    %4693 = vmatpush.bf16.msra.mxu0 %v2673
    %4694 = vmatpush.bf16.msra.mxu0 %v2669
    %4695 = vmatmul.bf16.gmra.mxu0 %v4523
    %v4696 = vpop.f32.mrf.mxu0
    %v4697 = vadd.f32 0.0, %v4696
    %v4698 = vpop.f32.mrf.mxu0
    %4699 = vdwg.mxu0
    %v4704 = vrot.slane %v4671, 7
    %v4705 = vrot.slane %v4684, 6
    %v4706 = vrot.slane %v4697, 5
    %v4707 = vsel %vm2789, %v4658, %v4704
    %v4708 = vsel %vm2791, %v4705, %v4706
    %v4709 = vsel %vm2793, %v4707, %v4708
    %v4710 = vsel %vm2795, %v4658, %v4704
    %v4711 = vsel %vm2797, %v4705, %v4706
    %v4712 = vsel %vm2799, %v4710, %v4711
    %v4713 = vrot.slane %v4712, 1
    %v4716 = vadd.f32 %v4645, %v4709
    %v4717 = vadd.f32 %v4647, %v4713
    %v4718 = vxor.u32 %v4716, 2147483648
    %v4719 = vxor.u32 %v4717, 2147483648
    %v4720 = vmul.f32 %v4718, 1.442695
    %v4721 = vpow.pop %v4720
    %v4722 = vmul.f32 %v4719, 1.442695
    %v4723 = vpow.pop %v4722
    %v4724 = vadd.f32 %v4721, 1.0
    %v4725 = vadd.f32 %v4723, 1.0
    %v4726 = vrcp.pop %v4724
    %v4727 = vmul.f32 %v4724, %v4726
    %v4728 = vsub.f32 1.0, %v4727
    %v4729 = vmul.f32 %v4726, %v4728
    %v4730 = vadd.f32 %v4726, %v4729
    %vm4731 = vweird.f32 %v4724
    %vm4732 = vweird.f32 %v4726
    %vm4733 = vmor %vm4731, %vm4732
    %v4734 = vsel %vm4733, %v4726, %v4730
    %v4735 = vand.u32 2147483647, %v4724
    %vm4736 = vcmp.eq.f32.partialorder %v4735, 8.507059e+37
    %v4737 = vand.u32 %v4724, 2147483648
    %v4738 = vor.u32 1.1754944e-38, %v4737
    %v4739 = vsel %vm4736, %v4738, %v4734
    %v4740 = vmul.f32 1.0, %v4739
    %v4741 = vrcp.pop %v4725
    %v4742 = vmul.f32 %v4725, %v4741
    %v4743 = vsub.f32 1.0, %v4742
    %v4744 = vmul.f32 %v4741, %v4743
    %v4745 = vadd.f32 %v4741, %v4744
    %vm4746 = vweird.f32 %v4725
    %vm4747 = vweird.f32 %v4741
    %vm4748 = vmor %vm4746, %vm4747
    %v4749 = vsel %vm4748, %v4741, %v4745
    %v4750 = vand.u32 2147483647, %v4725
    %vm4751 = vcmp.eq.f32.partialorder %v4750, 8.507059e+37
    %v4752 = vand.u32 %v4725, 2147483648
    %v4753 = vor.u32 1.1754944e-38, %v4752
    %v4754 = vsel %vm4751, %v4753, %v4749
    %v4755 = vmul.f32 1.0, %v4754
    %v4758 = vrot.slane %v4716, 1
    %v4759 = vrot.slane %v4717, 1
    %v4762 = vxor.u32 %v4758, 2147483648
    %v4763 = vxor.u32 %v4759, 2147483648
    %v4764 = vmul.f32 %v4762, 1.442695
    %v4765 = vpow.pop %v4764
    %v4766 = vmul.f32 %v4763, 1.442695
    %v4767 = vpow.pop %v4766
    %v4768 = vadd.f32 %v4765, 1.0
    %v4769 = vadd.f32 %v4767, 1.0
    %v4770 = vrcp.pop %v4768
    %v4771 = vmul.f32 %v4768, %v4770
    %v4772 = vsub.f32 1.0, %v4771
    %v4773 = vmul.f32 %v4770, %v4772
    %v4774 = vadd.f32 %v4770, %v4773
    %vm4775 = vweird.f32 %v4768
    %vm4776 = vweird.f32 %v4770
    %vm4777 = vmor %vm4775, %vm4776
    %v4778 = vsel %vm4777, %v4770, %v4774
    %v4779 = vand.u32 2147483647, %v4768
    %vm4780 = vcmp.eq.f32.partialorder %v4779, 8.507059e+37
    %v4781 = vand.u32 %v4768, 2147483648
    %v4782 = vor.u32 1.1754944e-38, %v4781
    %v4783 = vsel %vm4780, %v4782, %v4778
    %v4784 = vmul.f32 1.0, %v4783
    %v4785 = vrcp.pop %v4769
    %v4786 = vmul.f32 %v4769, %v4785
    %v4787 = vsub.f32 1.0, %v4786
    %v4788 = vmul.f32 %v4785, %v4787
    %v4789 = vadd.f32 %v4785, %v4788
    %vm4790 = vweird.f32 %v4769
    %vm4791 = vweird.f32 %v4785
    %vm4792 = vmor %vm4790, %vm4791
    %v4793 = vsel %vm4792, %v4785, %v4789
    %v4794 = vand.u32 2147483647, %v4769
    %vm4795 = vcmp.eq.f32.partialorder %v4794, 8.507059e+37
    %v4796 = vand.u32 %v4769, 2147483648
    %v4797 = vor.u32 1.1754944e-38, %v4796
    %v4798 = vsel %vm4795, %v4797, %v4793
    %v4799 = vmul.f32 1.0, %v4798
    %v4800 = vrot.slane %v4716, 2
    %v4801 = vrot.slane %v4717, 2
    %v4804 = vtanh.pop %v4800
    %v4805 = vtanh.pop %v4801
    %v4806 = vrot.slane %v4716, 3
    %v4807 = vrot.slane %v4717, 3
    %v4810 = vxor.u32 %v4806, 2147483648
    %v4811 = vxor.u32 %v4807, 2147483648
    %v4812 = vmul.f32 %v4810, 1.442695
    %v4813 = vpow.pop %v4812
    %v4814 = vmul.f32 %v4811, 1.442695
    %v4815 = vpow.pop %v4814
    %v4816 = vadd.f32 %v4813, 1.0
    %v4817 = vadd.f32 %v4815, 1.0
    %v4818 = vrcp.pop %v4816
    %v4819 = vmul.f32 %v4816, %v4818
    %v4820 = vsub.f32 1.0, %v4819
    %v4821 = vmul.f32 %v4818, %v4820
    %v4822 = vadd.f32 %v4818, %v4821
    %vm4823 = vweird.f32 %v4816
    %vm4824 = vweird.f32 %v4818
    %vm4825 = vmor %vm4823, %vm4824
    %v4826 = vsel %vm4825, %v4818, %v4822
    %v4827 = vand.u32 2147483647, %v4816
    %vm4828 = vcmp.eq.f32.partialorder %v4827, 8.507059e+37
    %v4829 = vand.u32 %v4816, 2147483648
    %v4830 = vor.u32 1.1754944e-38, %v4829
    %v4831 = vsel %vm4828, %v4830, %v4826
    %v4832 = vmul.f32 1.0, %v4831
    %v4833 = vrcp.pop %v4817
    %v4834 = vmul.f32 %v4817, %v4833
    %v4835 = vsub.f32 1.0, %v4834
    %v4836 = vmul.f32 %v4833, %v4835
    %v4837 = vadd.f32 %v4833, %v4836
    %vm4838 = vweird.f32 %v4817
    %vm4839 = vweird.f32 %v4833
    %vm4840 = vmor %vm4838, %vm4839
    %v4841 = vsel %vm4840, %v4833, %v4837
    %v4842 = vand.u32 2147483647, %v4817
    %vm4843 = vcmp.eq.f32.partialorder %v4842, 8.507059e+37
    %v4844 = vand.u32 %v4817, 2147483648
    %v4845 = vor.u32 1.1754944e-38, %v4844
    %v4846 = vsel %vm4843, %v4845, %v4841
    %v4847 = vmul.f32 1.0, %v4846
    %v4848 = vmul.f32 %v4784, %v4456
    %v4849 = vmul.f32 %v4799, %v4457
    %v4850 = vmul.f32 %v4740, %v4804
    %v4851 = vmul.f32 %v4755, %v4805
    %v4852 = vadd.f32 %v4848, %v4850
    %v4853 = vadd.f32 %v4849, %v4851
    %v4854 = vtanh.pop %v4852
    %v4855 = vtanh.pop %v4853
    %v4856 = vmul.f32 %v4832, %v4854
    %v4857 = vmul.f32 %v4847, %v4855
    %v4858 = vpack.c.bf16 %v4856, %v4856
    %v4859 = vpack.c.bf16 %v4857, %v4857
    %v4860 = vpack.c.bf16 %v4643, %v4643
    %4861 = vmatpush.bf16.msra.mxu0 %v3072
    %4862 = vmatpush.bf16.msra.mxu0 %v3068
    %4863 = vmatpush.bf16.msra.mxu0 %v3064
    %4864 = vmatpush.bf16.msra.mxu0 %v3060
    %4865 = vmatpush.bf16.msra.mxu0 %v3056
    %4866 = vmatpush.bf16.msra.mxu0 %v3052
    %4867 = vmatpush.bf16.msra.mxu0 %v3048
    %4868 = vmatpush.bf16.msra.mxu0 %v3044
    %4869 = vmatmul.bf16.gmra.mxu0 %v4860
    %v4870 = vpop.f32.mrf.mxu0
    %v4871 = vadd.f32 0.0, %v4870
    %v4872 = vpop.f32.mrf.mxu0
    %4873 = vdwg.mxu0
    %4874 = vmatpush.bf16.msra.mxu0 %v3073
    %4875 = vmatpush.bf16.msra.mxu0 %v3069
    %4876 = vmatpush.bf16.msra.mxu0 %v3065
    %4877 = vmatpush.bf16.msra.mxu0 %v3061
    %4878 = vmatpush.bf16.msra.mxu0 %v3057
    %4879 = vmatpush.bf16.msra.mxu0 %v3053
    %4880 = vmatpush.bf16.msra.mxu0 %v3049
    %4881 = vmatpush.bf16.msra.mxu0 %v3045
    %4882 = vmatmul.bf16.gmra.mxu0 %v4860
    %v4883 = vpop.f32.mrf.mxu0
    %v4884 = vadd.f32 0.0, %v4883
    %v4885 = vpop.f32.mrf.mxu0
    %4886 = vdwg.mxu0
    %4887 = vmatpush.bf16.msra.mxu0 %v3074
    %4888 = vmatpush.bf16.msra.mxu0 %v3070
    %4889 = vmatpush.bf16.msra.mxu0 %v3066
    %4890 = vmatpush.bf16.msra.mxu0 %v3062
    %4891 = vmatpush.bf16.msra.mxu0 %v3058
    %4892 = vmatpush.bf16.msra.mxu0 %v3054
    %4893 = vmatpush.bf16.msra.mxu0 %v3050
    %4894 = vmatpush.bf16.msra.mxu0 %v3046
    %4895 = vmatmul.bf16.gmra.mxu0 %v4860
    %v4896 = vpop.f32.mrf.mxu0
    %v4897 = vadd.f32 0.0, %v4896
    %v4898 = vpop.f32.mrf.mxu0
    %4899 = vdwg.mxu0
    %4900 = vmatpush.bf16.msra.mxu0 %v3075
    %4901 = vmatpush.bf16.msra.mxu0 %v3071
    %4902 = vmatpush.bf16.msra.mxu0 %v3067
    %4903 = vmatpush.bf16.msra.mxu0 %v3063
    %4904 = vmatpush.bf16.msra.mxu0 %v3059
    %4905 = vmatpush.bf16.msra.mxu0 %v3055
    %4906 = vmatpush.bf16.msra.mxu0 %v3051
    %4907 = vmatpush.bf16.msra.mxu0 %v3047
    %4908 = vmatmul.bf16.gmra.mxu0 %v4860
    %v4909 = vpop.f32.mrf.mxu0
    %v4910 = vadd.f32 0.0, %v4909
    %v4911 = vpop.f32.mrf.mxu0
    %4912 = vdwg.mxu0
    %v4915 = vunpack.c.l.b16 %v4858
    %v4916 = vunpack.c.l.b16 %v4859
    %v4917 = vrot.slane %v4916, 7
    %v4918 = vsel %vm2795, %v4917, %v4915
    %v4919 = vpack.c.b16 %v4918, %v4918
    %4921 = vmatpush.bf16.msra.mxu0 %v3292
    %4922 = vmatpush.bf16.msra.mxu0 %v3288
    %4923 = vmatpush.bf16.msra.mxu0 %v3284
    %4924 = vmatpush.bf16.msra.mxu0 %v3280
    %4925 = vmatpush.bf16.msra.mxu0 %v3276
    %4926 = vmatpush.bf16.msra.mxu0 %v3272
    %4927 = vmatpush.bf16.msra.mxu0 %v3268
    %4928 = vmatpush.bf16.msra.mxu0 %v3264
    %4929 = vmatmul.bf16.gmra.mxu0 %v4919
    %v4930 = vpop.f32.mrf.mxu0
    %v4931 = vadd.f32 %v4871, %v4930
    %v4932 = vpop.f32.mrf.mxu0
    %4933 = vdwg.mxu0
    %4934 = vmatpush.bf16.msra.mxu0 %v3293
    %4935 = vmatpush.bf16.msra.mxu0 %v3289
    %4936 = vmatpush.bf16.msra.mxu0 %v3285
    %4937 = vmatpush.bf16.msra.mxu0 %v3281
    %4938 = vmatpush.bf16.msra.mxu0 %v3277
    %4939 = vmatpush.bf16.msra.mxu0 %v3273
    %4940 = vmatpush.bf16.msra.mxu0 %v3269
    %4941 = vmatpush.bf16.msra.mxu0 %v3265
    %4942 = vmatmul.bf16.gmra.mxu0 %v4919
    %v4943 = vpop.f32.mrf.mxu0
    %v4944 = vadd.f32 %v4884, %v4943
    %v4945 = vpop.f32.mrf.mxu0
    %4946 = vdwg.mxu0
    %4947 = vmatpush.bf16.msra.mxu0 %v3294
    %4948 = vmatpush.bf16.msra.mxu0 %v3290
    %4949 = vmatpush.bf16.msra.mxu0 %v3286
    %4950 = vmatpush.bf16.msra.mxu0 %v3282
    %4951 = vmatpush.bf16.msra.mxu0 %v3278
    %4952 = vmatpush.bf16.msra.mxu0 %v3274
    %4953 = vmatpush.bf16.msra.mxu0 %v3270
    %4954 = vmatpush.bf16.msra.mxu0 %v3266
    %4955 = vmatmul.bf16.gmra.mxu0 %v4919
    %v4956 = vpop.f32.mrf.mxu0
    %v4957 = vadd.f32 %v4897, %v4956
    %v4958 = vpop.f32.mrf.mxu0
    %4959 = vdwg.mxu0
    %4960 = vmatpush.bf16.msra.mxu0 %v3295
    %4961 = vmatpush.bf16.msra.mxu0 %v3291
    %4962 = vmatpush.bf16.msra.mxu0 %v3287
    %4963 = vmatpush.bf16.msra.mxu0 %v3283
    %4964 = vmatpush.bf16.msra.mxu0 %v3279
    %4965 = vmatpush.bf16.msra.mxu0 %v3275
    %4966 = vmatpush.bf16.msra.mxu0 %v3271
    %4967 = vmatpush.bf16.msra.mxu0 %v3267
    %4968 = vmatmul.bf16.gmra.mxu0 %v4919
    %v4969 = vpop.f32.mrf.mxu0
    %v4970 = vadd.f32 %v4910, %v4969
    %v4971 = vpop.f32.mrf.mxu0
    %4972 = vdwg.mxu0
    %v4973 = vadd.f32 %v4931, %v3381
    %v4974 = vadd.f32 %v4944, %v3382
    %v4975 = vadd.f32 %v4957, %v3383
    %v4976 = vadd.f32 %v4970, %v3384
    %v4977 = vxor.u32 %v4973, 2147483648
    %v4978 = vmul.f32 %v4977, 1.442695
    %v4979 = vpow.pop %v4978
    %v4980 = vadd.f32 %v4979, 1.0
    %v4981 = vrcp.pop %v4980
    %v4982 = vmul.f32 %v4980, %v4981
    %v4983 = vsub.f32 1.0, %v4982
    %v4984 = vmul.f32 %v4981, %v4983
    %v4985 = vadd.f32 %v4981, %v4984
    %vm4986 = vweird.f32 %v4980
    %vm4987 = vweird.f32 %v4981
    %vm4988 = vmor %vm4986, %vm4987
    %v4989 = vsel %vm4988, %v4981, %v4985
    %v4990 = vand.u32 2147483647, %v4980
    %vm4991 = vcmp.eq.f32.partialorder %v4990, 8.507059e+37
    %v4992 = vand.u32 %v4980, 2147483648
    %v4993 = vor.u32 1.1754944e-38, %v4992
    %v4994 = vsel %vm4991, %v4993, %v4989
    %v4995 = vmul.f32 1.0, %v4994
    %v4996 = vxor.u32 %v4974, 2147483648
    %v4997 = vmul.f32 %v4996, 1.442695
    %v4998 = vpow.pop %v4997
    %v4999 = vadd.f32 %v4998, 1.0
    %v5000 = vrcp.pop %v4999
    %v5001 = vmul.f32 %v4999, %v5000
    %v5002 = vsub.f32 1.0, %v5001
    %v5003 = vmul.f32 %v5000, %v5002
    %v5004 = vadd.f32 %v5000, %v5003
    %vm5005 = vweird.f32 %v4999
    %vm5006 = vweird.f32 %v5000
    %vm5007 = vmor %vm5005, %vm5006
    %v5008 = vsel %vm5007, %v5000, %v5004
    %v5009 = vand.u32 2147483647, %v4999
    %vm5010 = vcmp.eq.f32.partialorder %v5009, 8.507059e+37
    %v5011 = vand.u32 %v4999, 2147483648
    %v5012 = vor.u32 1.1754944e-38, %v5011
    %v5013 = vsel %vm5010, %v5012, %v5008
    %v5014 = vmul.f32 1.0, %v5013
    %v5015 = vtanh.pop %v4975
    %v5016 = vxor.u32 %v4976, 2147483648
    %v5017 = vmul.f32 %v5016, 1.442695
    %v5018 = vpow.pop %v5017
    %v5019 = vadd.f32 %v5018, 1.0
    %v5020 = vrcp.pop %v5019
    %v5021 = vmul.f32 %v5019, %v5020
    %v5022 = vsub.f32 1.0, %v5021
    %v5023 = vmul.f32 %v5020, %v5022
    %v5024 = vadd.f32 %v5020, %v5023
    %vm5025 = vweird.f32 %v5019
    %vm5026 = vweird.f32 %v5020
    %vm5027 = vmor %vm5025, %vm5026
    %v5028 = vsel %vm5027, %v5020, %v5024
    %v5029 = vand.u32 2147483647, %v5019
    %vm5030 = vcmp.eq.f32.partialorder %v5029, 8.507059e+37
    %v5031 = vand.u32 %v5019, 2147483648
    %v5032 = vor.u32 1.1754944e-38, %v5031
    %v5033 = vsel %vm5030, %v5032, %v5028
    %v5034 = vmul.f32 1.0, %v5033
    %v5035 = vmul.f32 %v5014, %v4641
    %v5036 = vmul.f32 %v4995, %v5015
    %v5037 = vadd.f32 %v5035, %v5036
    %v5038 = vtanh.pop %v5037
    %v5039 = vmul.f32 %v5034, %v5038
    %s5040 = scalar_lea.vmem [#allocation2], 5
    %v5041 = vld [vmem:[%s5040] ss:$8 sm:$0xf]
    %s5042 = scalar_lea.vmem [#allocation2], 37
    %v5043 = vld [vmem:[%s5042] ss:$8 sm:$0xf]
    %5044 = vmatpush.bf16.msra.mxu0 %v2694
    %5045 = vmatpush.bf16.msra.mxu0 %v2690
    %5046 = vmatpush.bf16.msra.mxu0 %v2686
    %5047 = vmatpush.bf16.msra.mxu0 %v2682
    %5048 = vmatpush.bf16.msra.mxu0 %v2678
    %5049 = vmatpush.bf16.msra.mxu0 %v2674
    %5050 = vmatpush.bf16.msra.mxu0 %v2670
    %5051 = vmatpush.bf16.msra.mxu0 %v2666
    %5052 = vmatmul.bf16.gmra.mxu0 %v4919
    %v5053 = vpop.f32.mrf.mxu0
    %v5054 = vadd.f32 0.0, %v5053
    %v5055 = vpop.f32.mrf.mxu0
    %5056 = vdwg.mxu0
    %5057 = vmatpush.bf16.msra.mxu0 %v2695
    %5058 = vmatpush.bf16.msra.mxu0 %v2691
    %5059 = vmatpush.bf16.msra.mxu0 %v2687
    %5060 = vmatpush.bf16.msra.mxu0 %v2683
    %5061 = vmatpush.bf16.msra.mxu0 %v2679
    %5062 = vmatpush.bf16.msra.mxu0 %v2675
    %5063 = vmatpush.bf16.msra.mxu0 %v2671
    %5064 = vmatpush.bf16.msra.mxu0 %v2667
    %5065 = vmatmul.bf16.gmra.mxu0 %v4919
    %v5066 = vpop.f32.mrf.mxu0
    %v5067 = vadd.f32 0.0, %v5066
    %v5068 = vpop.f32.mrf.mxu0
    %5069 = vdwg.mxu0
    %5070 = vmatpush.bf16.msra.mxu0 %v2696
    %5071 = vmatpush.bf16.msra.mxu0 %v2692
    %5072 = vmatpush.bf16.msra.mxu0 %v2688
    %5073 = vmatpush.bf16.msra.mxu0 %v2684
    %5074 = vmatpush.bf16.msra.mxu0 %v2680
    %5075 = vmatpush.bf16.msra.mxu0 %v2676
    %5076 = vmatpush.bf16.msra.mxu0 %v2672
    %5077 = vmatpush.bf16.msra.mxu0 %v2668
    %5078 = vmatmul.bf16.gmra.mxu0 %v4919
    %v5079 = vpop.f32.mrf.mxu0
    %v5080 = vadd.f32 0.0, %v5079
    %v5081 = vpop.f32.mrf.mxu0
    %5082 = vdwg.mxu0
    %5083 = vmatpush.bf16.msra.mxu0 %v2697
    %5084 = vmatpush.bf16.msra.mxu0 %v2693
    %5085 = vmatpush.bf16.msra.mxu0 %v2689
    %5086 = vmatpush.bf16.msra.mxu0 %v2685
    %5087 = vmatpush.bf16.msra.mxu0 %v2681
    %5088 = vmatpush.bf16.msra.mxu0 %v2677
    %5089 = vmatpush.bf16.msra.mxu0 %v2673
    %5090 = vmatpush.bf16.msra.mxu0 %v2669
    %5091 = vmatmul.bf16.gmra.mxu0 %v4919
    %v5092 = vpop.f32.mrf.mxu0
    %v5093 = vadd.f32 0.0, %v5092
    %v5094 = vpop.f32.mrf.mxu0
    %5095 = vdwg.mxu0
    %v5100 = vrot.slane %v5067, 7
    %v5101 = vrot.slane %v5080, 6
    %v5102 = vrot.slane %v5093, 5
    %v5103 = vsel %vm2789, %v5054, %v5100
    %v5104 = vsel %vm2791, %v5101, %v5102
    %v5105 = vsel %vm2793, %v5103, %v5104
    %v5106 = vsel %vm2795, %v5054, %v5100
    %v5107 = vsel %vm2797, %v5101, %v5102
    %v5108 = vsel %vm2799, %v5106, %v5107
    %v5109 = vrot.slane %v5108, 1
    %v5112 = vadd.f32 %v5041, %v5105
    %v5113 = vadd.f32 %v5043, %v5109
    %v5114 = vxor.u32 %v5112, 2147483648
    %v5115 = vxor.u32 %v5113, 2147483648
    %v5116 = vmul.f32 %v5114, 1.442695
    %v5117 = vpow.pop %v5116
    %v5118 = vmul.f32 %v5115, 1.442695
    %v5119 = vpow.pop %v5118
    %v5120 = vadd.f32 %v5117, 1.0
    %v5121 = vadd.f32 %v5119, 1.0
    %v5122 = vrcp.pop %v5120
    %v5123 = vmul.f32 %v5120, %v5122
    %v5124 = vsub.f32 1.0, %v5123
    %v5125 = vmul.f32 %v5122, %v5124
    %v5126 = vadd.f32 %v5122, %v5125
    %vm5127 = vweird.f32 %v5120
    %vm5128 = vweird.f32 %v5122
    %vm5129 = vmor %vm5127, %vm5128
    %v5130 = vsel %vm5129, %v5122, %v5126
    %v5131 = vand.u32 2147483647, %v5120
    %vm5132 = vcmp.eq.f32.partialorder %v5131, 8.507059e+37
    %v5133 = vand.u32 %v5120, 2147483648
    %v5134 = vor.u32 1.1754944e-38, %v5133
    %v5135 = vsel %vm5132, %v5134, %v5130
    %v5136 = vmul.f32 1.0, %v5135
    %v5137 = vrcp.pop %v5121
    %v5138 = vmul.f32 %v5121, %v5137
    %v5139 = vsub.f32 1.0, %v5138
    %v5140 = vmul.f32 %v5137, %v5139
    %v5141 = vadd.f32 %v5137, %v5140
    %vm5142 = vweird.f32 %v5121
    %vm5143 = vweird.f32 %v5137
    %vm5144 = vmor %vm5142, %vm5143
    %v5145 = vsel %vm5144, %v5137, %v5141
    %v5146 = vand.u32 2147483647, %v5121
    %vm5147 = vcmp.eq.f32.partialorder %v5146, 8.507059e+37
    %v5148 = vand.u32 %v5121, 2147483648
    %v5149 = vor.u32 1.1754944e-38, %v5148
    %v5150 = vsel %vm5147, %v5149, %v5145
    %v5151 = vmul.f32 1.0, %v5150
    %v5154 = vrot.slane %v5112, 1
    %v5155 = vrot.slane %v5113, 1
    %v5158 = vxor.u32 %v5154, 2147483648
    %v5159 = vxor.u32 %v5155, 2147483648
    %v5160 = vmul.f32 %v5158, 1.442695
    %v5161 = vpow.pop %v5160
    %v5162 = vmul.f32 %v5159, 1.442695
    %v5163 = vpow.pop %v5162
    %v5164 = vadd.f32 %v5161, 1.0
    %v5165 = vadd.f32 %v5163, 1.0
    %v5166 = vrcp.pop %v5164
    %v5167 = vmul.f32 %v5164, %v5166
    %v5168 = vsub.f32 1.0, %v5167
    %v5169 = vmul.f32 %v5166, %v5168
    %v5170 = vadd.f32 %v5166, %v5169
    %vm5171 = vweird.f32 %v5164
    %vm5172 = vweird.f32 %v5166
    %vm5173 = vmor %vm5171, %vm5172
    %v5174 = vsel %vm5173, %v5166, %v5170
    %v5175 = vand.u32 2147483647, %v5164
    %vm5176 = vcmp.eq.f32.partialorder %v5175, 8.507059e+37
    %v5177 = vand.u32 %v5164, 2147483648
    %v5178 = vor.u32 1.1754944e-38, %v5177
    %v5179 = vsel %vm5176, %v5178, %v5174
    %v5180 = vmul.f32 1.0, %v5179
    %v5181 = vrcp.pop %v5165
    %v5182 = vmul.f32 %v5165, %v5181
    %v5183 = vsub.f32 1.0, %v5182
    %v5184 = vmul.f32 %v5181, %v5183
    %v5185 = vadd.f32 %v5181, %v5184
    %vm5186 = vweird.f32 %v5165
    %vm5187 = vweird.f32 %v5181
    %vm5188 = vmor %vm5186, %vm5187
    %v5189 = vsel %vm5188, %v5181, %v5185
    %v5190 = vand.u32 2147483647, %v5165
    %vm5191 = vcmp.eq.f32.partialorder %v5190, 8.507059e+37
    %v5192 = vand.u32 %v5165, 2147483648
    %v5193 = vor.u32 1.1754944e-38, %v5192
    %v5194 = vsel %vm5191, %v5193, %v5189
    %v5195 = vmul.f32 1.0, %v5194
    %v5196 = vrot.slane %v5112, 2
    %v5197 = vrot.slane %v5113, 2
    %v5200 = vtanh.pop %v5196
    %v5201 = vtanh.pop %v5197
    %v5202 = vrot.slane %v5112, 3
    %v5203 = vrot.slane %v5113, 3
    %v5206 = vxor.u32 %v5202, 2147483648
    %v5207 = vxor.u32 %v5203, 2147483648
    %v5208 = vmul.f32 %v5206, 1.442695
    %v5209 = vpow.pop %v5208
    %v5210 = vmul.f32 %v5207, 1.442695
    %v5211 = vpow.pop %v5210
    %v5212 = vadd.f32 %v5209, 1.0
    %v5213 = vadd.f32 %v5211, 1.0
    %v5214 = vrcp.pop %v5212
    %v5215 = vmul.f32 %v5212, %v5214
    %v5216 = vsub.f32 1.0, %v5215
    %v5217 = vmul.f32 %v5214, %v5216
    %v5218 = vadd.f32 %v5214, %v5217
    %vm5219 = vweird.f32 %v5212
    %vm5220 = vweird.f32 %v5214
    %vm5221 = vmor %vm5219, %vm5220
    %v5222 = vsel %vm5221, %v5214, %v5218
    %v5223 = vand.u32 2147483647, %v5212
    %vm5224 = vcmp.eq.f32.partialorder %v5223, 8.507059e+37
    %v5225 = vand.u32 %v5212, 2147483648
    %v5226 = vor.u32 1.1754944e-38, %v5225
    %v5227 = vsel %vm5224, %v5226, %v5222
    %v5228 = vmul.f32 1.0, %v5227
    %v5229 = vrcp.pop %v5213
    %v5230 = vmul.f32 %v5213, %v5229
    %v5231 = vsub.f32 1.0, %v5230
    %v5232 = vmul.f32 %v5229, %v5231
    %v5233 = vadd.f32 %v5229, %v5232
    %vm5234 = vweird.f32 %v5213
    %vm5235 = vweird.f32 %v5229
    %vm5236 = vmor %vm5234, %vm5235
    %v5237 = vsel %vm5236, %v5229, %v5233
    %v5238 = vand.u32 2147483647, %v5213
    %vm5239 = vcmp.eq.f32.partialorder %v5238, 8.507059e+37
    %v5240 = vand.u32 %v5213, 2147483648
    %v5241 = vor.u32 1.1754944e-38, %v5240
    %v5242 = vsel %vm5239, %v5241, %v5237
    %v5243 = vmul.f32 1.0, %v5242
    %v5244 = vmul.f32 %v5180, %v4852
    %v5245 = vmul.f32 %v5195, %v4853
    %v5246 = vmul.f32 %v5136, %v5200
    %v5247 = vmul.f32 %v5151, %v5201
    %v5248 = vadd.f32 %v5244, %v5246
    %v5249 = vadd.f32 %v5245, %v5247
    %v5250 = vtanh.pop %v5248
    %v5251 = vtanh.pop %v5249
    %v5252 = vmul.f32 %v5228, %v5250
    %v5253 = vmul.f32 %v5243, %v5251
    %v5254 = vpack.c.bf16 %v5252, %v5252
    %v5255 = vpack.c.bf16 %v5253, %v5253
    %v5256 = vpack.c.bf16 %v5039, %v5039
    %5257 = vmatpush.bf16.msra.mxu0 %v3072
    %5258 = vmatpush.bf16.msra.mxu0 %v3068
    %5259 = vmatpush.bf16.msra.mxu0 %v3064
    %5260 = vmatpush.bf16.msra.mxu0 %v3060
    %5261 = vmatpush.bf16.msra.mxu0 %v3056
    %5262 = vmatpush.bf16.msra.mxu0 %v3052
    %5263 = vmatpush.bf16.msra.mxu0 %v3048
    %5264 = vmatpush.bf16.msra.mxu0 %v3044
    %5265 = vmatmul.bf16.gmra.mxu0 %v5256
    %v5266 = vpop.f32.mrf.mxu0
    %v5267 = vadd.f32 0.0, %v5266
    %v5268 = vpop.f32.mrf.mxu0
    %5269 = vdwg.mxu0
    %5270 = vmatpush.bf16.msra.mxu0 %v3073
    %5271 = vmatpush.bf16.msra.mxu0 %v3069
    %5272 = vmatpush.bf16.msra.mxu0 %v3065
    %5273 = vmatpush.bf16.msra.mxu0 %v3061
    %5274 = vmatpush.bf16.msra.mxu0 %v3057
    %5275 = vmatpush.bf16.msra.mxu0 %v3053
    %5276 = vmatpush.bf16.msra.mxu0 %v3049
    %5277 = vmatpush.bf16.msra.mxu0 %v3045
    %5278 = vmatmul.bf16.gmra.mxu0 %v5256
    %v5279 = vpop.f32.mrf.mxu0
    %v5280 = vadd.f32 0.0, %v5279
    %v5281 = vpop.f32.mrf.mxu0
    %5282 = vdwg.mxu0
    %5283 = vmatpush.bf16.msra.mxu0 %v3074
    %5284 = vmatpush.bf16.msra.mxu0 %v3070
    %5285 = vmatpush.bf16.msra.mxu0 %v3066
    %5286 = vmatpush.bf16.msra.mxu0 %v3062
    %5287 = vmatpush.bf16.msra.mxu0 %v3058
    %5288 = vmatpush.bf16.msra.mxu0 %v3054
    %5289 = vmatpush.bf16.msra.mxu0 %v3050
    %5290 = vmatpush.bf16.msra.mxu0 %v3046
    %5291 = vmatmul.bf16.gmra.mxu0 %v5256
    %v5292 = vpop.f32.mrf.mxu0
    %v5293 = vadd.f32 0.0, %v5292
    %v5294 = vpop.f32.mrf.mxu0
    %5295 = vdwg.mxu0
    %5296 = vmatpush.bf16.msra.mxu0 %v3075
    %5297 = vmatpush.bf16.msra.mxu0 %v3071
    %5298 = vmatpush.bf16.msra.mxu0 %v3067
    %5299 = vmatpush.bf16.msra.mxu0 %v3063
    %5300 = vmatpush.bf16.msra.mxu0 %v3059
    %5301 = vmatpush.bf16.msra.mxu0 %v3055
    %5302 = vmatpush.bf16.msra.mxu0 %v3051
    %5303 = vmatpush.bf16.msra.mxu0 %v3047
    %5304 = vmatmul.bf16.gmra.mxu0 %v5256
    %v5305 = vpop.f32.mrf.mxu0
    %v5306 = vadd.f32 0.0, %v5305
    %v5307 = vpop.f32.mrf.mxu0
    %5308 = vdwg.mxu0
    %v5311 = vunpack.c.l.b16 %v5254
    %v5312 = vunpack.c.l.b16 %v5255
    %v5313 = vrot.slane %v5312, 7
    %v5314 = vsel %vm2795, %v5313, %v5311
    %v5315 = vpack.c.b16 %v5314, %v5314
    %5317 = vmatpush.bf16.msra.mxu0 %v3292
    %5318 = vmatpush.bf16.msra.mxu0 %v3288
    %5319 = vmatpush.bf16.msra.mxu0 %v3284
    %5320 = vmatpush.bf16.msra.mxu0 %v3280
    %5321 = vmatpush.bf16.msra.mxu0 %v3276
    %5322 = vmatpush.bf16.msra.mxu0 %v3272
    %5323 = vmatpush.bf16.msra.mxu0 %v3268
    %5324 = vmatpush.bf16.msra.mxu0 %v3264
    %5325 = vmatmul.bf16.gmra.mxu0 %v5315
    %v5326 = vpop.f32.mrf.mxu0
    %v5327 = vadd.f32 %v5267, %v5326
    %v5328 = vpop.f32.mrf.mxu0
    %5329 = vdwg.mxu0
    %5330 = vmatpush.bf16.msra.mxu0 %v3293
    %5331 = vmatpush.bf16.msra.mxu0 %v3289
    %5332 = vmatpush.bf16.msra.mxu0 %v3285
    %5333 = vmatpush.bf16.msra.mxu0 %v3281
    %5334 = vmatpush.bf16.msra.mxu0 %v3277
    %5335 = vmatpush.bf16.msra.mxu0 %v3273
    %5336 = vmatpush.bf16.msra.mxu0 %v3269
    %5337 = vmatpush.bf16.msra.mxu0 %v3265
    %5338 = vmatmul.bf16.gmra.mxu0 %v5315
    %v5339 = vpop.f32.mrf.mxu0
    %v5340 = vadd.f32 %v5280, %v5339
    %v5341 = vpop.f32.mrf.mxu0
    %5342 = vdwg.mxu0
    %5343 = vmatpush.bf16.msra.mxu0 %v3294
    %5344 = vmatpush.bf16.msra.mxu0 %v3290
    %5345 = vmatpush.bf16.msra.mxu0 %v3286
    %5346 = vmatpush.bf16.msra.mxu0 %v3282
    %5347 = vmatpush.bf16.msra.mxu0 %v3278
    %5348 = vmatpush.bf16.msra.mxu0 %v3274
    %5349 = vmatpush.bf16.msra.mxu0 %v3270
    %5350 = vmatpush.bf16.msra.mxu0 %v3266
    %5351 = vmatmul.bf16.gmra.mxu0 %v5315
    %v5352 = vpop.f32.mrf.mxu0
    %v5353 = vadd.f32 %v5293, %v5352
    %v5354 = vpop.f32.mrf.mxu0
    %5355 = vdwg.mxu0
    %5356 = vmatpush.bf16.msra.mxu0 %v3295
    %5357 = vmatpush.bf16.msra.mxu0 %v3291
    %5358 = vmatpush.bf16.msra.mxu0 %v3287
    %5359 = vmatpush.bf16.msra.mxu0 %v3283
    %5360 = vmatpush.bf16.msra.mxu0 %v3279
    %5361 = vmatpush.bf16.msra.mxu0 %v3275
    %5362 = vmatpush.bf16.msra.mxu0 %v3271
    %5363 = vmatpush.bf16.msra.mxu0 %v3267
    %5364 = vmatmul.bf16.gmra.mxu0 %v5315
    %v5365 = vpop.f32.mrf.mxu0
    %v5366 = vadd.f32 %v5306, %v5365
    %v5367 = vpop.f32.mrf.mxu0
    %5368 = vdwg.mxu0
    %v5369 = vadd.f32 %v5327, %v3381
    %v5370 = vadd.f32 %v5340, %v3382
    %v5371 = vadd.f32 %v5353, %v3383
    %v5372 = vadd.f32 %v5366, %v3384
    %v5373 = vxor.u32 %v5369, 2147483648
    %v5374 = vmul.f32 %v5373, 1.442695
    %v5375 = vpow.pop %v5374
    %v5376 = vadd.f32 %v5375, 1.0
    %v5377 = vrcp.pop %v5376
    %v5378 = vmul.f32 %v5376, %v5377
    %v5379 = vsub.f32 1.0, %v5378
    %v5380 = vmul.f32 %v5377, %v5379
    %v5381 = vadd.f32 %v5377, %v5380
    %vm5382 = vweird.f32 %v5376
    %vm5383 = vweird.f32 %v5377
    %vm5384 = vmor %vm5382, %vm5383
    %v5385 = vsel %vm5384, %v5377, %v5381
    %v5386 = vand.u32 2147483647, %v5376
    %vm5387 = vcmp.eq.f32.partialorder %v5386, 8.507059e+37
    %v5388 = vand.u32 %v5376, 2147483648
    %v5389 = vor.u32 1.1754944e-38, %v5388
    %v5390 = vsel %vm5387, %v5389, %v5385
    %v5391 = vmul.f32 1.0, %v5390
    %v5392 = vxor.u32 %v5370, 2147483648
    %v5393 = vmul.f32 %v5392, 1.442695
    %v5394 = vpow.pop %v5393
    %v5395 = vadd.f32 %v5394, 1.0
    %v5396 = vrcp.pop %v5395
    %v5397 = vmul.f32 %v5395, %v5396
    %v5398 = vsub.f32 1.0, %v5397
    %v5399 = vmul.f32 %v5396, %v5398
    %v5400 = vadd.f32 %v5396, %v5399
    %vm5401 = vweird.f32 %v5395
    %vm5402 = vweird.f32 %v5396
    %vm5403 = vmor %vm5401, %vm5402
    %v5404 = vsel %vm5403, %v5396, %v5400
    %v5405 = vand.u32 2147483647, %v5395
    %vm5406 = vcmp.eq.f32.partialorder %v5405, 8.507059e+37
    %v5407 = vand.u32 %v5395, 2147483648
    %v5408 = vor.u32 1.1754944e-38, %v5407
    %v5409 = vsel %vm5406, %v5408, %v5404
    %v5410 = vmul.f32 1.0, %v5409
    %v5411 = vtanh.pop %v5371
    %v5412 = vxor.u32 %v5372, 2147483648
    %v5413 = vmul.f32 %v5412, 1.442695
    %v5414 = vpow.pop %v5413
    %v5415 = vadd.f32 %v5414, 1.0
    %v5416 = vrcp.pop %v5415
    %v5417 = vmul.f32 %v5415, %v5416
    %v5418 = vsub.f32 1.0, %v5417
    %v5419 = vmul.f32 %v5416, %v5418
    %v5420 = vadd.f32 %v5416, %v5419
    %vm5421 = vweird.f32 %v5415
    %vm5422 = vweird.f32 %v5416
    %vm5423 = vmor %vm5421, %vm5422
    %v5424 = vsel %vm5423, %v5416, %v5420
    %v5425 = vand.u32 2147483647, %v5415
    %vm5426 = vcmp.eq.f32.partialorder %v5425, 8.507059e+37
    %v5427 = vand.u32 %v5415, 2147483648
    %v5428 = vor.u32 1.1754944e-38, %v5427
    %v5429 = vsel %vm5426, %v5428, %v5424
    %v5430 = vmul.f32 1.0, %v5429
    %v5431 = vmul.f32 %v5410, %v5037
    %v5432 = vmul.f32 %v5391, %v5411
    %v5433 = vadd.f32 %v5431, %v5432
    %v5434 = vtanh.pop %v5433
    %v5435 = vmul.f32 %v5430, %v5434
    %s5436 = scalar_lea.vmem [#allocation2], 6
    %v5437 = vld [vmem:[%s5436] ss:$8 sm:$0xf]
    %s5438 = scalar_lea.vmem [#allocation2], 38
    %v5439 = vld [vmem:[%s5438] ss:$8 sm:$0xf]
    %5440 = vmatpush.bf16.msra.mxu0 %v2694
    %5441 = vmatpush.bf16.msra.mxu0 %v2690
    %5442 = vmatpush.bf16.msra.mxu0 %v2686
    %5443 = vmatpush.bf16.msra.mxu0 %v2682
    %5444 = vmatpush.bf16.msra.mxu0 %v2678
    %5445 = vmatpush.bf16.msra.mxu0 %v2674
    %5446 = vmatpush.bf16.msra.mxu0 %v2670
    %5447 = vmatpush.bf16.msra.mxu0 %v2666
    %5448 = vmatmul.bf16.gmra.mxu0 %v5315
    %v5449 = vpop.f32.mrf.mxu0
    %v5450 = vadd.f32 0.0, %v5449
    %v5451 = vpop.f32.mrf.mxu0
    %5452 = vdwg.mxu0
    %5453 = vmatpush.bf16.msra.mxu0 %v2695
    %5454 = vmatpush.bf16.msra.mxu0 %v2691
    %5455 = vmatpush.bf16.msra.mxu0 %v2687
    %5456 = vmatpush.bf16.msra.mxu0 %v2683
    %5457 = vmatpush.bf16.msra.mxu0 %v2679
    %5458 = vmatpush.bf16.msra.mxu0 %v2675
    %5459 = vmatpush.bf16.msra.mxu0 %v2671
    %5460 = vmatpush.bf16.msra.mxu0 %v2667
    %5461 = vmatmul.bf16.gmra.mxu0 %v5315
    %v5462 = vpop.f32.mrf.mxu0
    %v5463 = vadd.f32 0.0, %v5462
    %v5464 = vpop.f32.mrf.mxu0
    %5465 = vdwg.mxu0
    %5466 = vmatpush.bf16.msra.mxu0 %v2696
    %5467 = vmatpush.bf16.msra.mxu0 %v2692
    %5468 = vmatpush.bf16.msra.mxu0 %v2688
    %5469 = vmatpush.bf16.msra.mxu0 %v2684
    %5470 = vmatpush.bf16.msra.mxu0 %v2680
    %5471 = vmatpush.bf16.msra.mxu0 %v2676
    %5472 = vmatpush.bf16.msra.mxu0 %v2672
    %5473 = vmatpush.bf16.msra.mxu0 %v2668
    %5474 = vmatmul.bf16.gmra.mxu0 %v5315
    %v5475 = vpop.f32.mrf.mxu0
    %v5476 = vadd.f32 0.0, %v5475
    %v5477 = vpop.f32.mrf.mxu0
    %5478 = vdwg.mxu0
    %5479 = vmatpush.bf16.msra.mxu0 %v2697
    %5480 = vmatpush.bf16.msra.mxu0 %v2693
    %5481 = vmatpush.bf16.msra.mxu0 %v2689
    %5482 = vmatpush.bf16.msra.mxu0 %v2685
    %5483 = vmatpush.bf16.msra.mxu0 %v2681
    %5484 = vmatpush.bf16.msra.mxu0 %v2677
    %5485 = vmatpush.bf16.msra.mxu0 %v2673
    %5486 = vmatpush.bf16.msra.mxu0 %v2669
    %5487 = vmatmul.bf16.gmra.mxu0 %v5315
    %v5488 = vpop.f32.mrf.mxu0
    %v5489 = vadd.f32 0.0, %v5488
    %v5490 = vpop.f32.mrf.mxu0
    %5491 = vdwg.mxu0
    %v5496 = vrot.slane %v5463, 7
    %v5497 = vrot.slane %v5476, 6
    %v5498 = vrot.slane %v5489, 5
    %v5499 = vsel %vm2789, %v5450, %v5496
    %v5500 = vsel %vm2791, %v5497, %v5498
    %v5501 = vsel %vm2793, %v5499, %v5500
    %v5502 = vsel %vm2795, %v5450, %v5496
    %v5503 = vsel %vm2797, %v5497, %v5498
    %v5504 = vsel %vm2799, %v5502, %v5503
    %v5505 = vrot.slane %v5504, 1
    %v5508 = vadd.f32 %v5437, %v5501
    %v5509 = vadd.f32 %v5439, %v5505
    %v5510 = vxor.u32 %v5508, 2147483648
    %v5511 = vxor.u32 %v5509, 2147483648
    %v5512 = vmul.f32 %v5510, 1.442695
    %v5513 = vpow.pop %v5512
    %v5514 = vmul.f32 %v5511, 1.442695
    %v5515 = vpow.pop %v5514
    %v5516 = vadd.f32 %v5513, 1.0
    %v5517 = vadd.f32 %v5515, 1.0
    %v5518 = vrcp.pop %v5516
    %v5519 = vmul.f32 %v5516, %v5518
    %v5520 = vsub.f32 1.0, %v5519
    %v5521 = vmul.f32 %v5518, %v5520
    %v5522 = vadd.f32 %v5518, %v5521
    %vm5523 = vweird.f32 %v5516
    %vm5524 = vweird.f32 %v5518
    %vm5525 = vmor %vm5523, %vm5524
    %v5526 = vsel %vm5525, %v5518, %v5522
    %v5527 = vand.u32 2147483647, %v5516
    %vm5528 = vcmp.eq.f32.partialorder %v5527, 8.507059e+37
    %v5529 = vand.u32 %v5516, 2147483648
    %v5530 = vor.u32 1.1754944e-38, %v5529
    %v5531 = vsel %vm5528, %v5530, %v5526
    %v5532 = vmul.f32 1.0, %v5531
    %v5533 = vrcp.pop %v5517
    %v5534 = vmul.f32 %v5517, %v5533
    %v5535 = vsub.f32 1.0, %v5534
    %v5536 = vmul.f32 %v5533, %v5535
    %v5537 = vadd.f32 %v5533, %v5536
    %vm5538 = vweird.f32 %v5517
    %vm5539 = vweird.f32 %v5533
    %vm5540 = vmor %vm5538, %vm5539
    %v5541 = vsel %vm5540, %v5533, %v5537
    %v5542 = vand.u32 2147483647, %v5517
    %vm5543 = vcmp.eq.f32.partialorder %v5542, 8.507059e+37
    %v5544 = vand.u32 %v5517, 2147483648
    %v5545 = vor.u32 1.1754944e-38, %v5544
    %v5546 = vsel %vm5543, %v5545, %v5541
    %v5547 = vmul.f32 1.0, %v5546
    %v5550 = vrot.slane %v5508, 1
    %v5551 = vrot.slane %v5509, 1
    %v5554 = vxor.u32 %v5550, 2147483648
    %v5555 = vxor.u32 %v5551, 2147483648
    %v5556 = vmul.f32 %v5554, 1.442695
    %v5557 = vpow.pop %v5556
    %v5558 = vmul.f32 %v5555, 1.442695
    %v5559 = vpow.pop %v5558
    %v5560 = vadd.f32 %v5557, 1.0
    %v5561 = vadd.f32 %v5559, 1.0
    %v5562 = vrcp.pop %v5560
    %v5563 = vmul.f32 %v5560, %v5562
    %v5564 = vsub.f32 1.0, %v5563
    %v5565 = vmul.f32 %v5562, %v5564
    %v5566 = vadd.f32 %v5562, %v5565
    %vm5567 = vweird.f32 %v5560
    %vm5568 = vweird.f32 %v5562
    %vm5569 = vmor %vm5567, %vm5568
    %v5570 = vsel %vm5569, %v5562, %v5566
    %v5571 = vand.u32 2147483647, %v5560
    %vm5572 = vcmp.eq.f32.partialorder %v5571, 8.507059e+37
    %v5573 = vand.u32 %v5560, 2147483648
    %v5574 = vor.u32 1.1754944e-38, %v5573
    %v5575 = vsel %vm5572, %v5574, %v5570
    %v5576 = vmul.f32 1.0, %v5575
    %v5577 = vrcp.pop %v5561
    %v5578 = vmul.f32 %v5561, %v5577
    %v5579 = vsub.f32 1.0, %v5578
    %v5580 = vmul.f32 %v5577, %v5579
    %v5581 = vadd.f32 %v5577, %v5580
    %vm5582 = vweird.f32 %v5561
    %vm5583 = vweird.f32 %v5577
    %vm5584 = vmor %vm5582, %vm5583
    %v5585 = vsel %vm5584, %v5577, %v5581
    %v5586 = vand.u32 2147483647, %v5561
    %vm5587 = vcmp.eq.f32.partialorder %v5586, 8.507059e+37
    %v5588 = vand.u32 %v5561, 2147483648
    %v5589 = vor.u32 1.1754944e-38, %v5588
    %v5590 = vsel %vm5587, %v5589, %v5585
    %v5591 = vmul.f32 1.0, %v5590
    %v5592 = vrot.slane %v5508, 2
    %v5593 = vrot.slane %v5509, 2
    %v5596 = vtanh.pop %v5592
    %v5597 = vtanh.pop %v5593
    %v5598 = vrot.slane %v5508, 3
    %v5599 = vrot.slane %v5509, 3
    %v5602 = vxor.u32 %v5598, 2147483648
    %v5603 = vxor.u32 %v5599, 2147483648
    %v5604 = vmul.f32 %v5602, 1.442695
    %v5605 = vpow.pop %v5604
    %v5606 = vmul.f32 %v5603, 1.442695
    %v5607 = vpow.pop %v5606
    %v5608 = vadd.f32 %v5605, 1.0
    %v5609 = vadd.f32 %v5607, 1.0
    %v5610 = vrcp.pop %v5608
    %v5611 = vmul.f32 %v5608, %v5610
    %v5612 = vsub.f32 1.0, %v5611
    %v5613 = vmul.f32 %v5610, %v5612
    %v5614 = vadd.f32 %v5610, %v5613
    %vm5615 = vweird.f32 %v5608
    %vm5616 = vweird.f32 %v5610
    %vm5617 = vmor %vm5615, %vm5616
    %v5618 = vsel %vm5617, %v5610, %v5614
    %v5619 = vand.u32 2147483647, %v5608
    %vm5620 = vcmp.eq.f32.partialorder %v5619, 8.507059e+37
    %v5621 = vand.u32 %v5608, 2147483648
    %v5622 = vor.u32 1.1754944e-38, %v5621
    %v5623 = vsel %vm5620, %v5622, %v5618
    %v5624 = vmul.f32 1.0, %v5623
    %v5625 = vrcp.pop %v5609
    %v5626 = vmul.f32 %v5609, %v5625
    %v5627 = vsub.f32 1.0, %v5626
    %v5628 = vmul.f32 %v5625, %v5627
    %v5629 = vadd.f32 %v5625, %v5628
    %vm5630 = vweird.f32 %v5609
    %vm5631 = vweird.f32 %v5625
    %vm5632 = vmor %vm5630, %vm5631
    %v5633 = vsel %vm5632, %v5625, %v5629
    %v5634 = vand.u32 2147483647, %v5609
    %vm5635 = vcmp.eq.f32.partialorder %v5634, 8.507059e+37
    %v5636 = vand.u32 %v5609, 2147483648
    %v5637 = vor.u32 1.1754944e-38, %v5636
    %v5638 = vsel %vm5635, %v5637, %v5633
    %v5639 = vmul.f32 1.0, %v5638
    %v5640 = vmul.f32 %v5576, %v5248
    %v5641 = vmul.f32 %v5591, %v5249
    %v5642 = vmul.f32 %v5532, %v5596
    %v5643 = vmul.f32 %v5547, %v5597
    %v5644 = vadd.f32 %v5640, %v5642
    %v5645 = vadd.f32 %v5641, %v5643
    %v5646 = vtanh.pop %v5644
    %v5647 = vtanh.pop %v5645
    %v5648 = vmul.f32 %v5624, %v5646
    %v5649 = vmul.f32 %v5639, %v5647
    %v5650 = vpack.c.bf16 %v5648, %v5648
    %v5651 = vpack.c.bf16 %v5649, %v5649
    %v5652 = vpack.c.bf16 %v5435, %v5435
    %5653 = vmatpush.bf16.msra.mxu0 %v3072
    %5654 = vmatpush.bf16.msra.mxu0 %v3068
    %5655 = vmatpush.bf16.msra.mxu0 %v3064
    %5656 = vmatpush.bf16.msra.mxu0 %v3060
    %5657 = vmatpush.bf16.msra.mxu0 %v3056
    %5658 = vmatpush.bf16.msra.mxu0 %v3052
    %5659 = vmatpush.bf16.msra.mxu0 %v3048
    %5660 = vmatpush.bf16.msra.mxu0 %v3044
    %5661 = vmatmul.bf16.gmra.mxu0 %v5652
    %v5662 = vpop.f32.mrf.mxu0
    %v5663 = vadd.f32 0.0, %v5662
    %v5664 = vpop.f32.mrf.mxu0
    %5665 = vdwg.mxu0
    %5666 = vmatpush.bf16.msra.mxu0 %v3073
    %5667 = vmatpush.bf16.msra.mxu0 %v3069
    %5668 = vmatpush.bf16.msra.mxu0 %v3065
    %5669 = vmatpush.bf16.msra.mxu0 %v3061
    %5670 = vmatpush.bf16.msra.mxu0 %v3057
    %5671 = vmatpush.bf16.msra.mxu0 %v3053
    %5672 = vmatpush.bf16.msra.mxu0 %v3049
    %5673 = vmatpush.bf16.msra.mxu0 %v3045
    %5674 = vmatmul.bf16.gmra.mxu0 %v5652
    %v5675 = vpop.f32.mrf.mxu0
    %v5676 = vadd.f32 0.0, %v5675
    %v5677 = vpop.f32.mrf.mxu0
    %5678 = vdwg.mxu0
    %5679 = vmatpush.bf16.msra.mxu0 %v3074
    %5680 = vmatpush.bf16.msra.mxu0 %v3070
    %5681 = vmatpush.bf16.msra.mxu0 %v3066
    %5682 = vmatpush.bf16.msra.mxu0 %v3062
    %5683 = vmatpush.bf16.msra.mxu0 %v3058
    %5684 = vmatpush.bf16.msra.mxu0 %v3054
    %5685 = vmatpush.bf16.msra.mxu0 %v3050
    %5686 = vmatpush.bf16.msra.mxu0 %v3046
    %5687 = vmatmul.bf16.gmra.mxu0 %v5652
    %v5688 = vpop.f32.mrf.mxu0
    %v5689 = vadd.f32 0.0, %v5688
    %v5690 = vpop.f32.mrf.mxu0
    %5691 = vdwg.mxu0
    %5692 = vmatpush.bf16.msra.mxu0 %v3075
    %5693 = vmatpush.bf16.msra.mxu0 %v3071
    %5694 = vmatpush.bf16.msra.mxu0 %v3067
    %5695 = vmatpush.bf16.msra.mxu0 %v3063
    %5696 = vmatpush.bf16.msra.mxu0 %v3059
    %5697 = vmatpush.bf16.msra.mxu0 %v3055
    %5698 = vmatpush.bf16.msra.mxu0 %v3051
    %5699 = vmatpush.bf16.msra.mxu0 %v3047
    %5700 = vmatmul.bf16.gmra.mxu0 %v5652
    %v5701 = vpop.f32.mrf.mxu0
    %v5702 = vadd.f32 0.0, %v5701
    %v5703 = vpop.f32.mrf.mxu0
    %5704 = vdwg.mxu0
    %v5707 = vunpack.c.l.b16 %v5650
    %v5708 = vunpack.c.l.b16 %v5651
    %v5709 = vrot.slane %v5708, 7
    %v5710 = vsel %vm2795, %v5709, %v5707
    %v5711 = vpack.c.b16 %v5710, %v5710
    %5713 = vmatpush.bf16.msra.mxu0 %v3292
    %5714 = vmatpush.bf16.msra.mxu0 %v3288
    %5715 = vmatpush.bf16.msra.mxu0 %v3284
    %5716 = vmatpush.bf16.msra.mxu0 %v3280
    %5717 = vmatpush.bf16.msra.mxu0 %v3276
    %5718 = vmatpush.bf16.msra.mxu0 %v3272
    %5719 = vmatpush.bf16.msra.mxu0 %v3268
    %5720 = vmatpush.bf16.msra.mxu0 %v3264
    %5721 = vmatmul.bf16.gmra.mxu0 %v5711
    %v5722 = vpop.f32.mrf.mxu0
    %v5723 = vadd.f32 %v5663, %v5722
    %v5724 = vpop.f32.mrf.mxu0
    %5725 = vdwg.mxu0
    %5726 = vmatpush.bf16.msra.mxu0 %v3293
    %5727 = vmatpush.bf16.msra.mxu0 %v3289
    %5728 = vmatpush.bf16.msra.mxu0 %v3285
    %5729 = vmatpush.bf16.msra.mxu0 %v3281
    %5730 = vmatpush.bf16.msra.mxu0 %v3277
    %5731 = vmatpush.bf16.msra.mxu0 %v3273
    %5732 = vmatpush.bf16.msra.mxu0 %v3269
    %5733 = vmatpush.bf16.msra.mxu0 %v3265
    %5734 = vmatmul.bf16.gmra.mxu0 %v5711
    %v5735 = vpop.f32.mrf.mxu0
    %v5736 = vadd.f32 %v5676, %v5735
    %v5737 = vpop.f32.mrf.mxu0
    %5738 = vdwg.mxu0
    %5739 = vmatpush.bf16.msra.mxu0 %v3294
    %5740 = vmatpush.bf16.msra.mxu0 %v3290
    %5741 = vmatpush.bf16.msra.mxu0 %v3286
    %5742 = vmatpush.bf16.msra.mxu0 %v3282
    %5743 = vmatpush.bf16.msra.mxu0 %v3278
    %5744 = vmatpush.bf16.msra.mxu0 %v3274
    %5745 = vmatpush.bf16.msra.mxu0 %v3270
    %5746 = vmatpush.bf16.msra.mxu0 %v3266
    %5747 = vmatmul.bf16.gmra.mxu0 %v5711
    %v5748 = vpop.f32.mrf.mxu0
    %v5749 = vadd.f32 %v5689, %v5748
    %v5750 = vpop.f32.mrf.mxu0
    %5751 = vdwg.mxu0
    %5752 = vmatpush.bf16.msra.mxu0 %v3295
    %5753 = vmatpush.bf16.msra.mxu0 %v3291
    %5754 = vmatpush.bf16.msra.mxu0 %v3287
    %5755 = vmatpush.bf16.msra.mxu0 %v3283
    %5756 = vmatpush.bf16.msra.mxu0 %v3279
    %5757 = vmatpush.bf16.msra.mxu0 %v3275
    %5758 = vmatpush.bf16.msra.mxu0 %v3271
    %5759 = vmatpush.bf16.msra.mxu0 %v3267
    %5760 = vmatmul.bf16.gmra.mxu0 %v5711
    %v5761 = vpop.f32.mrf.mxu0
    %v5762 = vadd.f32 %v5702, %v5761
    %v5763 = vpop.f32.mrf.mxu0
    %5764 = vdwg.mxu0
    %v5765 = vadd.f32 %v5723, %v3381
    %v5766 = vadd.f32 %v5736, %v3382
    %v5767 = vadd.f32 %v5749, %v3383
    %v5768 = vadd.f32 %v5762, %v3384
    %v5769 = vxor.u32 %v5765, 2147483648
    %v5770 = vmul.f32 %v5769, 1.442695
    %v5771 = vpow.pop %v5770
    %v5772 = vadd.f32 %v5771, 1.0
    %v5773 = vrcp.pop %v5772
    %v5774 = vmul.f32 %v5772, %v5773
    %v5775 = vsub.f32 1.0, %v5774
    %v5776 = vmul.f32 %v5773, %v5775
    %v5777 = vadd.f32 %v5773, %v5776
    %vm5778 = vweird.f32 %v5772
    %vm5779 = vweird.f32 %v5773
    %vm5780 = vmor %vm5778, %vm5779
    %v5781 = vsel %vm5780, %v5773, %v5777
    %v5782 = vand.u32 2147483647, %v5772
    %vm5783 = vcmp.eq.f32.partialorder %v5782, 8.507059e+37
    %v5784 = vand.u32 %v5772, 2147483648
    %v5785 = vor.u32 1.1754944e-38, %v5784
    %v5786 = vsel %vm5783, %v5785, %v5781
    %v5787 = vmul.f32 1.0, %v5786
    %v5788 = vxor.u32 %v5766, 2147483648
    %v5789 = vmul.f32 %v5788, 1.442695
    %v5790 = vpow.pop %v5789
    %v5791 = vadd.f32 %v5790, 1.0
    %v5792 = vrcp.pop %v5791
    %v5793 = vmul.f32 %v5791, %v5792
    %v5794 = vsub.f32 1.0, %v5793
    %v5795 = vmul.f32 %v5792, %v5794
    %v5796 = vadd.f32 %v5792, %v5795
    %vm5797 = vweird.f32 %v5791
    %vm5798 = vweird.f32 %v5792
    %vm5799 = vmor %vm5797, %vm5798
    %v5800 = vsel %vm5799, %v5792, %v5796
    %v5801 = vand.u32 2147483647, %v5791
    %vm5802 = vcmp.eq.f32.partialorder %v5801, 8.507059e+37
    %v5803 = vand.u32 %v5791, 2147483648
    %v5804 = vor.u32 1.1754944e-38, %v5803
    %v5805 = vsel %vm5802, %v5804, %v5800
    %v5806 = vmul.f32 1.0, %v5805
    %v5807 = vtanh.pop %v5767
    %v5808 = vxor.u32 %v5768, 2147483648
    %v5809 = vmul.f32 %v5808, 1.442695
    %v5810 = vpow.pop %v5809
    %v5811 = vadd.f32 %v5810, 1.0
    %v5812 = vrcp.pop %v5811
    %v5813 = vmul.f32 %v5811, %v5812
    %v5814 = vsub.f32 1.0, %v5813
    %v5815 = vmul.f32 %v5812, %v5814
    %v5816 = vadd.f32 %v5812, %v5815
    %vm5817 = vweird.f32 %v5811
    %vm5818 = vweird.f32 %v5812
    %vm5819 = vmor %vm5817, %vm5818
    %v5820 = vsel %vm5819, %v5812, %v5816
    %v5821 = vand.u32 2147483647, %v5811
    %vm5822 = vcmp.eq.f32.partialorder %v5821, 8.507059e+37
    %v5823 = vand.u32 %v5811, 2147483648
    %v5824 = vor.u32 1.1754944e-38, %v5823
    %v5825 = vsel %vm5822, %v5824, %v5820
    %v5826 = vmul.f32 1.0, %v5825
    %v5827 = vmul.f32 %v5806, %v5433
    %v5828 = vmul.f32 %v5787, %v5807
    %v5829 = vadd.f32 %v5827, %v5828
    %v5830 = vtanh.pop %v5829
    %v5831 = vmul.f32 %v5826, %v5830
    %s5832 = scalar_lea.vmem [#allocation2], 7
    %v5833 = vld [vmem:[%s5832] ss:$8 sm:$0xf]
    %s5834 = scalar_lea.vmem [#allocation2], 39
    %v5835 = vld [vmem:[%s5834] ss:$8 sm:$0xf]
    %5836 = vmatpush.bf16.msra.mxu0 %v2694
    %5837 = vmatpush.bf16.msra.mxu0 %v2690
    %5838 = vmatpush.bf16.msra.mxu0 %v2686
    %5839 = vmatpush.bf16.msra.mxu0 %v2682
    %5840 = vmatpush.bf16.msra.mxu0 %v2678
    %5841 = vmatpush.bf16.msra.mxu0 %v2674
    %5842 = vmatpush.bf16.msra.mxu0 %v2670
    %5843 = vmatpush.bf16.msra.mxu0 %v2666
    %5844 = vmatmul.bf16.gmra.mxu0 %v5711
    %v5845 = vpop.f32.mrf.mxu0
    %v5846 = vadd.f32 0.0, %v5845
    %v5847 = vpop.f32.mrf.mxu0
    %5848 = vdwg.mxu0
    %5849 = vmatpush.bf16.msra.mxu0 %v2695
    %5850 = vmatpush.bf16.msra.mxu0 %v2691
    %5851 = vmatpush.bf16.msra.mxu0 %v2687
    %5852 = vmatpush.bf16.msra.mxu0 %v2683
    %5853 = vmatpush.bf16.msra.mxu0 %v2679
    %5854 = vmatpush.bf16.msra.mxu0 %v2675
    %5855 = vmatpush.bf16.msra.mxu0 %v2671
    %5856 = vmatpush.bf16.msra.mxu0 %v2667
    %5857 = vmatmul.bf16.gmra.mxu0 %v5711
    %v5858 = vpop.f32.mrf.mxu0
    %v5859 = vadd.f32 0.0, %v5858
    %v5860 = vpop.f32.mrf.mxu0
    %5861 = vdwg.mxu0
    %5862 = vmatpush.bf16.msra.mxu0 %v2696
    %5863 = vmatpush.bf16.msra.mxu0 %v2692
    %5864 = vmatpush.bf16.msra.mxu0 %v2688
    %5865 = vmatpush.bf16.msra.mxu0 %v2684
    %5866 = vmatpush.bf16.msra.mxu0 %v2680
    %5867 = vmatpush.bf16.msra.mxu0 %v2676
    %5868 = vmatpush.bf16.msra.mxu0 %v2672
    %5869 = vmatpush.bf16.msra.mxu0 %v2668
    %5870 = vmatmul.bf16.gmra.mxu0 %v5711
    %v5871 = vpop.f32.mrf.mxu0
    %v5872 = vadd.f32 0.0, %v5871
    %v5873 = vpop.f32.mrf.mxu0
    %5874 = vdwg.mxu0
    %5875 = vmatpush.bf16.msra.mxu0 %v2697
    %5876 = vmatpush.bf16.msra.mxu0 %v2693
    %5877 = vmatpush.bf16.msra.mxu0 %v2689
    %5878 = vmatpush.bf16.msra.mxu0 %v2685
    %5879 = vmatpush.bf16.msra.mxu0 %v2681
    %5880 = vmatpush.bf16.msra.mxu0 %v2677
    %5881 = vmatpush.bf16.msra.mxu0 %v2673
    %5882 = vmatpush.bf16.msra.mxu0 %v2669
    %5883 = vmatmul.bf16.gmra.mxu0 %v5711
    %v5884 = vpop.f32.mrf.mxu0
    %v5885 = vadd.f32 0.0, %v5884
    %v5886 = vpop.f32.mrf.mxu0
    %5887 = vdwg.mxu0
    %v5892 = vrot.slane %v5859, 7
    %v5893 = vrot.slane %v5872, 6
    %v5894 = vrot.slane %v5885, 5
    %v5895 = vsel %vm2789, %v5846, %v5892
    %v5896 = vsel %vm2791, %v5893, %v5894
    %v5897 = vsel %vm2793, %v5895, %v5896
    %v5898 = vsel %vm2795, %v5846, %v5892
    %v5899 = vsel %vm2797, %v5893, %v5894
    %v5900 = vsel %vm2799, %v5898, %v5899
    %v5901 = vrot.slane %v5900, 1
    %v5904 = vadd.f32 %v5833, %v5897
    %v5905 = vadd.f32 %v5835, %v5901
    %v5906 = vxor.u32 %v5904, 2147483648
    %v5907 = vxor.u32 %v5905, 2147483648
    %v5908 = vmul.f32 %v5906, 1.442695
    %v5909 = vpow.pop %v5908
    %v5910 = vmul.f32 %v5907, 1.442695
    %v5911 = vpow.pop %v5910
    %v5912 = vadd.f32 %v5909, 1.0
    %v5913 = vadd.f32 %v5911, 1.0
    %v5914 = vrcp.pop %v5912
    %v5915 = vmul.f32 %v5912, %v5914
    %v5916 = vsub.f32 1.0, %v5915
    %v5917 = vmul.f32 %v5914, %v5916
    %v5918 = vadd.f32 %v5914, %v5917
    %vm5919 = vweird.f32 %v5912
    %vm5920 = vweird.f32 %v5914
    %vm5921 = vmor %vm5919, %vm5920
    %v5922 = vsel %vm5921, %v5914, %v5918
    %v5923 = vand.u32 2147483647, %v5912
    %vm5924 = vcmp.eq.f32.partialorder %v5923, 8.507059e+37
    %v5925 = vand.u32 %v5912, 2147483648
    %v5926 = vor.u32 1.1754944e-38, %v5925
    %v5927 = vsel %vm5924, %v5926, %v5922
    %v5928 = vmul.f32 1.0, %v5927
    %v5929 = vrcp.pop %v5913
    %v5930 = vmul.f32 %v5913, %v5929
    %v5931 = vsub.f32 1.0, %v5930
    %v5932 = vmul.f32 %v5929, %v5931
    %v5933 = vadd.f32 %v5929, %v5932
    %vm5934 = vweird.f32 %v5913
    %vm5935 = vweird.f32 %v5929
    %vm5936 = vmor %vm5934, %vm5935
    %v5937 = vsel %vm5936, %v5929, %v5933
    %v5938 = vand.u32 2147483647, %v5913
    %vm5939 = vcmp.eq.f32.partialorder %v5938, 8.507059e+37
    %v5940 = vand.u32 %v5913, 2147483648
    %v5941 = vor.u32 1.1754944e-38, %v5940
    %v5942 = vsel %vm5939, %v5941, %v5937
    %v5943 = vmul.f32 1.0, %v5942
    %v5946 = vrot.slane %v5904, 1
    %v5947 = vrot.slane %v5905, 1
    %v5950 = vxor.u32 %v5946, 2147483648
    %v5951 = vxor.u32 %v5947, 2147483648
    %v5952 = vmul.f32 %v5950, 1.442695
    %v5953 = vpow.pop %v5952
    %v5954 = vmul.f32 %v5951, 1.442695
    %v5955 = vpow.pop %v5954
    %v5956 = vadd.f32 %v5953, 1.0
    %v5957 = vadd.f32 %v5955, 1.0
    %v5958 = vrcp.pop %v5956
    %v5959 = vmul.f32 %v5956, %v5958
    %v5960 = vsub.f32 1.0, %v5959
    %v5961 = vmul.f32 %v5958, %v5960
    %v5962 = vadd.f32 %v5958, %v5961
    %vm5963 = vweird.f32 %v5956
    %vm5964 = vweird.f32 %v5958
    %vm5965 = vmor %vm5963, %vm5964
    %v5966 = vsel %vm5965, %v5958, %v5962
    %v5967 = vand.u32 2147483647, %v5956
    %vm5968 = vcmp.eq.f32.partialorder %v5967, 8.507059e+37
    %v5969 = vand.u32 %v5956, 2147483648
    %v5970 = vor.u32 1.1754944e-38, %v5969
    %v5971 = vsel %vm5968, %v5970, %v5966
    %v5972 = vmul.f32 1.0, %v5971
    %v5973 = vrcp.pop %v5957
    %v5974 = vmul.f32 %v5957, %v5973
    %v5975 = vsub.f32 1.0, %v5974
    %v5976 = vmul.f32 %v5973, %v5975
    %v5977 = vadd.f32 %v5973, %v5976
    %vm5978 = vweird.f32 %v5957
    %vm5979 = vweird.f32 %v5973
    %vm5980 = vmor %vm5978, %vm5979
    %v5981 = vsel %vm5980, %v5973, %v5977
    %v5982 = vand.u32 2147483647, %v5957
    %vm5983 = vcmp.eq.f32.partialorder %v5982, 8.507059e+37
    %v5984 = vand.u32 %v5957, 2147483648
    %v5985 = vor.u32 1.1754944e-38, %v5984
    %v5986 = vsel %vm5983, %v5985, %v5981
    %v5987 = vmul.f32 1.0, %v5986
    %v5988 = vrot.slane %v5904, 2
    %v5989 = vrot.slane %v5905, 2
    %v5992 = vtanh.pop %v5988
    %v5993 = vtanh.pop %v5989
    %v5994 = vrot.slane %v5904, 3
    %v5995 = vrot.slane %v5905, 3
    %v5998 = vxor.u32 %v5994, 2147483648
    %v5999 = vxor.u32 %v5995, 2147483648
    %v6000 = vmul.f32 %v5998, 1.442695
    %v6001 = vpow.pop %v6000
    %v6002 = vmul.f32 %v5999, 1.442695
    %v6003 = vpow.pop %v6002
    %v6004 = vadd.f32 %v6001, 1.0
    %v6005 = vadd.f32 %v6003, 1.0
    %v6006 = vrcp.pop %v6004
    %v6007 = vmul.f32 %v6004, %v6006
    %v6008 = vsub.f32 1.0, %v6007
    %v6009 = vmul.f32 %v6006, %v6008
    %v6010 = vadd.f32 %v6006, %v6009
    %vm6011 = vweird.f32 %v6004
    %vm6012 = vweird.f32 %v6006
    %vm6013 = vmor %vm6011, %vm6012
    %v6014 = vsel %vm6013, %v6006, %v6010
    %v6015 = vand.u32 2147483647, %v6004
    %vm6016 = vcmp.eq.f32.partialorder %v6015, 8.507059e+37
    %v6017 = vand.u32 %v6004, 2147483648
    %v6018 = vor.u32 1.1754944e-38, %v6017
    %v6019 = vsel %vm6016, %v6018, %v6014
    %v6020 = vmul.f32 1.0, %v6019
    %v6021 = vrcp.pop %v6005
    %v6022 = vmul.f32 %v6005, %v6021
    %v6023 = vsub.f32 1.0, %v6022
    %v6024 = vmul.f32 %v6021, %v6023
    %v6025 = vadd.f32 %v6021, %v6024
    %vm6026 = vweird.f32 %v6005
    %vm6027 = vweird.f32 %v6021
    %vm6028 = vmor %vm6026, %vm6027
    %v6029 = vsel %vm6028, %v6021, %v6025
    %v6030 = vand.u32 2147483647, %v6005
    %vm6031 = vcmp.eq.f32.partialorder %v6030, 8.507059e+37
    %v6032 = vand.u32 %v6005, 2147483648
    %v6033 = vor.u32 1.1754944e-38, %v6032
    %v6034 = vsel %vm6031, %v6033, %v6029
    %v6035 = vmul.f32 1.0, %v6034
    %v6036 = vmul.f32 %v5972, %v5644
    %v6037 = vmul.f32 %v5987, %v5645
    %v6038 = vmul.f32 %v5928, %v5992
    %v6039 = vmul.f32 %v5943, %v5993
    %v6040 = vadd.f32 %v6036, %v6038
    %v6041 = vadd.f32 %v6037, %v6039
    %v6042 = vtanh.pop %v6040
    %v6043 = vtanh.pop %v6041
    %v6044 = vmul.f32 %v6020, %v6042
    %v6045 = vmul.f32 %v6035, %v6043
    %v6046 = vpack.c.bf16 %v6044, %v6044
    %v6047 = vpack.c.bf16 %v6045, %v6045
    %v6048 = vpack.c.bf16 %v5831, %v5831
    %6049 = vmatpush.bf16.msra.mxu0 %v3072
    %6050 = vmatpush.bf16.msra.mxu0 %v3068
    %6051 = vmatpush.bf16.msra.mxu0 %v3064
    %6052 = vmatpush.bf16.msra.mxu0 %v3060
    %6053 = vmatpush.bf16.msra.mxu0 %v3056
    %6054 = vmatpush.bf16.msra.mxu0 %v3052
    %6055 = vmatpush.bf16.msra.mxu0 %v3048
    %6056 = vmatpush.bf16.msra.mxu0 %v3044
    %6057 = vmatmul.bf16.gmra.mxu0 %v6048
    %v6058 = vpop.f32.mrf.mxu0
    %v6059 = vadd.f32 0.0, %v6058
    %v6060 = vpop.f32.mrf.mxu0
    %6061 = vdwg.mxu0
    %6062 = vmatpush.bf16.msra.mxu0 %v3073
    %6063 = vmatpush.bf16.msra.mxu0 %v3069
    %6064 = vmatpush.bf16.msra.mxu0 %v3065
    %6065 = vmatpush.bf16.msra.mxu0 %v3061
    %6066 = vmatpush.bf16.msra.mxu0 %v3057
    %6067 = vmatpush.bf16.msra.mxu0 %v3053
    %6068 = vmatpush.bf16.msra.mxu0 %v3049
    %6069 = vmatpush.bf16.msra.mxu0 %v3045
    %6070 = vmatmul.bf16.gmra.mxu0 %v6048
    %v6071 = vpop.f32.mrf.mxu0
    %v6072 = vadd.f32 0.0, %v6071
    %v6073 = vpop.f32.mrf.mxu0
    %6074 = vdwg.mxu0
    %6075 = vmatpush.bf16.msra.mxu0 %v3074
    %6076 = vmatpush.bf16.msra.mxu0 %v3070
    %6077 = vmatpush.bf16.msra.mxu0 %v3066
    %6078 = vmatpush.bf16.msra.mxu0 %v3062
    %6079 = vmatpush.bf16.msra.mxu0 %v3058
    %6080 = vmatpush.bf16.msra.mxu0 %v3054
    %6081 = vmatpush.bf16.msra.mxu0 %v3050
    %6082 = vmatpush.bf16.msra.mxu0 %v3046
    %6083 = vmatmul.bf16.gmra.mxu0 %v6048
    %v6084 = vpop.f32.mrf.mxu0
    %v6085 = vadd.f32 0.0, %v6084
    %v6086 = vpop.f32.mrf.mxu0
    %6087 = vdwg.mxu0
    %6088 = vmatpush.bf16.msra.mxu0 %v3075
    %6089 = vmatpush.bf16.msra.mxu0 %v3071
    %6090 = vmatpush.bf16.msra.mxu0 %v3067
    %6091 = vmatpush.bf16.msra.mxu0 %v3063
    %6092 = vmatpush.bf16.msra.mxu0 %v3059
    %6093 = vmatpush.bf16.msra.mxu0 %v3055
    %6094 = vmatpush.bf16.msra.mxu0 %v3051
    %6095 = vmatpush.bf16.msra.mxu0 %v3047
    %6096 = vmatmul.bf16.gmra.mxu0 %v6048
    %v6097 = vpop.f32.mrf.mxu0
    %v6098 = vadd.f32 0.0, %v6097
    %v6099 = vpop.f32.mrf.mxu0
    %6100 = vdwg.mxu0
    %v6103 = vunpack.c.l.b16 %v6046
    %v6104 = vunpack.c.l.b16 %v6047
    %v6105 = vrot.slane %v6104, 7
    %v6106 = vsel %vm2795, %v6105, %v6103
    %v6107 = vpack.c.b16 %v6106, %v6106
    %6109 = vmatpush.bf16.msra.mxu0 %v3292
    %6110 = vmatpush.bf16.msra.mxu0 %v3288
    %6111 = vmatpush.bf16.msra.mxu0 %v3284
    %6112 = vmatpush.bf16.msra.mxu0 %v3280
    %6113 = vmatpush.bf16.msra.mxu0 %v3276
    %6114 = vmatpush.bf16.msra.mxu0 %v3272
    %6115 = vmatpush.bf16.msra.mxu0 %v3268
    %6116 = vmatpush.bf16.msra.mxu0 %v3264
    %6117 = vmatmul.bf16.gmra.mxu0 %v6107
    %v6118 = vpop.f32.mrf.mxu0
    %v6119 = vadd.f32 %v6059, %v6118
    %v6120 = vpop.f32.mrf.mxu0
    %6121 = vdwg.mxu0
    %6122 = vmatpush.bf16.msra.mxu0 %v3293
    %6123 = vmatpush.bf16.msra.mxu0 %v3289
    %6124 = vmatpush.bf16.msra.mxu0 %v3285
    %6125 = vmatpush.bf16.msra.mxu0 %v3281
    %6126 = vmatpush.bf16.msra.mxu0 %v3277
    %6127 = vmatpush.bf16.msra.mxu0 %v3273
    %6128 = vmatpush.bf16.msra.mxu0 %v3269
    %6129 = vmatpush.bf16.msra.mxu0 %v3265
    %6130 = vmatmul.bf16.gmra.mxu0 %v6107
    %v6131 = vpop.f32.mrf.mxu0
    %v6132 = vadd.f32 %v6072, %v6131
    %v6133 = vpop.f32.mrf.mxu0
    %6134 = vdwg.mxu0
    %6135 = vmatpush.bf16.msra.mxu0 %v3294
    %6136 = vmatpush.bf16.msra.mxu0 %v3290
    %6137 = vmatpush.bf16.msra.mxu0 %v3286
    %6138 = vmatpush.bf16.msra.mxu0 %v3282
    %6139 = vmatpush.bf16.msra.mxu0 %v3278
    %6140 = vmatpush.bf16.msra.mxu0 %v3274
    %6141 = vmatpush.bf16.msra.mxu0 %v3270
    %6142 = vmatpush.bf16.msra.mxu0 %v3266
    %6143 = vmatmul.bf16.gmra.mxu0 %v6107
    %v6144 = vpop.f32.mrf.mxu0
    %v6145 = vadd.f32 %v6085, %v6144
    %v6146 = vpop.f32.mrf.mxu0
    %6147 = vdwg.mxu0
    %6148 = vmatpush.bf16.msra.mxu0 %v3295
    %6149 = vmatpush.bf16.msra.mxu0 %v3291
    %6150 = vmatpush.bf16.msra.mxu0 %v3287
    %6151 = vmatpush.bf16.msra.mxu0 %v3283
    %6152 = vmatpush.bf16.msra.mxu0 %v3279
    %6153 = vmatpush.bf16.msra.mxu0 %v3275
    %6154 = vmatpush.bf16.msra.mxu0 %v3271
    %6155 = vmatpush.bf16.msra.mxu0 %v3267
    %6156 = vmatmul.bf16.gmra.mxu0 %v6107
    %v6157 = vpop.f32.mrf.mxu0
    %v6158 = vadd.f32 %v6098, %v6157
    %v6159 = vpop.f32.mrf.mxu0
    %6160 = vdwg.mxu0
    %v6161 = vadd.f32 %v6119, %v3381
    %v6162 = vadd.f32 %v6132, %v3382
    %v6163 = vadd.f32 %v6145, %v3383
    %v6164 = vadd.f32 %v6158, %v3384
    %v6165 = vxor.u32 %v6161, 2147483648
    %v6166 = vmul.f32 %v6165, 1.442695
    %v6167 = vpow.pop %v6166
    %v6168 = vadd.f32 %v6167, 1.0
    %v6169 = vrcp.pop %v6168
    %v6170 = vmul.f32 %v6168, %v6169
    %v6171 = vsub.f32 1.0, %v6170
    %v6172 = vmul.f32 %v6169, %v6171
    %v6173 = vadd.f32 %v6169, %v6172
    %vm6174 = vweird.f32 %v6168
    %vm6175 = vweird.f32 %v6169
    %vm6176 = vmor %vm6174, %vm6175
    %v6177 = vsel %vm6176, %v6169, %v6173
    %v6178 = vand.u32 2147483647, %v6168
    %vm6179 = vcmp.eq.f32.partialorder %v6178, 8.507059e+37
    %v6180 = vand.u32 %v6168, 2147483648
    %v6181 = vor.u32 1.1754944e-38, %v6180
    %v6182 = vsel %vm6179, %v6181, %v6177
    %v6183 = vmul.f32 1.0, %v6182
    %v6184 = vxor.u32 %v6162, 2147483648
    %v6185 = vmul.f32 %v6184, 1.442695
    %v6186 = vpow.pop %v6185
    %v6187 = vadd.f32 %v6186, 1.0
    %v6188 = vrcp.pop %v6187
    %v6189 = vmul.f32 %v6187, %v6188
    %v6190 = vsub.f32 1.0, %v6189
    %v6191 = vmul.f32 %v6188, %v6190
    %v6192 = vadd.f32 %v6188, %v6191
    %vm6193 = vweird.f32 %v6187
    %vm6194 = vweird.f32 %v6188
    %vm6195 = vmor %vm6193, %vm6194
    %v6196 = vsel %vm6195, %v6188, %v6192
    %v6197 = vand.u32 2147483647, %v6187
    %vm6198 = vcmp.eq.f32.partialorder %v6197, 8.507059e+37
    %v6199 = vand.u32 %v6187, 2147483648
    %v6200 = vor.u32 1.1754944e-38, %v6199
    %v6201 = vsel %vm6198, %v6200, %v6196
    %v6202 = vmul.f32 1.0, %v6201
    %v6203 = vtanh.pop %v6163
    %v6204 = vxor.u32 %v6164, 2147483648
    %v6205 = vmul.f32 %v6204, 1.442695
    %v6206 = vpow.pop %v6205
    %v6207 = vadd.f32 %v6206, 1.0
    %v6208 = vrcp.pop %v6207
    %v6209 = vmul.f32 %v6207, %v6208
    %v6210 = vsub.f32 1.0, %v6209
    %v6211 = vmul.f32 %v6208, %v6210
    %v6212 = vadd.f32 %v6208, %v6211
    %vm6213 = vweird.f32 %v6207
    %vm6214 = vweird.f32 %v6208
    %vm6215 = vmor %vm6213, %vm6214
    %v6216 = vsel %vm6215, %v6208, %v6212
    %v6217 = vand.u32 2147483647, %v6207
    %vm6218 = vcmp.eq.f32.partialorder %v6217, 8.507059e+37
    %v6219 = vand.u32 %v6207, 2147483648
    %v6220 = vor.u32 1.1754944e-38, %v6219
    %v6221 = vsel %vm6218, %v6220, %v6216
    %v6222 = vmul.f32 1.0, %v6221
    %v6223 = vmul.f32 %v6202, %v5829
    %v6224 = vmul.f32 %v6183, %v6203
    %v6225 = vadd.f32 %v6223, %v6224
    %v6226 = vtanh.pop %v6225
    %v6227 = vmul.f32 %v6222, %v6226
    %v6228 = vpack.c.bf16 %v6227, %v6227
    %v6229 = vld [vmem:[%s7] sm:$0xf]
    %v6230 = vld [vmem:[%s7 + $0x4] sm:$0xf]
    %v6231 = vld [vmem:[%s7 + $0x8] sm:$0xf]
    %v6232 = vld [vmem:[%s7 + $0xc] sm:$0xf]
    %v6233 = vld [vmem:[%s7 + $0x10] sm:$0xf]
    %v6234 = vld [vmem:[%s7 + $0x14] sm:$0xf]
    %v6235 = vld [vmem:[%s7 + $0x18] sm:$0xf]
    %v6236 = vld [vmem:[%s7 + $0x1c] sm:$0xf]
    %v6237 = vld [vmem:[%s7 + $0x20] sm:$0xf]
    %v6238 = vld [vmem:[%s7 + $0x24] sm:$0xf]
    %v6239 = vld [vmem:[%s7 + $0x28] sm:$0xf]
    %v6240 = vld [vmem:[%s7 + $0x2c] sm:$0xf]
    %v6241 = vld [vmem:[%s7 + $0x30] sm:$0xf]
    %v6242 = vld [vmem:[%s7 + $0x34] sm:$0xf]
    %v6243 = vld [vmem:[%s7 + $0x38] sm:$0xf]
    %v6244 = vld [vmem:[%s7 + $0x3c] sm:$0xf]
    %v6245 = vld [vmem:[%s8] sm:$0x1]
    %v6247 = vperm.slane %v6245, 0
    %v6265 = vunpack.c.l.b16 %v6229
    %v6266 = vunpack.c.l.b16 %v6230
    %v6267 = vunpack.c.l.b16 %v6231
    %v6268 = vunpack.c.l.b16 %v6232
    %v6269 = vunpack.c.l.b16 %v6233
    %v6270 = vunpack.c.l.b16 %v6234
    %v6271 = vunpack.c.l.b16 %v6235
    %v6272 = vunpack.c.l.b16 %v6236
    %v6273 = vunpack.c.l.b16 %v6237
    %v6274 = vunpack.c.l.b16 %v6238
    %v6275 = vunpack.c.l.b16 %v6239
    %v6276 = vunpack.c.l.b16 %v6240
    %v6277 = vunpack.c.l.b16 %v6241
    %v6278 = vunpack.c.l.b16 %v6242
    %v6279 = vunpack.c.l.b16 %v6243
    %v6280 = vunpack.c.l.b16 %v6244
    %v6281 = vpack.c.b16 %v6266, %v6265
    %v6282 = vpack.c.b16 %v6268, %v6267
    %v6283 = vpack.c.b16 %v6270, %v6269
    %v6284 = vpack.c.b16 %v6272, %v6271
    %v6285 = vpack.c.b16 %v6274, %v6273
    %v6286 = vpack.c.b16 %v6276, %v6275
    %v6287 = vpack.c.b16 %v6278, %v6277
    %v6288 = vpack.c.b16 %v6280, %v6279
    %6297 = vmatpush.bf16.msra.mxu0 %v6288
    %6298 = vmatpush.bf16.msra.mxu0 %v6287
    %6299 = vmatpush.bf16.msra.mxu0 %v6286
    %6300 = vmatpush.bf16.msra.mxu0 %v6285
    %6301 = vmatpush.bf16.msra.mxu0 %v6284
    %6302 = vmatpush.bf16.msra.mxu0 %v6283
    %6303 = vmatpush.bf16.msra.mxu0 %v6282
    %6304 = vmatpush.bf16.msra.mxu0 %v6281
    %6305 = vmatmul.bf16.gmra.mxu0 %v6228
    %v6306 = vpop.f32.mrf.mxu0
    %v6307 = vadd.f32 %v6247, %v6306
    %v6308 = vpop.f32.mrf.mxu0
    %6309 = vdwg.mxu0
    %6310 = vst [vmem:[#allocation6] sm:$0x3] %v6307
    // Predicated region
    $region42: #{lstm_video_classifier.1} parent=1 // pred_check
      _
    $region43: #{lstm_video_classifier.1} parent=1 // pred_check_branch
      %6312 = sbr.rel (0) target = $region45
    $region44: #{lstm_video_classifier.1} parent=1 // pred_region
      %6314 = vsyncadd [#allocation5], 0
      %s6316 = sshll.u32 [#allocation6], 4
      %s6317 = int_to_ptr.vmem [resolvable:$true] %s6316
      %s6318 = sshll.u32 %s9, 4
      %s6319 = int_to_ptr.hbm [resolvable:$true] %s6318
      %6321 = dma.vmem_to_hbm [thread:$0]  %s6317, 32, %s6319, [#allocation5]
    $region45: #{lstm_video_classifier.1} parent=1 // pred_fallthru
      _
    // Predicated region
    $region46: #{lstm_video_classifier.1} parent=1 // pred_check
      _
    $region47: #{lstm_video_classifier.1} parent=1 // pred_check_branch
      %6323 = sbr.rel (0) target = $region49
    $region48: #{lstm_video_classifier.1} parent=1 // pred_region
      %6325 = dma.done [#allocation5], 32
    $region49: #{lstm_video_classifier.1} parent=1 // pred_fallthru
      _
    %6326 = vsyncpa [#allocation4], 1
    %6327 = vsyncpa [#allocation5], 1

</llo_original>
